<compile_context>
chip_gen: v7x
topology: tpu7x:2x2x1
jax: 0.10.0
libtpu: 0.0.40
codegen_flags: <defaults>
</compile_context>

<pallas_src>
import jax
import jax.numpy as jnp
from jax import lax
from jax.experimental import pallas as pl
from jax.experimental.pallas import tpu as pltpu


# ------------------------------ LSTM cell -----------------------------------

def _lstm_cell(gx_s, h, c, w_hh, H):
    """One LSTM step. gx_s already contains x @ W_ih + (b_ih + b_hh)."""
    gates = gx_s + jnp.dot(h, w_hh, preferred_element_type=jnp.float32)  # (B, 4H)
    # PyTorch gate order: i, f, g, o
    i = jax.nn.sigmoid(gates[:, 0:H])
    f = jax.nn.sigmoid(gates[:, H:2 * H])
    g = jnp.tanh(gates[:, 2 * H:3 * H])
    o = jax.nn.sigmoid(gates[:, 3 * H:4 * H])
    c_new = f * c + i * g
    h_new = o * jnp.tanh(c_new)
    return h_new, c_new


# ---------------- fused bidirectional encoder + bridge kernel ----------------

def _bilstm_encoder_kernel(x_ref, wih_f_ref, whh_f_ref, b_f_ref,
                           wih_b_ref, whh_b_ref, b_b_ref,
                           whb_ref, bhb_ref, wcb_ref, bcb_ref,
                           mb_ref, h0_out_ref, c0_out_ref):
    B, S, E = x_ref.shape
    H = whh_f_ref.shape[0]

    x2d = x_ref[...].astype(jnp.float32).reshape(B * S, E)

    # Hoisted input projections: ONE (B*S, E) x (E, 4H) matmul per direction.
    gx_f = (jnp.dot(x2d, wih_f_ref[...], preferred_element_type=jnp.float32)
            + b_f_ref[...]).reshape(B, S, 4 * H)
    gx_b = (jnp.dot(x2d, wih_b_ref[...], preferred_element_type=jnp.float32)
            + b_b_ref[...]).reshape(B, S, 4 * H)

    whh_f = whh_f_ref[...]
    whh_b = whh_b_ref[...]

    h_f = jnp.zeros((B, H), jnp.float32)
    c_f = jnp.zeros((B, H), jnp.float32)
    h_b = jnp.zeros((B, H), jnp.float32)
    c_b = jnp.zeros((B, H), jnp.float32)

    # Static unrolled recurrence; only h @ W_hh remains inside the loop.
    # Backward direction is driven by reversed (static) index arithmetic.
    for s in range(S):
        sb = S - 1 - s
        h_f, c_f = _lstm_cell(gx_f[:, s, :], h_f, c_f, whh_f, H)
        h_b, c_b = _lstm_cell(gx_b[:, sb, :], h_b, c_b, whh_b, H)
        # Write directly into the batch-first, direction-concatenated bank.
        mb_ref[:, s:s + 1, 0:H] = h_f[:, None, :].astype(mb_ref.dtype)
        mb_ref[:, sb:sb + 1, H:2 * H] = h_b[:, None, :].astype(mb_ref.dtype)

    # Bridges (fused into this kernel; split weight rows instead of
    # concatenating [h_f, h_b] / [c_f, c_b] on the lane axis).
    whb = whb_ref[...]
    wcb = wcb_ref[...]
    dec_h0 = (jnp.dot(h_f, whb[0:H, :], preferred_element_type=jnp.float32)
              + jnp.dot(h_b, whb[H:2 * H, :], preferred_element_type=jnp.float32)
              + bhb_ref[...])
    dec_c0 = (jnp.dot(c_f, wcb[0:H, :], preferred_element_type=jnp.float32)
              + jnp.dot(c_b, wcb[H:2 * H, :], preferred_element_type=jnp.float32)
              + bcb_ref[...])
    h0_out_ref[...] = dec_h0.astype(h0_out_ref.dtype)
    c0_out_ref[...] = dec_c0.astype(c0_out_ref.dtype)


def bilstm_encoder_pallas(x, enc_fwd, enc_bwd, hidden_bridge, cell_bridge):
    """x: (B, S, E) batch-first embeddings.
    Returns memory_bank (B, S, 2H), dec_init_h (B, D), dec_init_c (B, D)."""
    B, S, _ = x.shape
    H = enc_fwd['w_hh'].shape[0]
    D = hidden_bridge['w'].shape[-1]
    return pl.pallas_call(
        _bilstm_encoder_kernel,
        out_shape=(jax.ShapeDtypeStruct((B, S, 2 * H), jnp.float32),
                   jax.ShapeDtypeStruct((B, D), jnp.float32),
                   jax.ShapeDtypeStruct((B, D), jnp.float32)),
    )(x, enc_fwd['w_ih'], enc_fwd['w_hh'], enc_fwd['b'],
      enc_bwd['w_ih'], enc_bwd['w_hh'], enc_bwd['b'],
      hidden_bridge['w'], hidden_bridge['b'],
      cell_bridge['w'], cell_bridge['b'])


# ------------- fused decoder LSTM + attention + normalizer kernel ------------

def _decoder_attn_kernel(x_ref, wih_ref, whh_ref, b_ref,
                         h0_ref, c0_ref, mem_ref,
                         wout_ref, wnorm_ref, bnorm_ref,
                         logits_ref, align_ref, dech_sc):
    B, Sd, E = x_ref.shape
    D = whh_ref.shape[1]
    Se = mem_ref.shape[1]
    V = wnorm_ref.shape[1]

    # Hoisted input projection for the whole sequence (one matmul).
    x2d = x_ref[...].astype(jnp.float32).reshape(B * Sd, E)
    gx = (jnp.dot(x2d, wih_ref[0], preferred_element_type=jnp.float32)
          + b_ref[0]).reshape(B, Sd, 4 * D)

    whh = whh_ref[0]
    h = h0_ref[...].astype(jnp.float32)
    c = c0_ref[...].astype(jnp.float32)
    for s in range(Sd):
        h, c = _lstm_cell(gx[:, s, :], h, c, whh, D)
        dech_sc[:, s:s + 1, :] = h[:, None, :]

    dec_h = dech_sc[...]                                # (B, Sd, D)
    mem = mem_ref[...].astype(jnp.float32)              # (B, Se, D)

    # Luong dot-product attention over encoder positions (tiny batched dots).
    scores = lax.dot_general(dec_h, mem, (((2,), (2,)), ((0,), (0,))),
                             preferred_element_type=jnp.float32)     # (B, Sd, Se)
    m = jnp.max(scores, axis=-1, keepdims=True)
    e = jnp.exp(scores - m)
    align = e / jnp.sum(e, axis=-1, keepdims=True)
    context = lax.dot_general(align, mem, (((2,), (1,)), ((0,), (0,))),
                              preferred_element_type=jnp.float32)    # (B, Sd, D)

    # attn_h = tanh([context; dec] @ W_out) with W_out rows split (no concat).
    wout = wout_ref[...]
    ctx2d = context.reshape(B * Sd, D)
    dec2d = dec_h.reshape(B * Sd, D)
    attn_h = jnp.tanh(
        jnp.dot(ctx2d, wout[0:D, :], preferred_element_type=jnp.float32)
        + jnp.dot(dec2d, wout[D:2 * D, :], preferred_element_type=jnp.float32))

    # Normalizer: one flat (B*Sd, D) x (D, V) matmul, lane-dense V=128 store.
    logits = (jnp.dot(attn_h, wnorm_ref[...], preferred_element_type=jnp.float32)
              + bnorm_ref[...])                          # (B*Sd, V)
    logits_ref[0] = logits.reshape(B, Sd, V).astype(logits_ref.dtype)
    align_ref[0] = align.astype(align_ref.dtype)


def decoders_pallas(dec_emb, w_ih_all, w_hh_all, b_all, h0, c0,
                    memory_bank, w_out, w_norm, b_norm):
    """Runs all decoders in one launch; grid axis over decoders is 'parallel'.

    dec_emb: (B, Sd, E); w_*_all stacked over decoders; memory_bank (B, Se, D).
    Returns logits (ND, B, Sd, V) and align (ND, B, Sd, Se)."""
    ND = w_ih_all.shape[0]
    D = w_hh_all.shape[1]
    B, Sd, E = dec_emb.shape
    Se = memory_bank.shape[1]
    V = w_norm.shape[-1]

    grid_spec = pltpu.PrefetchScalarGridSpec(
        num_scalar_prefetch=0,
        grid=(ND,),
        in_specs=[
            pl.BlockSpec((B, Sd, E), lambda d: (0, 0, 0)),
            pl.BlockSpec((1, E, 4 * D), lambda d: (d, 0, 0)),
            pl.BlockSpec((1, D, 4 * D), lambda d: (d, 0, 0)),
            pl.BlockSpec((1, 1, 4 * D), lambda d: (d, 0, 0)),
            pl.BlockSpec((B, D), lambda d: (0, 0)),
            pl.BlockSpec((B, D), lambda d: (0, 0)),
            pl.BlockSpec((B, Se, D), lambda d: (0, 0, 0)),
            pl.BlockSpec((2 * D, D), lambda d: (0, 0)),
            pl.BlockSpec((D, V), lambda d: (0, 0)),
            pl.BlockSpec((1, V), lambda d: (0, 0)),
        ],
        out_specs=[
            pl.BlockSpec((1, B, Sd, V), lambda d: (d, 0, 0, 0)),
            pl.BlockSpec((1, B, Sd, Se), lambda d: (d, 0, 0, 0)),
        ],
        scratch_shapes=[pltpu.VMEM((B, Sd, D), jnp.float32)],
    )
    return pl.pallas_call(
        _decoder_attn_kernel,
        grid_spec=grid_spec,
        out_shape=(jax.ShapeDtypeStruct((ND, B, Sd, V), jnp.float32),
                   jax.ShapeDtypeStruct((ND, B, Sd, Se), jnp.float32)),
        compiler_params=pltpu.CompilerParams(
            dimension_semantics=("parallel",)),
    )(dec_emb, w_ih_all, w_hh_all, b_all, h0, c0,
      memory_bank, w_out, w_norm, b_norm)


# ------------------------------- parameters ----------------------------------

def init_params(key, vocab_size, emb_size, enc_h, dec_h, nb_decoders):
    keys = iter(jax.random.split(key, 32))

    def u(shape, lo=-0.1, hi=0.1):
        return jax.random.uniform(next(keys), shape, jnp.float32, lo, hi)

    return dict(
        embedding=u((vocab_size, emb_size), -0.5, 0.5),
        enc_fwd=dict(w_ih=u((emb_size, 4 * enc_h)),
                     w_hh=u((enc_h, 4 * enc_h)),
                     b=u((1, 4 * enc_h))),               # b_ih + b_hh pre-summed
        enc_bwd=dict(w_ih=u((emb_size, 4 * enc_h)),
                     w_hh=u((enc_h, 4 * enc_h)),
                     b=u((1, 4 * enc_h))),
        hidden_bridge=dict(w=u((2 * enc_h, dec_h)), b=u((1, dec_h))),
        cell_bridge=dict(w=u((2 * enc_h, dec_h)), b=u((1, dec_h))),
        # decoder LSTM weights stacked over the nb_decoders axis
        dec_w_ih=u((nb_decoders, emb_size, 4 * dec_h)),
        dec_w_hh=u((nb_decoders, dec_h, 4 * dec_h)),
        dec_b=u((nb_decoders, 1, 4 * dec_h)),
        attn_w_out=u((2 * dec_h, dec_h)),
        normalizer=dict(w=u((dec_h, vocab_size)), b=u((1, vocab_size))),
    )


# -------------------------------- forward ------------------------------------

def rnn_autoencoder_forward(params, encoder_input, decoder_input):
    """Training-branch forward of RNNAutoEncoder.

    encoder_input, decoder_input: int32 (B, S) token ids.
    Returns (all_dec_out, all_dec_align, decoder_initial_state)."""
    enc_h = params['enc_fwd']['w_hh'].shape[0]
    dec_h = params['dec_w_hh'].shape[1]
    assert dec_h == 2 * enc_h, (
        "dot-product attention requires decoder_hidden == 2 * encoder_hidden")

    emb = params['embedding']
    # TODO(synk): embedding dropout (p=0.3) omitted (stochastic).
    enc_emb = jnp.take(emb, encoder_input, axis=0)        # (B, Se, E)
    dec_emb = jnp.take(emb, decoder_input, axis=0)        # (B, Sd, E)

    # Fused bi-LSTM encoder + bridges: one launch.
    memory_bank, dec_init_h, dec_init_c = bilstm_encoder_pallas(
        enc_emb, params['enc_fwd'], params['enc_bwd'],
        params['hidden_bridge'], params['cell_bridge'])

    # All decoders (teacher forcing) + attention + normalizer: one launch.
    logits_all, align_all = decoders_pallas(
        dec_emb, params['dec_w_ih'], params['dec_w_hh'], params['dec_b'],
        dec_init_h, dec_init_c, memory_bank,
        params['attn_w_out'], params['normalizer']['w'], params['normalizer']['b'])

    nb_dec = params['dec_w_ih'].shape[0]
    all_dec_out = [logits_all[i] for i in range(nb_dec)]
    all_dec_align = [align_all[i] for i in range(nb_dec)]
    decoder_initial_state = (dec_init_h[None], dec_init_c[None])  # (1, B, D)
    return all_dec_out, all_dec_align, decoder_initial_state


# --------------------------------- main ---------------------------------------

if __name__ == "__main__":
    VOCAB = 128
    EMB = 32
    ENC_H = 32
    DEC_H = 2 * ENC_H          # dot attention requires dec_h == 2*enc_h
    NB_DEC = 2
    B, S = 2, 8

    key = jax.random.PRNGKey(0)
    kp, ke, kd = jax.random.split(key, 3)
    params = init_params(kp, VOCAB, EMB, ENC_H, DEC_H, NB_DEC)
    encoder_input = jax.random.randint(ke, (B, S), 0, VOCAB, dtype=jnp.int32)
    decoder_input = jax.random.randint(kd, (B, S), 0, VOCAB, dtype=jnp.int32)

    fwd = jax.jit(rnn_autoencoder_forward)
    all_dec_out, all_dec_align, dec_init_state = fwd(
        params, encoder_input, decoder_input)

    jax.block_until_ready((all_dec_out, all_dec_align, dec_init_state))

    assert len(all_dec_out) == NB_DEC
    assert all_dec_out[0].shape == (B, S, VOCAB)
    assert all_dec_align[0].shape == (B, S, S)
    assert dec_init_state[0].shape == (1, B, DEC_H)
    assert bool(jnp.all(jnp.isfinite(all_dec_out[0])))
    print("KERNEL_OK")
</pallas_src>

<mosaic_0001>
module attributes {stable_mosaic.version = 11 : i64} {
  func.func @_decoder_attn_kernel(%arg0: i32, %arg1: memref<2x8x32xf32, #tpu.memory_space<vmem>>, %arg2: memref<1x32x256xf32, #tpu.memory_space<vmem>>, %arg3: memref<1x64x256xf32, #tpu.memory_space<vmem>>, %arg4: memref<1x1x256xf32, #tpu.memory_space<vmem>>, %arg5: memref<2x64xf32, #tpu.memory_space<vmem>>, %arg6: memref<2x64xf32, #tpu.memory_space<vmem>>, %arg7: memref<2x8x64xf32, #tpu.memory_space<vmem>>, %arg8: memref<128x64xf32, #tpu.memory_space<vmem>>, %arg9: memref<64x128xf32, #tpu.memory_space<vmem>>, %arg10: memref<1x128xf32, #tpu.memory_space<vmem>>, %arg11: memref<1x2x8x128xf32, #tpu.memory_space<vmem>>, %arg12: memref<1x2x8x8xf32, #tpu.memory_space<vmem>>, %arg13: memref<2x8x64xf32, #tpu.memory_space<vmem>>) attributes {dimension_semantics = [#tpu.dimension_semantics<parallel>], iteration_bounds = array<i64: 2>, scalar_prefetch = 0 : i64, scratch_operands = 1 : i64, tpu.core_type = #tpu.core_type<tc>, window_params = [{pipeline_mode = #tpu.pipeline_mode<synchronous>, transform_indices = @transform_0, window_bounds = array<i64: 2, 8, 32>}, {transform_indices = @transform_1, window_bounds = array<i64: 1, 32, 256>}, {transform_indices = @transform_2, window_bounds = array<i64: 1, 64, 256>}, {transform_indices = @transform_3, window_bounds = array<i64: 1, 1, 256>}, {pipeline_mode = #tpu.pipeline_mode<synchronous>, transform_indices = @transform_4, window_bounds = array<i64: 2, 64>}, {pipeline_mode = #tpu.pipeline_mode<synchronous>, transform_indices = @transform_5, window_bounds = array<i64: 2, 64>}, {pipeline_mode = #tpu.pipeline_mode<synchronous>, transform_indices = @transform_6, window_bounds = array<i64: 2, 8, 64>}, {pipeline_mode = #tpu.pipeline_mode<synchronous>, transform_indices = @transform_7, window_bounds = array<i64: 128, 64>}, {pipeline_mode = #tpu.pipeline_mode<synchronous>, transform_indices = @transform_8, window_bounds = array<i64: 64, 128>}, {pipeline_mode = #tpu.pipeline_mode<synchronous>, transform_indices = @transform_9, window_bounds = array<i64: 1, 128>}, {transform_indices = @transform_10, window_bounds = array<i64: 1, 2, 8, 128>}, {transform_indices = @transform_11, window_bounds = array<i64: 1, 2, 8, 8>}]} {
    %c0 = arith.constant 0 : index
    %c0_0 = arith.constant 0 : index
    %c0_1 = arith.constant 0 : index
    %0 = vector.load %arg1[%c0, %c0_0, %c0_1] : memref<2x8x32xf32, #tpu.memory_space<vmem>>, vector<2x8x32xf32>
    %1 = vector.shape_cast %0 : vector<2x8x32xf32> to vector<16x32xf32>
    %c0_2 = arith.constant 0 : index
    %c0_3 = arith.constant 0 : index
    %c0_4 = arith.constant 0 : index
    %2 = vector.load %arg2[%c0_2, %c0_3, %c0_4] : memref<1x32x256xf32, #tpu.memory_space<vmem>>, vector<1x32x256xf32>
    %3 = vector.shape_cast %2 : vector<1x32x256xf32> to vector<32x256xf32>
    %cst = arith.constant dense<0.000000e+00> : vector<16x256xf32>
    %4 = tpu.matmul %1, %3, %cst {dimension_numbers = #tpu.dot_dimension_numbers<[1], [0], [0], [1], [0, 0, 1, 1], [], []>} : vector<16x32xf32>, vector<32x256xf32>, vector<16x256xf32> -> vector<16x256xf32>
    %c0_5 = arith.constant 0 : index
    %c0_6 = arith.constant 0 : index
    %c0_7 = arith.constant 0 : index
    %5 = vector.load %arg4[%c0_5, %c0_6, %c0_7] : memref<1x1x256xf32, #tpu.memory_space<vmem>>, vector<1x1x256xf32>
    %6 = vector.shape_cast %5 : vector<1x1x256xf32> to vector<1x256xf32>
    %7 = vector.broadcast %6 : vector<1x256xf32> to vector<16x256xf32>
    %8 = arith.addf %4, %7 : vector<16x256xf32>
    %9 = vector.shape_cast %8 : vector<16x256xf32> to vector<2x8x256xf32>
    %c0_8 = arith.constant 0 : index
    %c0_9 = arith.constant 0 : index
    %c0_10 = arith.constant 0 : index
    %10 = vector.load %arg3[%c0_8, %c0_9, %c0_10] : memref<1x64x256xf32, #tpu.memory_space<vmem>>, vector<1x64x256xf32>
    %11 = vector.shape_cast %10 : vector<1x64x256xf32> to vector<64x256xf32>
    %c0_11 = arith.constant 0 : index
    %c0_12 = arith.constant 0 : index
    %12 = vector.load %arg5[%c0_11, %c0_12] : memref<2x64xf32, #tpu.memory_space<vmem>>, vector<2x64xf32>
    %c0_13 = arith.constant 0 : index
    %c0_14 = arith.constant 0 : index
    %13 = vector.load %arg6[%c0_13, %c0_14] : memref<2x64xf32, #tpu.memory_space<vmem>>, vector<2x64xf32>
    %14 = vector.extract_strided_slice %9 {offsets = [0, 0, 0], sizes = [2, 1, 256], strides = [1, 1, 1]} : vector<2x8x256xf32> to vector<2x1x256xf32>
    %15 = vector.shape_cast %14 : vector<2x1x256xf32> to vector<2x256xf32>
    %cst_15 = arith.constant dense<0.000000e+00> : vector<2x256xf32>
    %16 = tpu.matmul %12, %11, %cst_15 {dimension_numbers = #tpu.dot_dimension_numbers<[1], [0], [0], [1], [0, 0, 1, 1], [], []>} : vector<2x64xf32>, vector<64x256xf32>, vector<2x256xf32> -> vector<2x256xf32>
    %17 = arith.addf %15, %16 : vector<2x256xf32>
    %18 = vector.extract_strided_slice %17 {offsets = [0, 0], sizes = [2, 64], strides = [1, 1]} : vector<2x256xf32> to vector<2x64xf32>
    %19 = arith.negf %18 : vector<2x64xf32>
    %20 = math.exp %19 : vector<2x64xf32>
    %cst_16 = arith.constant 1.000000e+00 : f32
    %21 = vector.broadcast %cst_16 : f32 to vector<2x64xf32>
    %22 = arith.addf %21, %20 : vector<2x64xf32>
    %23 = arith.divf %21, %22 : vector<2x64xf32>
    %24 = vector.extract_strided_slice %17 {offsets = [0, 64], sizes = [2, 64], strides = [1, 1]} : vector<2x256xf32> to vector<2x64xf32>
    %25 = arith.negf %24 : vector<2x64xf32>
    %26 = math.exp %25 : vector<2x64xf32>
    %cst_17 = arith.constant 1.000000e+00 : f32
    %27 = vector.broadcast %cst_17 : f32 to vector<2x64xf32>
    %28 = arith.addf %27, %26 : vector<2x64xf32>
    %29 = arith.divf %27, %28 : vector<2x64xf32>
    %30 = vector.extract_strided_slice %17 {offsets = [0, 128], sizes = [2, 64], strides = [1, 1]} : vector<2x256xf32> to vector<2x64xf32>
    %31 = math.tanh %30 : vector<2x64xf32>
    %32 = vector.extract_strided_slice %17 {offsets = [0, 192], sizes = [2, 64], strides = [1, 1]} : vector<2x256xf32> to vector<2x64xf32>
    %33 = arith.negf %32 : vector<2x64xf32>
    %34 = math.exp %33 : vector<2x64xf32>
    %cst_18 = arith.constant 1.000000e+00 : f32
    %35 = vector.broadcast %cst_18 : f32 to vector<2x64xf32>
    %36 = arith.addf %35, %34 : vector<2x64xf32>
    %37 = arith.divf %35, %36 : vector<2x64xf32>
    %38 = arith.mulf %29, %13 : vector<2x64xf32>
    %39 = arith.mulf %23, %31 : vector<2x64xf32>
    %40 = arith.addf %38, %39 : vector<2x64xf32>
    %41 = math.tanh %40 : vector<2x64xf32>
    %42 = arith.mulf %37, %41 : vector<2x64xf32>
    %43 = vector.shape_cast %42 : vector<2x64xf32> to vector<2x1x64xf32>
    %c0_19 = arith.constant 0 : index
    %c0_20 = arith.constant 0 : index
    %c0_21 = arith.constant 0 : index
    %44 = vector.load %arg13[%c0_19, %c0_20, %c0_21] : memref<2x8x64xf32, #tpu.memory_space<vmem>>, vector<2x1x64xf32>
    tpu.vector_store %arg13[%c0_19, %c0_20, %c0_21], %43 {strides = array<i32>} : memref<2x8x64xf32, #tpu.memory_space<vmem>>, vector<2x1x64xf32>,
    %45 = vector.extract_strided_slice %9 {offsets = [0, 1, 0], sizes = [2, 1, 256], strides = [1, 1, 1]} : vector<2x8x256xf32> to vector<2x1x256xf32>
    %46 = vector.shape_cast %45 : vector<2x1x256xf32> to vector<2x256xf32>
    %cst_22 = arith.constant dense<0.000000e+00> : vector<2x256xf32>
    %47 = tpu.matmul %42, %11, %cst_22 {dimension_numbers = #tpu.dot_dimension_numbers<[1], [0], [0], [1], [0, 0, 1, 1], [], []>} : vector<2x64xf32>, vector<64x256xf32>, vector<2x256xf32> -> vector<2x256xf32>
    %48 = arith.addf %46, %47 : vector<2x256xf32>
    %49 = vector.extract_strided_slice %48 {offsets = [0, 0], sizes = [2, 64], strides = [1, 1]} : vector<2x256xf32> to vector<2x64xf32>
    %50 = arith.negf %49 : vector<2x64xf32>
    %51 = math.exp %50 : vector<2x64xf32>
    %cst_23 = arith.constant 1.000000e+00 : f32
    %52 = vector.broadcast %cst_23 : f32 to vector<2x64xf32>
    %53 = arith.addf %52, %51 : vector<2x64xf32>
    %54 = arith.divf %52, %53 : vector<2x64xf32>
    %55 = vector.extract_strided_slice %48 {offsets = [0, 64], sizes = [2, 64], strides = [1, 1]} : vector<2x256xf32> to vector<2x64xf32>
    %56 = arith.negf %55 : vector<2x64xf32>
    %57 = math.exp %56 : vector<2x64xf32>
    %cst_24 = arith.constant 1.000000e+00 : f32
    %58 = vector.broadcast %cst_24 : f32 to vector<2x64xf32>
    %59 = arith.addf %58, %57 : vector<2x64xf32>
    %60 = arith.divf %58, %59 : vector<2x64xf32>
    %61 = vector.extract_strided_slice %48 {offsets = [0, 128], sizes = [2, 64], strides = [1, 1]} : vector<2x256xf32> to vector<2x64xf32>
    %62 = math.tanh %61 : vector<2x64xf32>
    %63 = vector.extract_strided_slice %48 {offsets = [0, 192], sizes = [2, 64], strides = [1, 1]} : vector<2x256xf32> to vector<2x64xf32>
    %64 = arith.negf %63 : vector<2x64xf32>
    %65 = math.exp %64 : vector<2x64xf32>
    %cst_25 = arith.constant 1.000000e+00 : f32
    %66 = vector.broadcast %cst_25 : f32 to vector<2x64xf32>
    %67 = arith.addf %66, %65 : vector<2x64xf32>
    %68 = arith.divf %66, %67 : vector<2x64xf32>
    %69 = arith.mulf %60, %40 : vector<2x64xf32>
    %70 = arith.mulf %54, %62 : vector<2x64xf32>
    %71 = arith.addf %69, %70 : vector<2x64xf32>
    %72 = math.tanh %71 : vector<2x64xf32>
    %73 = arith.mulf %68, %72 : vector<2x64xf32>
    %74 = vector.shape_cast %73 : vector<2x64xf32> to vector<2x1x64xf32>
    %c0_26 = arith.constant 0 : index
    %c1 = arith.constant 1 : index
    %c0_27 = arith.constant 0 : index
    %75 = vector.load %arg13[%c0_26, %c1, %c0_27] : memref<2x8x64xf32, #tpu.memory_space<vmem>>, vector<2x1x64xf32>
    tpu.vector_store %arg13[%c0_26, %c1, %c0_27], %74 {strides = array<i32>} : memref<2x8x64xf32, #tpu.memory_space<vmem>>, vector<2x1x64xf32>,
    %76 = vector.extract_strided_slice %9 {offsets = [0, 2, 0], sizes = [2, 1, 256], strides = [1, 1, 1]} : vector<2x8x256xf32> to vector<2x1x256xf32>
    %77 = vector.shape_cast %76 : vector<2x1x256xf32> to vector<2x256xf32>
    %cst_28 = arith.constant dense<0.000000e+00> : vector<2x256xf32>
    %78 = tpu.matmul %73, %11, %cst_28 {dimension_numbers = #tpu.dot_dimension_numbers<[1], [0], [0], [1], [0, 0, 1, 1], [], []>} : vector<2x64xf32>, vector<64x256xf32>, vector<2x256xf32> -> vector<2x256xf32>
    %79 = arith.addf %77, %78 : vector<2x256xf32>
    %80 = vector.extract_strided_slice %79 {offsets = [0, 0], sizes = [2, 64], strides = [1, 1]} : vector<2x256xf32> to vector<2x64xf32>
    %81 = arith.negf %80 : vector<2x64xf32>
    %82 = math.exp %81 : vector<2x64xf32>
    %cst_29 = arith.constant 1.000000e+00 : f32
    %83 = vector.broadcast %cst_29 : f32 to vector<2x64xf32>
    %84 = arith.addf %83, %82 : vector<2x64xf32>
    %85 = arith.divf %83, %84 : vector<2x64xf32>
    %86 = vector.extract_strided_slice %79 {offsets = [0, 64], sizes = [2, 64], strides = [1, 1]} : vector<2x256xf32> to vector<2x64xf32>
    %87 = arith.negf %86 : vector<2x64xf32>
    %88 = math.exp %87 : vector<2x64xf32>
    %cst_30 = arith.constant 1.000000e+00 : f32
    %89 = vector.broadcast %cst_30 : f32 to vector<2x64xf32>
    %90 = arith.addf %89, %88 : vector<2x64xf32>
    %91 = arith.divf %89, %90 : vector<2x64xf32>
    %92 = vector.extract_strided_slice %79 {offsets = [0, 128], sizes = [2, 64], strides = [1, 1]} : vector<2x256xf32> to vector<2x64xf32>
    %93 = math.tanh %92 : vector<2x64xf32>
    %94 = vector.extract_strided_slice %79 {offsets = [0, 192], sizes = [2, 64], strides = [1, 1]} : vector<2x256xf32> to vector<2x64xf32>
    %95 = arith.negf %94 : vector<2x64xf32>
    %96 = math.exp %95 : vector<2x64xf32>
    %cst_31 = arith.constant 1.000000e+00 : f32
    %97 = vector.broadcast %cst_31 : f32 to vector<2x64xf32>
    %98 = arith.addf %97, %96 : vector<2x64xf32>
    %99 = arith.divf %97, %98 : vector<2x64xf32>
    %100 = arith.mulf %91, %71 : vector<2x64xf32>
    %101 = arith.mulf %85, %93 : vector<2x64xf32>
    %102 = arith.addf %100, %101 : vector<2x64xf32>
    %103 = math.tanh %102 : vector<2x64xf32>
    %104 = arith.mulf %99, %103 : vector<2x64xf32>
    %105 = vector.shape_cast %104 : vector<2x64xf32> to vector<2x1x64xf32>
    %c0_32 = arith.constant 0 : index
    %c2 = arith.constant 2 : index
    %c0_33 = arith.constant 0 : index
    %106 = vector.load %arg13[%c0_32, %c2, %c0_33] : memref<2x8x64xf32, #tpu.memory_space<vmem>>, vector<2x1x64xf32>
    tpu.vector_store %arg13[%c0_32, %c2, %c0_33], %105 {strides = array<i32>} : memref<2x8x64xf32, #tpu.memory_space<vmem>>, vector<2x1x64xf32>,
    %107 = vector.extract_strided_slice %9 {offsets = [0, 3, 0], sizes = [2, 1, 256], strides = [1, 1, 1]} : vector<2x8x256xf32> to vector<2x1x256xf32>
    %108 = vector.shape_cast %107 : vector<2x1x256xf32> to vector<2x256xf32>
    %cst_34 = arith.constant dense<0.000000e+00> : vector<2x256xf32>
    %109 = tpu.matmul %104, %11, %cst_34 {dimension_numbers = #tpu.dot_dimension_numbers<[1], [0], [0], [1], [0, 0, 1, 1], [], []>} : vector<2x64xf32>, vector<64x256xf32>, vector<2x256xf32> -> vector<2x256xf32>
    %110 = arith.addf %108, %109 : vector<2x256xf32>
    %111 = vector.extract_strided_slice %110 {offsets = [0, 0], sizes = [2, 64], strides = [1, 1]} : vector<2x256xf32> to vector<2x64xf32>
    %112 = arith.negf %111 : vector<2x64xf32>
    %113 = math.exp %112 : vector<2x64xf32>
    %cst_35 = arith.constant 1.000000e+00 : f32
    %114 = vector.broadcast %cst_35 : f32 to vector<2x64xf32>
    %115 = arith.addf %114, %113 : vector<2x64xf32>
    %116 = arith.divf %114, %115 : vector<2x64xf32>
    %117 = vector.extract_strided_slice %110 {offsets = [0, 64], sizes = [2, 64], strides = [1, 1]} : vector<2x256xf32> to vector<2x64xf32>
    %118 = arith.negf %117 : vector<2x64xf32>
    %119 = math.exp %118 : vector<2x64xf32>
    %cst_36 = arith.constant 1.000000e+00 : f32
    %120 = vector.broadcast %cst_36 : f32 to vector<2x64xf32>
    %121 = arith.addf %120, %119 : vector<2x64xf32>
    %122 = arith.divf %120, %121 : vector<2x64xf32>
    %123 = vector.extract_strided_slice %110 {offsets = [0, 128], sizes = [2, 64], strides = [1, 1]} : vector<2x256xf32> to vector<2x64xf32>
    %124 = math.tanh %123 : vector<2x64xf32>
    %125 = vector.extract_strided_slice %110 {offsets = [0, 192], sizes = [2, 64], strides = [1, 1]} : vector<2x256xf32> to vector<2x64xf32>
    %126 = arith.negf %125 : vector<2x64xf32>
    %127 = math.exp %126 : vector<2x64xf32>
    %cst_37 = arith.constant 1.000000e+00 : f32
    %128 = vector.broadcast %cst_37 : f32 to vector<2x64xf32>
    %129 = arith.addf %128, %127 : vector<2x64xf32>
    %130 = arith.divf %128, %129 : vector<2x64xf32>
    %131 = arith.mulf %122, %102 : vector<2x64xf32>
    %132 = arith.mulf %116, %124 : vector<2x64xf32>
    %133 = arith.addf %131, %132 : vector<2x64xf32>
    %134 = math.tanh %133 : vector<2x64xf32>
    %135 = arith.mulf %130, %134 : vector<2x64xf32>
    %136 = vector.shape_cast %135 : vector<2x64xf32> to vector<2x1x64xf32>
    %c0_38 = arith.constant 0 : index
    %c3 = arith.constant 3 : index
    %c0_39 = arith.constant 0 : index
    %137 = vector.load %arg13[%c0_38, %c3, %c0_39] : memref<2x8x64xf32, #tpu.memory_space<vmem>>, vector<2x1x64xf32>
    tpu.vector_store %arg13[%c0_38, %c3, %c0_39], %136 {strides = array<i32>} : memref<2x8x64xf32, #tpu.memory_space<vmem>>, vector<2x1x64xf32>,
    %138 = vector.extract_strided_slice %9 {offsets = [0, 4, 0], sizes = [2, 1, 256], strides = [1, 1, 1]} : vector<2x8x256xf32> to vector<2x1x256xf32>
    %139 = vector.shape_cast %138 : vector<2x1x256xf32> to vector<2x256xf32>
    %cst_40 = arith.constant dense<0.000000e+00> : vector<2x256xf32>
    %140 = tpu.matmul %135, %11, %cst_40 {dimension_numbers = #tpu.dot_dimension_numbers<[1], [0], [0], [1], [0, 0, 1, 1], [], []>} : vector<2x64xf32>, vector<64x256xf32>, vector<2x256xf32> -> vector<2x256xf32>
    %141 = arith.addf %139, %140 : vector<2x256xf32>
    %142 = vector.extract_strided_slice %141 {offsets = [0, 0], sizes = [2, 64], strides = [1, 1]} : vector<2x256xf32> to vector<2x64xf32>
    %143 = arith.negf %142 : vector<2x64xf32>
    %144 = math.exp %143 : vector<2x64xf32>
    %cst_41 = arith.constant 1.000000e+00 : f32
    %145 = vector.broadcast %cst_41 : f32 to vector<2x64xf32>
    %146 = arith.addf %145, %144 : vector<2x64xf32>
    %147 = arith.divf %145, %146 : vector<2x64xf32>
    %148 = vector.extract_strided_slice %141 {offsets = [0, 64], sizes = [2, 64], strides = [1, 1]} : vector<2x256xf32> to vector<2x64xf32>
    %149 = arith.negf %148 : vector<2x64xf32>
    %150 = math.exp %149 : vector<2x64xf32>
    %cst_42 = arith.constant 1.000000e+00 : f32
    %151 = vector.broadcast %cst_42 : f32 to vector<2x64xf32>
    %152 = arith.addf %151, %150 : vector<2x64xf32>
    %153 = arith.divf %151, %152 : vector<2x64xf32>
    %154 = vector.extract_strided_slice %141 {offsets = [0, 128], sizes = [2, 64], strides = [1, 1]} : vector<2x256xf32> to vector<2x64xf32>
    %155 = math.tanh %154 : vector<2x64xf32>
    %156 = vector.extract_strided_slice %141 {offsets = [0, 192], sizes = [2, 64], strides = [1, 1]} : vector<2x256xf32> to vector<2x64xf32>
    %157 = arith.negf %156 : vector<2x64xf32>
    %158 = math.exp %157 : vector<2x64xf32>
    %cst_43 = arith.constant 1.000000e+00 : f32
    %159 = vector.broadcast %cst_43 : f32 to vector<2x64xf32>
    %160 = arith.addf %159, %158 : vector<2x64xf32>
    %161 = arith.divf %159, %160 : vector<2x64xf32>
    %162 = arith.mulf %153, %133 : vector<2x64xf32>
    %163 = arith.mulf %147, %155 : vector<2x64xf32>
    %164 = arith.addf %162, %163 : vector<2x64xf32>
    %165 = math.tanh %164 : vector<2x64xf32>
    %166 = arith.mulf %161, %165 : vector<2x64xf32>
    %167 = vector.shape_cast %166 : vector<2x64xf32> to vector<2x1x64xf32>
    %c0_44 = arith.constant 0 : index
    %c4 = arith.constant 4 : index
    %c0_45 = arith.constant 0 : index
    %168 = vector.load %arg13[%c0_44, %c4, %c0_45] : memref<2x8x64xf32, #tpu.memory_space<vmem>>, vector<2x1x64xf32>
    tpu.vector_store %arg13[%c0_44, %c4, %c0_45], %167 {strides = array<i32>} : memref<2x8x64xf32, #tpu.memory_space<vmem>>, vector<2x1x64xf32>,
    %169 = vector.extract_strided_slice %9 {offsets = [0, 5, 0], sizes = [2, 1, 256], strides = [1, 1, 1]} : vector<2x8x256xf32> to vector<2x1x256xf32>
    %170 = vector.shape_cast %169 : vector<2x1x256xf32> to vector<2x256xf32>
    %cst_46 = arith.constant dense<0.000000e+00> : vector<2x256xf32>
    %171 = tpu.matmul %166, %11, %cst_46 {dimension_numbers = #tpu.dot_dimension_numbers<[1], [0], [0], [1], [0, 0, 1, 1], [], []>} : vector<2x64xf32>, vector<64x256xf32>, vector<2x256xf32> -> vector<2x256xf32>
    %172 = arith.addf %170, %171 : vector<2x256xf32>
    %173 = vector.extract_strided_slice %172 {offsets = [0, 0], sizes = [2, 64], strides = [1, 1]} : vector<2x256xf32> to vector<2x64xf32>
    %174 = arith.negf %173 : vector<2x64xf32>
    %175 = math.exp %174 : vector<2x64xf32>
    %cst_47 = arith.constant 1.000000e+00 : f32
    %176 = vector.broadcast %cst_47 : f32 to vector<2x64xf32>
    %177 = arith.addf %176, %175 : vector<2x64xf32>
    %178 = arith.divf %176, %177 : vector<2x64xf32>
    %179 = vector.extract_strided_slice %172 {offsets = [0, 64], sizes = [2, 64], strides = [1, 1]} : vector<2x256xf32> to vector<2x64xf32>
    %180 = arith.negf %179 : vector<2x64xf32>
    %181 = math.exp %180 : vector<2x64xf32>
    %cst_48 = arith.constant 1.000000e+00 : f32
    %182 = vector.broadcast %cst_48 : f32 to vector<2x64xf32>
    %183 = arith.addf %182, %181 : vector<2x64xf32>
    %184 = arith.divf %182, %183 : vector<2x64xf32>
    %185 = vector.extract_strided_slice %172 {offsets = [0, 128], sizes = [2, 64], strides = [1, 1]} : vector<2x256xf32> to vector<2x64xf32>
    %186 = math.tanh %185 : vector<2x64xf32>
    %187 = vector.extract_strided_slice %172 {offsets = [0, 192], sizes = [2, 64], strides = [1, 1]} : vector<2x256xf32> to vector<2x64xf32>
    %188 = arith.negf %187 : vector<2x64xf32>
    %189 = math.exp %188 : vector<2x64xf32>
    %cst_49 = arith.constant 1.000000e+00 : f32
    %190 = vector.broadcast %cst_49 : f32 to vector<2x64xf32>
    %191 = arith.addf %190, %189 : vector<2x64xf32>
    %192 = arith.divf %190, %191 : vector<2x64xf32>
    %193 = arith.mulf %184, %164 : vector<2x64xf32>
    %194 = arith.mulf %178, %186 : vector<2x64xf32>
    %195 = arith.addf %193, %194 : vector<2x64xf32>
    %196 = math.tanh %195 : vector<2x64xf32>
    %197 = arith.mulf %192, %196 : vector<2x64xf32>
    %198 = vector.shape_cast %197 : vector<2x64xf32> to vector<2x1x64xf32>
    %c0_50 = arith.constant 0 : index
    %c5 = arith.constant 5 : index
    %c0_51 = arith.constant 0 : index
    %199 = vector.load %arg13[%c0_50, %c5, %c0_51] : memref<2x8x64xf32, #tpu.memory_space<vmem>>, vector<2x1x64xf32>
    tpu.vector_store %arg13[%c0_50, %c5, %c0_51], %198 {strides = array<i32>} : memref<2x8x64xf32, #tpu.memory_space<vmem>>, vector<2x1x64xf32>,
    %200 = vector.extract_strided_slice %9 {offsets = [0, 6, 0], sizes = [2, 1, 256], strides = [1, 1, 1]} : vector<2x8x256xf32> to vector<2x1x256xf32>
    %201 = vector.shape_cast %200 : vector<2x1x256xf32> to vector<2x256xf32>
    %cst_52 = arith.constant dense<0.000000e+00> : vector<2x256xf32>
    %202 = tpu.matmul %197, %11, %cst_52 {dimension_numbers = #tpu.dot_dimension_numbers<[1], [0], [0], [1], [0, 0, 1, 1], [], []>} : vector<2x64xf32>, vector<64x256xf32>, vector<2x256xf32> -> vector<2x256xf32>
    %203 = arith.addf %201, %202 : vector<2x256xf32>
    %204 = vector.extract_strided_slice %203 {offsets = [0, 0], sizes = [2, 64], strides = [1, 1]} : vector<2x256xf32> to vector<2x64xf32>
    %205 = arith.negf %204 : vector<2x64xf32>
    %206 = math.exp %205 : vector<2x64xf32>
    %cst_53 = arith.constant 1.000000e+00 : f32
    %207 = vector.broadcast %cst_53 : f32 to vector<2x64xf32>
    %208 = arith.addf %207, %206 : vector<2x64xf32>
    %209 = arith.divf %207, %208 : vector<2x64xf32>
    %210 = vector.extract_strided_slice %203 {offsets = [0, 64], sizes = [2, 64], strides = [1, 1]} : vector<2x256xf32> to vector<2x64xf32>
    %211 = arith.negf %210 : vector<2x64xf32>
    %212 = math.exp %211 : vector<2x64xf32>
    %cst_54 = arith.constant 1.000000e+00 : f32
    %213 = vector.broadcast %cst_54 : f32 to vector<2x64xf32>
    %214 = arith.addf %213, %212 : vector<2x64xf32>
    %215 = arith.divf %213, %214 : vector<2x64xf32>
    %216 = vector.extract_strided_slice %203 {offsets = [0, 128], sizes = [2, 64], strides = [1, 1]} : vector<2x256xf32> to vector<2x64xf32>
    %217 = math.tanh %216 : vector<2x64xf32>
    %218 = vector.extract_strided_slice %203 {offsets = [0, 192], sizes = [2, 64], strides = [1, 1]} : vector<2x256xf32> to vector<2x64xf32>
    %219 = arith.negf %218 : vector<2x64xf32>
    %220 = math.exp %219 : vector<2x64xf32>
    %cst_55 = arith.constant 1.000000e+00 : f32
    %221 = vector.broadcast %cst_55 : f32 to vector<2x64xf32>
    %222 = arith.addf %221, %220 : vector<2x64xf32>
    %223 = arith.divf %221, %222 : vector<2x64xf32>
    %224 = arith.mulf %215, %195 : vector<2x64xf32>
    %225 = arith.mulf %209, %217 : vector<2x64xf32>
    %226 = arith.addf %224, %225 : vector<2x64xf32>
    %227 = math.tanh %226 : vector<2x64xf32>
    %228 = arith.mulf %223, %227 : vector<2x64xf32>
    %229 = vector.shape_cast %228 : vector<2x64xf32> to vector<2x1x64xf32>
    %c0_56 = arith.constant 0 : index
    %c6 = arith.constant 6 : index
    %c0_57 = arith.constant 0 : index
    %230 = vector.load %arg13[%c0_56, %c6, %c0_57] : memref<2x8x64xf32, #tpu.memory_space<vmem>>, vector<2x1x64xf32>
    tpu.vector_store %arg13[%c0_56, %c6, %c0_57], %229 {strides = array<i32>} : memref<2x8x64xf32, #tpu.memory_space<vmem>>, vector<2x1x64xf32>,
    %231 = vector.extract_strided_slice %9 {offsets = [0, 7, 0], sizes = [2, 1, 256], strides = [1, 1, 1]} : vector<2x8x256xf32> to vector<2x1x256xf32>
    %232 = vector.shape_cast %231 : vector<2x1x256xf32> to vector<2x256xf32>
    %cst_58 = arith.constant dense<0.000000e+00> : vector<2x256xf32>
    %233 = tpu.matmul %228, %11, %cst_58 {dimension_numbers = #tpu.dot_dimension_numbers<[1], [0], [0], [1], [0, 0, 1, 1], [], []>} : vector<2x64xf32>, vector<64x256xf32>, vector<2x256xf32> -> vector<2x256xf32>
    %234 = arith.addf %232, %233 : vector<2x256xf32>
    %235 = vector.extract_strided_slice %234 {offsets = [0, 0], sizes = [2, 64], strides = [1, 1]} : vector<2x256xf32> to vector<2x64xf32>
    %236 = arith.negf %235 : vector<2x64xf32>
    %237 = math.exp %236 : vector<2x64xf32>
    %cst_59 = arith.constant 1.000000e+00 : f32
    %238 = vector.broadcast %cst_59 : f32 to vector<2x64xf32>
    %239 = arith.addf %238, %237 : vector<2x64xf32>
    %240 = arith.divf %238, %239 : vector<2x64xf32>
    %241 = vector.extract_strided_slice %234 {offsets = [0, 64], sizes = [2, 64], strides = [1, 1]} : vector<2x256xf32> to vector<2x64xf32>
    %242 = arith.negf %241 : vector<2x64xf32>
    %243 = math.exp %242 : vector<2x64xf32>
    %cst_60 = arith.constant 1.000000e+00 : f32
    %244 = vector.broadcast %cst_60 : f32 to vector<2x64xf32>
    %245 = arith.addf %244, %243 : vector<2x64xf32>
    %246 = arith.divf %244, %245 : vector<2x64xf32>
    %247 = vector.extract_strided_slice %234 {offsets = [0, 128], sizes = [2, 64], strides = [1, 1]} : vector<2x256xf32> to vector<2x64xf32>
    %248 = math.tanh %247 : vector<2x64xf32>
    %249 = vector.extract_strided_slice %234 {offsets = [0, 192], sizes = [2, 64], strides = [1, 1]} : vector<2x256xf32> to vector<2x64xf32>
    %250 = arith.negf %249 : vector<2x64xf32>
    %251 = math.exp %250 : vector<2x64xf32>
    %cst_61 = arith.constant 1.000000e+00 : f32
    %252 = vector.broadcast %cst_61 : f32 to vector<2x64xf32>
    %253 = arith.addf %252, %251 : vector<2x64xf32>
    %254 = arith.divf %252, %253 : vector<2x64xf32>
    %255 = arith.mulf %246, %226 : vector<2x64xf32>
    %256 = arith.mulf %240, %248 : vector<2x64xf32>
    %257 = arith.addf %255, %256 : vector<2x64xf32>
    %258 = math.tanh %257 : vector<2x64xf32>
    %259 = arith.mulf %254, %258 : vector<2x64xf32>
    %260 = vector.shape_cast %259 : vector<2x64xf32> to vector<2x1x64xf32>
    %c0_62 = arith.constant 0 : index
    %c7 = arith.constant 7 : index
    %c0_63 = arith.constant 0 : index
    %261 = vector.load %arg13[%c0_62, %c7, %c0_63] : memref<2x8x64xf32, #tpu.memory_space<vmem>>, vector<2x1x64xf32>
    tpu.vector_store %arg13[%c0_62, %c7, %c0_63], %260 {strides = array<i32>} : memref<2x8x64xf32, #tpu.memory_space<vmem>>, vector<2x1x64xf32>,
    %c0_64 = arith.constant 0 : index
    %c0_65 = arith.constant 0 : index
    %c0_66 = arith.constant 0 : index
    %262 = vector.load %arg13[%c0_64, %c0_65, %c0_66] : memref<2x8x64xf32, #tpu.memory_space<vmem>>, vector<2x8x64xf32>
    %c0_67 = arith.constant 0 : index
    %c0_68 = arith.constant 0 : index
    %c0_69 = arith.constant 0 : index
    %263 = vector.load %arg7[%c0_67, %c0_68, %c0_69] : memref<2x8x64xf32, #tpu.memory_space<vmem>>, vector<2x8x64xf32>
    %cst_70 = arith.constant dense<0.000000e+00> : vector<2x8x8xf32>
    %264 = tpu.matmul %262, %263, %cst_70 {dimension_numbers = #tpu.dot_dimension_numbers<[2], [2], [1], [1], [0, 0, 0, 1, 1, 1], [0], [0]>} : vector<2x8x64xf32>, vector<2x8x64xf32>, vector<2x8x8xf32> -> vector<2x8x8xf32>
    %cst_71 = arith.constant dense<0xFF800000> : vector<2x8xf32>
    %265 = vector.multi_reduction <maximumf>, %264, %cst_71 [2] : vector<2x8x8xf32> to vector<2x8xf32>
    %266 = vector.shape_cast %265 : vector<2x8xf32> to vector<2x8x1xf32>
    %267 = vector.broadcast %266 : vector<2x8x1xf32> to vector<2x8x8xf32>
    %268 = arith.subf %264, %267 : vector<2x8x8xf32>
    %269 = math.exp %268 : vector<2x8x8xf32>
    %cst_72 = arith.constant dense<0.000000e+00> : vector<2x8xf32>
    %270 = vector.multi_reduction <add>, %269, %cst_72 [2] : vector<2x8x8xf32> to vector<2x8xf32>
    %271 = vector.shape_cast %270 : vector<2x8xf32> to vector<2x8x1xf32>
    %272 = vector.broadcast %271 : vector<2x8x1xf32> to vector<2x8x8xf32>
    %273 = arith.divf %269, %272 : vector<2x8x8xf32>
    %cst_73 = arith.constant dense<0.000000e+00> : vector<2x8x64xf32>
    %274 = tpu.matmul %273, %263, %cst_73 {dimension_numbers = #tpu.dot_dimension_numbers<[2], [1], [1], [2], [0, 0, 0, 1, 1, 2], [0], [0]>} : vector<2x8x8xf32>, vector<2x8x64xf32>, vector<2x8x64xf32> -> vector<2x8x64xf32>
    %c0_74 = arith.constant 0 : index
    %c0_75 = arith.constant 0 : index
    %275 = vector.load %arg8[%c0_74, %c0_75] : memref<128x64xf32, #tpu.memory_space<vmem>>, vector<128x64xf32>
    %276 = vector.shape_cast %274 : vector<2x8x64xf32> to vector<16x64xf32>
    %277 = vector.shape_cast %262 : vector<2x8x64xf32> to vector<16x64xf32>
    %278 = vector.extract_strided_slice %275 {offsets = [0, 0], sizes = [64, 64], strides = [1, 1]} : vector<128x64xf32> to vector<64x64xf32>
    %cst_76 = arith.constant dense<0.000000e+00> : vector<16x64xf32>
    %279 = tpu.matmul %276, %278, %cst_76 {dimension_numbers = #tpu.dot_dimension_numbers<[1], [0], [0], [1], [0, 0, 1, 1], [], []>} : vector<16x64xf32>, vector<64x64xf32>, vector<16x64xf32> -> vector<16x64xf32>
    %280 = vector.extract_strided_slice %275 {offsets = [64, 0], sizes = [64, 64], strides = [1, 1]} : vector<128x64xf32> to vector<64x64xf32>
    %cst_77 = arith.constant dense<0.000000e+00> : vector<16x64xf32>
    %281 = tpu.matmul %277, %280, %cst_77 {dimension_numbers = #tpu.dot_dimension_numbers<[1], [0], [0], [1], [0, 0, 1, 1], [], []>} : vector<16x64xf32>, vector<64x64xf32>, vector<16x64xf32> -> vector<16x64xf32>
    %282 = arith.addf %279, %281 : vector<16x64xf32>
    %283 = math.tanh %282 : vector<16x64xf32>
    %c0_78 = arith.constant 0 : index
    %c0_79 = arith.constant 0 : index
    %284 = vector.load %arg9[%c0_78, %c0_79] : memref<64x128xf32, #tpu.memory_space<vmem>>, vector<64x128xf32>
    %cst_80 = arith.constant dense<0.000000e+00> : vector<16x128xf32>
    %285 = tpu.matmul %283, %284, %cst_80 {dimension_numbers = #tpu.dot_dimension_numbers<[1], [0], [0], [1], [0, 0, 1, 1], [], []>} : vector<16x64xf32>, vector<64x128xf32>, vector<16x128xf32> -> vector<16x128xf32>
    %c0_81 = arith.constant 0 : index
    %c0_82 = arith.constant 0 : index
    %286 = vector.load %arg10[%c0_81, %c0_82] : memref<1x128xf32, #tpu.memory_space<vmem>>, vector<1x128xf32>
    %287 = vector.broadcast %286 : vector<1x128xf32> to vector<16x128xf32>
    %288 = arith.addf %285, %287 : vector<16x128xf32>
    %289 = vector.shape_cast %288 : vector<16x128xf32> to vector<2x8x128xf32>
    %c0_83 = arith.constant 0 : index
    %c0_84 = arith.constant 0 : index
    %c0_85 = arith.constant 0 : index
    %c0_86 = arith.constant 0 : index
    %290 = vector.load %arg11[%c0_83, %c0_84, %c0_85, %c0_86] : memref<1x2x8x128xf32, #tpu.memory_space<vmem>>, vector<1x2x8x128xf32>
    %291 = vector.shape_cast %290 : vector<1x2x8x128xf32> to vector<2x8x128xf32>
    %292 = vector.shape_cast %289 : vector<2x8x128xf32> to vector<1x2x8x128xf32>
    tpu.vector_store %arg11[%c0_83, %c0_84, %c0_85, %c0_86], %292 {strides = array<i32>} : memref<1x2x8x128xf32, #tpu.memory_space<vmem>>, vector<1x2x8x128xf32>,
    %c0_87 = arith.constant 0 : index
    %c0_88 = arith.constant 0 : index
    %c0_89 = arith.constant 0 : index
    %c0_90 = arith.constant 0 : index
    %293 = vector.load %arg12[%c0_87, %c0_88, %c0_89, %c0_90] : memref<1x2x8x8xf32, #tpu.memory_space<vmem>>, vector<1x2x8x8xf32>
    %294 = vector.shape_cast %293 : vector<1x2x8x8xf32> to vector<2x8x8xf32>
    %295 = vector.shape_cast %273 : vector<2x8x8xf32> to vector<1x2x8x8xf32>
    tpu.vector_store %arg12[%c0_87, %c0_88, %c0_89, %c0_90], %295 {strides = array<i32>} : memref<1x2x8x8xf32, #tpu.memory_space<vmem>>, vector<1x2x8x8xf32>,
    return
  }
  func.func @transform_0(%arg0: i32) -> (i32, i32, i32) {
    %c0_i32 = arith.constant 0 : i32
    %c0_i32_0 = arith.constant 0 : i32
    %c0_i32_1 = arith.constant 0 : i32
    %c0_i32_2 = arith.constant 0 : i32
    return %c0_i32, %c0_i32_0, %c0_i32_1 : i32, i32, i32
  }
  func.func @transform_1(%arg0: i32) -> (i32, i32, i32) {
    %c0_i32 = arith.constant 0 : i32
    %c0_i32_0 = arith.constant 0 : i32
    %c0_i32_1 = arith.constant 0 : i32
    return %arg0, %c0_i32, %c0_i32_0 : i32, i32, i32
  }
  func.func @transform_2(%arg0: i32) -> (i32, i32, i32) {
    %c0_i32 = arith.constant 0 : i32
    %c0_i32_0 = arith.constant 0 : i32
    %c0_i32_1 = arith.constant 0 : i32
    return %arg0, %c0_i32, %c0_i32_0 : i32, i32, i32
  }
  func.func @transform_3(%arg0: i32) -> (i32, i32, i32) {
    %c0_i32 = arith.constant 0 : i32
    %c0_i32_0 = arith.constant 0 : i32
    %c0_i32_1 = arith.constant 0 : i32
    return %arg0, %c0_i32, %c0_i32_0 : i32, i32, i32
  }
  func.func @transform_4(%arg0: i32) -> (i32, i32) {
    %c0_i32 = arith.constant 0 : i32
    %c0_i32_0 = arith.constant 0 : i32
    %c0_i32_1 = arith.constant 0 : i32
    return %c0_i32, %c0_i32_0 : i32, i32
  }
  func.func @transform_5(%arg0: i32) -> (i32, i32) {
    %c0_i32 = arith.constant 0 : i32
    %c0_i32_0 = arith.constant 0 : i32
    %c0_i32_1 = arith.constant 0 : i32
    return %c0_i32, %c0_i32_0 : i32, i32
  }
  func.func @transform_6(%arg0: i32) -> (i32, i32, i32) {
    %c0_i32 = arith.constant 0 : i32
    %c0_i32_0 = arith.constant 0 : i32
    %c0_i32_1 = arith.constant 0 : i32
    %c0_i32_2 = arith.constant 0 : i32
    return %c0_i32, %c0_i32_0, %c0_i32_1 : i32, i32, i32
  }
  func.func @transform_7(%arg0: i32) -> (i32, i32) {
    %c0_i32 = arith.constant 0 : i32
    %c0_i32_0 = arith.constant 0 : i32
    %c0_i32_1 = arith.constant 0 : i32
    return %c0_i32, %c0_i32_0 : i32, i32
  }
  func.func @transform_8(%arg0: i32) -> (i32, i32) {
    %c0_i32 = arith.constant 0 : i32
    %c0_i32_0 = arith.constant 0 : i32
    %c0_i32_1 = arith.constant 0 : i32
    return %c0_i32, %c0_i32_0 : i32, i32
  }
  func.func @transform_9(%arg0: i32) -> (i32, i32) {
    %c0_i32 = arith.constant 0 : i32
    %c0_i32_0 = arith.constant 0 : i32
    %c0_i32_1 = arith.constant 0 : i32
    return %c0_i32, %c0_i32_0 : i32, i32
  }
  func.func @transform_10(%arg0: i32) -> (i32, i32, i32, i32) {
    %c0_i32 = arith.constant 0 : i32
    %c0_i32_0 = arith.constant 0 : i32
    %c0_i32_1 = arith.constant 0 : i32
    %c0_i32_2 = arith.constant 0 : i32
    return %arg0, %c0_i32, %c0_i32_0, %c0_i32_1 : i32, i32, i32, i32
  }
  func.func @transform_11(%arg0: i32) -> (i32, i32, i32, i32) {
    %c0_i32 = arith.constant 0 : i32
    %c0_i32_0 = arith.constant 0 : i32
    %c0_i32_1 = arith.constant 0 : i32
    %c0_i32_2 = arith.constant 0 : i32
    return %arg0, %c0_i32, %c0_i32_0, %c0_i32_1 : i32, i32, i32, i32
  }
}

module attributes {stable_mosaic.version = 11 : i64} {
  func.func @_bilstm_encoder_kernel(%arg0: memref<2x8x32xf32, #tpu.memory_space<vmem>>, %arg1: memref<32x128xf32, #tpu.memory_space<vmem>>, %arg2: memref<32x128xf32, #tpu.memory_space<vmem>>, %arg3: memref<1x128xf32, #tpu.memory_space<vmem>>, %arg4: memref<32x128xf32, #tpu.memory_space<vmem>>, %arg5: memref<32x128xf32, #tpu.memory_space<vmem>>, %arg6: memref<1x128xf32, #tpu.memory_space<vmem>>, %arg7: memref<64x64xf32, #tpu.memory_space<vmem>>, %arg8: memref<1x64xf32, #tpu.memory_space<vmem>>, %arg9: memref<64x64xf32, #tpu.memory_space<vmem>>, %arg10: memref<1x64xf32, #tpu.memory_space<vmem>>, %arg11: memref<2x8x64xf32, #tpu.memory_space<vmem>>, %arg12: memref<2x64xf32, #tpu.memory_space<vmem>>, %arg13: memref<2x64xf32, #tpu.memory_space<vmem>>) attributes {dimension_semantics = [], scalar_prefetch = 0 : i64, scratch_operands = 0 : i64, tpu.core_type = #tpu.core_type<tc>} {
    %c0 = arith.constant 0 : index
    %c0_0 = arith.constant 0 : index
    %c0_1 = arith.constant 0 : index
    %0 = vector.load %arg0[%c0, %c0_0, %c0_1] : memref<2x8x32xf32, #tpu.memory_space<vmem>>, vector<2x8x32xf32>
    %1 = vector.shape_cast %0 : vector<2x8x32xf32> to vector<16x32xf32>
    %c0_2 = arith.constant 0 : index
    %c0_3 = arith.constant 0 : index
    %2 = vector.load %arg1[%c0_2, %c0_3] : memref<32x128xf32, #tpu.memory_space<vmem>>, vector<32x128xf32>
    %cst = arith.constant dense<0.000000e+00> : vector<16x128xf32>
    %3 = tpu.matmul %1, %2, %cst {dimension_numbers = #tpu.dot_dimension_numbers<[1], [0], [0], [1], [0, 0, 1, 1], [], []>} : vector<16x32xf32>, vector<32x128xf32>, vector<16x128xf32> -> vector<16x128xf32>
    %c0_4 = arith.constant 0 : index
    %c0_5 = arith.constant 0 : index
    %4 = vector.load %arg3[%c0_4, %c0_5] : memref<1x128xf32, #tpu.memory_space<vmem>>, vector<1x128xf32>
    %5 = vector.broadcast %4 : vector<1x128xf32> to vector<16x128xf32>
    %6 = arith.addf %3, %5 : vector<16x128xf32>
    %7 = vector.shape_cast %6 : vector<16x128xf32> to vector<2x8x128xf32>
    %c0_6 = arith.constant 0 : index
    %c0_7 = arith.constant 0 : index
    %8 = vector.load %arg4[%c0_6, %c0_7] : memref<32x128xf32, #tpu.memory_space<vmem>>, vector<32x128xf32>
    %cst_8 = arith.constant dense<0.000000e+00> : vector<16x128xf32>
    %9 = tpu.matmul %1, %8, %cst_8 {dimension_numbers = #tpu.dot_dimension_numbers<[1], [0], [0], [1], [0, 0, 1, 1], [], []>} : vector<16x32xf32>, vector<32x128xf32>, vector<16x128xf32> -> vector<16x128xf32>
    %c0_9 = arith.constant 0 : index
    %c0_10 = arith.constant 0 : index
    %10 = vector.load %arg6[%c0_9, %c0_10] : memref<1x128xf32, #tpu.memory_space<vmem>>, vector<1x128xf32>
    %11 = vector.broadcast %10 : vector<1x128xf32> to vector<16x128xf32>
    %12 = arith.addf %9, %11 : vector<16x128xf32>
    %13 = vector.shape_cast %12 : vector<16x128xf32> to vector<2x8x128xf32>
    %c0_11 = arith.constant 0 : index
    %c0_12 = arith.constant 0 : index
    %14 = vector.load %arg2[%c0_11, %c0_12] : memref<32x128xf32, #tpu.memory_space<vmem>>, vector<32x128xf32>
    %c0_13 = arith.constant 0 : index
    %c0_14 = arith.constant 0 : index
    %15 = vector.load %arg5[%c0_13, %c0_14] : memref<32x128xf32, #tpu.memory_space<vmem>>, vector<32x128xf32>
    %cst_15 = arith.constant 0.000000e+00 : f32
    %16 = vector.broadcast %cst_15 : f32 to vector<2x32xf32>
    %cst_16 = arith.constant 0.000000e+00 : f32
    %17 = vector.broadcast %cst_16 : f32 to vector<2x32xf32>
    %cst_17 = arith.constant 0.000000e+00 : f32
    %18 = vector.broadcast %cst_17 : f32 to vector<2x32xf32>
    %cst_18 = arith.constant 0.000000e+00 : f32
    %19 = vector.broadcast %cst_18 : f32 to vector<2x32xf32>
    %20 = vector.extract_strided_slice %7 {offsets = [0, 0, 0], sizes = [2, 1, 128], strides = [1, 1, 1]} : vector<2x8x128xf32> to vector<2x1x128xf32>
    %21 = vector.shape_cast %20 : vector<2x1x128xf32> to vector<2x128xf32>
    %cst_19 = arith.constant dense<0.000000e+00> : vector<2x128xf32>
    %22 = tpu.matmul %16, %14, %cst_19 {dimension_numbers = #tpu.dot_dimension_numbers<[1], [0], [0], [1], [0, 0, 1, 1], [], []>} : vector<2x32xf32>, vector<32x128xf32>, vector<2x128xf32> -> vector<2x128xf32>
    %23 = arith.addf %21, %22 : vector<2x128xf32>
    %24 = vector.extract_strided_slice %23 {offsets = [0, 0], sizes = [2, 32], strides = [1, 1]} : vector<2x128xf32> to vector<2x32xf32>
    %25 = arith.negf %24 : vector<2x32xf32>
    %26 = math.exp %25 : vector<2x32xf32>
    %cst_20 = arith.constant 1.000000e+00 : f32
    %27 = vector.broadcast %cst_20 : f32 to vector<2x32xf32>
    %28 = arith.addf %27, %26 : vector<2x32xf32>
    %29 = arith.divf %27, %28 : vector<2x32xf32>
    %30 = vector.extract_strided_slice %23 {offsets = [0, 32], sizes = [2, 32], strides = [1, 1]} : vector<2x128xf32> to vector<2x32xf32>
    %31 = arith.negf %30 : vector<2x32xf32>
    %32 = math.exp %31 : vector<2x32xf32>
    %cst_21 = arith.constant 1.000000e+00 : f32
    %33 = vector.broadcast %cst_21 : f32 to vector<2x32xf32>
    %34 = arith.addf %33, %32 : vector<2x32xf32>
    %35 = arith.divf %33, %34 : vector<2x32xf32>
    %36 = vector.extract_strided_slice %23 {offsets = [0, 64], sizes = [2, 32], strides = [1, 1]} : vector<2x128xf32> to vector<2x32xf32>
    %37 = math.tanh %36 : vector<2x32xf32>
    %38 = vector.extract_strided_slice %23 {offsets = [0, 96], sizes = [2, 32], strides = [1, 1]} : vector<2x128xf32> to vector<2x32xf32>
    %39 = arith.negf %38 : vector<2x32xf32>
    %40 = math.exp %39 : vector<2x32xf32>
    %cst_22 = arith.constant 1.000000e+00 : f32
    %41 = vector.broadcast %cst_22 : f32 to vector<2x32xf32>
    %42 = arith.addf %41, %40 : vector<2x32xf32>
    %43 = arith.divf %41, %42 : vector<2x32xf32>
    %44 = arith.mulf %35, %17 : vector<2x32xf32>
    %45 = arith.mulf %29, %37 : vector<2x32xf32>
    %46 = arith.addf %44, %45 : vector<2x32xf32>
    %47 = math.tanh %46 : vector<2x32xf32>
    %48 = arith.mulf %43, %47 : vector<2x32xf32>
    %49 = vector.extract_strided_slice %13 {offsets = [0, 7, 0], sizes = [2, 1, 128], strides = [1, 1, 1]} : vector<2x8x128xf32> to vector<2x1x128xf32>
    %50 = vector.shape_cast %49 : vector<2x1x128xf32> to vector<2x128xf32>
    %cst_23 = arith.constant dense<0.000000e+00> : vector<2x128xf32>
    %51 = tpu.matmul %18, %15, %cst_23 {dimension_numbers = #tpu.dot_dimension_numbers<[1], [0], [0], [1], [0, 0, 1, 1], [], []>} : vector<2x32xf32>, vector<32x128xf32>, vector<2x128xf32> -> vector<2x128xf32>
    %52 = arith.addf %50, %51 : vector<2x128xf32>
    %53 = vector.extract_strided_slice %52 {offsets = [0, 0], sizes = [2, 32], strides = [1, 1]} : vector<2x128xf32> to vector<2x32xf32>
    %54 = arith.negf %53 : vector<2x32xf32>
    %55 = math.exp %54 : vector<2x32xf32>
    %cst_24 = arith.constant 1.000000e+00 : f32
    %56 = vector.broadcast %cst_24 : f32 to vector<2x32xf32>
    %57 = arith.addf %56, %55 : vector<2x32xf32>
    %58 = arith.divf %56, %57 : vector<2x32xf32>
    %59 = vector.extract_strided_slice %52 {offsets = [0, 32], sizes = [2, 32], strides = [1, 1]} : vector<2x128xf32> to vector<2x32xf32>
    %60 = arith.negf %59 : vector<2x32xf32>
    %61 = math.exp %60 : vector<2x32xf32>
    %cst_25 = arith.constant 1.000000e+00 : f32
    %62 = vector.broadcast %cst_25 : f32 to vector<2x32xf32>
    %63 = arith.addf %62, %61 : vector<2x32xf32>
    %64 = arith.divf %62, %63 : vector<2x32xf32>
    %65 = vector.extract_strided_slice %52 {offsets = [0, 64], sizes = [2, 32], strides = [1, 1]} : vector<2x128xf32> to vector<2x32xf32>
    %66 = math.tanh %65 : vector<2x32xf32>
    %67 = vector.extract_strided_slice %52 {offsets = [0, 96], sizes = [2, 32], strides = [1, 1]} : vector<2x128xf32> to vector<2x32xf32>
    %68 = arith.negf %67 : vector<2x32xf32>
    %69 = math.exp %68 : vector<2x32xf32>
    %cst_26 = arith.constant 1.000000e+00 : f32
    %70 = vector.broadcast %cst_26 : f32 to vector<2x32xf32>
    %71 = arith.addf %70, %69 : vector<2x32xf32>
    %72 = arith.divf %70, %71 : vector<2x32xf32>
    %73 = arith.mulf %64, %19 : vector<2x32xf32>
    %74 = arith.mulf %58, %66 : vector<2x32xf32>
    %75 = arith.addf %73, %74 : vector<2x32xf32>
    %76 = math.tanh %75 : vector<2x32xf32>
    %77 = arith.mulf %72, %76 : vector<2x32xf32>
    %78 = vector.shape_cast %48 : vector<2x32xf32> to vector<2x1x32xf32>
    %c0_27 = arith.constant 0 : index
    %c0_28 = arith.constant 0 : index
    %c0_29 = arith.constant 0 : index
    %79 = vector.load %arg11[%c0_27, %c0_28, %c0_29] : memref<2x8x64xf32, #tpu.memory_space<vmem>>, vector<2x1x32xf32>
    tpu.vector_store %arg11[%c0_27, %c0_28, %c0_29], %78 {strides = array<i32>} : memref<2x8x64xf32, #tpu.memory_space<vmem>>, vector<2x1x32xf32>,
    %80 = vector.shape_cast %77 : vector<2x32xf32> to vector<2x1x32xf32>
    %c0_30 = arith.constant 0 : index
    %c7 = arith.constant 7 : index
    %c32 = arith.constant 32 : index
    %81 = vector.load %arg11[%c0_30, %c7, %c32] : memref<2x8x64xf32, #tpu.memory_space<vmem>>, vector<2x1x32xf32>
    tpu.vector_store %arg11[%c0_30, %c7, %c32], %80 {strides = array<i32>} : memref<2x8x64xf32, #tpu.memory_space<vmem>>, vector<2x1x32xf32>,
    %82 = vector.extract_strided_slice %7 {offsets = [0, 1, 0], sizes = [2, 1, 128], strides = [1, 1, 1]} : vector<2x8x128xf32> to vector<2x1x128xf32>
    %83 = vector.shape_cast %82 : vector<2x1x128xf32> to vector<2x128xf32>
    %cst_31 = arith.constant dense<0.000000e+00> : vector<2x128xf32>
    %84 = tpu.matmul %48, %14, %cst_31 {dimension_numbers = #tpu.dot_dimension_numbers<[1], [0], [0], [1], [0, 0, 1, 1], [], []>} : vector<2x32xf32>, vector<32x128xf32>, vector<2x128xf32> -> vector<2x128xf32>
    %85 = arith.addf %83, %84 : vector<2x128xf32>
    %86 = vector.extract_strided_slice %85 {offsets = [0, 0], sizes = [2, 32], strides = [1, 1]} : vector<2x128xf32> to vector<2x32xf32>
    %87 = arith.negf %86 : vector<2x32xf32>
    %88 = math.exp %87 : vector<2x32xf32>
    %cst_32 = arith.constant 1.000000e+00 : f32
    %89 = vector.broadcast %cst_32 : f32 to vector<2x32xf32>
    %90 = arith.addf %89, %88 : vector<2x32xf32>
    %91 = arith.divf %89, %90 : vector<2x32xf32>
    %92 = vector.extract_strided_slice %85 {offsets = [0, 32], sizes = [2, 32], strides = [1, 1]} : vector<2x128xf32> to vector<2x32xf32>
    %93 = arith.negf %92 : vector<2x32xf32>
    %94 = math.exp %93 : vector<2x32xf32>
    %cst_33 = arith.constant 1.000000e+00 : f32
    %95 = vector.broadcast %cst_33 : f32 to vector<2x32xf32>
    %96 = arith.addf %95, %94 : vector<2x32xf32>
    %97 = arith.divf %95, %96 : vector<2x32xf32>
    %98 = vector.extract_strided_slice %85 {offsets = [0, 64], sizes = [2, 32], strides = [1, 1]} : vector<2x128xf32> to vector<2x32xf32>
    %99 = math.tanh %98 : vector<2x32xf32>
    %100 = vector.extract_strided_slice %85 {offsets = [0, 96], sizes = [2, 32], strides = [1, 1]} : vector<2x128xf32> to vector<2x32xf32>
    %101 = arith.negf %100 : vector<2x32xf32>
    %102 = math.exp %101 : vector<2x32xf32>
    %cst_34 = arith.constant 1.000000e+00 : f32
    %103 = vector.broadcast %cst_34 : f32 to vector<2x32xf32>
    %104 = arith.addf %103, %102 : vector<2x32xf32>
    %105 = arith.divf %103, %104 : vector<2x32xf32>
    %106 = arith.mulf %97, %46 : vector<2x32xf32>
    %107 = arith.mulf %91, %99 : vector<2x32xf32>
    %108 = arith.addf %106, %107 : vector<2x32xf32>
    %109 = math.tanh %108 : vector<2x32xf32>
    %110 = arith.mulf %105, %109 : vector<2x32xf32>
    %111 = vector.extract_strided_slice %13 {offsets = [0, 6, 0], sizes = [2, 1, 128], strides = [1, 1, 1]} : vector<2x8x128xf32> to vector<2x1x128xf32>
    %112 = vector.shape_cast %111 : vector<2x1x128xf32> to vector<2x128xf32>
    %cst_35 = arith.constant dense<0.000000e+00> : vector<2x128xf32>
    %113 = tpu.matmul %77, %15, %cst_35 {dimension_numbers = #tpu.dot_dimension_numbers<[1], [0], [0], [1], [0, 0, 1, 1], [], []>} : vector<2x32xf32>, vector<32x128xf32>, vector<2x128xf32> -> vector<2x128xf32>
    %114 = arith.addf %112, %113 : vector<2x128xf32>
    %115 = vector.extract_strided_slice %114 {offsets = [0, 0], sizes = [2, 32], strides = [1, 1]} : vector<2x128xf32> to vector<2x32xf32>
    %116 = arith.negf %115 : vector<2x32xf32>
    %117 = math.exp %116 : vector<2x32xf32>
    %cst_36 = arith.constant 1.000000e+00 : f32
    %118 = vector.broadcast %cst_36 : f32 to vector<2x32xf32>
    %119 = arith.addf %118, %117 : vector<2x32xf32>
    %120 = arith.divf %118, %119 : vector<2x32xf32>
    %121 = vector.extract_strided_slice %114 {offsets = [0, 32], sizes = [2, 32], strides = [1, 1]} : vector<2x128xf32> to vector<2x32xf32>
    %122 = arith.negf %121 : vector<2x32xf32>
    %123 = math.exp %122 : vector<2x32xf32>
    %cst_37 = arith.constant 1.000000e+00 : f32
    %124 = vector.broadcast %cst_37 : f32 to vector<2x32xf32>
    %125 = arith.addf %124, %123 : vector<2x32xf32>
    %126 = arith.divf %124, %125 : vector<2x32xf32>
    %127 = vector.extract_strided_slice %114 {offsets = [0, 64], sizes = [2, 32], strides = [1, 1]} : vector<2x128xf32> to vector<2x32xf32>
    %128 = math.tanh %127 : vector<2x32xf32>
    %129 = vector.extract_strided_slice %114 {offsets = [0, 96], sizes = [2, 32], strides = [1, 1]} : vector<2x128xf32> to vector<2x32xf32>
    %130 = arith.negf %129 : vector<2x32xf32>
    %131 = math.exp %130 : vector<2x32xf32>
    %cst_38 = arith.constant 1.000000e+00 : f32
    %132 = vector.broadcast %cst_38 : f32 to vector<2x32xf32>
    %133 = arith.addf %132, %131 : vector<2x32xf32>
    %134 = arith.divf %132, %133 : vector<2x32xf32>
    %135 = arith.mulf %126, %75 : vector<2x32xf32>
    %136 = arith.mulf %120, %128 : vector<2x32xf32>
    %137 = arith.addf %135, %136 : vector<2x32xf32>
    %138 = math.tanh %137 : vector<2x32xf32>
    %139 = arith.mulf %134, %138 : vector<2x32xf32>
    %140 = vector.shape_cast %110 : vector<2x32xf32> to vector<2x1x32xf32>
    %c0_39 = arith.constant 0 : index
    %c1 = arith.constant 1 : index
    %c0_40 = arith.constant 0 : index
    %141 = vector.load %arg11[%c0_39, %c1, %c0_40] : memref<2x8x64xf32, #tpu.memory_space<vmem>>, vector<2x1x32xf32>
    tpu.vector_store %arg11[%c0_39, %c1, %c0_40], %140 {strides = array<i32>} : memref<2x8x64xf32, #tpu.memory_space<vmem>>, vector<2x1x32xf32>,
    %142 = vector.shape_cast %139 : vector<2x32xf32> to vector<2x1x32xf32>
    %c0_41 = arith.constant 0 : index
    %c6 = arith.constant 6 : index
    %c32_42 = arith.constant 32 : index
    %143 = vector.load %arg11[%c0_41, %c6, %c32_42] : memref<2x8x64xf32, #tpu.memory_space<vmem>>, vector<2x1x32xf32>
    tpu.vector_store %arg11[%c0_41, %c6, %c32_42], %142 {strides = array<i32>} : memref<2x8x64xf32, #tpu.memory_space<vmem>>, vector<2x1x32xf32>,
    %144 = vector.extract_strided_slice %7 {offsets = [0, 2, 0], sizes = [2, 1, 128], strides = [1, 1, 1]} : vector<2x8x128xf32> to vector<2x1x128xf32>
    %145 = vector.shape_cast %144 : vector<2x1x128xf32> to vector<2x128xf32>
    %cst_43 = arith.constant dense<0.000000e+00> : vector<2x128xf32>
    %146 = tpu.matmul %110, %14, %cst_43 {dimension_numbers = #tpu.dot_dimension_numbers<[1], [0], [0], [1], [0, 0, 1, 1], [], []>} : vector<2x32xf32>, vector<32x128xf32>, vector<2x128xf32> -> vector<2x128xf32>
    %147 = arith.addf %145, %146 : vector<2x128xf32>
    %148 = vector.extract_strided_slice %147 {offsets = [0, 0], sizes = [2, 32], strides = [1, 1]} : vector<2x128xf32> to vector<2x32xf32>
    %149 = arith.negf %148 : vector<2x32xf32>
    %150 = math.exp %149 : vector<2x32xf32>
    %cst_44 = arith.constant 1.000000e+00 : f32
    %151 = vector.broadcast %cst_44 : f32 to vector<2x32xf32>
    %152 = arith.addf %151, %150 : vector<2x32xf32>
    %153 = arith.divf %151, %152 : vector<2x32xf32>
    %154 = vector.extract_strided_slice %147 {offsets = [0, 32], sizes = [2, 32], strides = [1, 1]} : vector<2x128xf32> to vector<2x32xf32>
    %155 = arith.negf %154 : vector<2x32xf32>
    %156 = math.exp %155 : vector<2x32xf32>
    %cst_45 = arith.constant 1.000000e+00 : f32
    %157 = vector.broadcast %cst_45 : f32 to vector<2x32xf32>
    %158 = arith.addf %157, %156 : vector<2x32xf32>
    %159 = arith.divf %157, %158 : vector<2x32xf32>
    %160 = vector.extract_strided_slice %147 {offsets = [0, 64], sizes = [2, 32], strides = [1, 1]} : vector<2x128xf32> to vector<2x32xf32>
    %161 = math.tanh %160 : vector<2x32xf32>
    %162 = vector.extract_strided_slice %147 {offsets = [0, 96], sizes = [2, 32], strides = [1, 1]} : vector<2x128xf32> to vector<2x32xf32>
    %163 = arith.negf %162 : vector<2x32xf32>
    %164 = math.exp %163 : vector<2x32xf32>
    %cst_46 = arith.constant 1.000000e+00 : f32
    %165 = vector.broadcast %cst_46 : f32 to vector<2x32xf32>
    %166 = arith.addf %165, %164 : vector<2x32xf32>
    %167 = arith.divf %165, %166 : vector<2x32xf32>
    %168 = arith.mulf %159, %108 : vector<2x32xf32>
    %169 = arith.mulf %153, %161 : vector<2x32xf32>
    %170 = arith.addf %168, %169 : vector<2x32xf32>
    %171 = math.tanh %170 : vector<2x32xf32>
    %172 = arith.mulf %167, %171 : vector<2x32xf32>
    %173 = vector.extract_strided_slice %13 {offsets = [0, 5, 0], sizes = [2, 1, 128], strides = [1, 1, 1]} : vector<2x8x128xf32> to vector<2x1x128xf32>
    %174 = vector.shape_cast %173 : vector<2x1x128xf32> to vector<2x128xf32>
    %cst_47 = arith.constant dense<0.000000e+00> : vector<2x128xf32>
    %175 = tpu.matmul %139, %15, %cst_47 {dimension_numbers = #tpu.dot_dimension_numbers<[1], [0], [0], [1], [0, 0, 1, 1], [], []>} : vector<2x32xf32>, vector<32x128xf32>, vector<2x128xf32> -> vector<2x128xf32>
    %176 = arith.addf %174, %175 : vector<2x128xf32>
    %177 = vector.extract_strided_slice %176 {offsets = [0, 0], sizes = [2, 32], strides = [1, 1]} : vector<2x128xf32> to vector<2x32xf32>
    %178 = arith.negf %177 : vector<2x32xf32>
    %179 = math.exp %178 : vector<2x32xf32>
    %cst_48 = arith.constant 1.000000e+00 : f32
    %180 = vector.broadcast %cst_48 : f32 to vector<2x32xf32>
    %181 = arith.addf %180, %179 : vector<2x32xf32>
    %182 = arith.divf %180, %181 : vector<2x32xf32>
    %183 = vector.extract_strided_slice %176 {offsets = [0, 32], sizes = [2, 32], strides = [1, 1]} : vector<2x128xf32> to vector<2x32xf32>
    %184 = arith.negf %183 : vector<2x32xf32>
    %185 = math.exp %184 : vector<2x32xf32>
    %cst_49 = arith.constant 1.000000e+00 : f32
    %186 = vector.broadcast %cst_49 : f32 to vector<2x32xf32>
    %187 = arith.addf %186, %185 : vector<2x32xf32>
    %188 = arith.divf %186, %187 : vector<2x32xf32>
    %189 = vector.extract_strided_slice %176 {offsets = [0, 64], sizes = [2, 32], strides = [1, 1]} : vector<2x128xf32> to vector<2x32xf32>
    %190 = math.tanh %189 : vector<2x32xf32>
    %191 = vector.extract_strided_slice %176 {offsets = [0, 96], sizes = [2, 32], strides = [1, 1]} : vector<2x128xf32> to vector<2x32xf32>
    %192 = arith.negf %191 : vector<2x32xf32>
    %193 = math.exp %192 : vector<2x32xf32>
    %cst_50 = arith.constant 1.000000e+00 : f32
    %194 = vector.broadcast %cst_50 : f32 to vector<2x32xf32>
    %195 = arith.addf %194, %193 : vector<2x32xf32>
    %196 = arith.divf %194, %195 : vector<2x32xf32>
    %197 = arith.mulf %188, %137 : vector<2x32xf32>
    %198 = arith.mulf %182, %190 : vector<2x32xf32>
    %199 = arith.addf %197, %198 : vector<2x32xf32>
    %200 = math.tanh %199 : vector<2x32xf32>
    %201 = arith.mulf %196, %200 : vector<2x32xf32>
    %202 = vector.shape_cast %172 : vector<2x32xf32> to vector<2x1x32xf32>
    %c0_51 = arith.constant 0 : index
    %c2 = arith.constant 2 : index
    %c0_52 = arith.constant 0 : index
    %203 = vector.load %arg11[%c0_51, %c2, %c0_52] : memref<2x8x64xf32, #tpu.memory_space<vmem>>, vector<2x1x32xf32>
    tpu.vector_store %arg11[%c0_51, %c2, %c0_52], %202 {strides = array<i32>} : memref<2x8x64xf32, #tpu.memory_space<vmem>>, vector<2x1x32xf32>,
    %204 = vector.shape_cast %201 : vector<2x32xf32> to vector<2x1x32xf32>
    %c0_53 = arith.constant 0 : index
    %c5 = arith.constant 5 : index
    %c32_54 = arith.constant 32 : index
    %205 = vector.load %arg11[%c0_53, %c5, %c32_54] : memref<2x8x64xf32, #tpu.memory_space<vmem>>, vector<2x1x32xf32>
    tpu.vector_store %arg11[%c0_53, %c5, %c32_54], %204 {strides = array<i32>} : memref<2x8x64xf32, #tpu.memory_space<vmem>>, vector<2x1x32xf32>,
    %206 = vector.extract_strided_slice %7 {offsets = [0, 3, 0], sizes = [2, 1, 128], strides = [1, 1, 1]} : vector<2x8x128xf32> to vector<2x1x128xf32>
    %207 = vector.shape_cast %206 : vector<2x1x128xf32> to vector<2x128xf32>
    %cst_55 = arith.constant dense<0.000000e+00> : vector<2x128xf32>
    %208 = tpu.matmul %172, %14, %cst_55 {dimension_numbers = #tpu.dot_dimension_numbers<[1], [0], [0], [1], [0, 0, 1, 1], [], []>} : vector<2x32xf32>, vector<32x128xf32>, vector<2x128xf32> -> vector<2x128xf32>
    %209 = arith.addf %207, %208 : vector<2x128xf32>
    %210 = vector.extract_strided_slice %209 {offsets = [0, 0], sizes = [2, 32], strides = [1, 1]} : vector<2x128xf32> to vector<2x32xf32>
    %211 = arith.negf %210 : vector<2x32xf32>
    %212 = math.exp %211 : vector<2x32xf32>
    %cst_56 = arith.constant 1.000000e+00 : f32
    %213 = vector.broadcast %cst_56 : f32 to vector<2x32xf32>
    %214 = arith.addf %213, %212 : vector<2x32xf32>
    %215 = arith.divf %213, %214 : vector<2x32xf32>
    %216 = vector.extract_strided_slice %209 {offsets = [0, 32], sizes = [2, 32], strides = [1, 1]} : vector<2x128xf32> to vector<2x32xf32>
    %217 = arith.negf %216 : vector<2x32xf32>
    %218 = math.exp %217 : vector<2x32xf32>
    %cst_57 = arith.constant 1.000000e+00 : f32
    %219 = vector.broadcast %cst_57 : f32 to vector<2x32xf32>
    %220 = arith.addf %219, %218 : vector<2x32xf32>
    %221 = arith.divf %219, %220 : vector<2x32xf32>
    %222 = vector.extract_strided_slice %209 {offsets = [0, 64], sizes = [2, 32], strides = [1, 1]} : vector<2x128xf32> to vector<2x32xf32>
    %223 = math.tanh %222 : vector<2x32xf32>
    %224 = vector.extract_strided_slice %209 {offsets = [0, 96], sizes = [2, 32], strides = [1, 1]} : vector<2x128xf32> to vector<2x32xf32>
    %225 = arith.negf %224 : vector<2x32xf32>
    %226 = math.exp %225 : vector<2x32xf32>
    %cst_58 = arith.constant 1.000000e+00 : f32
    %227 = vector.broadcast %cst_58 : f32 to vector<2x32xf32>
    %228 = arith.addf %227, %226 : vector<2x32xf32>
    %229 = arith.divf %227, %228 : vector<2x32xf32>
    %230 = arith.mulf %221, %170 : vector<2x32xf32>
    %231 = arith.mulf %215, %223 : vector<2x32xf32>
    %232 = arith.addf %230, %231 : vector<2x32xf32>
    %233 = math.tanh %232 : vector<2x32xf32>
    %234 = arith.mulf %229, %233 : vector<2x32xf32>
    %235 = vector.extract_strided_slice %13 {offsets = [0, 4, 0], sizes = [2, 1, 128], strides = [1, 1, 1]} : vector<2x8x128xf32> to vector<2x1x128xf32>
    %236 = vector.shape_cast %235 : vector<2x1x128xf32> to vector<2x128xf32>
    %cst_59 = arith.constant dense<0.000000e+00> : vector<2x128xf32>
    %237 = tpu.matmul %201, %15, %cst_59 {dimension_numbers = #tpu.dot_dimension_numbers<[1], [0], [0], [1], [0, 0, 1, 1], [], []>} : vector<2x32xf32>, vector<32x128xf32>, vector<2x128xf32> -> vector<2x128xf32>
    %238 = arith.addf %236, %237 : vector<2x128xf32>
    %239 = vector.extract_strided_slice %238 {offsets = [0, 0], sizes = [2, 32], strides = [1, 1]} : vector<2x128xf32> to vector<2x32xf32>
    %240 = arith.negf %239 : vector<2x32xf32>
    %241 = math.exp %240 : vector<2x32xf32>
    %cst_60 = arith.constant 1.000000e+00 : f32
    %242 = vector.broadcast %cst_60 : f32 to vector<2x32xf32>
    %243 = arith.addf %242, %241 : vector<2x32xf32>
    %244 = arith.divf %242, %243 : vector<2x32xf32>
    %245 = vector.extract_strided_slice %238 {offsets = [0, 32], sizes = [2, 32], strides = [1, 1]} : vector<2x128xf32> to vector<2x32xf32>
    %246 = arith.negf %245 : vector<2x32xf32>
    %247 = math.exp %246 : vector<2x32xf32>
    %cst_61 = arith.constant 1.000000e+00 : f32
    %248 = vector.broadcast %cst_61 : f32 to vector<2x32xf32>
    %249 = arith.addf %248, %247 : vector<2x32xf32>
    %250 = arith.divf %248, %249 : vector<2x32xf32>
    %251 = vector.extract_strided_slice %238 {offsets = [0, 64], sizes = [2, 32], strides = [1, 1]} : vector<2x128xf32> to vector<2x32xf32>
    %252 = math.tanh %251 : vector<2x32xf32>
    %253 = vector.extract_strided_slice %238 {offsets = [0, 96], sizes = [2, 32], strides = [1, 1]} : vector<2x128xf32> to vector<2x32xf32>
    %254 = arith.negf %253 : vector<2x32xf32>
    %255 = math.exp %254 : vector<2x32xf32>
    %cst_62 = arith.constant 1.000000e+00 : f32
    %256 = vector.broadcast %cst_62 : f32 to vector<2x32xf32>
    %257 = arith.addf %256, %255 : vector<2x32xf32>
    %258 = arith.divf %256, %257 : vector<2x32xf32>
    %259 = arith.mulf %250, %199 : vector<2x32xf32>
    %260 = arith.mulf %244, %252 : vector<2x32xf32>
    %261 = arith.addf %259, %260 : vector<2x32xf32>
    %262 = math.tanh %261 : vector<2x32xf32>
    %263 = arith.mulf %258, %262 : vector<2x32xf32>
    %264 = vector.shape_cast %234 : vector<2x32xf32> to vector<2x1x32xf32>
    %c0_63 = arith.constant 0 : index
    %c3 = arith.constant 3 : index
    %c0_64 = arith.constant 0 : index
    %265 = vector.load %arg11[%c0_63, %c3, %c0_64] : memref<2x8x64xf32, #tpu.memory_space<vmem>>, vector<2x1x32xf32>
    tpu.vector_store %arg11[%c0_63, %c3, %c0_64], %264 {strides = array<i32>} : memref<2x8x64xf32, #tpu.memory_space<vmem>>, vector<2x1x32xf32>,
    %266 = vector.shape_cast %263 : vector<2x32xf32> to vector<2x1x32xf32>
    %c0_65 = arith.constant 0 : index
    %c4 = arith.constant 4 : index
    %c32_66 = arith.constant 32 : index
    %267 = vector.load %arg11[%c0_65, %c4, %c32_66] : memref<2x8x64xf32, #tpu.memory_space<vmem>>, vector<2x1x32xf32>
    tpu.vector_store %arg11[%c0_65, %c4, %c32_66], %266 {strides = array<i32>} : memref<2x8x64xf32, #tpu.memory_space<vmem>>, vector<2x1x32xf32>,
    %268 = vector.extract_strided_slice %7 {offsets = [0, 4, 0], sizes = [2, 1, 128], strides = [1, 1, 1]} : vector<2x8x128xf32> to vector<2x1x128xf32>
    %269 = vector.shape_cast %268 : vector<2x1x128xf32> to vector<2x128xf32>
    %cst_67 = arith.constant dense<0.000000e+00> : vector<2x128xf32>
    %270 = tpu.matmul %234, %14, %cst_67 {dimension_numbers = #tpu.dot_dimension_numbers<[1], [0], [0], [1], [0, 0, 1, 1], [], []>} : vector<2x32xf32>, vector<32x128xf32>, vector<2x128xf32> -> vector<2x128xf32>
    %271 = arith.addf %269, %270 : vector<2x128xf32>
    %272 = vector.extract_strided_slice %271 {offsets = [0, 0], sizes = [2, 32], strides = [1, 1]} : vector<2x128xf32> to vector<2x32xf32>
    %273 = arith.negf %272 : vector<2x32xf32>
    %274 = math.exp %273 : vector<2x32xf32>
    %cst_68 = arith.constant 1.000000e+00 : f32
    %275 = vector.broadcast %cst_68 : f32 to vector<2x32xf32>
    %276 = arith.addf %275, %274 : vector<2x32xf32>
    %277 = arith.divf %275, %276 : vector<2x32xf32>
    %278 = vector.extract_strided_slice %271 {offsets = [0, 32], sizes = [2, 32], strides = [1, 1]} : vector<2x128xf32> to vector<2x32xf32>
    %279 = arith.negf %278 : vector<2x32xf32>
    %280 = math.exp %279 : vector<2x32xf32>
    %cst_69 = arith.constant 1.000000e+00 : f32
    %281 = vector.broadcast %cst_69 : f32 to vector<2x32xf32>
    %282 = arith.addf %281, %280 : vector<2x32xf32>
    %283 = arith.divf %281, %282 : vector<2x32xf32>
    %284 = vector.extract_strided_slice %271 {offsets = [0, 64], sizes = [2, 32], strides = [1, 1]} : vector<2x128xf32> to vector<2x32xf32>
    %285 = math.tanh %284 : vector<2x32xf32>
    %286 = vector.extract_strided_slice %271 {offsets = [0, 96], sizes = [2, 32], strides = [1, 1]} : vector<2x128xf32> to vector<2x32xf32>
    %287 = arith.negf %286 : vector<2x32xf32>
    %288 = math.exp %287 : vector<2x32xf32>
    %cst_70 = arith.constant 1.000000e+00 : f32
    %289 = vector.broadcast %cst_70 : f32 to vector<2x32xf32>
    %290 = arith.addf %289, %288 : vector<2x32xf32>
    %291 = arith.divf %289, %290 : vector<2x32xf32>
    %292 = arith.mulf %283, %232 : vector<2x32xf32>
    %293 = arith.mulf %277, %285 : vector<2x32xf32>
    %294 = arith.addf %292, %293 : vector<2x32xf32>
    %295 = math.tanh %294 : vector<2x32xf32>
    %296 = arith.mulf %291, %295 : vector<2x32xf32>
    %297 = vector.extract_strided_slice %13 {offsets = [0, 3, 0], sizes = [2, 1, 128], strides = [1, 1, 1]} : vector<2x8x128xf32> to vector<2x1x128xf32>
    %298 = vector.shape_cast %297 : vector<2x1x128xf32> to vector<2x128xf32>
    %cst_71 = arith.constant dense<0.000000e+00> : vector<2x128xf32>
    %299 = tpu.matmul %263, %15, %cst_71 {dimension_numbers = #tpu.dot_dimension_numbers<[1], [0], [0], [1], [0, 0, 1, 1], [], []>} : vector<2x32xf32>, vector<32x128xf32>, vector<2x128xf32> -> vector<2x128xf32>
    %300 = arith.addf %298, %299 : vector<2x128xf32>
    %301 = vector.extract_strided_slice %300 {offsets = [0, 0], sizes = [2, 32], strides = [1, 1]} : vector<2x128xf32> to vector<2x32xf32>
    %302 = arith.negf %301 : vector<2x32xf32>
    %303 = math.exp %302 : vector<2x32xf32>
    %cst_72 = arith.constant 1.000000e+00 : f32
    %304 = vector.broadcast %cst_72 : f32 to vector<2x32xf32>
    %305 = arith.addf %304, %303 : vector<2x32xf32>
    %306 = arith.divf %304, %305 : vector<2x32xf32>
    %307 = vector.extract_strided_slice %300 {offsets = [0, 32], sizes = [2, 32], strides = [1, 1]} : vector<2x128xf32> to vector<2x32xf32>
    %308 = arith.negf %307 : vector<2x32xf32>
    %309 = math.exp %308 : vector<2x32xf32>
    %cst_73 = arith.constant 1.000000e+00 : f32
    %310 = vector.broadcast %cst_73 : f32 to vector<2x32xf32>
    %311 = arith.addf %310, %309 : vector<2x32xf32>
    %312 = arith.divf %310, %311 : vector<2x32xf32>
    %313 = vector.extract_strided_slice %300 {offsets = [0, 64], sizes = [2, 32], strides = [1, 1]} : vector<2x128xf32> to vector<2x32xf32>
    %314 = math.tanh %313 : vector<2x32xf32>
    %315 = vector.extract_strided_slice %300 {offsets = [0, 96], sizes = [2, 32], strides = [1, 1]} : vector<2x128xf32> to vector<2x32xf32>
    %316 = arith.negf %315 : vector<2x32xf32>
    %317 = math.exp %316 : vector<2x32xf32>
    %cst_74 = arith.constant 1.000000e+00 : f32
    %318 = vector.broadcast %cst_74 : f32 to vector<2x32xf32>
    %319 = arith.addf %318, %317 : vector<2x32xf32>
    %320 = arith.divf %318, %319 : vector<2x32xf32>
    %321 = arith.mulf %312, %261 : vector<2x32xf32>
    %322 = arith.mulf %306, %314 : vector<2x32xf32>
    %323 = arith.addf %321, %322 : vector<2x32xf32>
    %324 = math.tanh %323 : vector<2x32xf32>
    %325 = arith.mulf %320, %324 : vector<2x32xf32>
    %326 = vector.shape_cast %296 : vector<2x32xf32> to vector<2x1x32xf32>
    %c0_75 = arith.constant 0 : index
    %c4_76 = arith.constant 4 : index
    %c0_77 = arith.constant 0 : index
    %327 = vector.load %arg11[%c0_75, %c4_76, %c0_77] : memref<2x8x64xf32, #tpu.memory_space<vmem>>, vector<2x1x32xf32>
    tpu.vector_store %arg11[%c0_75, %c4_76, %c0_77], %326 {strides = array<i32>} : memref<2x8x64xf32, #tpu.memory_space<vmem>>, vector<2x1x32xf32>,
    %328 = vector.shape_cast %325 : vector<2x32xf32> to vector<2x1x32xf32>
    %c0_78 = arith.constant 0 : index
    %c3_79 = arith.constant 3 : index
    %c32_80 = arith.constant 32 : index
    %329 = vector.load %arg11[%c0_78, %c3_79, %c32_80] : memref<2x8x64xf32, #tpu.memory_space<vmem>>, vector<2x1x32xf32>
    tpu.vector_store %arg11[%c0_78, %c3_79, %c32_80], %328 {strides = array<i32>} : memref<2x8x64xf32, #tpu.memory_space<vmem>>, vector<2x1x32xf32>,
    %330 = vector.extract_strided_slice %7 {offsets = [0, 5, 0], sizes = [2, 1, 128], strides = [1, 1, 1]} : vector<2x8x128xf32> to vector<2x1x128xf32>
    %331 = vector.shape_cast %330 : vector<2x1x128xf32> to vector<2x128xf32>
    %cst_81 = arith.constant dense<0.000000e+00> : vector<2x128xf32>
    %332 = tpu.matmul %296, %14, %cst_81 {dimension_numbers = #tpu.dot_dimension_numbers<[1], [0], [0], [1], [0, 0, 1, 1], [], []>} : vector<2x32xf32>, vector<32x128xf32>, vector<2x128xf32> -> vector<2x128xf32>
    %333 = arith.addf %331, %332 : vector<2x128xf32>
    %334 = vector.extract_strided_slice %333 {offsets = [0, 0], sizes = [2, 32], strides = [1, 1]} : vector<2x128xf32> to vector<2x32xf32>
    %335 = arith.negf %334 : vector<2x32xf32>
    %336 = math.exp %335 : vector<2x32xf32>
    %cst_82 = arith.constant 1.000000e+00 : f32
    %337 = vector.broadcast %cst_82 : f32 to vector<2x32xf32>
    %338 = arith.addf %337, %336 : vector<2x32xf32>
    %339 = arith.divf %337, %338 : vector<2x32xf32>
    %340 = vector.extract_strided_slice %333 {offsets = [0, 32], sizes = [2, 32], strides = [1, 1]} : vector<2x128xf32> to vector<2x32xf32>
    %341 = arith.negf %340 : vector<2x32xf32>
    %342 = math.exp %341 : vector<2x32xf32>
    %cst_83 = arith.constant 1.000000e+00 : f32
    %343 = vector.broadcast %cst_83 : f32 to vector<2x32xf32>
    %344 = arith.addf %343, %342 : vector<2x32xf32>
    %345 = arith.divf %343, %344 : vector<2x32xf32>
    %346 = vector.extract_strided_slice %333 {offsets = [0, 64], sizes = [2, 32], strides = [1, 1]} : vector<2x128xf32> to vector<2x32xf32>
    %347 = math.tanh %346 : vector<2x32xf32>
    %348 = vector.extract_strided_slice %333 {offsets = [0, 96], sizes = [2, 32], strides = [1, 1]} : vector<2x128xf32> to vector<2x32xf32>
    %349 = arith.negf %348 : vector<2x32xf32>
    %350 = math.exp %349 : vector<2x32xf32>
    %cst_84 = arith.constant 1.000000e+00 : f32
    %351 = vector.broadcast %cst_84 : f32 to vector<2x32xf32>
    %352 = arith.addf %351, %350 : vector<2x32xf32>
    %353 = arith.divf %351, %352 : vector<2x32xf32>
    %354 = arith.mulf %345, %294 : vector<2x32xf32>
    %355 = arith.mulf %339, %347 : vector<2x32xf32>
    %356 = arith.addf %354, %355 : vector<2x32xf32>
    %357 = math.tanh %356 : vector<2x32xf32>
    %358 = arith.mulf %353, %357 : vector<2x32xf32>
    %359 = vector.extract_strided_slice %13 {offsets = [0, 2, 0], sizes = [2, 1, 128], strides = [1, 1, 1]} : vector<2x8x128xf32> to vector<2x1x128xf32>
    %360 = vector.shape_cast %359 : vector<2x1x128xf32> to vector<2x128xf32>
    %cst_85 = arith.constant dense<0.000000e+00> : vector<2x128xf32>
    %361 = tpu.matmul %325, %15, %cst_85 {dimension_numbers = #tpu.dot_dimension_numbers<[1], [0], [0], [1], [0, 0, 1, 1], [], []>} : vector<2x32xf32>, vector<32x128xf32>, vector<2x128xf32> -> vector<2x128xf32>
    %362 = arith.addf %360, %361 : vector<2x128xf32>
    %363 = vector.extract_strided_slice %362 {offsets = [0, 0], sizes = [2, 32], strides = [1, 1]} : vector<2x128xf32> to vector<2x32xf32>
    %364 = arith.negf %363 : vector<2x32xf32>
    %365 = math.exp %364 : vector<2x32xf32>
    %cst_86 = arith.constant 1.000000e+00 : f32
    %366 = vector.broadcast %cst_86 : f32 to vector<2x32xf32>
    %367 = arith.addf %366, %365 : vector<2x32xf32>
    %368 = arith.divf %366, %367 : vector<2x32xf32>
    %369 = vector.extract_strided_slice %362 {offsets = [0, 32], sizes = [2, 32], strides = [1, 1]} : vector<2x128xf32> to vector<2x32xf32>
    %370 = arith.negf %369 : vector<2x32xf32>
    %371 = math.exp %370 : vector<2x32xf32>
    %cst_87 = arith.constant 1.000000e+00 : f32
    %372 = vector.broadcast %cst_87 : f32 to vector<2x32xf32>
    %373 = arith.addf %372, %371 : vector<2x32xf32>
    %374 = arith.divf %372, %373 : vector<2x32xf32>
    %375 = vector.extract_strided_slice %362 {offsets = [0, 64], sizes = [2, 32], strides = [1, 1]} : vector<2x128xf32> to vector<2x32xf32>
    %376 = math.tanh %375 : vector<2x32xf32>
    %377 = vector.extract_strided_slice %362 {offsets = [0, 96], sizes = [2, 32], strides = [1, 1]} : vector<2x128xf32> to vector<2x32xf32>
    %378 = arith.negf %377 : vector<2x32xf32>
    %379 = math.exp %378 : vector<2x32xf32>
    %cst_88 = arith.constant 1.000000e+00 : f32
    %380 = vector.broadcast %cst_88 : f32 to vector<2x32xf32>
    %381 = arith.addf %380, %379 : vector<2x32xf32>
    %382 = arith.divf %380, %381 : vector<2x32xf32>
    %383 = arith.mulf %374, %323 : vector<2x32xf32>
    %384 = arith.mulf %368, %376 : vector<2x32xf32>
    %385 = arith.addf %383, %384 : vector<2x32xf32>
    %386 = math.tanh %385 : vector<2x32xf32>
    %387 = arith.mulf %382, %386 : vector<2x32xf32>
    %388 = vector.shape_cast %358 : vector<2x32xf32> to vector<2x1x32xf32>
    %c0_89 = arith.constant 0 : index
    %c5_90 = arith.constant 5 : index
    %c0_91 = arith.constant 0 : index
    %389 = vector.load %arg11[%c0_89, %c5_90, %c0_91] : memref<2x8x64xf32, #tpu.memory_space<vmem>>, vector<2x1x32xf32>
    tpu.vector_store %arg11[%c0_89, %c5_90, %c0_91], %388 {strides = array<i32>} : memref<2x8x64xf32, #tpu.memory_space<vmem>>, vector<2x1x32xf32>,
    %390 = vector.shape_cast %387 : vector<2x32xf32> to vector<2x1x32xf32>
    %c0_92 = arith.constant 0 : index
    %c2_93 = arith.constant 2 : index
    %c32_94 = arith.constant 32 : index
    %391 = vector.load %arg11[%c0_92, %c2_93, %c32_94] : memref<2x8x64xf32, #tpu.memory_space<vmem>>, vector<2x1x32xf32>
    tpu.vector_store %arg11[%c0_92, %c2_93, %c32_94], %390 {strides = array<i32>} : memref<2x8x64xf32, #tpu.memory_space<vmem>>, vector<2x1x32xf32>,
    %392 = vector.extract_strided_slice %7 {offsets = [0, 6, 0], sizes = [2, 1, 128], strides = [1, 1, 1]} : vector<2x8x128xf32> to vector<2x1x128xf32>
    %393 = vector.shape_cast %392 : vector<2x1x128xf32> to vector<2x128xf32>
    %cst_95 = arith.constant dense<0.000000e+00> : vector<2x128xf32>
    %394 = tpu.matmul %358, %14, %cst_95 {dimension_numbers = #tpu.dot_dimension_numbers<[1], [0], [0], [1], [0, 0, 1, 1], [], []>} : vector<2x32xf32>, vector<32x128xf32>, vector<2x128xf32> -> vector<2x128xf32>
    %395 = arith.addf %393, %394 : vector<2x128xf32>
    %396 = vector.extract_strided_slice %395 {offsets = [0, 0], sizes = [2, 32], strides = [1, 1]} : vector<2x128xf32> to vector<2x32xf32>
    %397 = arith.negf %396 : vector<2x32xf32>
    %398 = math.exp %397 : vector<2x32xf32>
    %cst_96 = arith.constant 1.000000e+00 : f32
    %399 = vector.broadcast %cst_96 : f32 to vector<2x32xf32>
    %400 = arith.addf %399, %398 : vector<2x32xf32>
    %401 = arith.divf %399, %400 : vector<2x32xf32>
    %402 = vector.extract_strided_slice %395 {offsets = [0, 32], sizes = [2, 32], strides = [1, 1]} : vector<2x128xf32> to vector<2x32xf32>
    %403 = arith.negf %402 : vector<2x32xf32>
    %404 = math.exp %403 : vector<2x32xf32>
    %cst_97 = arith.constant 1.000000e+00 : f32
    %405 = vector.broadcast %cst_97 : f32 to vector<2x32xf32>
    %406 = arith.addf %405, %404 : vector<2x32xf32>
    %407 = arith.divf %405, %406 : vector<2x32xf32>
    %408 = vector.extract_strided_slice %395 {offsets = [0, 64], sizes = [2, 32], strides = [1, 1]} : vector<2x128xf32> to vector<2x32xf32>
    %409 = math.tanh %408 : vector<2x32xf32>
    %410 = vector.extract_strided_slice %395 {offsets = [0, 96], sizes = [2, 32], strides = [1, 1]} : vector<2x128xf32> to vector<2x32xf32>
    %411 = arith.negf %410 : vector<2x32xf32>
    %412 = math.exp %411 : vector<2x32xf32>
    %cst_98 = arith.constant 1.000000e+00 : f32
    %413 = vector.broadcast %cst_98 : f32 to vector<2x32xf32>
    %414 = arith.addf %413, %412 : vector<2x32xf32>
    %415 = arith.divf %413, %414 : vector<2x32xf32>
    %416 = arith.mulf %407, %356 : vector<2x32xf32>
    %417 = arith.mulf %401, %409 : vector<2x32xf32>
    %418 = arith.addf %416, %417 : vector<2x32xf32>
    %419 = math.tanh %418 : vector<2x32xf32>
    %420 = arith.mulf %415, %419 : vector<2x32xf32>
    %421 = vector.extract_strided_slice %13 {offsets = [0, 1, 0], sizes = [2, 1, 128], strides = [1, 1, 1]} : vector<2x8x128xf32> to vector<2x1x128xf32>
    %422 = vector.shape_cast %421 : vector<2x1x128xf32> to vector<2x128xf32>
    %cst_99 = arith.constant dense<0.000000e+00> : vector<2x128xf32>
    %423 = tpu.matmul %387, %15, %cst_99 {dimension_numbers = #tpu.dot_dimension_numbers<[1], [0], [0], [1], [0, 0, 1, 1], [], []>} : vector<2x32xf32>, vector<32x128xf32>, vector<2x128xf32> -> vector<2x128xf32>
    %424 = arith.addf %422, %423 : vector<2x128xf32>
    %425 = vector.extract_strided_slice %424 {offsets = [0, 0], sizes = [2, 32], strides = [1, 1]} : vector<2x128xf32> to vector<2x32xf32>
    %426 = arith.negf %425 : vector<2x32xf32>
    %427 = math.exp %426 : vector<2x32xf32>
    %cst_100 = arith.constant 1.000000e+00 : f32
    %428 = vector.broadcast %cst_100 : f32 to vector<2x32xf32>
    %429 = arith.addf %428, %427 : vector<2x32xf32>
    %430 = arith.divf %428, %429 : vector<2x32xf32>
    %431 = vector.extract_strided_slice %424 {offsets = [0, 32], sizes = [2, 32], strides = [1, 1]} : vector<2x128xf32> to vector<2x32xf32>
    %432 = arith.negf %431 : vector<2x32xf32>
    %433 = math.exp %432 : vector<2x32xf32>
    %cst_101 = arith.constant 1.000000e+00 : f32
    %434 = vector.broadcast %cst_101 : f32 to vector<2x32xf32>
    %435 = arith.addf %434, %433 : vector<2x32xf32>
    %436 = arith.divf %434, %435 : vector<2x32xf32>
    %437 = vector.extract_strided_slice %424 {offsets = [0, 64], sizes = [2, 32], strides = [1, 1]} : vector<2x128xf32> to vector<2x32xf32>
    %438 = math.tanh %437 : vector<2x32xf32>
    %439 = vector.extract_strided_slice %424 {offsets = [0, 96], sizes = [2, 32], strides = [1, 1]} : vector<2x128xf32> to vector<2x32xf32>
    %440 = arith.negf %439 : vector<2x32xf32>
    %441 = math.exp %440 : vector<2x32xf32>
    %cst_102 = arith.constant 1.000000e+00 : f32
    %442 = vector.broadcast %cst_102 : f32 to vector<2x32xf32>
    %443 = arith.addf %442, %441 : vector<2x32xf32>
    %444 = arith.divf %442, %443 : vector<2x32xf32>
    %445 = arith.mulf %436, %385 : vector<2x32xf32>
    %446 = arith.mulf %430, %438 : vector<2x32xf32>
    %447 = arith.addf %445, %446 : vector<2x32xf32>
    %448 = math.tanh %447 : vector<2x32xf32>
    %449 = arith.mulf %444, %448 : vector<2x32xf32>
    %450 = vector.shape_cast %420 : vector<2x32xf32> to vector<2x1x32xf32>
    %c0_103 = arith.constant 0 : index
    %c6_104 = arith.constant 6 : index
    %c0_105 = arith.constant 0 : index
    %451 = vector.load %arg11[%c0_103, %c6_104, %c0_105] : memref<2x8x64xf32, #tpu.memory_space<vmem>>, vector<2x1x32xf32>
    tpu.vector_store %arg11[%c0_103, %c6_104, %c0_105], %450 {strides = array<i32>} : memref<2x8x64xf32, #tpu.memory_space<vmem>>, vector<2x1x32xf32>,
    %452 = vector.shape_cast %449 : vector<2x32xf32> to vector<2x1x32xf32>
    %c0_106 = arith.constant 0 : index
    %c1_107 = arith.constant 1 : index
    %c32_108 = arith.constant 32 : index
    %453 = vector.load %arg11[%c0_106, %c1_107, %c32_108] : memref<2x8x64xf32, #tpu.memory_space<vmem>>, vector<2x1x32xf32>
    tpu.vector_store %arg11[%c0_106, %c1_107, %c32_108], %452 {strides = array<i32>} : memref<2x8x64xf32, #tpu.memory_space<vmem>>, vector<2x1x32xf32>,
    %454 = vector.extract_strided_slice %7 {offsets = [0, 7, 0], sizes = [2, 1, 128], strides = [1, 1, 1]} : vector<2x8x128xf32> to vector<2x1x128xf32>
    %455 = vector.shape_cast %454 : vector<2x1x128xf32> to vector<2x128xf32>
    %cst_109 = arith.constant dense<0.000000e+00> : vector<2x128xf32>
    %456 = tpu.matmul %420, %14, %cst_109 {dimension_numbers = #tpu.dot_dimension_numbers<[1], [0], [0], [1], [0, 0, 1, 1], [], []>} : vector<2x32xf32>, vector<32x128xf32>, vector<2x128xf32> -> vector<2x128xf32>
    %457 = arith.addf %455, %456 : vector<2x128xf32>
    %458 = vector.extract_strided_slice %457 {offsets = [0, 0], sizes = [2, 32], strides = [1, 1]} : vector<2x128xf32> to vector<2x32xf32>
    %459 = arith.negf %458 : vector<2x32xf32>
    %460 = math.exp %459 : vector<2x32xf32>
    %cst_110 = arith.constant 1.000000e+00 : f32
    %461 = vector.broadcast %cst_110 : f32 to vector<2x32xf32>
    %462 = arith.addf %461, %460 : vector<2x32xf32>
    %463 = arith.divf %461, %462 : vector<2x32xf32>
    %464 = vector.extract_strided_slice %457 {offsets = [0, 32], sizes = [2, 32], strides = [1, 1]} : vector<2x128xf32> to vector<2x32xf32>
    %465 = arith.negf %464 : vector<2x32xf32>
    %466 = math.exp %465 : vector<2x32xf32>
    %cst_111 = arith.constant 1.000000e+00 : f32
    %467 = vector.broadcast %cst_111 : f32 to vector<2x32xf32>
    %468 = arith.addf %467, %466 : vector<2x32xf32>
    %469 = arith.divf %467, %468 : vector<2x32xf32>
    %470 = vector.extract_strided_slice %457 {offsets = [0, 64], sizes = [2, 32], strides = [1, 1]} : vector<2x128xf32> to vector<2x32xf32>
    %471 = math.tanh %470 : vector<2x32xf32>
    %472 = vector.extract_strided_slice %457 {offsets = [0, 96], sizes = [2, 32], strides = [1, 1]} : vector<2x128xf32> to vector<2x32xf32>
    %473 = arith.negf %472 : vector<2x32xf32>
    %474 = math.exp %473 : vector<2x32xf32>
    %cst_112 = arith.constant 1.000000e+00 : f32
    %475 = vector.broadcast %cst_112 : f32 to vector<2x32xf32>
    %476 = arith.addf %475, %474 : vector<2x32xf32>
    %477 = arith.divf %475, %476 : vector<2x32xf32>
    %478 = arith.mulf %469, %418 : vector<2x32xf32>
    %479 = arith.mulf %463, %471 : vector<2x32xf32>
    %480 = arith.addf %478, %479 : vector<2x32xf32>
    %481 = math.tanh %480 : vector<2x32xf32>
    %482 = arith.mulf %477, %481 : vector<2x32xf32>
    %483 = vector.extract_strided_slice %13 {offsets = [0, 0, 0], sizes = [2, 1, 128], strides = [1, 1, 1]} : vector<2x8x128xf32> to vector<2x1x128xf32>
    %484 = vector.shape_cast %483 : vector<2x1x128xf32> to vector<2x128xf32>
    %cst_113 = arith.constant dense<0.000000e+00> : vector<2x128xf32>
    %485 = tpu.matmul %449, %15, %cst_113 {dimension_numbers = #tpu.dot_dimension_numbers<[1], [0], [0], [1], [0, 0, 1, 1], [], []>} : vector<2x32xf32>, vector<32x128xf32>, vector<2x128xf32> -> vector<2x128xf32>
    %486 = arith.addf %484, %485 : vector<2x128xf32>
    %487 = vector.extract_strided_slice %486 {offsets = [0, 0], sizes = [2, 32], strides = [1, 1]} : vector<2x128xf32> to vector<2x32xf32>
    %488 = arith.negf %487 : vector<2x32xf32>
    %489 = math.exp %488 : vector<2x32xf32>
    %cst_114 = arith.constant 1.000000e+00 : f32
    %490 = vector.broadcast %cst_114 : f32 to vector<2x32xf32>
    %491 = arith.addf %490, %489 : vector<2x32xf32>
    %492 = arith.divf %490, %491 : vector<2x32xf32>
    %493 = vector.extract_strided_slice %486 {offsets = [0, 32], sizes = [2, 32], strides = [1, 1]} : vector<2x128xf32> to vector<2x32xf32>
    %494 = arith.negf %493 : vector<2x32xf32>
    %495 = math.exp %494 : vector<2x32xf32>
    %cst_115 = arith.constant 1.000000e+00 : f32
    %496 = vector.broadcast %cst_115 : f32 to vector<2x32xf32>
    %497 = arith.addf %496, %495 : vector<2x32xf32>
    %498 = arith.divf %496, %497 : vector<2x32xf32>
    %499 = vector.extract_strided_slice %486 {offsets = [0, 64], sizes = [2, 32], strides = [1, 1]} : vector<2x128xf32> to vector<2x32xf32>
    %500 = math.tanh %499 : vector<2x32xf32>
    %501 = vector.extract_strided_slice %486 {offsets = [0, 96], sizes = [2, 32], strides = [1, 1]} : vector<2x128xf32> to vector<2x32xf32>
    %502 = arith.negf %501 : vector<2x32xf32>
    %503 = math.exp %502 : vector<2x32xf32>
    %cst_116 = arith.constant 1.000000e+00 : f32
    %504 = vector.broadcast %cst_116 : f32 to vector<2x32xf32>
    %505 = arith.addf %504, %503 : vector<2x32xf32>
    %506 = arith.divf %504, %505 : vector<2x32xf32>
    %507 = arith.mulf %498, %447 : vector<2x32xf32>
    %508 = arith.mulf %492, %500 : vector<2x32xf32>
    %509 = arith.addf %507, %508 : vector<2x32xf32>
    %510 = math.tanh %509 : vector<2x32xf32>
    %511 = arith.mulf %506, %510 : vector<2x32xf32>
    %512 = vector.shape_cast %482 : vector<2x32xf32> to vector<2x1x32xf32>
    %c0_117 = arith.constant 0 : index
    %c7_118 = arith.constant 7 : index
    %c0_119 = arith.constant 0 : index
    %513 = vector.load %arg11[%c0_117, %c7_118, %c0_119] : memref<2x8x64xf32, #tpu.memory_space<vmem>>, vector<2x1x32xf32>
    tpu.vector_store %arg11[%c0_117, %c7_118, %c0_119], %512 {strides = array<i32>} : memref<2x8x64xf32, #tpu.memory_space<vmem>>, vector<2x1x32xf32>,
    %514 = vector.shape_cast %511 : vector<2x32xf32> to vector<2x1x32xf32>
    %c0_120 = arith.constant 0 : index
    %c0_121 = arith.constant 0 : index
    %c32_122 = arith.constant 32 : index
    %515 = vector.load %arg11[%c0_120, %c0_121, %c32_122] : memref<2x8x64xf32, #tpu.memory_space<vmem>>, vector<2x1x32xf32>
    tpu.vector_store %arg11[%c0_120, %c0_121, %c32_122], %514 {strides = array<i32>} : memref<2x8x64xf32, #tpu.memory_space<vmem>>, vector<2x1x32xf32>,
    %c0_123 = arith.constant 0 : index
    %c0_124 = arith.constant 0 : index
    %516 = vector.load %arg7[%c0_123, %c0_124] : memref<64x64xf32, #tpu.memory_space<vmem>>, vector<64x64xf32>
    %c0_125 = arith.constant 0 : index
    %c0_126 = arith.constant 0 : index
    %517 = vector.load %arg9[%c0_125, %c0_126] : memref<64x64xf32, #tpu.memory_space<vmem>>, vector<64x64xf32>
    %518 = vector.extract_strided_slice %516 {offsets = [0, 0], sizes = [32, 64], strides = [1, 1]} : vector<64x64xf32> to vector<32x64xf32>
    %cst_127 = arith.constant dense<0.000000e+00> : vector<2x64xf32>
    %519 = tpu.matmul %482, %518, %cst_127 {dimension_numbers = #tpu.dot_dimension_numbers<[1], [0], [0], [1], [0, 0, 1, 1], [], []>} : vector<2x32xf32>, vector<32x64xf32>, vector<2x64xf32> -> vector<2x64xf32>
    %520 = vector.extract_strided_slice %516 {offsets = [32, 0], sizes = [32, 64], strides = [1, 1]} : vector<64x64xf32> to vector<32x64xf32>
    %cst_128 = arith.constant dense<0.000000e+00> : vector<2x64xf32>
    %521 = tpu.matmul %511, %520, %cst_128 {dimension_numbers = #tpu.dot_dimension_numbers<[1], [0], [0], [1], [0, 0, 1, 1], [], []>} : vector<2x32xf32>, vector<32x64xf32>, vector<2x64xf32> -> vector<2x64xf32>
    %522 = arith.addf %519, %521 : vector<2x64xf32>
    %c0_129 = arith.constant 0 : index
    %c0_130 = arith.constant 0 : index
    %523 = vector.load %arg8[%c0_129, %c0_130] : memref<1x64xf32, #tpu.memory_space<vmem>>, vector<1x64xf32>
    %524 = vector.broadcast %523 : vector<1x64xf32> to vector<2x64xf32>
    %525 = arith.addf %522, %524 : vector<2x64xf32>
    %526 = vector.extract_strided_slice %517 {offsets = [0, 0], sizes = [32, 64], strides = [1, 1]} : vector<64x64xf32> to vector<32x64xf32>
    %cst_131 = arith.constant dense<0.000000e+00> : vector<2x64xf32>
    %527 = tpu.matmul %480, %526, %cst_131 {dimension_numbers = #tpu.dot_dimension_numbers<[1], [0], [0], [1], [0, 0, 1, 1], [], []>} : vector<2x32xf32>, vector<32x64xf32>, vector<2x64xf32> -> vector<2x64xf32>
    %528 = vector.extract_strided_slice %517 {offsets = [32, 0], sizes = [32, 64], strides = [1, 1]} : vector<64x64xf32> to vector<32x64xf32>
    %cst_132 = arith.constant dense<0.000000e+00> : vector<2x64xf32>
    %529 = tpu.matmul %509, %528, %cst_132 {dimension_numbers = #tpu.dot_dimension_numbers<[1], [0], [0], [1], [0, 0, 1, 1], [], []>} : vector<2x32xf32>, vector<32x64xf32>, vector<2x64xf32> -> vector<2x64xf32>
    %530 = arith.addf %527, %529 : vector<2x64xf32>
    %c0_133 = arith.constant 0 : index
    %c0_134 = arith.constant 0 : index
    %531 = vector.load %arg10[%c0_133, %c0_134] : memref<1x64xf32, #tpu.memory_space<vmem>>, vector<1x64xf32>
    %532 = vector.broadcast %531 : vector<1x64xf32> to vector<2x64xf32>
    %533 = arith.addf %530, %532 : vector<2x64xf32>
    %c0_135 = arith.constant 0 : index
    %c0_136 = arith.constant 0 : index
    %534 = vector.load %arg12[%c0_135, %c0_136] : memref<2x64xf32, #tpu.memory_space<vmem>>, vector<2x64xf32>
    tpu.vector_store %arg12[%c0_135, %c0_136], %525 {strides = array<i32>} : memref<2x64xf32, #tpu.memory_space<vmem>>, vector<2x64xf32>,
    %c0_137 = arith.constant 0 : index
    %c0_138 = arith.constant 0 : index
    %535 = vector.load %arg13[%c0_137, %c0_138] : memref<2x64xf32, #tpu.memory_space<vmem>>, vector<2x64xf32>
    tpu.vector_store %arg13[%c0_137, %c0_138], %533 {strides = array<i32>} : memref<2x64xf32, #tpu.memory_space<vmem>>, vector<2x64xf32>,
    return
  }
}

</mosaic_0001>

<llo_original>
// kernel: rnn_autoencoder_forward.3
$region0: #{rnn_autoencoder_forward.3}
  #allocation0 [shape = 'u32[]', space=smem, size = 0x4, offset = 0x4, fixed_abs, tag = 'smem constant byte address 0x4 - core index']
  #allocation1 [shape = 'u32[144,128]{1,0:T(1,128)}', space=vmem, size = 0x12000, scoped, tag = 'internal scratch']
  #allocation2 [shape = 'f32[2,8,64]{2,1,0:T(8,128)}', space=vmem, size = 0x2000, scoped, tag = 'scratch operand']
  %s0 = inlined_call_operand.vmem [shape: f32[2,8,32], index: 0, kind: input, shape index: {}]
  %s1 = inlined_call_operand.vmem [shape: f32[2,32,256], index: 1, kind: input, shape index: {}]
  %s2 = inlined_call_operand.vmem [shape: f32[2,64,256], index: 2, kind: input, shape index: {}]
  %s3 = inlined_call_operand.vmem [shape: f32[2,1,256], index: 3, kind: input, shape index: {}]
  %s4 = inlined_call_operand.vmem [shape: f32[2,64], index: 4, kind: input, shape index: {}]
  %s5 = inlined_call_operand.vmem [shape: f32[2,64], index: 5, kind: input, shape index: {}]
  %s6 = inlined_call_operand.vmem [shape: f32[2,8,64], index: 6, kind: input, shape index: {}]
  %s7 = inlined_call_operand.vmem [shape: f32[128,64], index: 7, kind: input, shape index: {}]
  %s8 = inlined_call_operand.vmem [shape: f32[64,128], index: 8, kind: input, shape index: {}]
  %s9 = inlined_call_operand.vmem [shape: f32[1,128], index: 9, kind: input, shape index: {}]
  %s10 = inlined_call_operand.vmem [shape: f32[2,2,8,128], index: 10, kind: output, shape index: {0}]
  %s11 = inlined_call_operand.vmem [shape: f32[2,2,8,8], index: 11, kind: output, shape index: {1}]
  %12 = xla_tuple %s10, %s11
  %s13 = sld [smem:[#allocation0]]
  $region81: #{rnn_autoencoder_forward.3} parent=0
    _
  %s15 = ssub.s32 1, %s13
  %s16 = scalar_select 0, %s15, %s13
  loop: start=0, step=1, limit=4
  $region2: #{rnn_autoencoder_forward.3} parent=0 // loop_pre_header
    _
  $region3: #{rnn_autoencoder_forward.3} parent=0 // loop_header
    %s18 = sphi 0, %s22
    %p19 = scmp.ge.s32.totalorder %s18, 4
    %s26 = sphi 0, %s26
    %s28 = sphi 0, %s26
    %s29 = sphi 0, %s28
    %s43 = sphi 0, %s29
    %s49 = sphi 0, %s51
    %s52 = sphi 0, %s49
    %s53 = sphi 0, %s52
    %s69 = sphi 0, %s53
    %s75 = sphi 0, %s77
    %s78 = sphi 0, %s75
    %s79 = sphi 0, %s78
    %s95 = sphi 0, %s79
    %s101 = sphi 0, %s103
    %s104 = sphi 0, %s101
    %s105 = sphi 0, %s104
    %s121 = sphi 0, %s105
    %s125 = sphi 0, %s125
    %s127 = sphi 0, %s125
    %s128 = sphi 0, %s127
    %s142 = sphi 0, %s128
    %s146 = sphi 0, %s146
    %s148 = sphi 0, %s146
    %s149 = sphi 0, %s148
    %s163 = sphi 0, %s149
    %s167 = sphi 0, %s167
    %s169 = sphi 0, %s167
    %s170 = sphi 0, %s169
    %s184 = sphi 0, %s170
    %s188 = sphi 0, %s188
    %s190 = sphi 0, %s188
    %s191 = sphi 0, %s190
    %s205 = sphi 0, %s191
    %s209 = sphi 0, %s209
    %s211 = sphi 0, %s209
    %s212 = sphi 0, %s211
    %s226 = sphi 0, %s212
    %s230 = sphi 0, %s230
    %s232 = sphi 0, %s230
    %s233 = sphi 0, %s232
    %s247 = sphi 0, %s233
    %s253 = sphi 0, %s255
    %s256 = sphi 0, %s253
    %s257 = sphi 0, %s256
    %s273 = sphi 0, %s257
    %s279 = sphi 0, %s281
    %s282 = sphi 0, %s279
    %s283 = sphi 0, %s282
    %s299 = sphi 0, %s283
  $region4: #{rnn_autoencoder_forward.3} parent=0 // loop_header_branch
    %21 = sbr.rel (%p19) target = $region8
  $region5: #{rnn_autoencoder_forward.3} parent=0 // loop_body
    %s23 = ssub.s32 %s18, 1
    %s24 = ssub.s32 %s18, 2
    %s25 = sadd.s32 %s18, 1
    %s27 = sadd.s32 %s26, 1
    %p30 = scmp.eq.s32.totalorder %s18, 1
    %p31 = scmp.ne.s32.totalorder %s26, %s28
    %p32 = scmp.eq.s32.totalorder %s18, 0
    %p33 = por %p31, %p32
    %p34 = scmp.ne.s32.totalorder %s26, %s28
    %p35 = scmp.eq.s32.totalorder %s23, 1
    %p36 = por %p34, %p35
    %p37 = scmp.ne.s32.totalorder %s28, %s29
    %p38 = scmp.eq.s32.totalorder %s23, 0
    %p39 = por %p37, %p38
    %p40 = scmp.ne.s32.totalorder %s28, %s29
    %p41 = scmp.eq.s32.totalorder %s24, 1
    %p42 = por %p40, %p41
    %p44 = scmp.ne.s32.totalorder %s29, %s43
    %p45 = scmp.eq.s32.totalorder %s24, 0
    %p46 = por %p44, %p45
    %s47 = ssub.s32 %s18, %s25
    %p48 = scmp.eq.s32.totalorder %s47, 0
    %s50 = sadd.s32 %s49, 1
    %s51 = scalar_select %p48, %s49, %s50
    %p54 = pneg %p48
    %p55 = scmp.eq.s32.totalorder %s18, 1
    %p56 = por %p54, %p55
    %p57 = scmp.ne.s32.totalorder %s49, %s52
    %p58 = scmp.eq.s32.totalorder %s18, 0
    %p59 = por %p57, %p58
    %p60 = scmp.ne.s32.totalorder %s49, %s52
    %p61 = scmp.eq.s32.totalorder %s23, 1
    %p62 = por %p60, %p61
    %p63 = scmp.ne.s32.totalorder %s52, %s53
    %p64 = scmp.eq.s32.totalorder %s23, 0
    %p65 = por %p63, %p64
    %p66 = scmp.ne.s32.totalorder %s52, %s53
    %p67 = scmp.eq.s32.totalorder %s24, 1
    %p68 = por %p66, %p67
    %p70 = scmp.ne.s32.totalorder %s53, %s69
    %p71 = scmp.eq.s32.totalorder %s24, 0
    %p72 = por %p70, %p71
    %s73 = ssub.s32 %s18, %s25
    %p74 = scmp.eq.s32.totalorder %s73, 0
    %s76 = sadd.s32 %s75, 1
    %s77 = scalar_select %p74, %s75, %s76
    %p80 = pneg %p74
    %p81 = scmp.eq.s32.totalorder %s18, 1
    %p82 = por %p80, %p81
    %p83 = scmp.ne.s32.totalorder %s75, %s78
    %p84 = scmp.eq.s32.totalorder %s18, 0
    %p85 = por %p83, %p84
    %p86 = scmp.ne.s32.totalorder %s75, %s78
    %p87 = scmp.eq.s32.totalorder %s23, 1
    %p88 = por %p86, %p87
    %p89 = scmp.ne.s32.totalorder %s78, %s79
    %p90 = scmp.eq.s32.totalorder %s23, 0
    %p91 = por %p89, %p90
    %p92 = scmp.ne.s32.totalorder %s78, %s79
    %p93 = scmp.eq.s32.totalorder %s24, 1
    %p94 = por %p92, %p93
    %p96 = scmp.ne.s32.totalorder %s79, %s95
    %p97 = scmp.eq.s32.totalorder %s24, 0
    %p98 = por %p96, %p97
    %s99 = ssub.s32 %s18, %s25
    %p100 = scmp.eq.s32.totalorder %s99, 0
    %s102 = sadd.s32 %s101, 1
    %s103 = scalar_select %p100, %s101, %s102
    %p106 = pneg %p100
    %p107 = scmp.eq.s32.totalorder %s18, 1
    %p108 = por %p106, %p107
    %p109 = scmp.ne.s32.totalorder %s101, %s104
    %p110 = scmp.eq.s32.totalorder %s18, 0
    %p111 = por %p109, %p110
    %p112 = scmp.ne.s32.totalorder %s101, %s104
    %p113 = scmp.eq.s32.totalorder %s23, 1
    %p114 = por %p112, %p113
    %p115 = scmp.ne.s32.totalorder %s104, %s105
    %p116 = scmp.eq.s32.totalorder %s23, 0
    %p117 = por %p115, %p116
    %p118 = scmp.ne.s32.totalorder %s104, %s105
    %p119 = scmp.eq.s32.totalorder %s24, 1
    %p120 = por %p118, %p119
    %p122 = scmp.ne.s32.totalorder %s105, %s121
    %p123 = scmp.eq.s32.totalorder %s24, 0
    %p124 = por %p122, %p123
    %s126 = sadd.s32 %s125, 1
    %p129 = scmp.eq.s32.totalorder %s18, 1
    %p130 = scmp.ne.s32.totalorder %s125, %s127
    %p131 = scmp.eq.s32.totalorder %s18, 0
    %p132 = por %p130, %p131
    %p133 = scmp.ne.s32.totalorder %s125, %s127
    %p134 = scmp.eq.s32.totalorder %s23, 1
    %p135 = por %p133, %p134
    %p136 = scmp.ne.s32.totalorder %s127, %s128
    %p137 = scmp.eq.s32.totalorder %s23, 0
    %p138 = por %p136, %p137
    %p139 = scmp.ne.s32.totalorder %s127, %s128
    %p140 = scmp.eq.s32.totalorder %s24, 1
    %p141 = por %p139, %p140
    %p143 = scmp.ne.s32.totalorder %s128, %s142
    %p144 = scmp.eq.s32.totalorder %s24, 0
    %p145 = por %p143, %p144
    %s147 = sadd.s32 %s146, 1
    %p150 = scmp.eq.s32.totalorder %s18, 1
    %p151 = scmp.ne.s32.totalorder %s146, %s148
    %p152 = scmp.eq.s32.totalorder %s18, 0
    %p153 = por %p151, %p152
    %p154 = scmp.ne.s32.totalorder %s146, %s148
    %p155 = scmp.eq.s32.totalorder %s23, 1
    %p156 = por %p154, %p155
    %p157 = scmp.ne.s32.totalorder %s148, %s149
    %p158 = scmp.eq.s32.totalorder %s23, 0
    %p159 = por %p157, %p158
    %p160 = scmp.ne.s32.totalorder %s148, %s149
    %p161 = scmp.eq.s32.totalorder %s24, 1
    %p162 = por %p160, %p161
    %p164 = scmp.ne.s32.totalorder %s149, %s163
    %p165 = scmp.eq.s32.totalorder %s24, 0
    %p166 = por %p164, %p165
    %s168 = sadd.s32 %s167, 1
    %p171 = scmp.eq.s32.totalorder %s18, 1
    %p172 = scmp.ne.s32.totalorder %s167, %s169
    %p173 = scmp.eq.s32.totalorder %s18, 0
    %p174 = por %p172, %p173
    %p175 = scmp.ne.s32.totalorder %s167, %s169
    %p176 = scmp.eq.s32.totalorder %s23, 1
    %p177 = por %p175, %p176
    %p178 = scmp.ne.s32.totalorder %s169, %s170
    %p179 = scmp.eq.s32.totalorder %s23, 0
    %p180 = por %p178, %p179
    %p181 = scmp.ne.s32.totalorder %s169, %s170
    %p182 = scmp.eq.s32.totalorder %s24, 1
    %p183 = por %p181, %p182
    %p185 = scmp.ne.s32.totalorder %s170, %s184
    %p186 = scmp.eq.s32.totalorder %s24, 0
    %p187 = por %p185, %p186
    %s189 = sadd.s32 %s188, 1
    %p192 = scmp.eq.s32.totalorder %s18, 1
    %p193 = scmp.ne.s32.totalorder %s188, %s190
    %p194 = scmp.eq.s32.totalorder %s18, 0
    %p195 = por %p193, %p194
    %p196 = scmp.ne.s32.totalorder %s188, %s190
    %p197 = scmp.eq.s32.totalorder %s23, 1
    %p198 = por %p196, %p197
    %p199 = scmp.ne.s32.totalorder %s190, %s191
    %p200 = scmp.eq.s32.totalorder %s23, 0
    %p201 = por %p199, %p200
    %p202 = scmp.ne.s32.totalorder %s190, %s191
    %p203 = scmp.eq.s32.totalorder %s24, 1
    %p204 = por %p202, %p203
    %p206 = scmp.ne.s32.totalorder %s191, %s205
    %p207 = scmp.eq.s32.totalorder %s24, 0
    %p208 = por %p206, %p207
    %s210 = sadd.s32 %s209, 1
    %p213 = scmp.eq.s32.totalorder %s18, 1
    %p214 = scmp.ne.s32.totalorder %s209, %s211
    %p215 = scmp.eq.s32.totalorder %s18, 0
    %p216 = por %p214, %p215
    %p217 = scmp.ne.s32.totalorder %s209, %s211
    %p218 = scmp.eq.s32.totalorder %s23, 1
    %p219 = por %p217, %p218
    %p220 = scmp.ne.s32.totalorder %s211, %s212
    %p221 = scmp.eq.s32.totalorder %s23, 0
    %p222 = por %p220, %p221
    %p223 = scmp.ne.s32.totalorder %s211, %s212
    %p224 = scmp.eq.s32.totalorder %s24, 1
    %p225 = por %p223, %p224
    %p227 = scmp.ne.s32.totalorder %s212, %s226
    %p228 = scmp.eq.s32.totalorder %s24, 0
    %p229 = por %p227, %p228
    %s231 = sadd.s32 %s230, 1
    %p234 = scmp.eq.s32.totalorder %s18, 1
    %p235 = scmp.ne.s32.totalorder %s230, %s232
    %p236 = scmp.eq.s32.totalorder %s18, 0
    %p237 = por %p235, %p236
    %p238 = scmp.ne.s32.totalorder %s230, %s232
    %p239 = scmp.eq.s32.totalorder %s23, 1
    %p240 = por %p238, %p239
    %p241 = scmp.ne.s32.totalorder %s232, %s233
    %p242 = scmp.eq.s32.totalorder %s23, 0
    %p243 = por %p241, %p242
    %p244 = scmp.ne.s32.totalorder %s232, %s233
    %p245 = scmp.eq.s32.totalorder %s24, 1
    %p246 = por %p244, %p245
    %p248 = scmp.ne.s32.totalorder %s233, %s247
    %p249 = scmp.eq.s32.totalorder %s24, 0
    %p250 = por %p248, %p249
    %s251 = ssub.s32 %s18, %s25
    %p252 = scmp.eq.s32.totalorder %s251, 0
    %s254 = sadd.s32 %s253, 1
    %s255 = scalar_select %p252, %s253, %s254
    %p258 = pneg %p252
    %p259 = scmp.eq.s32.totalorder %s18, 1
    %p260 = por %p258, %p259
    %p261 = scmp.ne.s32.totalorder %s253, %s256
    %p262 = scmp.eq.s32.totalorder %s18, 0
    %p263 = por %p261, %p262
    %p264 = scmp.ne.s32.totalorder %s253, %s256
    %p265 = scmp.eq.s32.totalorder %s23, 1
    %p266 = por %p264, %p265
    %p267 = scmp.ne.s32.totalorder %s256, %s257
    %p268 = scmp.eq.s32.totalorder %s23, 0
    %p269 = por %p267, %p268
    %p270 = scmp.ne.s32.totalorder %s256, %s257
    %p271 = scmp.eq.s32.totalorder %s24, 1
    %p272 = por %p270, %p271
    %p274 = scmp.ne.s32.totalorder %s257, %s273
    %p275 = scmp.eq.s32.totalorder %s24, 0
    %p276 = por %p274, %p275
    %s277 = ssub.s32 %s18, %s25
    %p278 = scmp.eq.s32.totalorder %s277, 0
    %s280 = sadd.s32 %s279, 1
    %s281 = scalar_select %p278, %s279, %s280
    %p284 = pneg %p278
    %p285 = scmp.eq.s32.totalorder %s18, 1
    %p286 = por %p284, %p285
    %p287 = scmp.ne.s32.totalorder %s279, %s282
    %p288 = scmp.eq.s32.totalorder %s18, 0
    %p289 = por %p287, %p288
    %p290 = scmp.ne.s32.totalorder %s279, %s282
    %p291 = scmp.eq.s32.totalorder %s23, 1
    %p292 = por %p290, %p291
    %p293 = scmp.ne.s32.totalorder %s282, %s283
    %p294 = scmp.eq.s32.totalorder %s23, 0
    %p295 = por %p293, %p294
    %p296 = scmp.ne.s32.totalorder %s282, %s283
    %p297 = scmp.eq.s32.totalorder %s24, 1
    %p298 = por %p296, %p297
    %p300 = scmp.ne.s32.totalorder %s283, %s299
    %p301 = scmp.eq.s32.totalorder %s24, 0
    %p302 = por %p300, %p301
    %p303 = scmp.le.s32.totalorder 1, %s18
    %p304 = scmp.lt.s32.totalorder %s18, 3
    %p305 = pnand %p303, %p304
    %p306 = pneg %p305
    // Predicated region
    $region9: #{rnn_autoencoder_forward.3} parent=5 // pred_check
      _
    $region10: #{rnn_autoencoder_forward.3} parent=5 // pred_check_branch
      %308 = sbr.rel (%p305) target = $region12
    $region11: #{rnn_autoencoder_forward.3} parent=5 // pred_region
      %s309 = ssub.s32 %s18, 1
      // Predicated region
      $region13: #{rnn_autoencoder_forward.3} parent=11 // pred_check
        %p310 = pneg %p39
      $region14: #{rnn_autoencoder_forward.3} parent=11 // pred_check_branch
        %312 = sbr.rel (%p310) target = $region16
      $region15: #{rnn_autoencoder_forward.3} parent=11 // pred_region
        _
      $region16: #{rnn_autoencoder_forward.3} parent=11 // pred_fallthru
        _
      // Predicated region
      $region17: #{rnn_autoencoder_forward.3} parent=11 // pred_check
        %p313 = pneg %p138
      $region18: #{rnn_autoencoder_forward.3} parent=11 // pred_check_branch
        %315 = sbr.rel (%p313) target = $region20
      $region19: #{rnn_autoencoder_forward.3} parent=11 // pred_region
        _
      $region20: #{rnn_autoencoder_forward.3} parent=11 // pred_fallthru
        _
      // Predicated region
      $region21: #{rnn_autoencoder_forward.3} parent=11 // pred_check
        %p316 = pneg %p159
      $region22: #{rnn_autoencoder_forward.3} parent=11 // pred_check_branch
        %318 = sbr.rel (%p316) target = $region24
      $region23: #{rnn_autoencoder_forward.3} parent=11 // pred_region
        _
      $region24: #{rnn_autoencoder_forward.3} parent=11 // pred_fallthru
        _
      // Predicated region
      $region25: #{rnn_autoencoder_forward.3} parent=11 // pred_check
        %p319 = pneg %p180
      $region26: #{rnn_autoencoder_forward.3} parent=11 // pred_check_branch
        %321 = sbr.rel (%p319) target = $region28
      $region27: #{rnn_autoencoder_forward.3} parent=11 // pred_region
        _
      $region28: #{rnn_autoencoder_forward.3} parent=11 // pred_fallthru
        _
      // Predicated region
      $region29: #{rnn_autoencoder_forward.3} parent=11 // pred_check
        %p322 = pneg %p201
      $region30: #{rnn_autoencoder_forward.3} parent=11 // pred_check_branch
        %324 = sbr.rel (%p322) target = $region32
      $region31: #{rnn_autoencoder_forward.3} parent=11 // pred_region
        _
      $region32: #{rnn_autoencoder_forward.3} parent=11 // pred_fallthru
        _
      // Predicated region
      $region33: #{rnn_autoencoder_forward.3} parent=11 // pred_check
        %p325 = pneg %p222
      $region34: #{rnn_autoencoder_forward.3} parent=11 // pred_check_branch
        %327 = sbr.rel (%p325) target = $region36
      $region35: #{rnn_autoencoder_forward.3} parent=11 // pred_region
        _
      $region36: #{rnn_autoencoder_forward.3} parent=11 // pred_fallthru
        _
      // Predicated region
      $region37: #{rnn_autoencoder_forward.3} parent=11 // pred_check
        %p328 = pneg %p243
      $region38: #{rnn_autoencoder_forward.3} parent=11 // pred_check_branch
        %330 = sbr.rel (%p328) target = $region40
      $region39: #{rnn_autoencoder_forward.3} parent=11 // pred_region
        _
      $region40: #{rnn_autoencoder_forward.3} parent=11 // pred_fallthru
        _
    $region12: #{rnn_autoencoder_forward.3} parent=5 // pred_fallthru
      _
    %p331 = scmp.lt.s32.totalorder %s18, 2
    // Predicated region
    $region41: #{rnn_autoencoder_forward.3} parent=5 // pred_check
      %p332 = pneg %p331
    $region42: #{rnn_autoencoder_forward.3} parent=5 // pred_check_branch
      %334 = sbr.rel (%p332) target = $region44
    $region43: #{rnn_autoencoder_forward.3} parent=5 // pred_region
      // Predicated region
      $region45: #{rnn_autoencoder_forward.3} parent=43 // pred_check
        %p335 = pneg %p59
      $region46: #{rnn_autoencoder_forward.3} parent=43 // pred_check_branch
        %337 = sbr.rel (%p335) target = $region48
      $region47: #{rnn_autoencoder_forward.3} parent=43 // pred_region
        %p338 = scmp.lt.s32.totalorder %s18, 1
        %s339 = scalar_select %p338, %s18, 1
        %s340 = smul.addr %s339, 8
        %s341 = smul.addr %s340, 8
        %s342 = scalar_lea.vmem %s1, %s341
      $region48: #{rnn_autoencoder_forward.3} parent=43 // pred_fallthru
        _
      // Predicated region
      $region49: #{rnn_autoencoder_forward.3} parent=43 // pred_check
        %p343 = pneg %p85
      $region50: #{rnn_autoencoder_forward.3} parent=43 // pred_check_branch
        %345 = sbr.rel (%p343) target = $region52
      $region51: #{rnn_autoencoder_forward.3} parent=43 // pred_region
        %p346 = scmp.lt.s32.totalorder %s18, 1
        %s347 = scalar_select %p346, %s18, 1
        %s348 = smul.addr %s347, 16
        %s349 = smul.addr %s348, 8
        %s350 = scalar_lea.vmem %s2, %s349
      $region52: #{rnn_autoencoder_forward.3} parent=43 // pred_fallthru
        _
      // Predicated region
      $region53: #{rnn_autoencoder_forward.3} parent=43 // pred_check
        %p351 = pneg %p111
      $region54: #{rnn_autoencoder_forward.3} parent=43 // pred_check_branch
        %353 = sbr.rel (%p351) target = $region56
      $region55: #{rnn_autoencoder_forward.3} parent=43 // pred_region
        %p354 = scmp.lt.s32.totalorder %s18, 1
        %s355 = scalar_select %p354, %s18, 1
        %s356 = smul.addr %s355, 2
        %s357 = scalar_lea.vmem %s3, %s356
      $region56: #{rnn_autoencoder_forward.3} parent=43 // pred_fallthru
        _
    $region44: #{rnn_autoencoder_forward.3} parent=5 // pred_fallthru
      _
    %p358 = scmp.le.s32.totalorder 1, %s18
    %p359 = scmp.lt.s32.totalorder %s18, 3
    %p360 = pnand %p358, %p359
    %p361 = pneg %p360
    // Predicated region
    $region57: #{rnn_autoencoder_forward.3} parent=5 // pred_check
      _
    $region58: #{rnn_autoencoder_forward.3} parent=5 // pred_check_branch
      %363 = sbr.rel (%p360) target = $region60
    $region59: #{rnn_autoencoder_forward.3} parent=5 // pred_region
      %s364 = ssub.s32 %s18, 1
      %p365 = pneg %p39
      %p366 = pneg %p36
      %p367 = scmp.lt.s32.totalorder %s23, 1
      %s368 = scalar_select %p367, %s23, 1
      %s369 = smul.addr %s368, 8
      %s370 = smul.addr %s369, 8
      %s371 = scalar_lea.vmem %s1, %s370
      %p372 = pneg %p65
      %p373 = pneg %p62
      %p374 = scmp.lt.s32.totalorder %s23, 1
      %s375 = scalar_select %p374, %s23, 1
      %s376 = smul.addr %s375, 16
      %s377 = smul.addr %s376, 8
      %s378 = scalar_lea.vmem %s2, %s377
      %p379 = pneg %p91
      %p380 = pneg %p88
      %p381 = scmp.lt.s32.totalorder %s23, 1
      %s382 = scalar_select %p381, %s23, 1
      %s383 = smul.addr %s382, 2
      %s384 = scalar_lea.vmem %s3, %s383
      %p385 = pneg %p117
      %p386 = pneg %p114
      %p387 = pneg %p138
      %p388 = pneg %p135
      %p389 = pneg %p159
      %p390 = pneg %p156
      %p391 = pneg %p180
      %p392 = pneg %p177
      %p393 = pneg %p201
      %p394 = pneg %p198
      %p395 = pneg %p222
      %p396 = pneg %p219
      %p397 = pneg %p243
      %p398 = pneg %p240
      %p399 = pneg %p269
      %p400 = pneg %p266
      %p401 = scmp.lt.s32.totalorder %s23, 1
      %s402 = scalar_select %p401, %s23, 1
      %s403 = smul.addr %s402, 2
      %s404 = smul.addr %s403, 8
      %s405 = scalar_lea.vmem %s10, %s404
      %p406 = pneg %p295
      %p407 = pneg %p292
      %p408 = scmp.lt.s32.totalorder %s23, 1
      %s409 = scalar_select %p408, %s23, 1
      %s410 = smul.addr %s409, 2
      %s411 = smul.addr %s410, 8
      %s412 = scalar_lea.vmem %s11, %s411
      %p413 = scmp.lt.s32.totalorder %s23, 1
      %s414 = scalar_select %p413, %s23, 1
      %s415 = smul.addr %s414, 8
      %s416 = smul.addr %s415, 8
      %s417 = scalar_lea.vmem %s1, %s416
      %p418 = scmp.lt.s32.totalorder %s23, 1
      %s419 = scalar_select %p418, %s23, 1
      %s420 = smul.addr %s419, 16
      %s421 = smul.addr %s420, 8
      %s422 = scalar_lea.vmem %s2, %s421
      %p423 = scmp.lt.s32.totalorder %s23, 1
      %s424 = scalar_select %p423, %s23, 1
      %s425 = smul.addr %s424, 2
      %s426 = scalar_lea.vmem %s3, %s425
      %p427 = scmp.lt.s32.totalorder %s23, 1
      %s428 = scalar_select %p427, %s23, 1
      %s429 = smul.addr %s428, 2
      %s430 = smul.addr %s429, 8
      %s431 = scalar_lea.vmem %s10, %s430
      %p432 = scmp.lt.s32.totalorder %s23, 1
      %s433 = scalar_select %p432, %s23, 1
      %s434 = smul.addr %s433, 2
      %s435 = smul.addr %s434, 8
      %s436 = scalar_lea.vmem %s11, %s435
      %v437 = vld [vmem:[%s0] sm:$0xff]
      %v438 = vld [vmem:[%s0 + $0x8] sm:$0xff]
      %v439 = vld [vmem:[%s417] sm:$0xff]
      %v440 = vld [vmem:[%s417 + $0x8] sm:$0xff]
      %v441 = vld [vmem:[%s417 + $0x10] sm:$0xff]
      %v442 = vld [vmem:[%s417 + $0x18] sm:$0xff]
      %v443 = vld [vmem:[%s417 + $0x20] sm:$0xff]
      %v444 = vld [vmem:[%s417 + $0x28] sm:$0xff]
      %v445 = vld [vmem:[%s417 + $0x30] sm:$0xff]
      %v446 = vld [vmem:[%s417 + $0x38] sm:$0xff]
      %v447 = vld [vmem:[%s426] sm:$0x3]
      %v449 = vlaneseq
      %v450 = vshrl.u32 %v449, 7
      %v451 = vsub.s32 0, %v450
      %v452 = vrot.slane %v447, %v451
      %v453 = vlaneseq
      %v454 = vshrl.u32 %v453, 7
      %v455 = vsub.s32 1, %v454
      %v456 = vrot.slane %v447, %v455
      %vm459 = vcmask 261120
      %v461 = vsel %vm459, %v437, 0
      %v464 = vsel %vm459, %v438, 0
      %466 = vmatprep.subr.mxu0 %v440
      %467 = vmatpush1.msra.mxu0 %v439
      %468 = vmatprep.subr.mxu0 %v442
      %469 = vmatpush1.msra.mxu0 %v441
      %470 = vmatprep.subr.mxu0 %v444
      %471 = vmatpush1.msra.mxu0 %v443
      %472 = vmatprep.subr.mxu0 %v446
      %473 = vmatpush1.msra.mxu0 %v445
      %474 = vmatprep.subr.mxu0 0.0
      %475 = vmatpush1.msra.mxu0 0.0
      %476 = vmatprep.subr.mxu0 0.0
      %477 = vmatpush1.msra.mxu0 0.0
      %478 = vmatprep.subr.mxu0 0.0
      %479 = vmatpush1.msra.mxu0 0.0
      %480 = vmatprep.subr.mxu0 0.0
      %481 = vmatpush1.msra.mxu0 0.0
      %482 = vmatprep.subr.mxu0 0.0
      %483 = vmatpush1.msra.mxu0 0.0
      %484 = vmatprep.subr.mxu0 0.0
      %485 = vmatpush1.msra.mxu0 0.0
      %486 = vmatprep.subr.mxu0 0.0
      %487 = vmatpush1.msra.mxu0 0.0
      %488 = vmatprep.subr.mxu0 0.0
      %489 = vmatpush1.msra.mxu0 0.0
      %490 = vmatprep.subr.mxu0 0.0
      %491 = vmatpush1.msra.mxu0 0.0
      %492 = vmatprep.subr.mxu0 0.0
      %493 = vmatpush1.msra.mxu0 0.0
      %494 = vmatprep.subr.mxu0 0.0
      %495 = vmatpush1.msra.mxu0 0.0
      %496 = vmatprep.subr.mxu0 0.0
      %497 = vmatpush1.msra.mxu0 0.0
      %498 = vmatprep.subr.mxu0 0.0
      %499 = vmatpush1.msra.mxu0 0.0
      %500 = vmatprep.subr.mxu0 0.0
      %501 = vmatpush1.msra.mxu0 0.0
      %502 = vmatprep.subr.mxu0 0.0
      %503 = vmatpush1.msra.mxu0 0.0
      %504 = vmatprep.subr.mxu0 0.0
      %505 = vmatpush1.msra.mxu0 0.0
      %506 = vmatprep.subr.mxu0 0.0
      %507 = vmatpush1.msra.mxu0 0.0
      %508 = vmatprep.subr.mxu0 0.0
      %509 = vmatpush1.msra.mxu0 0.0
      %510 = vmatprep.subr.mxu0 0.0
      %511 = vmatpush1.msra.mxu0 0.0
      %512 = vmatprep.subr.mxu0 0.0
      %513 = vmatpush1.msra.mxu0 0.0
      %514 = vmatprep.subr.mxu0 0.0
      %515 = vmatpush1.msra.mxu0 0.0
      %516 = vmatprep.subr.mxu0 0.0
      %517 = vmatpush1.msra.mxu0 0.0
      %518 = vmatprep.subr.mxu0 0.0
      %519 = vmatpush1.msra.mxu0 0.0
      %520 = vmatprep.subr.mxu0 0.0
      %521 = vmatpush1.msra.mxu0 0.0
      %522 = vmatprep.subr.mxu0 0.0
      %523 = vmatpush1.msra.mxu0 0.0
      %524 = vmatprep.subr.mxu0 0.0
      %525 = vmatpush1.msra.mxu0 0.0
      %526 = vmatprep.subr.mxu0 0.0
      %527 = vmatpush1.msra.mxu0 0.0
      %528 = vmatprep.subr.mxu0 0.0
      %529 = vmatpush1.msra.mxu0 0.0
      %530 = vmatprep.mubr.f32.mxu0 0.0
      %531 = vmatmul.mubr.f32.gmra.mrb[0].mxu0 %v461
      %v532 = vpop.f32.mrb[0].mxu0
      %v533 = vadd.f32 %v452, %v532
      %v534 = vpop.f32.mrb[0].mxu0
      %v535 = vadd.f32 %v456, %v534
      %536 = vmatprep.mubr.f32.mxu0 0.0
      %537 = vmatmul.mubr.f32.gmra.mrb[0].mxu0 %v464
      %v538 = vpop.f32.mrb[0].mxu0
      %v539 = vadd.f32 %v452, %v538
      %v540 = vpop.f32.mrb[0].mxu0
      %v541 = vadd.f32 %v456, %v540
      %542 = vdwg.mxu0
      %v543 = vld [vmem:[%s422] sm:$0xff]
      %v544 = vld [vmem:[%s422 + $0x8] sm:$0xff]
      %v545 = vld [vmem:[%s422 + $0x10] sm:$0xff]
      %v546 = vld [vmem:[%s422 + $0x18] sm:$0xff]
      %v547 = vld [vmem:[%s422 + $0x20] sm:$0xff]
      %v548 = vld [vmem:[%s422 + $0x28] sm:$0xff]
      %v549 = vld [vmem:[%s422 + $0x30] sm:$0xff]
      %v550 = vld [vmem:[%s422 + $0x38] sm:$0xff]
      %v551 = vld [vmem:[%s422 + $0x40] sm:$0xff]
      %v552 = vld [vmem:[%s422 + $0x48] sm:$0xff]
      %v553 = vld [vmem:[%s422 + $0x50] sm:$0xff]
      %v554 = vld [vmem:[%s422 + $0x58] sm:$0xff]
      %v555 = vld [vmem:[%s422 + $0x60] sm:$0xff]
      %v556 = vld [vmem:[%s422 + $0x68] sm:$0xff]
      %v557 = vld [vmem:[%s422 + $0x70] sm:$0xff]
      %v558 = vld [vmem:[%s422 + $0x78] sm:$0xff]
      %v559 = vld [vmem:[%s4] sm:$0x3]
      %v560 = vld [vmem:[%s5] sm:$0x3]
      %vm561 = vcmask 523264
      %v563 = vsel %vm561, %v559, 0
      %565 = vmatprep.subr.mxu0 %v544
      %566 = vmatpush1.msra.mxu0 %v543
      %567 = vmatprep.subr.mxu0 %v546
      %568 = vmatpush1.msra.mxu0 %v545
      %569 = vmatprep.subr.mxu0 %v548
      %570 = vmatpush1.msra.mxu0 %v547
      %571 = vmatprep.subr.mxu0 %v550
      %572 = vmatpush1.msra.mxu0 %v549
      %573 = vmatprep.subr.mxu0 %v552
      %574 = vmatpush1.msra.mxu0 %v551
      %575 = vmatprep.subr.mxu0 %v554
      %576 = vmatpush1.msra.mxu0 %v553
      %577 = vmatprep.subr.mxu0 %v556
      %578 = vmatpush1.msra.mxu0 %v555
      %579 = vmatprep.subr.mxu0 %v558
      %580 = vmatpush1.msra.mxu0 %v557
      %581 = vmatprep.subr.mxu0 0.0
      %582 = vmatpush1.msra.mxu0 0.0
      %583 = vmatprep.subr.mxu0 0.0
      %584 = vmatpush1.msra.mxu0 0.0
      %585 = vmatprep.subr.mxu0 0.0
      %586 = vmatpush1.msra.mxu0 0.0
      %587 = vmatprep.subr.mxu0 0.0
      %588 = vmatpush1.msra.mxu0 0.0
      %589 = vmatprep.subr.mxu0 0.0
      %590 = vmatpush1.msra.mxu0 0.0
      %591 = vmatprep.subr.mxu0 0.0
      %592 = vmatpush1.msra.mxu0 0.0
      %593 = vmatprep.subr.mxu0 0.0
      %594 = vmatpush1.msra.mxu0 0.0
      %595 = vmatprep.subr.mxu0 0.0
      %596 = vmatpush1.msra.mxu0 0.0
      %597 = vmatprep.subr.mxu0 0.0
      %598 = vmatpush1.msra.mxu0 0.0
      %599 = vmatprep.subr.mxu0 0.0
      %600 = vmatpush1.msra.mxu0 0.0
      %601 = vmatprep.subr.mxu0 0.0
      %602 = vmatpush1.msra.mxu0 0.0
      %603 = vmatprep.subr.mxu0 0.0
      %604 = vmatpush1.msra.mxu0 0.0
      %605 = vmatprep.subr.mxu0 0.0
      %606 = vmatpush1.msra.mxu0 0.0
      %607 = vmatprep.subr.mxu0 0.0
      %608 = vmatpush1.msra.mxu0 0.0
      %609 = vmatprep.subr.mxu0 0.0
      %610 = vmatpush1.msra.mxu0 0.0
      %611 = vmatprep.subr.mxu0 0.0
      %612 = vmatpush1.msra.mxu0 0.0
      %613 = vmatprep.subr.mxu0 0.0
      %614 = vmatpush1.msra.mxu0 0.0
      %615 = vmatprep.subr.mxu0 0.0
      %616 = vmatpush1.msra.mxu0 0.0
      %617 = vmatprep.subr.mxu0 0.0
      %618 = vmatpush1.msra.mxu0 0.0
      %619 = vmatprep.subr.mxu0 0.0
      %620 = vmatpush1.msra.mxu0 0.0
      %621 = vmatprep.subr.mxu0 0.0
      %622 = vmatpush1.msra.mxu0 0.0
      %623 = vmatprep.subr.mxu0 0.0
      %624 = vmatpush1.msra.mxu0 0.0
      %625 = vmatprep.subr.mxu0 0.0
      %626 = vmatpush1.msra.mxu0 0.0
      %627 = vmatprep.subr.mxu0 0.0
      %628 = vmatpush1.msra.mxu0 0.0
      %629 = vmatprep.mubr.f32.mxu0 0.0
      %630 = vmatmul.mubr.f32.gmra.mrb[0].mxu0 %v563
      %v631 = vpop.f32.mrb[0].mxu0
      %v632 = vadd.f32 0.0, %v631
      %v633 = vpop.f32.mrb[0].mxu0
      %v634 = vadd.f32 0.0, %v633
      %635 = vdwg.mxu0
      %v638 = vrot.slane %v632, 1
      %v639 = vrot.slane %v634, 1
      %v644 = vadd.f32 %v533, %v632
      %v645 = vadd.f32 %v535, %v634
      %v646 = vadd.f32 %v539, %v638
      %v647 = vadd.f32 %v541, %v639
      %v648 = vxor.u32 %v644, 2147483648
      %v649 = vxor.u32 %v646, 2147483648
      %v650 = vmul.f32 %v648, 1.442695
      %v651 = vpow.pop %v650
      %v652 = vmul.f32 %v649, 1.442695
      %v653 = vpow.pop %v652
      %v654 = vadd.f32 %v651, 1.0
      %v655 = vadd.f32 %v653, 1.0
      %v656 = vrcp.pop %v654
      %v657 = vmul.f32 1.0, %v656
      %v658 = vrcp.pop %v655
      %v659 = vmul.f32 1.0, %v658
      %v660 = vtanh.pop %v645
      %v661 = vtanh.pop %v647
      %v662 = vxor.u32 %v645, 2147483648
      %v663 = vxor.u32 %v647, 2147483648
      %v664 = vmul.f32 %v662, 1.442695
      %v665 = vpow.pop %v664
      %v666 = vmul.f32 %v663, 1.442695
      %v667 = vpow.pop %v666
      %v668 = vadd.f32 %v665, 1.0
      %v669 = vadd.f32 %v667, 1.0
      %v670 = vrcp.pop %v668
      %v671 = vmul.f32 1.0, %v670
      %v672 = vrcp.pop %v669
      %v673 = vmul.f32 1.0, %v672
      %v675 = vrot.slane %v560, 1
      %676 = vrot.lane.b32.xlu0 %v560, 64
      %v677 = vpop.permute.xlu0 %676
      %678 = vrot.lane.b32.xlu0 %v675, 64
      %v679 = vpop.permute.xlu0 %678
      %v682 = vmul.f32 %v657, %v677
      %v683 = vmul.f32 %v659, %v679
      %v684 = vmul.f32 %v657, %v660
      %v685 = vmul.f32 %v659, %v661
      %688 = vrot.lane.b32.xlu0 %v684, 64
      %v689 = vpop.permute.xlu0 %688
      %690 = vrot.lane.b32.xlu0 %v685, 64
      %v691 = vpop.permute.xlu0 %690
      %v694 = vadd.f32 %v682, %v689
      %v695 = vadd.f32 %v683, %v691
      %v696 = vtanh.pop %v694
      %v697 = vtanh.pop %v695
      %v698 = vmul.f32 %v671, %v696
      %v699 = vmul.f32 %v673, %v697
      %702 = vrot.lane.b32.xlu0 %v698, 64
      %v703 = vpop.permute.xlu0 %702
      %704 = vrot.lane.b32.xlu0 %v699, 64
      %v705 = vpop.permute.xlu0 %704
      %vm708 = vcmask 516096
      %709 = vst.msk [vmem:[#allocation2] sm:$0x1] %vm708, %v703
      %710 = vst.msk [vmem:[#allocation2 + $0x8] sm:$0x1] %vm708, %v705
      %v711 = vrot.slane %v699, 7
      %vm712 = vcmask 1041409
      %v713 = vsel %vm712, %v711, %v698
      %714 = vrot.lane.b32.xlu0 %v713, 64
      %v715 = vpop.permute.xlu0 %714
      %v716 = vsel %vm561, %v715, 0
      %718 = vmatprep.subr.mxu0 %v544
      %719 = vmatpush1.msra.mxu0 %v543
      %720 = vmatprep.subr.mxu0 %v546
      %721 = vmatpush1.msra.mxu0 %v545
      %722 = vmatprep.subr.mxu0 %v548
      %723 = vmatpush1.msra.mxu0 %v547
      %724 = vmatprep.subr.mxu0 %v550
      %725 = vmatpush1.msra.mxu0 %v549
      %726 = vmatprep.subr.mxu0 %v552
      %727 = vmatpush1.msra.mxu0 %v551
      %728 = vmatprep.subr.mxu0 %v554
      %729 = vmatpush1.msra.mxu0 %v553
      %730 = vmatprep.subr.mxu0 %v556
      %731 = vmatpush1.msra.mxu0 %v555
      %732 = vmatprep.subr.mxu0 %v558
      %733 = vmatpush1.msra.mxu0 %v557
      %734 = vmatprep.subr.mxu0 0.0
      %735 = vmatpush1.msra.mxu0 0.0
      %736 = vmatprep.subr.mxu0 0.0
      %737 = vmatpush1.msra.mxu0 0.0
      %738 = vmatprep.subr.mxu0 0.0
      %739 = vmatpush1.msra.mxu0 0.0
      %740 = vmatprep.subr.mxu0 0.0
      %741 = vmatpush1.msra.mxu0 0.0
      %742 = vmatprep.subr.mxu0 0.0
      %743 = vmatpush1.msra.mxu0 0.0
      %744 = vmatprep.subr.mxu0 0.0
      %745 = vmatpush1.msra.mxu0 0.0
      %746 = vmatprep.subr.mxu0 0.0
      %747 = vmatpush1.msra.mxu0 0.0
      %748 = vmatprep.subr.mxu0 0.0
      %749 = vmatpush1.msra.mxu0 0.0
      %750 = vmatprep.subr.mxu0 0.0
      %751 = vmatpush1.msra.mxu0 0.0
      %752 = vmatprep.subr.mxu0 0.0
      %753 = vmatpush1.msra.mxu0 0.0
      %754 = vmatprep.subr.mxu0 0.0
      %755 = vmatpush1.msra.mxu0 0.0
      %756 = vmatprep.subr.mxu0 0.0
      %757 = vmatpush1.msra.mxu0 0.0
      %758 = vmatprep.subr.mxu0 0.0
      %759 = vmatpush1.msra.mxu0 0.0
      %760 = vmatprep.subr.mxu0 0.0
      %761 = vmatpush1.msra.mxu0 0.0
      %762 = vmatprep.subr.mxu0 0.0
      %763 = vmatpush1.msra.mxu0 0.0
      %764 = vmatprep.subr.mxu0 0.0
      %765 = vmatpush1.msra.mxu0 0.0
      %766 = vmatprep.subr.mxu0 0.0
      %767 = vmatpush1.msra.mxu0 0.0
      %768 = vmatprep.subr.mxu0 0.0
      %769 = vmatpush1.msra.mxu0 0.0
      %770 = vmatprep.subr.mxu0 0.0
      %771 = vmatpush1.msra.mxu0 0.0
      %772 = vmatprep.subr.mxu0 0.0
      %773 = vmatpush1.msra.mxu0 0.0
      %774 = vmatprep.subr.mxu0 0.0
      %775 = vmatpush1.msra.mxu0 0.0
      %776 = vmatprep.subr.mxu0 0.0
      %777 = vmatpush1.msra.mxu0 0.0
      %778 = vmatprep.subr.mxu0 0.0
      %779 = vmatpush1.msra.mxu0 0.0
      %780 = vmatprep.subr.mxu0 0.0
      %781 = vmatpush1.msra.mxu0 0.0
      %782 = vmatprep.mubr.f32.mxu0 0.0
      %783 = vmatmul.mubr.f32.gmra.mrb[0].mxu0 %v716
      %v784 = vpop.f32.mrb[0].mxu0
      %v785 = vadd.f32 0.0, %v784
      %v786 = vpop.f32.mrb[0].mxu0
      %v787 = vadd.f32 0.0, %v786
      %788 = vdwg.mxu0
      %v791 = vrot.slane %v785, 7
      %v792 = vrot.slane %v787, 7
      %v797 = vadd.f32 %v533, %v791
      %v798 = vadd.f32 %v535, %v792
      %v799 = vadd.f32 %v539, %v785
      %v800 = vadd.f32 %v541, %v787
      %v801 = vxor.u32 %v797, 2147483648
      %v802 = vxor.u32 %v799, 2147483648
      %v803 = vmul.f32 %v801, 1.442695
      %v804 = vpow.pop %v803
      %v805 = vmul.f32 %v802, 1.442695
      %v806 = vpow.pop %v805
      %v807 = vadd.f32 %v804, 1.0
      %v808 = vadd.f32 %v806, 1.0
      %v809 = vrcp.pop %v807
      %v810 = vmul.f32 1.0, %v809
      %v811 = vrcp.pop %v808
      %v812 = vmul.f32 1.0, %v811
      %v813 = vtanh.pop %v798
      %v814 = vtanh.pop %v800
      %v815 = vxor.u32 %v798, 2147483648
      %v816 = vxor.u32 %v800, 2147483648
      %v817 = vmul.f32 %v815, 1.442695
      %v818 = vpow.pop %v817
      %v819 = vmul.f32 %v816, 1.442695
      %v820 = vpow.pop %v819
      %v821 = vadd.f32 %v818, 1.0
      %v822 = vadd.f32 %v820, 1.0
      %v823 = vrcp.pop %v821
      %v824 = vmul.f32 1.0, %v823
      %v825 = vrcp.pop %v822
      %v826 = vmul.f32 1.0, %v825
      %v829 = vrot.slane %v694, 7
      %v830 = vrot.slane %v695, 7
      %v833 = vmul.f32 %v810, %v829
      %v834 = vmul.f32 %v812, %v830
      %v835 = vmul.f32 %v810, %v813
      %v836 = vmul.f32 %v812, %v814
      %839 = vrot.lane.b32.xlu0 %v835, 64
      %v840 = vpop.permute.xlu0 %839
      %841 = vrot.lane.b32.xlu0 %v836, 64
      %v842 = vpop.permute.xlu0 %841
      %v845 = vadd.f32 %v833, %v840
      %v846 = vadd.f32 %v834, %v842
      %v847 = vtanh.pop %v845
      %v848 = vtanh.pop %v846
      %v849 = vmul.f32 %v824, %v847
      %v850 = vmul.f32 %v826, %v848
      %853 = vrot.lane.b32.xlu0 %v849, 64
      %v854 = vpop.permute.xlu0 %853
      %855 = vrot.lane.b32.xlu0 %v850, 64
      %v856 = vpop.permute.xlu0 %855
      %vm859 = vcmask 517121
      %860 = vst.msk [vmem:[#allocation2] sm:$0x2] %vm859, %v854
      %861 = vst.msk [vmem:[#allocation2 + $0x8] sm:$0x2] %vm859, %v856
      %v862 = vrot.slane %v849, 1
      %v863 = vsel %vm712, %v850, %v862
      %864 = vrot.lane.b32.xlu0 %v863, 64
      %v865 = vpop.permute.xlu0 %864
      %v866 = vsel %vm561, %v865, 0
      %868 = vmatprep.subr.mxu0 %v544
      %869 = vmatpush1.msra.mxu0 %v543
      %870 = vmatprep.subr.mxu0 %v546
      %871 = vmatpush1.msra.mxu0 %v545
      %872 = vmatprep.subr.mxu0 %v548
      %873 = vmatpush1.msra.mxu0 %v547
      %874 = vmatprep.subr.mxu0 %v550
      %875 = vmatpush1.msra.mxu0 %v549
      %876 = vmatprep.subr.mxu0 %v552
      %877 = vmatpush1.msra.mxu0 %v551
      %878 = vmatprep.subr.mxu0 %v554
      %879 = vmatpush1.msra.mxu0 %v553
      %880 = vmatprep.subr.mxu0 %v556
      %881 = vmatpush1.msra.mxu0 %v555
      %882 = vmatprep.subr.mxu0 %v558
      %883 = vmatpush1.msra.mxu0 %v557
      %884 = vmatprep.subr.mxu0 0.0
      %885 = vmatpush1.msra.mxu0 0.0
      %886 = vmatprep.subr.mxu0 0.0
      %887 = vmatpush1.msra.mxu0 0.0
      %888 = vmatprep.subr.mxu0 0.0
      %889 = vmatpush1.msra.mxu0 0.0
      %890 = vmatprep.subr.mxu0 0.0
      %891 = vmatpush1.msra.mxu0 0.0
      %892 = vmatprep.subr.mxu0 0.0
      %893 = vmatpush1.msra.mxu0 0.0
      %894 = vmatprep.subr.mxu0 0.0
      %895 = vmatpush1.msra.mxu0 0.0
      %896 = vmatprep.subr.mxu0 0.0
      %897 = vmatpush1.msra.mxu0 0.0
      %898 = vmatprep.subr.mxu0 0.0
      %899 = vmatpush1.msra.mxu0 0.0
      %900 = vmatprep.subr.mxu0 0.0
      %901 = vmatpush1.msra.mxu0 0.0
      %902 = vmatprep.subr.mxu0 0.0
      %903 = vmatpush1.msra.mxu0 0.0
      %904 = vmatprep.subr.mxu0 0.0
      %905 = vmatpush1.msra.mxu0 0.0
      %906 = vmatprep.subr.mxu0 0.0
      %907 = vmatpush1.msra.mxu0 0.0
      %908 = vmatprep.subr.mxu0 0.0
      %909 = vmatpush1.msra.mxu0 0.0
      %910 = vmatprep.subr.mxu0 0.0
      %911 = vmatpush1.msra.mxu0 0.0
      %912 = vmatprep.subr.mxu0 0.0
      %913 = vmatpush1.msra.mxu0 0.0
      %914 = vmatprep.subr.mxu0 0.0
      %915 = vmatpush1.msra.mxu0 0.0
      %916 = vmatprep.subr.mxu0 0.0
      %917 = vmatpush1.msra.mxu0 0.0
      %918 = vmatprep.subr.mxu0 0.0
      %919 = vmatpush1.msra.mxu0 0.0
      %920 = vmatprep.subr.mxu0 0.0
      %921 = vmatpush1.msra.mxu0 0.0
      %922 = vmatprep.subr.mxu0 0.0
      %923 = vmatpush1.msra.mxu0 0.0
      %924 = vmatprep.subr.mxu0 0.0
      %925 = vmatpush1.msra.mxu0 0.0
      %926 = vmatprep.subr.mxu0 0.0
      %927 = vmatpush1.msra.mxu0 0.0
      %928 = vmatprep.subr.mxu0 0.0
      %929 = vmatpush1.msra.mxu0 0.0
      %930 = vmatprep.subr.mxu0 0.0
      %931 = vmatpush1.msra.mxu0 0.0
      %932 = vmatprep.mubr.f32.mxu0 0.0
      %933 = vmatmul.mubr.f32.gmra.mrb[0].mxu0 %v866
      %v934 = vpop.f32.mrb[0].mxu0
      %v935 = vadd.f32 0.0, %v934
      %v936 = vpop.f32.mrb[0].mxu0
      %v937 = vadd.f32 0.0, %v936
      %938 = vdwg.mxu0
      %v941 = vrot.slane %v935, 6
      %v942 = vrot.slane %v937, 6
      %v943 = vrot.slane %v935, 7
      %v944 = vrot.slane %v937, 7
      %v949 = vadd.f32 %v533, %v941
      %v950 = vadd.f32 %v535, %v942
      %v951 = vadd.f32 %v539, %v943
      %v952 = vadd.f32 %v541, %v944
      %v953 = vxor.u32 %v949, 2147483648
      %v954 = vxor.u32 %v951, 2147483648
      %v955 = vmul.f32 %v953, 1.442695
      %v956 = vpow.pop %v955
      %v957 = vmul.f32 %v954, 1.442695
      %v958 = vpow.pop %v957
      %v959 = vadd.f32 %v956, 1.0
      %v960 = vadd.f32 %v958, 1.0
      %v961 = vrcp.pop %v959
      %v962 = vmul.f32 1.0, %v961
      %v963 = vrcp.pop %v960
      %v964 = vmul.f32 1.0, %v963
      %v965 = vtanh.pop %v950
      %v966 = vtanh.pop %v952
      %v967 = vxor.u32 %v950, 2147483648
      %v968 = vxor.u32 %v952, 2147483648
      %v969 = vmul.f32 %v967, 1.442695
      %v970 = vpow.pop %v969
      %v971 = vmul.f32 %v968, 1.442695
      %v972 = vpow.pop %v971
      %v973 = vadd.f32 %v970, 1.0
      %v974 = vadd.f32 %v972, 1.0
      %v975 = vrcp.pop %v973
      %v976 = vmul.f32 1.0, %v975
      %v977 = vrcp.pop %v974
      %v978 = vmul.f32 1.0, %v977
      %v981 = vrot.slane %v845, 7
      %v982 = vrot.slane %v846, 7
      %v985 = vmul.f32 %v962, %v981
      %v986 = vmul.f32 %v964, %v982
      %v987 = vmul.f32 %v962, %v965
      %v988 = vmul.f32 %v964, %v966
      %991 = vrot.lane.b32.xlu0 %v987, 64
      %v992 = vpop.permute.xlu0 %991
      %993 = vrot.lane.b32.xlu0 %v988, 64
      %v994 = vpop.permute.xlu0 %993
      %v997 = vadd.f32 %v985, %v992
      %v998 = vadd.f32 %v986, %v994
      %v999 = vtanh.pop %v997
      %v1000 = vtanh.pop %v998
      %v1001 = vmul.f32 %v976, %v999
      %v1002 = vmul.f32 %v978, %v1000
      %1005 = vrot.lane.b32.xlu0 %v1001, 64
      %v1006 = vpop.permute.xlu0 %1005
      %1007 = vrot.lane.b32.xlu0 %v1002, 64
      %v1008 = vpop.permute.xlu0 %1007
      %vm1011 = vcmask 518146
      %1012 = vst.msk [vmem:[#allocation2] sm:$0x4] %vm1011, %v1006
      %1013 = vst.msk [vmem:[#allocation2 + $0x8] sm:$0x4] %vm1011, %v1008
      %v1014 = vrot.slane %v1001, 2
      %v1015 = vrot.slane %v1002, 1
      %v1016 = vsel %vm712, %v1015, %v1014
      %1017 = vrot.lane.b32.xlu0 %v1016, 64
      %v1018 = vpop.permute.xlu0 %1017
      %v1019 = vsel %vm561, %v1018, 0
      %1021 = vmatprep.subr.mxu0 %v544
      %1022 = vmatpush1.msra.mxu0 %v543
      %1023 = vmatprep.subr.mxu0 %v546
      %1024 = vmatpush1.msra.mxu0 %v545
      %1025 = vmatprep.subr.mxu0 %v548
      %1026 = vmatpush1.msra.mxu0 %v547
      %1027 = vmatprep.subr.mxu0 %v550
      %1028 = vmatpush1.msra.mxu0 %v549
      %1029 = vmatprep.subr.mxu0 %v552
      %1030 = vmatpush1.msra.mxu0 %v551
      %1031 = vmatprep.subr.mxu0 %v554
      %1032 = vmatpush1.msra.mxu0 %v553
      %1033 = vmatprep.subr.mxu0 %v556
      %1034 = vmatpush1.msra.mxu0 %v555
      %1035 = vmatprep.subr.mxu0 %v558
      %1036 = vmatpush1.msra.mxu0 %v557
      %1037 = vmatprep.subr.mxu0 0.0
      %1038 = vmatpush1.msra.mxu0 0.0
      %1039 = vmatprep.subr.mxu0 0.0
      %1040 = vmatpush1.msra.mxu0 0.0
      %1041 = vmatprep.subr.mxu0 0.0
      %1042 = vmatpush1.msra.mxu0 0.0
      %1043 = vmatprep.subr.mxu0 0.0
      %1044 = vmatpush1.msra.mxu0 0.0
      %1045 = vmatprep.subr.mxu0 0.0
      %1046 = vmatpush1.msra.mxu0 0.0
      %1047 = vmatprep.subr.mxu0 0.0
      %1048 = vmatpush1.msra.mxu0 0.0
      %1049 = vmatprep.subr.mxu0 0.0
      %1050 = vmatpush1.msra.mxu0 0.0
      %1051 = vmatprep.subr.mxu0 0.0
      %1052 = vmatpush1.msra.mxu0 0.0
      %1053 = vmatprep.subr.mxu0 0.0
      %1054 = vmatpush1.msra.mxu0 0.0
      %1055 = vmatprep.subr.mxu0 0.0
      %1056 = vmatpush1.msra.mxu0 0.0
      %1057 = vmatprep.subr.mxu0 0.0
      %1058 = vmatpush1.msra.mxu0 0.0
      %1059 = vmatprep.subr.mxu0 0.0
      %1060 = vmatpush1.msra.mxu0 0.0
      %1061 = vmatprep.subr.mxu0 0.0
      %1062 = vmatpush1.msra.mxu0 0.0
      %1063 = vmatprep.subr.mxu0 0.0
      %1064 = vmatpush1.msra.mxu0 0.0
      %1065 = vmatprep.subr.mxu0 0.0
      %1066 = vmatpush1.msra.mxu0 0.0
      %1067 = vmatprep.subr.mxu0 0.0
      %1068 = vmatpush1.msra.mxu0 0.0
      %1069 = vmatprep.subr.mxu0 0.0
      %1070 = vmatpush1.msra.mxu0 0.0
      %1071 = vmatprep.subr.mxu0 0.0
      %1072 = vmatpush1.msra.mxu0 0.0
      %1073 = vmatprep.subr.mxu0 0.0
      %1074 = vmatpush1.msra.mxu0 0.0
      %1075 = vmatprep.subr.mxu0 0.0
      %1076 = vmatpush1.msra.mxu0 0.0
      %1077 = vmatprep.subr.mxu0 0.0
      %1078 = vmatpush1.msra.mxu0 0.0
      %1079 = vmatprep.subr.mxu0 0.0
      %1080 = vmatpush1.msra.mxu0 0.0
      %1081 = vmatprep.subr.mxu0 0.0
      %1082 = vmatpush1.msra.mxu0 0.0
      %1083 = vmatprep.subr.mxu0 0.0
      %1084 = vmatpush1.msra.mxu0 0.0
      %1085 = vmatprep.mubr.f32.mxu0 0.0
      %1086 = vmatmul.mubr.f32.gmra.mrb[0].mxu0 %v1019
      %v1087 = vpop.f32.mrb[0].mxu0
      %v1088 = vadd.f32 0.0, %v1087
      %v1089 = vpop.f32.mrb[0].mxu0
      %v1090 = vadd.f32 0.0, %v1089
      %1091 = vdwg.mxu0
      %v1094 = vrot.slane %v1088, 5
      %v1095 = vrot.slane %v1090, 5
      %v1096 = vrot.slane %v1088, 6
      %v1097 = vrot.slane %v1090, 6
      %v1102 = vadd.f32 %v533, %v1094
      %v1103 = vadd.f32 %v535, %v1095
      %v1104 = vadd.f32 %v539, %v1096
      %v1105 = vadd.f32 %v541, %v1097
      %v1106 = vxor.u32 %v1102, 2147483648
      %v1107 = vxor.u32 %v1104, 2147483648
      %v1108 = vmul.f32 %v1106, 1.442695
      %v1109 = vpow.pop %v1108
      %v1110 = vmul.f32 %v1107, 1.442695
      %v1111 = vpow.pop %v1110
      %v1112 = vadd.f32 %v1109, 1.0
      %v1113 = vadd.f32 %v1111, 1.0
      %v1114 = vrcp.pop %v1112
      %v1115 = vmul.f32 1.0, %v1114
      %v1116 = vrcp.pop %v1113
      %v1117 = vmul.f32 1.0, %v1116
      %v1118 = vtanh.pop %v1103
      %v1119 = vtanh.pop %v1105
      %v1120 = vxor.u32 %v1103, 2147483648
      %v1121 = vxor.u32 %v1105, 2147483648
      %v1122 = vmul.f32 %v1120, 1.442695
      %v1123 = vpow.pop %v1122
      %v1124 = vmul.f32 %v1121, 1.442695
      %v1125 = vpow.pop %v1124
      %v1126 = vadd.f32 %v1123, 1.0
      %v1127 = vadd.f32 %v1125, 1.0
      %v1128 = vrcp.pop %v1126
      %v1129 = vmul.f32 1.0, %v1128
      %v1130 = vrcp.pop %v1127
      %v1131 = vmul.f32 1.0, %v1130
      %v1134 = vrot.slane %v997, 7
      %v1135 = vrot.slane %v998, 7
      %v1138 = vmul.f32 %v1115, %v1134
      %v1139 = vmul.f32 %v1117, %v1135
      %v1140 = vmul.f32 %v1115, %v1118
      %v1141 = vmul.f32 %v1117, %v1119
      %1144 = vrot.lane.b32.xlu0 %v1140, 64
      %v1145 = vpop.permute.xlu0 %1144
      %1146 = vrot.lane.b32.xlu0 %v1141, 64
      %v1147 = vpop.permute.xlu0 %1146
      %v1150 = vadd.f32 %v1138, %v1145
      %v1151 = vadd.f32 %v1139, %v1147
      %v1152 = vtanh.pop %v1150
      %v1153 = vtanh.pop %v1151
      %v1154 = vmul.f32 %v1129, %v1152
      %v1155 = vmul.f32 %v1131, %v1153
      %1158 = vrot.lane.b32.xlu0 %v1154, 64
      %v1159 = vpop.permute.xlu0 %1158
      %1160 = vrot.lane.b32.xlu0 %v1155, 64
      %v1161 = vpop.permute.xlu0 %1160
      %vm1164 = vcmask 519171
      %1165 = vst.msk [vmem:[#allocation2] sm:$0x8] %vm1164, %v1159
      %1166 = vst.msk [vmem:[#allocation2 + $0x8] sm:$0x8] %vm1164, %v1161
      %v1167 = vrot.slane %v1154, 3
      %v1168 = vrot.slane %v1155, 2
      %v1169 = vsel %vm712, %v1168, %v1167
      %1170 = vrot.lane.b32.xlu0 %v1169, 64
      %v1171 = vpop.permute.xlu0 %1170
      %v1172 = vsel %vm561, %v1171, 0
      %1174 = vmatprep.subr.mxu0 %v544
      %1175 = vmatpush1.msra.mxu0 %v543
      %1176 = vmatprep.subr.mxu0 %v546
      %1177 = vmatpush1.msra.mxu0 %v545
      %1178 = vmatprep.subr.mxu0 %v548
      %1179 = vmatpush1.msra.mxu0 %v547
      %1180 = vmatprep.subr.mxu0 %v550
      %1181 = vmatpush1.msra.mxu0 %v549
      %1182 = vmatprep.subr.mxu0 %v552
      %1183 = vmatpush1.msra.mxu0 %v551
      %1184 = vmatprep.subr.mxu0 %v554
      %1185 = vmatpush1.msra.mxu0 %v553
      %1186 = vmatprep.subr.mxu0 %v556
      %1187 = vmatpush1.msra.mxu0 %v555
      %1188 = vmatprep.subr.mxu0 %v558
      %1189 = vmatpush1.msra.mxu0 %v557
      %1190 = vmatprep.subr.mxu0 0.0
      %1191 = vmatpush1.msra.mxu0 0.0
      %1192 = vmatprep.subr.mxu0 0.0
      %1193 = vmatpush1.msra.mxu0 0.0
      %1194 = vmatprep.subr.mxu0 0.0
      %1195 = vmatpush1.msra.mxu0 0.0
      %1196 = vmatprep.subr.mxu0 0.0
      %1197 = vmatpush1.msra.mxu0 0.0
      %1198 = vmatprep.subr.mxu0 0.0
      %1199 = vmatpush1.msra.mxu0 0.0
      %1200 = vmatprep.subr.mxu0 0.0
      %1201 = vmatpush1.msra.mxu0 0.0
      %1202 = vmatprep.subr.mxu0 0.0
      %1203 = vmatpush1.msra.mxu0 0.0
      %1204 = vmatprep.subr.mxu0 0.0
      %1205 = vmatpush1.msra.mxu0 0.0
      %1206 = vmatprep.subr.mxu0 0.0
      %1207 = vmatpush1.msra.mxu0 0.0
      %1208 = vmatprep.subr.mxu0 0.0
      %1209 = vmatpush1.msra.mxu0 0.0
      %1210 = vmatprep.subr.mxu0 0.0
      %1211 = vmatpush1.msra.mxu0 0.0
      %1212 = vmatprep.subr.mxu0 0.0
      %1213 = vmatpush1.msra.mxu0 0.0
      %1214 = vmatprep.subr.mxu0 0.0
      %1215 = vmatpush1.msra.mxu0 0.0
      %1216 = vmatprep.subr.mxu0 0.0
      %1217 = vmatpush1.msra.mxu0 0.0
      %1218 = vmatprep.subr.mxu0 0.0
      %1219 = vmatpush1.msra.mxu0 0.0
      %1220 = vmatprep.subr.mxu0 0.0
      %1221 = vmatpush1.msra.mxu0 0.0
      %1222 = vmatprep.subr.mxu0 0.0
      %1223 = vmatpush1.msra.mxu0 0.0
      %1224 = vmatprep.subr.mxu0 0.0
      %1225 = vmatpush1.msra.mxu0 0.0
      %1226 = vmatprep.subr.mxu0 0.0
      %1227 = vmatpush1.msra.mxu0 0.0
      %1228 = vmatprep.subr.mxu0 0.0
      %1229 = vmatpush1.msra.mxu0 0.0
      %1230 = vmatprep.subr.mxu0 0.0
      %1231 = vmatpush1.msra.mxu0 0.0
      %1232 = vmatprep.subr.mxu0 0.0
      %1233 = vmatpush1.msra.mxu0 0.0
      %1234 = vmatprep.subr.mxu0 0.0
      %1235 = vmatpush1.msra.mxu0 0.0
      %1236 = vmatprep.subr.mxu0 0.0
      %1237 = vmatpush1.msra.mxu0 0.0
      %1238 = vmatprep.mubr.f32.mxu0 0.0
      %1239 = vmatmul.mubr.f32.gmra.mrb[0].mxu0 %v1172
      %v1240 = vpop.f32.mrb[0].mxu0
      %v1241 = vadd.f32 0.0, %v1240
      %v1242 = vpop.f32.mrb[0].mxu0
      %v1243 = vadd.f32 0.0, %v1242
      %1244 = vdwg.mxu0
      %v1247 = vrot.slane %v1241, 4
      %v1248 = vrot.slane %v1243, 4
      %v1249 = vrot.slane %v1241, 5
      %v1250 = vrot.slane %v1243, 5
      %v1255 = vadd.f32 %v533, %v1247
      %v1256 = vadd.f32 %v535, %v1248
      %v1257 = vadd.f32 %v539, %v1249
      %v1258 = vadd.f32 %v541, %v1250
      %v1259 = vxor.u32 %v1255, 2147483648
      %v1260 = vxor.u32 %v1257, 2147483648
      %v1261 = vmul.f32 %v1259, 1.442695
      %v1262 = vpow.pop %v1261
      %v1263 = vmul.f32 %v1260, 1.442695
      %v1264 = vpow.pop %v1263
      %v1265 = vadd.f32 %v1262, 1.0
      %v1266 = vadd.f32 %v1264, 1.0
      %v1267 = vrcp.pop %v1265
      %v1268 = vmul.f32 1.0, %v1267
      %v1269 = vrcp.pop %v1266
      %v1270 = vmul.f32 1.0, %v1269
      %v1271 = vtanh.pop %v1256
      %v1272 = vtanh.pop %v1258
      %v1273 = vxor.u32 %v1256, 2147483648
      %v1274 = vxor.u32 %v1258, 2147483648
      %v1275 = vmul.f32 %v1273, 1.442695
      %v1276 = vpow.pop %v1275
      %v1277 = vmul.f32 %v1274, 1.442695
      %v1278 = vpow.pop %v1277
      %v1279 = vadd.f32 %v1276, 1.0
      %v1280 = vadd.f32 %v1278, 1.0
      %v1281 = vrcp.pop %v1279
      %v1282 = vmul.f32 1.0, %v1281
      %v1283 = vrcp.pop %v1280
      %v1284 = vmul.f32 1.0, %v1283
      %v1287 = vrot.slane %v1150, 7
      %v1288 = vrot.slane %v1151, 7
      %v1291 = vmul.f32 %v1268, %v1287
      %v1292 = vmul.f32 %v1270, %v1288
      %v1293 = vmul.f32 %v1268, %v1271
      %v1294 = vmul.f32 %v1270, %v1272
      %1297 = vrot.lane.b32.xlu0 %v1293, 64
      %v1298 = vpop.permute.xlu0 %1297
      %1299 = vrot.lane.b32.xlu0 %v1294, 64
      %v1300 = vpop.permute.xlu0 %1299
      %v1303 = vadd.f32 %v1291, %v1298
      %v1304 = vadd.f32 %v1292, %v1300
      %v1305 = vtanh.pop %v1303
      %v1306 = vtanh.pop %v1304
      %v1307 = vmul.f32 %v1282, %v1305
      %v1308 = vmul.f32 %v1284, %v1306
      %1311 = vrot.lane.b32.xlu0 %v1307, 64
      %v1312 = vpop.permute.xlu0 %1311
      %1313 = vrot.lane.b32.xlu0 %v1308, 64
      %v1314 = vpop.permute.xlu0 %1313
      %vm1317 = vcmask 520196
      %1318 = vst.msk [vmem:[#allocation2] sm:$0x10] %vm1317, %v1312
      %1319 = vst.msk [vmem:[#allocation2 + $0x8] sm:$0x10] %vm1317, %v1314
      %v1320 = vrot.slane %v1307, 4
      %v1321 = vrot.slane %v1308, 3
      %v1322 = vsel %vm712, %v1321, %v1320
      %1323 = vrot.lane.b32.xlu0 %v1322, 64
      %v1324 = vpop.permute.xlu0 %1323
      %v1325 = vsel %vm561, %v1324, 0
      %1327 = vmatprep.subr.mxu0 %v544
      %1328 = vmatpush1.msra.mxu0 %v543
      %1329 = vmatprep.subr.mxu0 %v546
      %1330 = vmatpush1.msra.mxu0 %v545
      %1331 = vmatprep.subr.mxu0 %v548
      %1332 = vmatpush1.msra.mxu0 %v547
      %1333 = vmatprep.subr.mxu0 %v550
      %1334 = vmatpush1.msra.mxu0 %v549
      %1335 = vmatprep.subr.mxu0 %v552
      %1336 = vmatpush1.msra.mxu0 %v551
      %1337 = vmatprep.subr.mxu0 %v554
      %1338 = vmatpush1.msra.mxu0 %v553
      %1339 = vmatprep.subr.mxu0 %v556
      %1340 = vmatpush1.msra.mxu0 %v555
      %1341 = vmatprep.subr.mxu0 %v558
      %1342 = vmatpush1.msra.mxu0 %v557
      %1343 = vmatprep.subr.mxu0 0.0
      %1344 = vmatpush1.msra.mxu0 0.0
      %1345 = vmatprep.subr.mxu0 0.0
      %1346 = vmatpush1.msra.mxu0 0.0
      %1347 = vmatprep.subr.mxu0 0.0
      %1348 = vmatpush1.msra.mxu0 0.0
      %1349 = vmatprep.subr.mxu0 0.0
      %1350 = vmatpush1.msra.mxu0 0.0
      %1351 = vmatprep.subr.mxu0 0.0
      %1352 = vmatpush1.msra.mxu0 0.0
      %1353 = vmatprep.subr.mxu0 0.0
      %1354 = vmatpush1.msra.mxu0 0.0
      %1355 = vmatprep.subr.mxu0 0.0
      %1356 = vmatpush1.msra.mxu0 0.0
      %1357 = vmatprep.subr.mxu0 0.0
      %1358 = vmatpush1.msra.mxu0 0.0
      %1359 = vmatprep.subr.mxu0 0.0
      %1360 = vmatpush1.msra.mxu0 0.0
      %1361 = vmatprep.subr.mxu0 0.0
      %1362 = vmatpush1.msra.mxu0 0.0
      %1363 = vmatprep.subr.mxu0 0.0
      %1364 = vmatpush1.msra.mxu0 0.0
      %1365 = vmatprep.subr.mxu0 0.0
      %1366 = vmatpush1.msra.mxu0 0.0
      %1367 = vmatprep.subr.mxu0 0.0
      %1368 = vmatpush1.msra.mxu0 0.0
      %1369 = vmatprep.subr.mxu0 0.0
      %1370 = vmatpush1.msra.mxu0 0.0
      %1371 = vmatprep.subr.mxu0 0.0
      %1372 = vmatpush1.msra.mxu0 0.0
      %1373 = vmatprep.subr.mxu0 0.0
      %1374 = vmatpush1.msra.mxu0 0.0
      %1375 = vmatprep.subr.mxu0 0.0
      %1376 = vmatpush1.msra.mxu0 0.0
      %1377 = vmatprep.subr.mxu0 0.0
      %1378 = vmatpush1.msra.mxu0 0.0
      %1379 = vmatprep.subr.mxu0 0.0
      %1380 = vmatpush1.msra.mxu0 0.0
      %1381 = vmatprep.subr.mxu0 0.0
      %1382 = vmatpush1.msra.mxu0 0.0
      %1383 = vmatprep.subr.mxu0 0.0
      %1384 = vmatpush1.msra.mxu0 0.0
      %1385 = vmatprep.subr.mxu0 0.0
      %1386 = vmatpush1.msra.mxu0 0.0
      %1387 = vmatprep.subr.mxu0 0.0
      %1388 = vmatpush1.msra.mxu0 0.0
      %1389 = vmatprep.subr.mxu0 0.0
      %1390 = vmatpush1.msra.mxu0 0.0
      %1391 = vmatprep.mubr.f32.mxu0 0.0
      %1392 = vmatmul.mubr.f32.gmra.mrb[0].mxu0 %v1325
      %v1393 = vpop.f32.mrb[0].mxu0
      %v1394 = vadd.f32 0.0, %v1393
      %v1395 = vpop.f32.mrb[0].mxu0
      %v1396 = vadd.f32 0.0, %v1395
      %1397 = vdwg.mxu0
      %v1400 = vrot.slane %v1394, 3
      %v1401 = vrot.slane %v1396, 3
      %v1402 = vrot.slane %v1394, 4
      %v1403 = vrot.slane %v1396, 4
      %v1408 = vadd.f32 %v533, %v1400
      %v1409 = vadd.f32 %v535, %v1401
      %v1410 = vadd.f32 %v539, %v1402
      %v1411 = vadd.f32 %v541, %v1403
      %v1412 = vxor.u32 %v1408, 2147483648
      %v1413 = vxor.u32 %v1410, 2147483648
      %v1414 = vmul.f32 %v1412, 1.442695
      %v1415 = vpow.pop %v1414
      %v1416 = vmul.f32 %v1413, 1.442695
      %v1417 = vpow.pop %v1416
      %v1418 = vadd.f32 %v1415, 1.0
      %v1419 = vadd.f32 %v1417, 1.0
      %v1420 = vrcp.pop %v1418
      %v1421 = vmul.f32 1.0, %v1420
      %v1422 = vrcp.pop %v1419
      %v1423 = vmul.f32 1.0, %v1422
      %v1424 = vtanh.pop %v1409
      %v1425 = vtanh.pop %v1411
      %v1426 = vxor.u32 %v1409, 2147483648
      %v1427 = vxor.u32 %v1411, 2147483648
      %v1428 = vmul.f32 %v1426, 1.442695
      %v1429 = vpow.pop %v1428
      %v1430 = vmul.f32 %v1427, 1.442695
      %v1431 = vpow.pop %v1430
      %v1432 = vadd.f32 %v1429, 1.0
      %v1433 = vadd.f32 %v1431, 1.0
      %v1434 = vrcp.pop %v1432
      %v1435 = vmul.f32 1.0, %v1434
      %v1436 = vrcp.pop %v1433
      %v1437 = vmul.f32 1.0, %v1436
      %v1440 = vrot.slane %v1303, 7
      %v1441 = vrot.slane %v1304, 7
      %v1444 = vmul.f32 %v1421, %v1440
      %v1445 = vmul.f32 %v1423, %v1441
      %v1446 = vmul.f32 %v1421, %v1424
      %v1447 = vmul.f32 %v1423, %v1425
      %1450 = vrot.lane.b32.xlu0 %v1446, 64
      %v1451 = vpop.permute.xlu0 %1450
      %1452 = vrot.lane.b32.xlu0 %v1447, 64
      %v1453 = vpop.permute.xlu0 %1452
      %v1456 = vadd.f32 %v1444, %v1451
      %v1457 = vadd.f32 %v1445, %v1453
      %v1458 = vtanh.pop %v1456
      %v1459 = vtanh.pop %v1457
      %v1460 = vmul.f32 %v1435, %v1458
      %v1461 = vmul.f32 %v1437, %v1459
      %1464 = vrot.lane.b32.xlu0 %v1460, 64
      %v1465 = vpop.permute.xlu0 %1464
      %1466 = vrot.lane.b32.xlu0 %v1461, 64
      %v1467 = vpop.permute.xlu0 %1466
      %vm1470 = vcmask 521221
      %1471 = vst.msk [vmem:[#allocation2] sm:$0x20] %vm1470, %v1465
      %1472 = vst.msk [vmem:[#allocation2 + $0x8] sm:$0x20] %vm1470, %v1467
      %v1473 = vrot.slane %v1460, 5
      %v1474 = vrot.slane %v1461, 4
      %v1475 = vsel %vm712, %v1474, %v1473
      %1476 = vrot.lane.b32.xlu0 %v1475, 64
      %v1477 = vpop.permute.xlu0 %1476
      %v1478 = vsel %vm561, %v1477, 0
      %1480 = vmatprep.subr.mxu0 %v544
      %1481 = vmatpush1.msra.mxu0 %v543
      %1482 = vmatprep.subr.mxu0 %v546
      %1483 = vmatpush1.msra.mxu0 %v545
      %1484 = vmatprep.subr.mxu0 %v548
      %1485 = vmatpush1.msra.mxu0 %v547
      %1486 = vmatprep.subr.mxu0 %v550
      %1487 = vmatpush1.msra.mxu0 %v549
      %1488 = vmatprep.subr.mxu0 %v552
      %1489 = vmatpush1.msra.mxu0 %v551
      %1490 = vmatprep.subr.mxu0 %v554
      %1491 = vmatpush1.msra.mxu0 %v553
      %1492 = vmatprep.subr.mxu0 %v556
      %1493 = vmatpush1.msra.mxu0 %v555
      %1494 = vmatprep.subr.mxu0 %v558
      %1495 = vmatpush1.msra.mxu0 %v557
      %1496 = vmatprep.subr.mxu0 0.0
      %1497 = vmatpush1.msra.mxu0 0.0
      %1498 = vmatprep.subr.mxu0 0.0
      %1499 = vmatpush1.msra.mxu0 0.0
      %1500 = vmatprep.subr.mxu0 0.0
      %1501 = vmatpush1.msra.mxu0 0.0
      %1502 = vmatprep.subr.mxu0 0.0
      %1503 = vmatpush1.msra.mxu0 0.0
      %1504 = vmatprep.subr.mxu0 0.0
      %1505 = vmatpush1.msra.mxu0 0.0
      %1506 = vmatprep.subr.mxu0 0.0
      %1507 = vmatpush1.msra.mxu0 0.0
      %1508 = vmatprep.subr.mxu0 0.0
      %1509 = vmatpush1.msra.mxu0 0.0
      %1510 = vmatprep.subr.mxu0 0.0
      %1511 = vmatpush1.msra.mxu0 0.0
      %1512 = vmatprep.subr.mxu0 0.0
      %1513 = vmatpush1.msra.mxu0 0.0
      %1514 = vmatprep.subr.mxu0 0.0
      %1515 = vmatpush1.msra.mxu0 0.0
      %1516 = vmatprep.subr.mxu0 0.0
      %1517 = vmatpush1.msra.mxu0 0.0
      %1518 = vmatprep.subr.mxu0 0.0
      %1519 = vmatpush1.msra.mxu0 0.0
      %1520 = vmatprep.subr.mxu0 0.0
      %1521 = vmatpush1.msra.mxu0 0.0
      %1522 = vmatprep.subr.mxu0 0.0
      %1523 = vmatpush1.msra.mxu0 0.0
      %1524 = vmatprep.subr.mxu0 0.0
      %1525 = vmatpush1.msra.mxu0 0.0
      %1526 = vmatprep.subr.mxu0 0.0
      %1527 = vmatpush1.msra.mxu0 0.0
      %1528 = vmatprep.subr.mxu0 0.0
      %1529 = vmatpush1.msra.mxu0 0.0
      %1530 = vmatprep.subr.mxu0 0.0
      %1531 = vmatpush1.msra.mxu0 0.0
      %1532 = vmatprep.subr.mxu0 0.0
      %1533 = vmatpush1.msra.mxu0 0.0
      %1534 = vmatprep.subr.mxu0 0.0
      %1535 = vmatpush1.msra.mxu0 0.0
      %1536 = vmatprep.subr.mxu0 0.0
      %1537 = vmatpush1.msra.mxu0 0.0
      %1538 = vmatprep.subr.mxu0 0.0
      %1539 = vmatpush1.msra.mxu0 0.0
      %1540 = vmatprep.subr.mxu0 0.0
      %1541 = vmatpush1.msra.mxu0 0.0
      %1542 = vmatprep.subr.mxu0 0.0
      %1543 = vmatpush1.msra.mxu0 0.0
      %1544 = vmatprep.mubr.f32.mxu0 0.0
      %1545 = vmatmul.mubr.f32.gmra.mrb[0].mxu0 %v1478
      %v1546 = vpop.f32.mrb[0].mxu0
      %v1547 = vadd.f32 0.0, %v1546
      %v1548 = vpop.f32.mrb[0].mxu0
      %v1549 = vadd.f32 0.0, %v1548
      %1550 = vdwg.mxu0
      %v1553 = vrot.slane %v1547, 2
      %v1554 = vrot.slane %v1549, 2
      %v1555 = vrot.slane %v1547, 3
      %v1556 = vrot.slane %v1549, 3
      %v1561 = vadd.f32 %v533, %v1553
      %v1562 = vadd.f32 %v535, %v1554
      %v1563 = vadd.f32 %v539, %v1555
      %v1564 = vadd.f32 %v541, %v1556
      %v1565 = vxor.u32 %v1561, 2147483648
      %v1566 = vxor.u32 %v1563, 2147483648
      %v1567 = vmul.f32 %v1565, 1.442695
      %v1568 = vpow.pop %v1567
      %v1569 = vmul.f32 %v1566, 1.442695
      %v1570 = vpow.pop %v1569
      %v1571 = vadd.f32 %v1568, 1.0
      %v1572 = vadd.f32 %v1570, 1.0
      %v1573 = vrcp.pop %v1571
      %v1574 = vmul.f32 1.0, %v1573
      %v1575 = vrcp.pop %v1572
      %v1576 = vmul.f32 1.0, %v1575
      %v1577 = vtanh.pop %v1562
      %v1578 = vtanh.pop %v1564
      %v1579 = vxor.u32 %v1562, 2147483648
      %v1580 = vxor.u32 %v1564, 2147483648
      %v1581 = vmul.f32 %v1579, 1.442695
      %v1582 = vpow.pop %v1581
      %v1583 = vmul.f32 %v1580, 1.442695
      %v1584 = vpow.pop %v1583
      %v1585 = vadd.f32 %v1582, 1.0
      %v1586 = vadd.f32 %v1584, 1.0
      %v1587 = vrcp.pop %v1585
      %v1588 = vmul.f32 1.0, %v1587
      %v1589 = vrcp.pop %v1586
      %v1590 = vmul.f32 1.0, %v1589
      %v1593 = vrot.slane %v1456, 7
      %v1594 = vrot.slane %v1457, 7
      %v1597 = vmul.f32 %v1574, %v1593
      %v1598 = vmul.f32 %v1576, %v1594
      %v1599 = vmul.f32 %v1574, %v1577
      %v1600 = vmul.f32 %v1576, %v1578
      %1603 = vrot.lane.b32.xlu0 %v1599, 64
      %v1604 = vpop.permute.xlu0 %1603
      %1605 = vrot.lane.b32.xlu0 %v1600, 64
      %v1606 = vpop.permute.xlu0 %1605
      %v1609 = vadd.f32 %v1597, %v1604
      %v1610 = vadd.f32 %v1598, %v1606
      %v1611 = vtanh.pop %v1609
      %v1612 = vtanh.pop %v1610
      %v1613 = vmul.f32 %v1588, %v1611
      %v1614 = vmul.f32 %v1590, %v1612
      %1617 = vrot.lane.b32.xlu0 %v1613, 64
      %v1618 = vpop.permute.xlu0 %1617
      %1619 = vrot.lane.b32.xlu0 %v1614, 64
      %v1620 = vpop.permute.xlu0 %1619
      %vm1623 = vcmask 522246
      %1624 = vst.msk [vmem:[#allocation2] sm:$0x40] %vm1623, %v1618
      %1625 = vst.msk [vmem:[#allocation2 + $0x8] sm:$0x40] %vm1623, %v1620
      %v1626 = vrot.slane %v1613, 6
      %v1627 = vrot.slane %v1614, 5
      %v1628 = vsel %vm712, %v1627, %v1626
      %1629 = vrot.lane.b32.xlu0 %v1628, 64
      %v1630 = vpop.permute.xlu0 %1629
      %v1631 = vsel %vm561, %v1630, 0
      %1633 = vmatprep.subr.mxu0 %v544
      %1634 = vmatpush1.msra.mxu0 %v543
      %1635 = vmatprep.subr.mxu0 %v546
      %1636 = vmatpush1.msra.mxu0 %v545
      %1637 = vmatprep.subr.mxu0 %v548
      %1638 = vmatpush1.msra.mxu0 %v547
      %1639 = vmatprep.subr.mxu0 %v550
      %1640 = vmatpush1.msra.mxu0 %v549
      %1641 = vmatprep.subr.mxu0 %v552
      %1642 = vmatpush1.msra.mxu0 %v551
      %1643 = vmatprep.subr.mxu0 %v554
      %1644 = vmatpush1.msra.mxu0 %v553
      %1645 = vmatprep.subr.mxu0 %v556
      %1646 = vmatpush1.msra.mxu0 %v555
      %1647 = vmatprep.subr.mxu0 %v558
      %1648 = vmatpush1.msra.mxu0 %v557
      %1649 = vmatprep.subr.mxu0 0.0
      %1650 = vmatpush1.msra.mxu0 0.0
      %1651 = vmatprep.subr.mxu0 0.0
      %1652 = vmatpush1.msra.mxu0 0.0
      %1653 = vmatprep.subr.mxu0 0.0
      %1654 = vmatpush1.msra.mxu0 0.0
      %1655 = vmatprep.subr.mxu0 0.0
      %1656 = vmatpush1.msra.mxu0 0.0
      %1657 = vmatprep.subr.mxu0 0.0
      %1658 = vmatpush1.msra.mxu0 0.0
      %1659 = vmatprep.subr.mxu0 0.0
      %1660 = vmatpush1.msra.mxu0 0.0
      %1661 = vmatprep.subr.mxu0 0.0
      %1662 = vmatpush1.msra.mxu0 0.0
      %1663 = vmatprep.subr.mxu0 0.0
      %1664 = vmatpush1.msra.mxu0 0.0
      %1665 = vmatprep.subr.mxu0 0.0
      %1666 = vmatpush1.msra.mxu0 0.0
      %1667 = vmatprep.subr.mxu0 0.0
      %1668 = vmatpush1.msra.mxu0 0.0
      %1669 = vmatprep.subr.mxu0 0.0
      %1670 = vmatpush1.msra.mxu0 0.0
      %1671 = vmatprep.subr.mxu0 0.0
      %1672 = vmatpush1.msra.mxu0 0.0
      %1673 = vmatprep.subr.mxu0 0.0
      %1674 = vmatpush1.msra.mxu0 0.0
      %1675 = vmatprep.subr.mxu0 0.0
      %1676 = vmatpush1.msra.mxu0 0.0
      %1677 = vmatprep.subr.mxu0 0.0
      %1678 = vmatpush1.msra.mxu0 0.0
      %1679 = vmatprep.subr.mxu0 0.0
      %1680 = vmatpush1.msra.mxu0 0.0
      %1681 = vmatprep.subr.mxu0 0.0
      %1682 = vmatpush1.msra.mxu0 0.0
      %1683 = vmatprep.subr.mxu0 0.0
      %1684 = vmatpush1.msra.mxu0 0.0
      %1685 = vmatprep.subr.mxu0 0.0
      %1686 = vmatpush1.msra.mxu0 0.0
      %1687 = vmatprep.subr.mxu0 0.0
      %1688 = vmatpush1.msra.mxu0 0.0
      %1689 = vmatprep.subr.mxu0 0.0
      %1690 = vmatpush1.msra.mxu0 0.0
      %1691 = vmatprep.subr.mxu0 0.0
      %1692 = vmatpush1.msra.mxu0 0.0
      %1693 = vmatprep.subr.mxu0 0.0
      %1694 = vmatpush1.msra.mxu0 0.0
      %1695 = vmatprep.subr.mxu0 0.0
      %1696 = vmatpush1.msra.mxu0 0.0
      %1697 = vmatprep.mubr.f32.mxu0 0.0
      %1698 = vmatmul.mubr.f32.gmra.mrb[0].mxu0 %v1631
      %v1699 = vpop.f32.mrb[0].mxu0
      %v1700 = vadd.f32 0.0, %v1699
      %v1701 = vpop.f32.mrb[0].mxu0
      %v1702 = vadd.f32 0.0, %v1701
      %1703 = vdwg.mxu0
      %v1706 = vrot.slane %v1700, 1
      %v1707 = vrot.slane %v1702, 1
      %v1708 = vrot.slane %v1700, 2
      %v1709 = vrot.slane %v1702, 2
      %v1714 = vadd.f32 %v533, %v1706
      %v1715 = vadd.f32 %v535, %v1707
      %v1716 = vadd.f32 %v539, %v1708
      %v1717 = vadd.f32 %v541, %v1709
      %v1718 = vxor.u32 %v1714, 2147483648
      %v1719 = vxor.u32 %v1716, 2147483648
      %v1720 = vmul.f32 %v1718, 1.442695
      %v1721 = vpow.pop %v1720
      %v1722 = vmul.f32 %v1719, 1.442695
      %v1723 = vpow.pop %v1722
      %v1724 = vadd.f32 %v1721, 1.0
      %v1725 = vadd.f32 %v1723, 1.0
      %v1726 = vrcp.pop %v1724
      %v1727 = vmul.f32 1.0, %v1726
      %v1728 = vrcp.pop %v1725
      %v1729 = vmul.f32 1.0, %v1728
      %v1730 = vtanh.pop %v1715
      %v1731 = vtanh.pop %v1717
      %v1732 = vxor.u32 %v1715, 2147483648
      %v1733 = vxor.u32 %v1717, 2147483648
      %v1734 = vmul.f32 %v1732, 1.442695
      %v1735 = vpow.pop %v1734
      %v1736 = vmul.f32 %v1733, 1.442695
      %v1737 = vpow.pop %v1736
      %v1738 = vadd.f32 %v1735, 1.0
      %v1739 = vadd.f32 %v1737, 1.0
      %v1740 = vrcp.pop %v1738
      %v1741 = vmul.f32 1.0, %v1740
      %v1742 = vrcp.pop %v1739
      %v1743 = vmul.f32 1.0, %v1742
      %v1746 = vrot.slane %v1609, 7
      %v1747 = vrot.slane %v1610, 7
      %v1750 = vmul.f32 %v1727, %v1746
      %v1751 = vmul.f32 %v1729, %v1747
      %v1752 = vmul.f32 %v1727, %v1730
      %v1753 = vmul.f32 %v1729, %v1731
      %1756 = vrot.lane.b32.xlu0 %v1752, 64
      %v1757 = vpop.permute.xlu0 %1756
      %1758 = vrot.lane.b32.xlu0 %v1753, 64
      %v1759 = vpop.permute.xlu0 %1758
      %v1762 = vadd.f32 %v1750, %v1757
      %v1763 = vadd.f32 %v1751, %v1759
      %v1764 = vtanh.pop %v1762
      %v1765 = vtanh.pop %v1763
      %v1766 = vmul.f32 %v1741, %v1764
      %v1767 = vmul.f32 %v1743, %v1765
      %1770 = vrot.lane.b32.xlu0 %v1766, 64
      %v1771 = vpop.permute.xlu0 %1770
      %1772 = vrot.lane.b32.xlu0 %v1767, 64
      %v1773 = vpop.permute.xlu0 %1772
      %vm1776 = vcmask 523271
      %1777 = vst.msk [vmem:[#allocation2] sm:$0x80] %vm1776, %v1771
      %1778 = vst.msk [vmem:[#allocation2 + $0x8] sm:$0x80] %vm1776, %v1773
      %v1779 = vld [vmem:[#allocation2] sm:$0xff]
      %v1780 = vld [vmem:[#allocation2 + $0x8] sm:$0xff]
      %v1781 = vld [vmem:[%s6] sm:$0xff]
      %v1782 = vld [vmem:[%s6 + $0x8] sm:$0xff]
      %v1784 = vsel %vm561, %v1779, 0
      %v1787 = vsel %vm561, %v1781, 0
      %1789 = vmatprep.subr.mxu0 0.0
      %1790 = vmatpush1.xpose.msra.mxu0 %v1787
      %1791 = vmatprep.subr.mxu0 0.0
      %1792 = vmatpush1.xpose.msra.mxu0 0.0
      %1793 = vmatprep.subr.mxu0 0.0
      %1794 = vmatpush1.xpose.msra.mxu0 0.0
      %1795 = vmatprep.subr.mxu0 0.0
      %1796 = vmatpush1.xpose.msra.mxu0 0.0
      %1797 = vmatprep.subr.mxu0 0.0
      %1798 = vmatpush1.xpose.msra.mxu0 0.0
      %1799 = vmatprep.subr.mxu0 0.0
      %1800 = vmatpush1.xpose.msra.mxu0 0.0
      %1801 = vmatprep.subr.mxu0 0.0
      %1802 = vmatpush1.xpose.msra.mxu0 0.0
      %1803 = vmatprep.subr.mxu0 0.0
      %1804 = vmatpush1.xpose.msra.mxu0 0.0
      %1805 = vmatprep.subr.mxu0 0.0
      %1806 = vmatpush1.xpose.msra.mxu0 0.0
      %1807 = vmatprep.subr.mxu0 0.0
      %1808 = vmatpush1.xpose.msra.mxu0 0.0
      %1809 = vmatprep.subr.mxu0 0.0
      %1810 = vmatpush1.xpose.msra.mxu0 0.0
      %1811 = vmatprep.subr.mxu0 0.0
      %1812 = vmatpush1.xpose.msra.mxu0 0.0
      %1813 = vmatprep.subr.mxu0 0.0
      %1814 = vmatpush1.xpose.msra.mxu0 0.0
      %1815 = vmatprep.subr.mxu0 0.0
      %1816 = vmatpush1.xpose.msra.mxu0 0.0
      %1817 = vmatprep.subr.mxu0 0.0
      %1818 = vmatpush1.xpose.msra.mxu0 0.0
      %1819 = vmatprep.subr.mxu0 0.0
      %1820 = vmatpush1.xpose.msra.mxu0 0.0
      %1821 = vmatprep.subr.mxu0 0.0
      %1822 = vmatpush1.xpose.msra.mxu0 0.0
      %1823 = vmatprep.subr.mxu0 0.0
      %1824 = vmatpush1.xpose.msra.mxu0 0.0
      %1825 = vmatprep.subr.mxu0 0.0
      %1826 = vmatpush1.xpose.msra.mxu0 0.0
      %1827 = vmatprep.subr.mxu0 0.0
      %1828 = vmatpush1.xpose.msra.mxu0 0.0
      %1829 = vmatprep.subr.mxu0 0.0
      %1830 = vmatpush1.xpose.msra.mxu0 0.0
      %1831 = vmatprep.subr.mxu0 0.0
      %1832 = vmatpush1.xpose.msra.mxu0 0.0
      %1833 = vmatprep.subr.mxu0 0.0
      %1834 = vmatpush1.xpose.msra.mxu0 0.0
      %1835 = vmatprep.subr.mxu0 0.0
      %1836 = vmatpush1.xpose.msra.mxu0 0.0
      %1837 = vmatprep.subr.mxu0 0.0
      %1838 = vmatpush1.xpose.msra.mxu0 0.0
      %1839 = vmatprep.subr.mxu0 0.0
      %1840 = vmatpush1.xpose.msra.mxu0 0.0
      %1841 = vmatprep.subr.mxu0 0.0
      %1842 = vmatpush1.xpose.msra.mxu0 0.0
      %1843 = vmatprep.subr.mxu0 0.0
      %1844 = vmatpush1.xpose.msra.mxu0 0.0
      %1845 = vmatprep.subr.mxu0 0.0
      %1846 = vmatpush1.xpose.msra.mxu0 0.0
      %1847 = vmatprep.subr.mxu0 0.0
      %1848 = vmatpush1.xpose.msra.mxu0 0.0
      %1849 = vmatprep.subr.mxu0 0.0
      %1850 = vmatpush1.xpose.msra.mxu0 0.0
      %1851 = vmatprep.subr.mxu0 0.0
      %1852 = vmatpush1.xpose.msra.mxu0 0.0
      %1853 = vmatprep.mubr.f32.mxu0 0.0
      %1854 = vmatmul.mubr.f32.gmra.mrb[0].mxu0 %v1784
      %v1855 = vpop.f32.mrb[0].mxu0
      %v1856 = vadd.f32 0.0, %v1855
      %v1857 = vpop.f32.mrb[0].mxu0
      %1858 = vdwg.mxu0
      %v1860 = vsel %vm561, %v1780, 0
      %v1863 = vsel %vm561, %v1782, 0
      %1865 = vmatprep.subr.mxu0 0.0
      %1866 = vmatpush1.xpose.msra.mxu0 %v1863
      %1867 = vmatprep.subr.mxu0 0.0
      %1868 = vmatpush1.xpose.msra.mxu0 0.0
      %1869 = vmatprep.subr.mxu0 0.0
      %1870 = vmatpush1.xpose.msra.mxu0 0.0
      %1871 = vmatprep.subr.mxu0 0.0
      %1872 = vmatpush1.xpose.msra.mxu0 0.0
      %1873 = vmatprep.subr.mxu0 0.0
      %1874 = vmatpush1.xpose.msra.mxu0 0.0
      %1875 = vmatprep.subr.mxu0 0.0
      %1876 = vmatpush1.xpose.msra.mxu0 0.0
      %1877 = vmatprep.subr.mxu0 0.0
      %1878 = vmatpush1.xpose.msra.mxu0 0.0
      %1879 = vmatprep.subr.mxu0 0.0
      %1880 = vmatpush1.xpose.msra.mxu0 0.0
      %1881 = vmatprep.subr.mxu0 0.0
      %1882 = vmatpush1.xpose.msra.mxu0 0.0
      %1883 = vmatprep.subr.mxu0 0.0
      %1884 = vmatpush1.xpose.msra.mxu0 0.0
      %1885 = vmatprep.subr.mxu0 0.0
      %1886 = vmatpush1.xpose.msra.mxu0 0.0
      %1887 = vmatprep.subr.mxu0 0.0
      %1888 = vmatpush1.xpose.msra.mxu0 0.0
      %1889 = vmatprep.subr.mxu0 0.0
      %1890 = vmatpush1.xpose.msra.mxu0 0.0
      %1891 = vmatprep.subr.mxu0 0.0
      %1892 = vmatpush1.xpose.msra.mxu0 0.0
      %1893 = vmatprep.subr.mxu0 0.0
      %1894 = vmatpush1.xpose.msra.mxu0 0.0
      %1895 = vmatprep.subr.mxu0 0.0
      %1896 = vmatpush1.xpose.msra.mxu0 0.0
      %1897 = vmatprep.subr.mxu0 0.0
      %1898 = vmatpush1.xpose.msra.mxu0 0.0
      %1899 = vmatprep.subr.mxu0 0.0
      %1900 = vmatpush1.xpose.msra.mxu0 0.0
      %1901 = vmatprep.subr.mxu0 0.0
      %1902 = vmatpush1.xpose.msra.mxu0 0.0
      %1903 = vmatprep.subr.mxu0 0.0
      %1904 = vmatpush1.xpose.msra.mxu0 0.0
      %1905 = vmatprep.subr.mxu0 0.0
      %1906 = vmatpush1.xpose.msra.mxu0 0.0
      %1907 = vmatprep.subr.mxu0 0.0
      %1908 = vmatpush1.xpose.msra.mxu0 0.0
      %1909 = vmatprep.subr.mxu0 0.0
      %1910 = vmatpush1.xpose.msra.mxu0 0.0
      %1911 = vmatprep.subr.mxu0 0.0
      %1912 = vmatpush1.xpose.msra.mxu0 0.0
      %1913 = vmatprep.subr.mxu0 0.0
      %1914 = vmatpush1.xpose.msra.mxu0 0.0
      %1915 = vmatprep.subr.mxu0 0.0
      %1916 = vmatpush1.xpose.msra.mxu0 0.0
      %1917 = vmatprep.subr.mxu0 0.0
      %1918 = vmatpush1.xpose.msra.mxu0 0.0
      %1919 = vmatprep.subr.mxu0 0.0
      %1920 = vmatpush1.xpose.msra.mxu0 0.0
      %1921 = vmatprep.subr.mxu0 0.0
      %1922 = vmatpush1.xpose.msra.mxu0 0.0
      %1923 = vmatprep.subr.mxu0 0.0
      %1924 = vmatpush1.xpose.msra.mxu0 0.0
      %1925 = vmatprep.subr.mxu0 0.0
      %1926 = vmatpush1.xpose.msra.mxu0 0.0
      %1927 = vmatprep.subr.mxu0 0.0
      %1928 = vmatpush1.xpose.msra.mxu0 0.0
      %1929 = vmatprep.mubr.f32.mxu0 0.0
      %1930 = vmatmul.mubr.f32.gmra.mrb[0].mxu0 %v1860
      %v1931 = vpop.f32.mrb[0].mxu0
      %v1932 = vadd.f32 0.0, %v1931
      %v1933 = vpop.f32.mrb[0].mxu0
      %1934 = vdwg.mxu0
      %vm1935 = vcmask 64512
      %v1936 = vsel %vm1935, %v1856, -inf
      %1937 = vmax.xlane.f32.xlu0 %v1936
      %v1938 = vpop.xlane.xlu0 %1937
      %v1939 = vsel %vm1935, %v1932, -inf
      %1940 = vmax.xlane.f32.xlu0 %v1939
      %v1941 = vpop.xlane.xlu0 %1940
      %v1942 = vsub.f32 %v1856, %v1938
      %v1943 = vsub.f32 %v1932, %v1941
      %v1944 = vmul.f32 %v1942, 1.442695
      %v1945 = vpow.pop %v1944
      %v1946 = vmul.f32 %v1943, 1.442695
      %v1947 = vpow.pop %v1946
      %v1948 = vsel %vm1935, %v1945, 0.0
      %1949 = vadd.xlane.f32.xlu0 %v1948
      %v1950 = vpop.xlane.xlu0 %1949
      %v1951 = vsel %vm1935, %v1947, 0.0
      %1952 = vadd.xlane.f32.xlu0 %v1951
      %v1953 = vpop.xlane.xlu0 %1952
      %v1954 = vrcp.pop %v1950
      %v1955 = vmul.f32 %v1945, %v1954
      %v1956 = vrcp.pop %v1953
      %v1957 = vmul.f32 %v1947, %v1956
      %v1959 = vsel %vm1935, %v1955, 0
      %1961 = vmatprep.subr.mxu0 0.0
      %1962 = vmatpush1.msra.mxu0 %v1781
      %1963 = vmatprep.subr.mxu0 0.0
      %1964 = vmatpush1.msra.mxu0 0.0
      %1965 = vmatprep.subr.mxu0 0.0
      %1966 = vmatpush1.msra.mxu0 0.0
      %1967 = vmatprep.subr.mxu0 0.0
      %1968 = vmatpush1.msra.mxu0 0.0
      %1969 = vmatprep.subr.mxu0 0.0
      %1970 = vmatpush1.msra.mxu0 0.0
      %1971 = vmatprep.subr.mxu0 0.0
      %1972 = vmatpush1.msra.mxu0 0.0
      %1973 = vmatprep.subr.mxu0 0.0
      %1974 = vmatpush1.msra.mxu0 0.0
      %1975 = vmatprep.subr.mxu0 0.0
      %1976 = vmatpush1.msra.mxu0 0.0
      %1977 = vmatprep.subr.mxu0 0.0
      %1978 = vmatpush1.msra.mxu0 0.0
      %1979 = vmatprep.subr.mxu0 0.0
      %1980 = vmatpush1.msra.mxu0 0.0
      %1981 = vmatprep.subr.mxu0 0.0
      %1982 = vmatpush1.msra.mxu0 0.0
      %1983 = vmatprep.subr.mxu0 0.0
      %1984 = vmatpush1.msra.mxu0 0.0
      %1985 = vmatprep.subr.mxu0 0.0
      %1986 = vmatpush1.msra.mxu0 0.0
      %1987 = vmatprep.subr.mxu0 0.0
      %1988 = vmatpush1.msra.mxu0 0.0
      %1989 = vmatprep.subr.mxu0 0.0
      %1990 = vmatpush1.msra.mxu0 0.0
      %1991 = vmatprep.subr.mxu0 0.0
      %1992 = vmatpush1.msra.mxu0 0.0
      %1993 = vmatprep.subr.mxu0 0.0
      %1994 = vmatpush1.msra.mxu0 0.0
      %1995 = vmatprep.subr.mxu0 0.0
      %1996 = vmatpush1.msra.mxu0 0.0
      %1997 = vmatprep.subr.mxu0 0.0
      %1998 = vmatpush1.msra.mxu0 0.0
      %1999 = vmatprep.subr.mxu0 0.0
      %2000 = vmatpush1.msra.mxu0 0.0
      %2001 = vmatprep.subr.mxu0 0.0
      %2002 = vmatpush1.msra.mxu0 0.0
      %2003 = vmatprep.subr.mxu0 0.0
      %2004 = vmatpush1.msra.mxu0 0.0
      %2005 = vmatprep.subr.mxu0 0.0
      %2006 = vmatpush1.msra.mxu0 0.0
      %2007 = vmatprep.subr.mxu0 0.0
      %2008 = vmatpush1.msra.mxu0 0.0
      %2009 = vmatprep.subr.mxu0 0.0
      %2010 = vmatpush1.msra.mxu0 0.0
      %2011 = vmatprep.subr.mxu0 0.0
      %2012 = vmatpush1.msra.mxu0 0.0
      %2013 = vmatprep.subr.mxu0 0.0
      %2014 = vmatpush1.msra.mxu0 0.0
      %2015 = vmatprep.subr.mxu0 0.0
      %2016 = vmatpush1.msra.mxu0 0.0
      %2017 = vmatprep.subr.mxu0 0.0
      %2018 = vmatpush1.msra.mxu0 0.0
      %2019 = vmatprep.subr.mxu0 0.0
      %2020 = vmatpush1.msra.mxu0 0.0
      %2021 = vmatprep.subr.mxu0 0.0
      %2022 = vmatpush1.msra.mxu0 0.0
      %2023 = vmatprep.subr.mxu0 0.0
      %2024 = vmatpush1.msra.mxu0 0.0
      %2025 = vmatprep.mubr.f32.mxu0 0.0
      %2026 = vmatmul.mubr.f32.gmra.mrb[0].mxu0 %v1959
      %v2027 = vpop.f32.mrb[0].mxu0
      %v2028 = vadd.f32 0.0, %v2027
      %v2029 = vpop.f32.mrb[0].mxu0
      %2030 = vdwg.mxu0
      %v2032 = vsel %vm1935, %v1957, 0
      %2034 = vmatprep.subr.mxu0 0.0
      %2035 = vmatpush1.msra.mxu0 %v1782
      %2036 = vmatprep.subr.mxu0 0.0
      %2037 = vmatpush1.msra.mxu0 0.0
      %2038 = vmatprep.subr.mxu0 0.0
      %2039 = vmatpush1.msra.mxu0 0.0
      %2040 = vmatprep.subr.mxu0 0.0
      %2041 = vmatpush1.msra.mxu0 0.0
      %2042 = vmatprep.subr.mxu0 0.0
      %2043 = vmatpush1.msra.mxu0 0.0
      %2044 = vmatprep.subr.mxu0 0.0
      %2045 = vmatpush1.msra.mxu0 0.0
      %2046 = vmatprep.subr.mxu0 0.0
      %2047 = vmatpush1.msra.mxu0 0.0
      %2048 = vmatprep.subr.mxu0 0.0
      %2049 = vmatpush1.msra.mxu0 0.0
      %2050 = vmatprep.subr.mxu0 0.0
      %2051 = vmatpush1.msra.mxu0 0.0
      %2052 = vmatprep.subr.mxu0 0.0
      %2053 = vmatpush1.msra.mxu0 0.0
      %2054 = vmatprep.subr.mxu0 0.0
      %2055 = vmatpush1.msra.mxu0 0.0
      %2056 = vmatprep.subr.mxu0 0.0
      %2057 = vmatpush1.msra.mxu0 0.0
      %2058 = vmatprep.subr.mxu0 0.0
      %2059 = vmatpush1.msra.mxu0 0.0
      %2060 = vmatprep.subr.mxu0 0.0
      %2061 = vmatpush1.msra.mxu0 0.0
      %2062 = vmatprep.subr.mxu0 0.0
      %2063 = vmatpush1.msra.mxu0 0.0
      %2064 = vmatprep.subr.mxu0 0.0
      %2065 = vmatpush1.msra.mxu0 0.0
      %2066 = vmatprep.subr.mxu0 0.0
      %2067 = vmatpush1.msra.mxu0 0.0
      %2068 = vmatprep.subr.mxu0 0.0
      %2069 = vmatpush1.msra.mxu0 0.0
      %2070 = vmatprep.subr.mxu0 0.0
      %2071 = vmatpush1.msra.mxu0 0.0
      %2072 = vmatprep.subr.mxu0 0.0
      %2073 = vmatpush1.msra.mxu0 0.0
      %2074 = vmatprep.subr.mxu0 0.0
      %2075 = vmatpush1.msra.mxu0 0.0
      %2076 = vmatprep.subr.mxu0 0.0
      %2077 = vmatpush1.msra.mxu0 0.0
      %2078 = vmatprep.subr.mxu0 0.0
      %2079 = vmatpush1.msra.mxu0 0.0
      %2080 = vmatprep.subr.mxu0 0.0
      %2081 = vmatpush1.msra.mxu0 0.0
      %2082 = vmatprep.subr.mxu0 0.0
      %2083 = vmatpush1.msra.mxu0 0.0
      %2084 = vmatprep.subr.mxu0 0.0
      %2085 = vmatpush1.msra.mxu0 0.0
      %2086 = vmatprep.subr.mxu0 0.0
      %2087 = vmatpush1.msra.mxu0 0.0
      %2088 = vmatprep.subr.mxu0 0.0
      %2089 = vmatpush1.msra.mxu0 0.0
      %2090 = vmatprep.subr.mxu0 0.0
      %2091 = vmatpush1.msra.mxu0 0.0
      %2092 = vmatprep.subr.mxu0 0.0
      %2093 = vmatpush1.msra.mxu0 0.0
      %2094 = vmatprep.subr.mxu0 0.0
      %2095 = vmatpush1.msra.mxu0 0.0
      %2096 = vmatprep.subr.mxu0 0.0
      %2097 = vmatpush1.msra.mxu0 0.0
      %2098 = vmatprep.mubr.f32.mxu0 0.0
      %2099 = vmatmul.mubr.f32.gmra.mrb[0].mxu0 %v2032
      %v2100 = vpop.f32.mrb[0].mxu0
      %v2101 = vadd.f32 0.0, %v2100
      %v2102 = vpop.f32.mrb[0].mxu0
      %2103 = vdwg.mxu0
      %v2104 = vld [vmem:[%s7] sm:$0xff]
      %v2105 = vld [vmem:[%s7 + $0x8] sm:$0xff]
      %v2106 = vld [vmem:[%s7 + $0x10] sm:$0xff]
      %v2107 = vld [vmem:[%s7 + $0x18] sm:$0xff]
      %v2108 = vld [vmem:[%s7 + $0x20] sm:$0xff]
      %v2109 = vld [vmem:[%s7 + $0x28] sm:$0xff]
      %v2110 = vld [vmem:[%s7 + $0x30] sm:$0xff]
      %v2111 = vld [vmem:[%s7 + $0x38] sm:$0xff]
      %v2112 = vld [vmem:[%s7 + $0x40] sm:$0xff]
      %v2113 = vld [vmem:[%s7 + $0x48] sm:$0xff]
      %v2114 = vld [vmem:[%s7 + $0x50] sm:$0xff]
      %v2115 = vld [vmem:[%s7 + $0x58] sm:$0xff]
      %v2116 = vld [vmem:[%s7 + $0x60] sm:$0xff]
      %v2117 = vld [vmem:[%s7 + $0x68] sm:$0xff]
      %v2118 = vld [vmem:[%s7 + $0x70] sm:$0xff]
      %v2119 = vld [vmem:[%s7 + $0x78] sm:$0xff]
      %2120 = vmatprep.subr.mxu0 0.0
      %2121 = vmatpush1.msra.mxu0 %v2112
      %2122 = vmatprep.subr.mxu0 0.0
      %2123 = vmatpush1.msra.mxu0 %v2113
      %2124 = vmatprep.subr.mxu0 0.0
      %2125 = vmatpush1.msra.mxu0 %v2114
      %2126 = vmatprep.subr.mxu0 0.0
      %2127 = vmatpush1.msra.mxu0 %v2115
      %2128 = vmatprep.subr.mxu0 0.0
      %2129 = vmatpush1.msra.mxu0 %v2116
      %2130 = vmatprep.subr.mxu0 0.0
      %2131 = vmatpush1.msra.mxu0 %v2117
      %2132 = vmatprep.subr.mxu0 0.0
      %2133 = vmatpush1.msra.mxu0 %v2118
      %2134 = vmatprep.subr.mxu0 0.0
      %2135 = vmatpush1.msra.mxu0 %v2119
      %2136 = vmatprep.subr.mxu0 0.0
      %2137 = vmatpush1.msra.mxu0 0.0
      %2138 = vmatprep.subr.mxu0 0.0
      %2139 = vmatpush1.msra.mxu0 0.0
      %2140 = vmatprep.subr.mxu0 0.0
      %2141 = vmatpush1.msra.mxu0 0.0
      %2142 = vmatprep.subr.mxu0 0.0
      %2143 = vmatpush1.msra.mxu0 0.0
      %2144 = vmatprep.subr.mxu0 0.0
      %2145 = vmatpush1.msra.mxu0 0.0
      %2146 = vmatprep.subr.mxu0 0.0
      %2147 = vmatpush1.msra.mxu0 0.0
      %2148 = vmatprep.subr.mxu0 0.0
      %2149 = vmatpush1.msra.mxu0 0.0
      %2150 = vmatprep.subr.mxu0 0.0
      %2151 = vmatpush1.msra.mxu0 0.0
      %2152 = vmatprep.subr.mxu0 0.0
      %2153 = vmatpush1.msra.mxu0 0.0
      %2154 = vmatprep.subr.mxu0 0.0
      %2155 = vmatpush1.msra.mxu0 0.0
      %2156 = vmatprep.subr.mxu0 0.0
      %2157 = vmatpush1.msra.mxu0 0.0
      %2158 = vmatprep.subr.mxu0 0.0
      %2159 = vmatpush1.msra.mxu0 0.0
      %2160 = vmatprep.subr.mxu0 0.0
      %2161 = vmatpush1.msra.mxu0 0.0
      %2162 = vmatprep.subr.mxu0 0.0
      %2163 = vmatpush1.msra.mxu0 0.0
      %2164 = vmatprep.subr.mxu0 0.0
      %2165 = vmatpush1.msra.mxu0 0.0
      %2166 = vmatprep.subr.mxu0 0.0
      %2167 = vmatpush1.msra.mxu0 0.0
      %2168 = vmatprep.subr.mxu0 0.0
      %2169 = vmatpush1.msra.mxu0 0.0
      %2170 = vmatprep.subr.mxu0 0.0
      %2171 = vmatpush1.msra.mxu0 0.0
      %2172 = vmatprep.subr.mxu0 0.0
      %2173 = vmatpush1.msra.mxu0 0.0
      %2174 = vmatprep.subr.mxu0 0.0
      %2175 = vmatpush1.msra.mxu0 0.0
      %2176 = vmatprep.subr.mxu0 0.0
      %2177 = vmatpush1.msra.mxu0 0.0
      %2178 = vmatprep.subr.mxu0 0.0
      %2179 = vmatpush1.msra.mxu0 0.0
      %2180 = vmatprep.subr.mxu0 0.0
      %2181 = vmatpush1.msra.mxu0 0.0
      %2182 = vmatprep.subr.mxu0 0.0
      %2183 = vmatpush1.msra.mxu0 0.0
      %2184 = vmatprep.mubr.f32.mxu0 0.0
      %2185 = vmatmul.mubr.f32.gmra.mrb[0].mxu0 %v1784
      %v2186 = vpop.f32.mrb[0].mxu0
      %v2187 = vadd.f32 0.0, %v2186
      %v2188 = vpop.f32.mrb[0].mxu0
      %2189 = vmatprep.mubr.f32.mxu0 0.0
      %2190 = vmatmul.mubr.f32.gmra.mrb[0].mxu0 %v1860
      %v2191 = vpop.f32.mrb[0].mxu0
      %v2192 = vadd.f32 0.0, %v2191
      %v2193 = vpop.f32.mrb[0].mxu0
      %2194 = vdwg.mxu0
      %v2196 = vsel %vm561, %v2028, 0
      %v2199 = vsel %vm561, %v2101, 0
      %2201 = vmatprep.subr.mxu0 0.0
      %2202 = vmatpush1.msra.mxu0 %v2104
      %2203 = vmatprep.subr.mxu0 0.0
      %2204 = vmatpush1.msra.mxu0 %v2105
      %2205 = vmatprep.subr.mxu0 0.0
      %2206 = vmatpush1.msra.mxu0 %v2106
      %2207 = vmatprep.subr.mxu0 0.0
      %2208 = vmatpush1.msra.mxu0 %v2107
      %2209 = vmatprep.subr.mxu0 0.0
      %2210 = vmatpush1.msra.mxu0 %v2108
      %2211 = vmatprep.subr.mxu0 0.0
      %2212 = vmatpush1.msra.mxu0 %v2109
      %2213 = vmatprep.subr.mxu0 0.0
      %2214 = vmatpush1.msra.mxu0 %v2110
      %2215 = vmatprep.subr.mxu0 0.0
      %2216 = vmatpush1.msra.mxu0 %v2111
      %2217 = vmatprep.subr.mxu0 0.0
      %2218 = vmatpush1.msra.mxu0 0.0
      %2219 = vmatprep.subr.mxu0 0.0
      %2220 = vmatpush1.msra.mxu0 0.0
      %2221 = vmatprep.subr.mxu0 0.0
      %2222 = vmatpush1.msra.mxu0 0.0
      %2223 = vmatprep.subr.mxu0 0.0
      %2224 = vmatpush1.msra.mxu0 0.0
      %2225 = vmatprep.subr.mxu0 0.0
      %2226 = vmatpush1.msra.mxu0 0.0
      %2227 = vmatprep.subr.mxu0 0.0
      %2228 = vmatpush1.msra.mxu0 0.0
      %2229 = vmatprep.subr.mxu0 0.0
      %2230 = vmatpush1.msra.mxu0 0.0
      %2231 = vmatprep.subr.mxu0 0.0
      %2232 = vmatpush1.msra.mxu0 0.0
      %2233 = vmatprep.subr.mxu0 0.0
      %2234 = vmatpush1.msra.mxu0 0.0
      %2235 = vmatprep.subr.mxu0 0.0
      %2236 = vmatpush1.msra.mxu0 0.0
      %2237 = vmatprep.subr.mxu0 0.0
      %2238 = vmatpush1.msra.mxu0 0.0
      %2239 = vmatprep.subr.mxu0 0.0
      %2240 = vmatpush1.msra.mxu0 0.0
      %2241 = vmatprep.subr.mxu0 0.0
      %2242 = vmatpush1.msra.mxu0 0.0
      %2243 = vmatprep.subr.mxu0 0.0
      %2244 = vmatpush1.msra.mxu0 0.0
      %2245 = vmatprep.subr.mxu0 0.0
      %2246 = vmatpush1.msra.mxu0 0.0
      %2247 = vmatprep.subr.mxu0 0.0
      %2248 = vmatpush1.msra.mxu0 0.0
      %2249 = vmatprep.subr.mxu0 0.0
      %2250 = vmatpush1.msra.mxu0 0.0
      %2251 = vmatprep.subr.mxu0 0.0
      %2252 = vmatpush1.msra.mxu0 0.0
      %2253 = vmatprep.subr.mxu0 0.0
      %2254 = vmatpush1.msra.mxu0 0.0
      %2255 = vmatprep.subr.mxu0 0.0
      %2256 = vmatpush1.msra.mxu0 0.0
      %2257 = vmatprep.subr.mxu0 0.0
      %2258 = vmatpush1.msra.mxu0 0.0
      %2259 = vmatprep.subr.mxu0 0.0
      %2260 = vmatpush1.msra.mxu0 0.0
      %2261 = vmatprep.subr.mxu0 0.0
      %2262 = vmatpush1.msra.mxu0 0.0
      %2263 = vmatprep.subr.mxu0 0.0
      %2264 = vmatpush1.msra.mxu0 0.0
      %2265 = vmatprep.mubr.f32.mxu0 0.0
      %2266 = vmatmul.mubr.f32.gmra.mrb[0].mxu0 %v2196
      %v2267 = vpop.f32.mrb[0].mxu0
      %v2268 = vadd.f32 %v2187, %v2267
      %v2269 = vpop.f32.mrb[0].mxu0
      %2270 = vmatprep.mubr.f32.mxu0 0.0
      %2271 = vmatmul.mubr.f32.gmra.mrb[0].mxu0 %v2199
      %v2272 = vpop.f32.mrb[0].mxu0
      %v2273 = vadd.f32 %v2192, %v2272
      %v2274 = vpop.f32.mrb[0].mxu0
      %2275 = vdwg.mxu0
      %v2276 = vtanh.pop %v2268
      %v2277 = vtanh.pop %v2273
      %v2278 = vld [vmem:[%s8] sm:$0xff]
      %v2279 = vld [vmem:[%s8 + $0x8] sm:$0xff]
      %v2280 = vld [vmem:[%s8 + $0x10] sm:$0xff]
      %v2281 = vld [vmem:[%s8 + $0x18] sm:$0xff]
      %v2282 = vld [vmem:[%s8 + $0x20] sm:$0xff]
      %v2283 = vld [vmem:[%s8 + $0x28] sm:$0xff]
      %v2284 = vld [vmem:[%s8 + $0x30] sm:$0xff]
      %v2285 = vld [vmem:[%s8 + $0x38] sm:$0xff]
      %v2286 = vld [vmem:[%s9] sm:$0x1]
      %v2288 = vlaneseq
      %v2289 = vshrl.u32 %v2288, 7
      %v2290 = vsub.s32 0, %v2289
      %v2291 = vrot.slane %v2286, %v2290
      %v2294 = vsel %vm561, %v2276, 0
      %v2297 = vsel %vm561, %v2277, 0
      %2299 = vmatprep.subr.mxu0 0.0
      %2300 = vmatpush1.msra.mxu0 %v2278
      %2301 = vmatprep.subr.mxu0 0.0
      %2302 = vmatpush1.msra.mxu0 %v2279
      %2303 = vmatprep.subr.mxu0 0.0
      %2304 = vmatpush1.msra.mxu0 %v2280
      %2305 = vmatprep.subr.mxu0 0.0
      %2306 = vmatpush1.msra.mxu0 %v2281
      %2307 = vmatprep.subr.mxu0 0.0
      %2308 = vmatpush1.msra.mxu0 %v2282
      %2309 = vmatprep.subr.mxu0 0.0
      %2310 = vmatpush1.msra.mxu0 %v2283
      %2311 = vmatprep.subr.mxu0 0.0
      %2312 = vmatpush1.msra.mxu0 %v2284
      %2313 = vmatprep.subr.mxu0 0.0
      %2314 = vmatpush1.msra.mxu0 %v2285
      %2315 = vmatprep.subr.mxu0 0.0
      %2316 = vmatpush1.msra.mxu0 0.0
      %2317 = vmatprep.subr.mxu0 0.0
      %2318 = vmatpush1.msra.mxu0 0.0
      %2319 = vmatprep.subr.mxu0 0.0
      %2320 = vmatpush1.msra.mxu0 0.0
      %2321 = vmatprep.subr.mxu0 0.0
      %2322 = vmatpush1.msra.mxu0 0.0
      %2323 = vmatprep.subr.mxu0 0.0
      %2324 = vmatpush1.msra.mxu0 0.0
      %2325 = vmatprep.subr.mxu0 0.0
      %2326 = vmatpush1.msra.mxu0 0.0
      %2327 = vmatprep.subr.mxu0 0.0
      %2328 = vmatpush1.msra.mxu0 0.0
      %2329 = vmatprep.subr.mxu0 0.0
      %2330 = vmatpush1.msra.mxu0 0.0
      %2331 = vmatprep.subr.mxu0 0.0
      %2332 = vmatpush1.msra.mxu0 0.0
      %2333 = vmatprep.subr.mxu0 0.0
      %2334 = vmatpush1.msra.mxu0 0.0
      %2335 = vmatprep.subr.mxu0 0.0
      %2336 = vmatpush1.msra.mxu0 0.0
      %2337 = vmatprep.subr.mxu0 0.0
      %2338 = vmatpush1.msra.mxu0 0.0
      %2339 = vmatprep.subr.mxu0 0.0
      %2340 = vmatpush1.msra.mxu0 0.0
      %2341 = vmatprep.subr.mxu0 0.0
      %2342 = vmatpush1.msra.mxu0 0.0
      %2343 = vmatprep.subr.mxu0 0.0
      %2344 = vmatpush1.msra.mxu0 0.0
      %2345 = vmatprep.subr.mxu0 0.0
      %2346 = vmatpush1.msra.mxu0 0.0
      %2347 = vmatprep.subr.mxu0 0.0
      %2348 = vmatpush1.msra.mxu0 0.0
      %2349 = vmatprep.subr.mxu0 0.0
      %2350 = vmatpush1.msra.mxu0 0.0
      %2351 = vmatprep.subr.mxu0 0.0
      %2352 = vmatpush1.msra.mxu0 0.0
      %2353 = vmatprep.subr.mxu0 0.0
      %2354 = vmatpush1.msra.mxu0 0.0
      %2355 = vmatprep.subr.mxu0 0.0
      %2356 = vmatpush1.msra.mxu0 0.0
      %2357 = vmatprep.subr.mxu0 0.0
      %2358 = vmatpush1.msra.mxu0 0.0
      %2359 = vmatprep.subr.mxu0 0.0
      %2360 = vmatpush1.msra.mxu0 0.0
      %2361 = vmatprep.subr.mxu0 0.0
      %2362 = vmatpush1.msra.mxu0 0.0
      %2363 = vmatprep.mubr.f32.mxu0 0.0
      %2364 = vmatmul.mubr.f32.gmra.mrb[0].mxu0 %v2294
      %v2365 = vpop.f32.mrb[0].mxu0
      %v2366 = vadd.f32 %v2291, %v2365
      %v2367 = vpop.f32.mrb[0].mxu0
      %2368 = vmatprep.mubr.f32.mxu0 0.0
      %2369 = vmatmul.mubr.f32.gmra.mrb[0].mxu0 %v2297
      %v2370 = vpop.f32.mrb[0].mxu0
      %v2371 = vadd.f32 %v2291, %v2370
      %v2372 = vpop.f32.mrb[0].mxu0
      %2373 = vdwg.mxu0
      %2374 = vst [vmem:[%s431] sm:$0xff] %v2366
      %2375 = vst [vmem:[%s431 + $0x8] sm:$0xff] %v2371
      %2376 = vst.msk [vmem:[%s436] sm:$0xff] %vm1935, %v1955
      %2377 = vst.msk [vmem:[%s436 + $0x8] sm:$0xff] %vm1935, %v1957
      %p2378 = scmp.lt.s32.totalorder %s23, 1
      %s2379 = scalar_select %p2378, %s23, 1
      %s2380 = smul.addr %s2379, 2
      %s2381 = smul.addr %s2380, 8
      %s2382 = scalar_lea.vmem %s10, %s2381
      %p2383 = scmp.lt.s32.totalorder %s23, 1
      %s2384 = scalar_select %p2383, %s23, 1
      %s2385 = smul.addr %s2384, 2
      %s2386 = smul.addr %s2385, 8
      %s2387 = scalar_lea.vmem %s11, %s2386
      // Predicated region
      $region61: #{rnn_autoencoder_forward.3} parent=59 // pred_check
        %p2388 = pneg %p266
      $region62: #{rnn_autoencoder_forward.3} parent=59 // pred_check_branch
        %2390 = sbr.rel (%p2388) target = $region64
      $region63: #{rnn_autoencoder_forward.3} parent=59 // pred_region
        _
      $region64: #{rnn_autoencoder_forward.3} parent=59 // pred_fallthru
        _
      // Predicated region
      $region65: #{rnn_autoencoder_forward.3} parent=59 // pred_check
        %p2391 = pneg %p292
      $region66: #{rnn_autoencoder_forward.3} parent=59 // pred_check_branch
        %2393 = sbr.rel (%p2391) target = $region68
      $region67: #{rnn_autoencoder_forward.3} parent=59 // pred_region
        _
      $region68: #{rnn_autoencoder_forward.3} parent=59 // pred_fallthru
        _
    $region60: #{rnn_autoencoder_forward.3} parent=5 // pred_fallthru
      _
    %p2394 = scmp.le.s32.totalorder 2, %s18
    // Predicated region
    $region69: #{rnn_autoencoder_forward.3} parent=5 // pred_check
      %p2395 = pneg %p2394
    $region70: #{rnn_autoencoder_forward.3} parent=5 // pred_check_branch
      %2397 = sbr.rel (%p2395) target = $region72
    $region71: #{rnn_autoencoder_forward.3} parent=5 // pred_region
      %s2398 = ssub.s32 %s18, 2
      // Predicated region
      $region73: #{rnn_autoencoder_forward.3} parent=71 // pred_check
        %p2399 = pneg %p272
      $region74: #{rnn_autoencoder_forward.3} parent=71 // pred_check_branch
        %2401 = sbr.rel (%p2399) target = $region76
      $region75: #{rnn_autoencoder_forward.3} parent=71 // pred_region
        %p2402 = scmp.lt.s32.totalorder %s24, 1
        %s2403 = scalar_select %p2402, %s24, 1
        %s2404 = smul.addr %s2403, 2
        %s2405 = smul.addr %s2404, 8
        %s2406 = scalar_lea.vmem %s10, %s2405
      $region76: #{rnn_autoencoder_forward.3} parent=71 // pred_fallthru
        _
      // Predicated region
      $region77: #{rnn_autoencoder_forward.3} parent=71 // pred_check
        %p2407 = pneg %p298
      $region78: #{rnn_autoencoder_forward.3} parent=71 // pred_check_branch
        %2409 = sbr.rel (%p2407) target = $region80
      $region79: #{rnn_autoencoder_forward.3} parent=71 // pred_region
        %p2410 = scmp.lt.s32.totalorder %s24, 1
        %s2411 = scalar_select %p2410, %s24, 1
        %s2412 = smul.addr %s2411, 2
        %s2413 = smul.addr %s2412, 8
        %s2414 = scalar_lea.vmem %s11, %s2413
      $region80: #{rnn_autoencoder_forward.3} parent=71 // pred_fallthru
        _
    $region72: #{rnn_autoencoder_forward.3} parent=5 // pred_fallthru
      _
  $region6: #{rnn_autoencoder_forward.3} parent=0 // loop_footer
    %s22 = sadd.s32 1, %s18
  $region7: #{rnn_autoencoder_forward.3} parent=0 // loop_footer_branch
    %17 = sbr.rel target = $region3
  $region8: #{rnn_autoencoder_forward.3} parent=0 // loop_exit
    _

// kernel: rnn_autoencoder_forward.2
$region0: #{rnn_autoencoder_forward.2}
  #allocation0 [shape = 'u32[]', space=smem, size = 0x4, offset = 0x4, fixed_abs, tag = 'smem constant byte address 0x4 - core index']
  #allocation1 [shape = 'u32[144,128]{1,0:T(1,128)}', space=vmem, size = 0x12000, scoped, tag = 'internal scratch']
  %s0 = inlined_call_operand.vmem [shape: f32[2,8,32], index: 0, kind: input, shape index: {}]
  %s1 = inlined_call_operand.vmem [shape: f32[32,128], index: 1, kind: input, shape index: {}]
  %s2 = inlined_call_operand.vmem [shape: f32[32,128], index: 2, kind: input, shape index: {}]
  %s3 = inlined_call_operand.vmem [shape: f32[1,128], index: 3, kind: input, shape index: {}]
  %s4 = inlined_call_operand.vmem [shape: f32[32,128], index: 4, kind: input, shape index: {}]
  %s5 = inlined_call_operand.vmem [shape: f32[32,128], index: 5, kind: input, shape index: {}]
  %s6 = inlined_call_operand.vmem [shape: f32[1,128], index: 6, kind: input, shape index: {}]
  %s7 = inlined_call_operand.vmem [shape: f32[64,64], index: 7, kind: input, shape index: {}]
  %s8 = inlined_call_operand.vmem [shape: f32[1,64], index: 8, kind: input, shape index: {}]
  %s9 = inlined_call_operand.vmem [shape: f32[64,64], index: 9, kind: input, shape index: {}]
  %s10 = inlined_call_operand.vmem [shape: f32[1,64], index: 10, kind: input, shape index: {}]
  %s11 = inlined_call_operand.vmem [shape: f32[2,8,64], index: 11, kind: output, shape index: {0}]
  %s12 = inlined_call_operand.vmem [shape: f32[2,64], index: 12, kind: output, shape index: {1}]
  %s13 = inlined_call_operand.vmem [shape: f32[2,64], index: 13, kind: output, shape index: {2}]
  %14 = xla_tuple %s11, %s12, %s13
  %s15 = sld [smem:[#allocation0]]
  $region70: #{rnn_autoencoder_forward.2} parent=0
    _
  %s17 = ssub.s32 1, %s15
  %s18 = scalar_select 0, %s17, %s15
  // Predicated region
  $region2: #{rnn_autoencoder_forward.2} parent=0 // pred_check
    _
  $region3: #{rnn_autoencoder_forward.2} parent=0 // pred_check_branch
    %20 = sbr.rel (0) target = $region5
  $region4: #{rnn_autoencoder_forward.2} parent=0 // pred_region
    _
  $region5: #{rnn_autoencoder_forward.2} parent=0 // pred_fallthru
    _
  // Predicated region
  $region6: #{rnn_autoencoder_forward.2} parent=0 // pred_check
    _
  $region7: #{rnn_autoencoder_forward.2} parent=0 // pred_check_branch
    %22 = sbr.rel (0) target = $region9
  $region8: #{rnn_autoencoder_forward.2} parent=0 // pred_region
    _
  $region9: #{rnn_autoencoder_forward.2} parent=0 // pred_fallthru
    _
  // Predicated region
  $region10: #{rnn_autoencoder_forward.2} parent=0 // pred_check
    _
  $region11: #{rnn_autoencoder_forward.2} parent=0 // pred_check_branch
    %24 = sbr.rel (0) target = $region13
  $region12: #{rnn_autoencoder_forward.2} parent=0 // pred_region
    _
  $region13: #{rnn_autoencoder_forward.2} parent=0 // pred_fallthru
    _
  // Predicated region
  $region14: #{rnn_autoencoder_forward.2} parent=0 // pred_check
    _
  $region15: #{rnn_autoencoder_forward.2} parent=0 // pred_check_branch
    %26 = sbr.rel (0) target = $region17
  $region16: #{rnn_autoencoder_forward.2} parent=0 // pred_region
    _
  $region17: #{rnn_autoencoder_forward.2} parent=0 // pred_fallthru
    _
  // Predicated region
  $region18: #{rnn_autoencoder_forward.2} parent=0 // pred_check
    _
  $region19: #{rnn_autoencoder_forward.2} parent=0 // pred_check_branch
    %28 = sbr.rel (0) target = $region21
  $region20: #{rnn_autoencoder_forward.2} parent=0 // pred_region
    _
  $region21: #{rnn_autoencoder_forward.2} parent=0 // pred_fallthru
    _
  // Predicated region
  $region22: #{rnn_autoencoder_forward.2} parent=0 // pred_check
    _
  $region23: #{rnn_autoencoder_forward.2} parent=0 // pred_check_branch
    %30 = sbr.rel (0) target = $region25
  $region24: #{rnn_autoencoder_forward.2} parent=0 // pred_region
    _
  $region25: #{rnn_autoencoder_forward.2} parent=0 // pred_fallthru
    _
  // Predicated region
  $region26: #{rnn_autoencoder_forward.2} parent=0 // pred_check
    _
  $region27: #{rnn_autoencoder_forward.2} parent=0 // pred_check_branch
    %32 = sbr.rel (0) target = $region29
  $region28: #{rnn_autoencoder_forward.2} parent=0 // pred_region
    _
  $region29: #{rnn_autoencoder_forward.2} parent=0 // pred_fallthru
    _
  // Predicated region
  $region30: #{rnn_autoencoder_forward.2} parent=0 // pred_check
    _
  $region31: #{rnn_autoencoder_forward.2} parent=0 // pred_check_branch
    %34 = sbr.rel (0) target = $region33
  $region32: #{rnn_autoencoder_forward.2} parent=0 // pred_region
    _
  $region33: #{rnn_autoencoder_forward.2} parent=0 // pred_fallthru
    _
  // Predicated region
  $region34: #{rnn_autoencoder_forward.2} parent=0 // pred_check
    _
  $region35: #{rnn_autoencoder_forward.2} parent=0 // pred_check_branch
    %36 = sbr.rel (0) target = $region37
  $region36: #{rnn_autoencoder_forward.2} parent=0 // pred_region
    _
  $region37: #{rnn_autoencoder_forward.2} parent=0 // pred_fallthru
    _
  // Predicated region
  $region38: #{rnn_autoencoder_forward.2} parent=0 // pred_check
    _
  $region39: #{rnn_autoencoder_forward.2} parent=0 // pred_check_branch
    %38 = sbr.rel (0) target = $region41
  $region40: #{rnn_autoencoder_forward.2} parent=0 // pred_region
    _
  $region41: #{rnn_autoencoder_forward.2} parent=0 // pred_fallthru
    _
  // Predicated region
  $region42: #{rnn_autoencoder_forward.2} parent=0 // pred_check
    _
  $region43: #{rnn_autoencoder_forward.2} parent=0 // pred_check_branch
    %40 = sbr.rel (0) target = $region45
  $region44: #{rnn_autoencoder_forward.2} parent=0 // pred_region
    _
  $region45: #{rnn_autoencoder_forward.2} parent=0 // pred_fallthru
    _
  %v41 = vld [vmem:[%s0] sm:$0xff]
  %v42 = vld [vmem:[%s0 + $0x8] sm:$0xff]
  %v43 = vld [vmem:[%s1] sm:$0xff]
  %v44 = vld [vmem:[%s1 + $0x8] sm:$0xff]
  %v45 = vld [vmem:[%s1 + $0x10] sm:$0xff]
  %v46 = vld [vmem:[%s1 + $0x18] sm:$0xff]
  %v47 = vld [vmem:[%s3] sm:$0x1]
  %v49 = vlaneseq
  %v50 = vshrl.u32 %v49, 7
  %v51 = vsub.s32 0, %v50
  %v52 = vrot.slane %v47, %v51
  %vm54 = vcmask 261120
  %v56 = vsel %vm54, %v41, 0
  %v59 = vsel %vm54, %v42, 0
  %61 = vmatprep.subr.mxu0 0.0
  %62 = vmatpush1.msra.mxu0 %v43
  %63 = vmatprep.subr.mxu0 0.0
  %64 = vmatpush1.msra.mxu0 %v44
  %65 = vmatprep.subr.mxu0 0.0
  %66 = vmatpush1.msra.mxu0 %v45
  %67 = vmatprep.subr.mxu0 0.0
  %68 = vmatpush1.msra.mxu0 %v46
  %69 = vmatprep.subr.mxu0 0.0
  %70 = vmatpush1.msra.mxu0 0.0
  %71 = vmatprep.subr.mxu0 0.0
  %72 = vmatpush1.msra.mxu0 0.0
  %73 = vmatprep.subr.mxu0 0.0
  %74 = vmatpush1.msra.mxu0 0.0
  %75 = vmatprep.subr.mxu0 0.0
  %76 = vmatpush1.msra.mxu0 0.0
  %77 = vmatprep.subr.mxu0 0.0
  %78 = vmatpush1.msra.mxu0 0.0
  %79 = vmatprep.subr.mxu0 0.0
  %80 = vmatpush1.msra.mxu0 0.0
  %81 = vmatprep.subr.mxu0 0.0
  %82 = vmatpush1.msra.mxu0 0.0
  %83 = vmatprep.subr.mxu0 0.0
  %84 = vmatpush1.msra.mxu0 0.0
  %85 = vmatprep.subr.mxu0 0.0
  %86 = vmatpush1.msra.mxu0 0.0
  %87 = vmatprep.subr.mxu0 0.0
  %88 = vmatpush1.msra.mxu0 0.0
  %89 = vmatprep.subr.mxu0 0.0
  %90 = vmatpush1.msra.mxu0 0.0
  %91 = vmatprep.subr.mxu0 0.0
  %92 = vmatpush1.msra.mxu0 0.0
  %93 = vmatprep.subr.mxu0 0.0
  %94 = vmatpush1.msra.mxu0 0.0
  %95 = vmatprep.subr.mxu0 0.0
  %96 = vmatpush1.msra.mxu0 0.0
  %97 = vmatprep.subr.mxu0 0.0
  %98 = vmatpush1.msra.mxu0 0.0
  %99 = vmatprep.subr.mxu0 0.0
  %100 = vmatpush1.msra.mxu0 0.0
  %101 = vmatprep.subr.mxu0 0.0
  %102 = vmatpush1.msra.mxu0 0.0
  %103 = vmatprep.subr.mxu0 0.0
  %104 = vmatpush1.msra.mxu0 0.0
  %105 = vmatprep.subr.mxu0 0.0
  %106 = vmatpush1.msra.mxu0 0.0
  %107 = vmatprep.subr.mxu0 0.0
  %108 = vmatpush1.msra.mxu0 0.0
  %109 = vmatprep.subr.mxu0 0.0
  %110 = vmatpush1.msra.mxu0 0.0
  %111 = vmatprep.subr.mxu0 0.0
  %112 = vmatpush1.msra.mxu0 0.0
  %113 = vmatprep.subr.mxu0 0.0
  %114 = vmatpush1.msra.mxu0 0.0
  %115 = vmatprep.subr.mxu0 0.0
  %116 = vmatpush1.msra.mxu0 0.0
  %117 = vmatprep.subr.mxu0 0.0
  %118 = vmatpush1.msra.mxu0 0.0
  %119 = vmatprep.subr.mxu0 0.0
  %120 = vmatpush1.msra.mxu0 0.0
  %121 = vmatprep.subr.mxu0 0.0
  %122 = vmatpush1.msra.mxu0 0.0
  %123 = vmatprep.subr.mxu0 0.0
  %124 = vmatpush1.msra.mxu0 0.0
  %125 = vmatprep.mubr.f32.mxu0 0.0
  %126 = vmatmul.mubr.f32.gmra.mrb[0].mxu0 %v56
  %v127 = vpop.f32.mrb[0].mxu0
  %v128 = vadd.f32 %v52, %v127
  %v129 = vpop.f32.mrb[0].mxu0
  %130 = vmatprep.mubr.f32.mxu0 0.0
  %131 = vmatmul.mubr.f32.gmra.mrb[0].mxu0 %v59
  %v132 = vpop.f32.mrb[0].mxu0
  %v133 = vadd.f32 %v52, %v132
  %v134 = vpop.f32.mrb[0].mxu0
  %135 = vdwg.mxu0
  %v136 = vld [vmem:[%s4] sm:$0xff]
  %v137 = vld [vmem:[%s4 + $0x8] sm:$0xff]
  %v138 = vld [vmem:[%s4 + $0x10] sm:$0xff]
  %v139 = vld [vmem:[%s4 + $0x18] sm:$0xff]
  %v140 = vld [vmem:[%s6] sm:$0x1]
  %v142 = vlaneseq
  %v143 = vshrl.u32 %v142, 7
  %v144 = vsub.s32 0, %v143
  %v145 = vrot.slane %v140, %v144
  %147 = vmatprep.subr.mxu0 0.0
  %148 = vmatpush1.msra.mxu0 %v136
  %149 = vmatprep.subr.mxu0 0.0
  %150 = vmatpush1.msra.mxu0 %v137
  %151 = vmatprep.subr.mxu0 0.0
  %152 = vmatpush1.msra.mxu0 %v138
  %153 = vmatprep.subr.mxu0 0.0
  %154 = vmatpush1.msra.mxu0 %v139
  %155 = vmatprep.subr.mxu0 0.0
  %156 = vmatpush1.msra.mxu0 0.0
  %157 = vmatprep.subr.mxu0 0.0
  %158 = vmatpush1.msra.mxu0 0.0
  %159 = vmatprep.subr.mxu0 0.0
  %160 = vmatpush1.msra.mxu0 0.0
  %161 = vmatprep.subr.mxu0 0.0
  %162 = vmatpush1.msra.mxu0 0.0
  %163 = vmatprep.subr.mxu0 0.0
  %164 = vmatpush1.msra.mxu0 0.0
  %165 = vmatprep.subr.mxu0 0.0
  %166 = vmatpush1.msra.mxu0 0.0
  %167 = vmatprep.subr.mxu0 0.0
  %168 = vmatpush1.msra.mxu0 0.0
  %169 = vmatprep.subr.mxu0 0.0
  %170 = vmatpush1.msra.mxu0 0.0
  %171 = vmatprep.subr.mxu0 0.0
  %172 = vmatpush1.msra.mxu0 0.0
  %173 = vmatprep.subr.mxu0 0.0
  %174 = vmatpush1.msra.mxu0 0.0
  %175 = vmatprep.subr.mxu0 0.0
  %176 = vmatpush1.msra.mxu0 0.0
  %177 = vmatprep.subr.mxu0 0.0
  %178 = vmatpush1.msra.mxu0 0.0
  %179 = vmatprep.subr.mxu0 0.0
  %180 = vmatpush1.msra.mxu0 0.0
  %181 = vmatprep.subr.mxu0 0.0
  %182 = vmatpush1.msra.mxu0 0.0
  %183 = vmatprep.subr.mxu0 0.0
  %184 = vmatpush1.msra.mxu0 0.0
  %185 = vmatprep.subr.mxu0 0.0
  %186 = vmatpush1.msra.mxu0 0.0
  %187 = vmatprep.subr.mxu0 0.0
  %188 = vmatpush1.msra.mxu0 0.0
  %189 = vmatprep.subr.mxu0 0.0
  %190 = vmatpush1.msra.mxu0 0.0
  %191 = vmatprep.subr.mxu0 0.0
  %192 = vmatpush1.msra.mxu0 0.0
  %193 = vmatprep.subr.mxu0 0.0
  %194 = vmatpush1.msra.mxu0 0.0
  %195 = vmatprep.subr.mxu0 0.0
  %196 = vmatpush1.msra.mxu0 0.0
  %197 = vmatprep.subr.mxu0 0.0
  %198 = vmatpush1.msra.mxu0 0.0
  %199 = vmatprep.subr.mxu0 0.0
  %200 = vmatpush1.msra.mxu0 0.0
  %201 = vmatprep.subr.mxu0 0.0
  %202 = vmatpush1.msra.mxu0 0.0
  %203 = vmatprep.subr.mxu0 0.0
  %204 = vmatpush1.msra.mxu0 0.0
  %205 = vmatprep.subr.mxu0 0.0
  %206 = vmatpush1.msra.mxu0 0.0
  %207 = vmatprep.subr.mxu0 0.0
  %208 = vmatpush1.msra.mxu0 0.0
  %209 = vmatprep.subr.mxu0 0.0
  %210 = vmatpush1.msra.mxu0 0.0
  %211 = vmatprep.mubr.f32.mxu0 0.0
  %212 = vmatmul.mubr.f32.gmra.mrb[0].mxu0 %v56
  %v213 = vpop.f32.mrb[0].mxu0
  %v214 = vadd.f32 %v145, %v213
  %v215 = vpop.f32.mrb[0].mxu0
  %216 = vmatprep.mubr.f32.mxu0 0.0
  %217 = vmatmul.mubr.f32.gmra.mrb[0].mxu0 %v59
  %v218 = vpop.f32.mrb[0].mxu0
  %v219 = vadd.f32 %v145, %v218
  %v220 = vpop.f32.mrb[0].mxu0
  %221 = vdwg.mxu0
  %v222 = vld [vmem:[%s2] sm:$0xff]
  %v223 = vld [vmem:[%s2 + $0x8] sm:$0xff]
  %v224 = vld [vmem:[%s2 + $0x10] sm:$0xff]
  %v225 = vld [vmem:[%s2 + $0x18] sm:$0xff]
  %v226 = vld [vmem:[%s5] sm:$0xff]
  %v227 = vld [vmem:[%s5 + $0x8] sm:$0xff]
  %v228 = vld [vmem:[%s5 + $0x10] sm:$0xff]
  %v229 = vld [vmem:[%s5 + $0x18] sm:$0xff]
  %v231 = vsel %vm54, 0.0, 0
  %233 = vmatprep.subr.mxu0 0.0
  %234 = vmatpush1.msra.mxu0 %v222
  %235 = vmatprep.subr.mxu0 0.0
  %236 = vmatpush1.msra.mxu0 %v223
  %237 = vmatprep.subr.mxu0 0.0
  %238 = vmatpush1.msra.mxu0 %v224
  %239 = vmatprep.subr.mxu0 0.0
  %240 = vmatpush1.msra.mxu0 %v225
  %241 = vmatprep.subr.mxu0 0.0
  %242 = vmatpush1.msra.mxu0 0.0
  %243 = vmatprep.subr.mxu0 0.0
  %244 = vmatpush1.msra.mxu0 0.0
  %245 = vmatprep.subr.mxu0 0.0
  %246 = vmatpush1.msra.mxu0 0.0
  %247 = vmatprep.subr.mxu0 0.0
  %248 = vmatpush1.msra.mxu0 0.0
  %249 = vmatprep.subr.mxu0 0.0
  %250 = vmatpush1.msra.mxu0 0.0
  %251 = vmatprep.subr.mxu0 0.0
  %252 = vmatpush1.msra.mxu0 0.0
  %253 = vmatprep.subr.mxu0 0.0
  %254 = vmatpush1.msra.mxu0 0.0
  %255 = vmatprep.subr.mxu0 0.0
  %256 = vmatpush1.msra.mxu0 0.0
  %257 = vmatprep.subr.mxu0 0.0
  %258 = vmatpush1.msra.mxu0 0.0
  %259 = vmatprep.subr.mxu0 0.0
  %260 = vmatpush1.msra.mxu0 0.0
  %261 = vmatprep.subr.mxu0 0.0
  %262 = vmatpush1.msra.mxu0 0.0
  %263 = vmatprep.subr.mxu0 0.0
  %264 = vmatpush1.msra.mxu0 0.0
  %265 = vmatprep.subr.mxu0 0.0
  %266 = vmatpush1.msra.mxu0 0.0
  %267 = vmatprep.subr.mxu0 0.0
  %268 = vmatpush1.msra.mxu0 0.0
  %269 = vmatprep.subr.mxu0 0.0
  %270 = vmatpush1.msra.mxu0 0.0
  %271 = vmatprep.subr.mxu0 0.0
  %272 = vmatpush1.msra.mxu0 0.0
  %273 = vmatprep.subr.mxu0 0.0
  %274 = vmatpush1.msra.mxu0 0.0
  %275 = vmatprep.subr.mxu0 0.0
  %276 = vmatpush1.msra.mxu0 0.0
  %277 = vmatprep.subr.mxu0 0.0
  %278 = vmatpush1.msra.mxu0 0.0
  %279 = vmatprep.subr.mxu0 0.0
  %280 = vmatpush1.msra.mxu0 0.0
  %281 = vmatprep.subr.mxu0 0.0
  %282 = vmatpush1.msra.mxu0 0.0
  %283 = vmatprep.subr.mxu0 0.0
  %284 = vmatpush1.msra.mxu0 0.0
  %285 = vmatprep.subr.mxu0 0.0
  %286 = vmatpush1.msra.mxu0 0.0
  %287 = vmatprep.subr.mxu0 0.0
  %288 = vmatpush1.msra.mxu0 0.0
  %289 = vmatprep.subr.mxu0 0.0
  %290 = vmatpush1.msra.mxu0 0.0
  %291 = vmatprep.subr.mxu0 0.0
  %292 = vmatpush1.msra.mxu0 0.0
  %293 = vmatprep.subr.mxu0 0.0
  %294 = vmatpush1.msra.mxu0 0.0
  %295 = vmatprep.subr.mxu0 0.0
  %296 = vmatpush1.msra.mxu0 0.0
  %297 = vmatprep.mubr.f32.mxu0 0.0
  %298 = vmatmul.mubr.f32.gmra.mrb[0].mxu0 %v231
  %v299 = vpop.f32.mrb[0].mxu0
  %v300 = vadd.f32 0.0, %v299
  %v301 = vpop.f32.mrb[0].mxu0
  %302 = vdwg.mxu0
  %v304 = vrot.slane %v300, 1
  %v307 = vadd.f32 %v128, %v300
  %v308 = vadd.f32 %v133, %v304
  %v309 = vxor.u32 %v307, 2147483648
  %v310 = vxor.u32 %v308, 2147483648
  %v311 = vmul.f32 %v309, 1.442695
  %v312 = vpow.pop %v311
  %v313 = vmul.f32 %v310, 1.442695
  %v314 = vpow.pop %v313
  %v315 = vadd.f32 %v312, 1.0
  %v316 = vadd.f32 %v314, 1.0
  %v317 = vrcp.pop %v315
  %v318 = vmul.f32 1.0, %v317
  %v319 = vrcp.pop %v316
  %v320 = vmul.f32 1.0, %v319
  %v321 = vtanh.pop %v307
  %v322 = vtanh.pop %v308
  %v323 = vmul.f32 %v318, 0.0
  %v324 = vmul.f32 %v320, 0.0
  %327 = vrot.lane.b32.xlu0 %v321, 64
  %v328 = vpop.permute.xlu0 %327
  %329 = vrot.lane.b32.xlu0 %v322, 64
  %v330 = vpop.permute.xlu0 %329
  %v333 = vmul.f32 %v318, %v328
  %v334 = vmul.f32 %v320, %v330
  %337 = vrot.lane.b32.xlu0 %v333, 32
  %v338 = vpop.permute.xlu0 %337
  %339 = vrot.lane.b32.xlu0 %v334, 32
  %v340 = vpop.permute.xlu0 %339
  %v343 = vadd.f32 %v323, %v338
  %v344 = vadd.f32 %v324, %v340
  %v345 = vtanh.pop %v343
  %v346 = vtanh.pop %v344
  %349 = vrot.lane.b32.xlu0 %v345, 64
  %v350 = vpop.permute.xlu0 %349
  %351 = vrot.lane.b32.xlu0 %v346, 64
  %v352 = vpop.permute.xlu0 %351
  %v355 = vmul.f32 %v318, %v350
  %v356 = vmul.f32 %v320, %v352
  %357 = vmatprep.subr.mxu0 0.0
  %358 = vmatpush1.msra.mxu0 %v226
  %359 = vmatprep.subr.mxu0 0.0
  %360 = vmatpush1.msra.mxu0 %v227
  %361 = vmatprep.subr.mxu0 0.0
  %362 = vmatpush1.msra.mxu0 %v228
  %363 = vmatprep.subr.mxu0 0.0
  %364 = vmatpush1.msra.mxu0 %v229
  %365 = vmatprep.subr.mxu0 0.0
  %366 = vmatpush1.msra.mxu0 0.0
  %367 = vmatprep.subr.mxu0 0.0
  %368 = vmatpush1.msra.mxu0 0.0
  %369 = vmatprep.subr.mxu0 0.0
  %370 = vmatpush1.msra.mxu0 0.0
  %371 = vmatprep.subr.mxu0 0.0
  %372 = vmatpush1.msra.mxu0 0.0
  %373 = vmatprep.subr.mxu0 0.0
  %374 = vmatpush1.msra.mxu0 0.0
  %375 = vmatprep.subr.mxu0 0.0
  %376 = vmatpush1.msra.mxu0 0.0
  %377 = vmatprep.subr.mxu0 0.0
  %378 = vmatpush1.msra.mxu0 0.0
  %379 = vmatprep.subr.mxu0 0.0
  %380 = vmatpush1.msra.mxu0 0.0
  %381 = vmatprep.subr.mxu0 0.0
  %382 = vmatpush1.msra.mxu0 0.0
  %383 = vmatprep.subr.mxu0 0.0
  %384 = vmatpush1.msra.mxu0 0.0
  %385 = vmatprep.subr.mxu0 0.0
  %386 = vmatpush1.msra.mxu0 0.0
  %387 = vmatprep.subr.mxu0 0.0
  %388 = vmatpush1.msra.mxu0 0.0
  %389 = vmatprep.subr.mxu0 0.0
  %390 = vmatpush1.msra.mxu0 0.0
  %391 = vmatprep.subr.mxu0 0.0
  %392 = vmatpush1.msra.mxu0 0.0
  %393 = vmatprep.subr.mxu0 0.0
  %394 = vmatpush1.msra.mxu0 0.0
  %395 = vmatprep.subr.mxu0 0.0
  %396 = vmatpush1.msra.mxu0 0.0
  %397 = vmatprep.subr.mxu0 0.0
  %398 = vmatpush1.msra.mxu0 0.0
  %399 = vmatprep.subr.mxu0 0.0
  %400 = vmatpush1.msra.mxu0 0.0
  %401 = vmatprep.subr.mxu0 0.0
  %402 = vmatpush1.msra.mxu0 0.0
  %403 = vmatprep.subr.mxu0 0.0
  %404 = vmatpush1.msra.mxu0 0.0
  %405 = vmatprep.subr.mxu0 0.0
  %406 = vmatpush1.msra.mxu0 0.0
  %407 = vmatprep.subr.mxu0 0.0
  %408 = vmatpush1.msra.mxu0 0.0
  %409 = vmatprep.subr.mxu0 0.0
  %410 = vmatpush1.msra.mxu0 0.0
  %411 = vmatprep.subr.mxu0 0.0
  %412 = vmatpush1.msra.mxu0 0.0
  %413 = vmatprep.subr.mxu0 0.0
  %414 = vmatpush1.msra.mxu0 0.0
  %415 = vmatprep.subr.mxu0 0.0
  %416 = vmatpush1.msra.mxu0 0.0
  %417 = vmatprep.subr.mxu0 0.0
  %418 = vmatpush1.msra.mxu0 0.0
  %419 = vmatprep.subr.mxu0 0.0
  %420 = vmatpush1.msra.mxu0 0.0
  %421 = vmatprep.mubr.f32.mxu0 0.0
  %422 = vmatmul.mubr.f32.gmra.mrb[0].mxu0 %v231
  %v423 = vpop.f32.mrb[0].mxu0
  %v424 = vadd.f32 0.0, %v423
  %v425 = vpop.f32.mrb[0].mxu0
  %426 = vdwg.mxu0
  %v428 = vrot.slane %v424, 1
  %v429 = vrot.slane %v424, 2
  %v432 = vadd.f32 %v214, %v428
  %v433 = vadd.f32 %v219, %v429
  %v434 = vxor.u32 %v432, 2147483648
  %v435 = vxor.u32 %v433, 2147483648
  %v436 = vmul.f32 %v434, 1.442695
  %v437 = vpow.pop %v436
  %v438 = vmul.f32 %v435, 1.442695
  %v439 = vpow.pop %v438
  %v440 = vadd.f32 %v437, 1.0
  %v441 = vadd.f32 %v439, 1.0
  %v442 = vrcp.pop %v440
  %v443 = vmul.f32 1.0, %v442
  %v444 = vrcp.pop %v441
  %v445 = vmul.f32 1.0, %v444
  %v446 = vtanh.pop %v432
  %v447 = vtanh.pop %v433
  %v448 = vmul.f32 %v443, 0.0
  %v449 = vmul.f32 %v445, 0.0
  %452 = vrot.lane.b32.xlu0 %v446, 64
  %v453 = vpop.permute.xlu0 %452
  %454 = vrot.lane.b32.xlu0 %v447, 64
  %v455 = vpop.permute.xlu0 %454
  %v458 = vmul.f32 %v443, %v453
  %v459 = vmul.f32 %v445, %v455
  %462 = vrot.lane.b32.xlu0 %v458, 32
  %v463 = vpop.permute.xlu0 %462
  %464 = vrot.lane.b32.xlu0 %v459, 32
  %v465 = vpop.permute.xlu0 %464
  %v468 = vadd.f32 %v448, %v463
  %v469 = vadd.f32 %v449, %v465
  %v470 = vtanh.pop %v468
  %v471 = vtanh.pop %v469
  %474 = vrot.lane.b32.xlu0 %v470, 64
  %v475 = vpop.permute.xlu0 %474
  %476 = vrot.lane.b32.xlu0 %v471, 64
  %v477 = vpop.permute.xlu0 %476
  %v480 = vmul.f32 %v443, %v475
  %v481 = vmul.f32 %v445, %v477
  %484 = vrot.lane.b32.xlu0 %v355, 32
  %v485 = vpop.permute.xlu0 %484
  %486 = vrot.lane.b32.xlu0 %v356, 32
  %v487 = vpop.permute.xlu0 %486
  %vm490 = vcmask 253952
  %491 = vst.msk [vmem:[%s11] sm:$0x1] %vm490, %v485
  %492 = vst.msk [vmem:[%s11 + $0x8] sm:$0x1] %vm490, %v487
  %495 = vrot.lane.b32.xlu0 %v480, 64
  %v496 = vpop.permute.xlu0 %495
  %497 = vrot.lane.b32.xlu0 %v481, 64
  %v498 = vpop.permute.xlu0 %497
  %vm501 = vcmask 523527
  %502 = vst.msk [vmem:[%s11] sm:$0x80] %vm501, %v496
  %503 = vst.msk [vmem:[%s11 + $0x8] sm:$0x80] %vm501, %v498
  %v504 = vrot.slane %v356, 7
  %vm505 = vcmask 1041409
  %v506 = vsel %vm505, %v504, %v355
  %507 = vrot.lane.b32.xlu0 %v506, 32
  %v508 = vpop.permute.xlu0 %507
  %v509 = vsel %vm54, %v508, 0
  %511 = vmatprep.subr.mxu0 0.0
  %512 = vmatpush1.msra.mxu0 %v222
  %513 = vmatprep.subr.mxu0 0.0
  %514 = vmatpush1.msra.mxu0 %v223
  %515 = vmatprep.subr.mxu0 0.0
  %516 = vmatpush1.msra.mxu0 %v224
  %517 = vmatprep.subr.mxu0 0.0
  %518 = vmatpush1.msra.mxu0 %v225
  %519 = vmatprep.subr.mxu0 0.0
  %520 = vmatpush1.msra.mxu0 0.0
  %521 = vmatprep.subr.mxu0 0.0
  %522 = vmatpush1.msra.mxu0 0.0
  %523 = vmatprep.subr.mxu0 0.0
  %524 = vmatpush1.msra.mxu0 0.0
  %525 = vmatprep.subr.mxu0 0.0
  %526 = vmatpush1.msra.mxu0 0.0
  %527 = vmatprep.subr.mxu0 0.0
  %528 = vmatpush1.msra.mxu0 0.0
  %529 = vmatprep.subr.mxu0 0.0
  %530 = vmatpush1.msra.mxu0 0.0
  %531 = vmatprep.subr.mxu0 0.0
  %532 = vmatpush1.msra.mxu0 0.0
  %533 = vmatprep.subr.mxu0 0.0
  %534 = vmatpush1.msra.mxu0 0.0
  %535 = vmatprep.subr.mxu0 0.0
  %536 = vmatpush1.msra.mxu0 0.0
  %537 = vmatprep.subr.mxu0 0.0
  %538 = vmatpush1.msra.mxu0 0.0
  %539 = vmatprep.subr.mxu0 0.0
  %540 = vmatpush1.msra.mxu0 0.0
  %541 = vmatprep.subr.mxu0 0.0
  %542 = vmatpush1.msra.mxu0 0.0
  %543 = vmatprep.subr.mxu0 0.0
  %544 = vmatpush1.msra.mxu0 0.0
  %545 = vmatprep.subr.mxu0 0.0
  %546 = vmatpush1.msra.mxu0 0.0
  %547 = vmatprep.subr.mxu0 0.0
  %548 = vmatpush1.msra.mxu0 0.0
  %549 = vmatprep.subr.mxu0 0.0
  %550 = vmatpush1.msra.mxu0 0.0
  %551 = vmatprep.subr.mxu0 0.0
  %552 = vmatpush1.msra.mxu0 0.0
  %553 = vmatprep.subr.mxu0 0.0
  %554 = vmatpush1.msra.mxu0 0.0
  %555 = vmatprep.subr.mxu0 0.0
  %556 = vmatpush1.msra.mxu0 0.0
  %557 = vmatprep.subr.mxu0 0.0
  %558 = vmatpush1.msra.mxu0 0.0
  %559 = vmatprep.subr.mxu0 0.0
  %560 = vmatpush1.msra.mxu0 0.0
  %561 = vmatprep.subr.mxu0 0.0
  %562 = vmatpush1.msra.mxu0 0.0
  %563 = vmatprep.subr.mxu0 0.0
  %564 = vmatpush1.msra.mxu0 0.0
  %565 = vmatprep.subr.mxu0 0.0
  %566 = vmatpush1.msra.mxu0 0.0
  %567 = vmatprep.subr.mxu0 0.0
  %568 = vmatpush1.msra.mxu0 0.0
  %569 = vmatprep.subr.mxu0 0.0
  %570 = vmatpush1.msra.mxu0 0.0
  %571 = vmatprep.subr.mxu0 0.0
  %572 = vmatpush1.msra.mxu0 0.0
  %573 = vmatprep.subr.mxu0 0.0
  %574 = vmatpush1.msra.mxu0 0.0
  %575 = vmatprep.mubr.f32.mxu0 0.0
  %576 = vmatmul.mubr.f32.gmra.mrb[0].mxu0 %v509
  %v577 = vpop.f32.mrb[0].mxu0
  %v578 = vadd.f32 0.0, %v577
  %v579 = vpop.f32.mrb[0].mxu0
  %580 = vdwg.mxu0
  %v582 = vrot.slane %v578, 7
  %v585 = vadd.f32 %v128, %v582
  %v586 = vadd.f32 %v133, %v578
  %v587 = vxor.u32 %v585, 2147483648
  %v588 = vxor.u32 %v586, 2147483648
  %v589 = vmul.f32 %v587, 1.442695
  %v590 = vpow.pop %v589
  %v591 = vmul.f32 %v588, 1.442695
  %v592 = vpow.pop %v591
  %v593 = vadd.f32 %v590, 1.0
  %v594 = vadd.f32 %v592, 1.0
  %v595 = vrcp.pop %v593
  %v596 = vmul.f32 1.0, %v595
  %v597 = vrcp.pop %v594
  %v598 = vmul.f32 1.0, %v597
  %v599 = vtanh.pop %v585
  %v600 = vtanh.pop %v586
  %v603 = vrot.slane %v343, 7
  %v604 = vrot.slane %v344, 7
  %v607 = vmul.f32 %v596, %v603
  %v608 = vmul.f32 %v598, %v604
  %611 = vrot.lane.b32.xlu0 %v599, 64
  %v612 = vpop.permute.xlu0 %611
  %613 = vrot.lane.b32.xlu0 %v600, 64
  %v614 = vpop.permute.xlu0 %613
  %v617 = vmul.f32 %v596, %v612
  %v618 = vmul.f32 %v598, %v614
  %621 = vrot.lane.b32.xlu0 %v617, 32
  %v622 = vpop.permute.xlu0 %621
  %623 = vrot.lane.b32.xlu0 %v618, 32
  %v624 = vpop.permute.xlu0 %623
  %v627 = vadd.f32 %v607, %v622
  %v628 = vadd.f32 %v608, %v624
  %v629 = vtanh.pop %v627
  %v630 = vtanh.pop %v628
  %633 = vrot.lane.b32.xlu0 %v629, 64
  %v634 = vpop.permute.xlu0 %633
  %635 = vrot.lane.b32.xlu0 %v630, 64
  %v636 = vpop.permute.xlu0 %635
  %v639 = vmul.f32 %v596, %v634
  %v640 = vmul.f32 %v598, %v636
  %v641 = vrot.slane %v480, 7
  %v642 = vrot.slane %v481, 6
  %v643 = vsel %vm505, %v642, %v641
  %644 = vrot.lane.b32.xlu0 %v643, 32
  %v645 = vpop.permute.xlu0 %644
  %v646 = vsel %vm54, %v645, 0
  %648 = vmatprep.subr.mxu0 0.0
  %649 = vmatpush1.msra.mxu0 %v226
  %650 = vmatprep.subr.mxu0 0.0
  %651 = vmatpush1.msra.mxu0 %v227
  %652 = vmatprep.subr.mxu0 0.0
  %653 = vmatpush1.msra.mxu0 %v228
  %654 = vmatprep.subr.mxu0 0.0
  %655 = vmatpush1.msra.mxu0 %v229
  %656 = vmatprep.subr.mxu0 0.0
  %657 = vmatpush1.msra.mxu0 0.0
  %658 = vmatprep.subr.mxu0 0.0
  %659 = vmatpush1.msra.mxu0 0.0
  %660 = vmatprep.subr.mxu0 0.0
  %661 = vmatpush1.msra.mxu0 0.0
  %662 = vmatprep.subr.mxu0 0.0
  %663 = vmatpush1.msra.mxu0 0.0
  %664 = vmatprep.subr.mxu0 0.0
  %665 = vmatpush1.msra.mxu0 0.0
  %666 = vmatprep.subr.mxu0 0.0
  %667 = vmatpush1.msra.mxu0 0.0
  %668 = vmatprep.subr.mxu0 0.0
  %669 = vmatpush1.msra.mxu0 0.0
  %670 = vmatprep.subr.mxu0 0.0
  %671 = vmatpush1.msra.mxu0 0.0
  %672 = vmatprep.subr.mxu0 0.0
  %673 = vmatpush1.msra.mxu0 0.0
  %674 = vmatprep.subr.mxu0 0.0
  %675 = vmatpush1.msra.mxu0 0.0
  %676 = vmatprep.subr.mxu0 0.0
  %677 = vmatpush1.msra.mxu0 0.0
  %678 = vmatprep.subr.mxu0 0.0
  %679 = vmatpush1.msra.mxu0 0.0
  %680 = vmatprep.subr.mxu0 0.0
  %681 = vmatpush1.msra.mxu0 0.0
  %682 = vmatprep.subr.mxu0 0.0
  %683 = vmatpush1.msra.mxu0 0.0
  %684 = vmatprep.subr.mxu0 0.0
  %685 = vmatpush1.msra.mxu0 0.0
  %686 = vmatprep.subr.mxu0 0.0
  %687 = vmatpush1.msra.mxu0 0.0
  %688 = vmatprep.subr.mxu0 0.0
  %689 = vmatpush1.msra.mxu0 0.0
  %690 = vmatprep.subr.mxu0 0.0
  %691 = vmatpush1.msra.mxu0 0.0
  %692 = vmatprep.subr.mxu0 0.0
  %693 = vmatpush1.msra.mxu0 0.0
  %694 = vmatprep.subr.mxu0 0.0
  %695 = vmatpush1.msra.mxu0 0.0
  %696 = vmatprep.subr.mxu0 0.0
  %697 = vmatpush1.msra.mxu0 0.0
  %698 = vmatprep.subr.mxu0 0.0
  %699 = vmatpush1.msra.mxu0 0.0
  %700 = vmatprep.subr.mxu0 0.0
  %701 = vmatpush1.msra.mxu0 0.0
  %702 = vmatprep.subr.mxu0 0.0
  %703 = vmatpush1.msra.mxu0 0.0
  %704 = vmatprep.subr.mxu0 0.0
  %705 = vmatpush1.msra.mxu0 0.0
  %706 = vmatprep.subr.mxu0 0.0
  %707 = vmatpush1.msra.mxu0 0.0
  %708 = vmatprep.subr.mxu0 0.0
  %709 = vmatpush1.msra.mxu0 0.0
  %710 = vmatprep.subr.mxu0 0.0
  %711 = vmatpush1.msra.mxu0 0.0
  %712 = vmatprep.mubr.f32.mxu0 0.0
  %713 = vmatmul.mubr.f32.gmra.mrb[0].mxu0 %v646
  %v714 = vpop.f32.mrb[0].mxu0
  %v715 = vadd.f32 0.0, %v714
  %v716 = vpop.f32.mrb[0].mxu0
  %717 = vdwg.mxu0
  %v719 = vrot.slane %v715, 2
  %v720 = vrot.slane %v715, 3
  %v723 = vadd.f32 %v214, %v719
  %v724 = vadd.f32 %v219, %v720
  %v725 = vxor.u32 %v723, 2147483648
  %v726 = vxor.u32 %v724, 2147483648
  %v727 = vmul.f32 %v725, 1.442695
  %v728 = vpow.pop %v727
  %v729 = vmul.f32 %v726, 1.442695
  %v730 = vpow.pop %v729
  %v731 = vadd.f32 %v728, 1.0
  %v732 = vadd.f32 %v730, 1.0
  %v733 = vrcp.pop %v731
  %v734 = vmul.f32 1.0, %v733
  %v735 = vrcp.pop %v732
  %v736 = vmul.f32 1.0, %v735
  %v737 = vtanh.pop %v723
  %v738 = vtanh.pop %v724
  %v741 = vrot.slane %v468, 1
  %v742 = vrot.slane %v469, 1
  %v745 = vmul.f32 %v734, %v741
  %v746 = vmul.f32 %v736, %v742
  %749 = vrot.lane.b32.xlu0 %v737, 64
  %v750 = vpop.permute.xlu0 %749
  %751 = vrot.lane.b32.xlu0 %v738, 64
  %v752 = vpop.permute.xlu0 %751
  %v755 = vmul.f32 %v734, %v750
  %v756 = vmul.f32 %v736, %v752
  %759 = vrot.lane.b32.xlu0 %v755, 32
  %v760 = vpop.permute.xlu0 %759
  %761 = vrot.lane.b32.xlu0 %v756, 32
  %v762 = vpop.permute.xlu0 %761
  %v765 = vadd.f32 %v745, %v760
  %v766 = vadd.f32 %v746, %v762
  %v767 = vtanh.pop %v765
  %v768 = vtanh.pop %v766
  %771 = vrot.lane.b32.xlu0 %v767, 64
  %v772 = vpop.permute.xlu0 %771
  %773 = vrot.lane.b32.xlu0 %v768, 64
  %v774 = vpop.permute.xlu0 %773
  %v777 = vmul.f32 %v734, %v772
  %v778 = vmul.f32 %v736, %v774
  %781 = vrot.lane.b32.xlu0 %v639, 32
  %v782 = vpop.permute.xlu0 %781
  %783 = vrot.lane.b32.xlu0 %v640, 32
  %v784 = vpop.permute.xlu0 %783
  %vm787 = vcmask 254977
  %788 = vst.msk [vmem:[%s11] sm:$0x2] %vm787, %v782
  %789 = vst.msk [vmem:[%s11 + $0x8] sm:$0x2] %vm787, %v784
  %792 = vrot.lane.b32.xlu0 %v777, 64
  %v793 = vpop.permute.xlu0 %792
  %794 = vrot.lane.b32.xlu0 %v778, 64
  %v795 = vpop.permute.xlu0 %794
  %vm798 = vcmask 522502
  %799 = vst.msk [vmem:[%s11] sm:$0x40] %vm798, %v793
  %800 = vst.msk [vmem:[%s11 + $0x8] sm:$0x40] %vm798, %v795
  %v801 = vrot.slane %v639, 1
  %v802 = vsel %vm505, %v640, %v801
  %803 = vrot.lane.b32.xlu0 %v802, 32
  %v804 = vpop.permute.xlu0 %803
  %v805 = vsel %vm54, %v804, 0
  %807 = vmatprep.subr.mxu0 0.0
  %808 = vmatpush1.msra.mxu0 %v222
  %809 = vmatprep.subr.mxu0 0.0
  %810 = vmatpush1.msra.mxu0 %v223
  %811 = vmatprep.subr.mxu0 0.0
  %812 = vmatpush1.msra.mxu0 %v224
  %813 = vmatprep.subr.mxu0 0.0
  %814 = vmatpush1.msra.mxu0 %v225
  %815 = vmatprep.subr.mxu0 0.0
  %816 = vmatpush1.msra.mxu0 0.0
  %817 = vmatprep.subr.mxu0 0.0
  %818 = vmatpush1.msra.mxu0 0.0
  %819 = vmatprep.subr.mxu0 0.0
  %820 = vmatpush1.msra.mxu0 0.0
  %821 = vmatprep.subr.mxu0 0.0
  %822 = vmatpush1.msra.mxu0 0.0
  %823 = vmatprep.subr.mxu0 0.0
  %824 = vmatpush1.msra.mxu0 0.0
  %825 = vmatprep.subr.mxu0 0.0
  %826 = vmatpush1.msra.mxu0 0.0
  %827 = vmatprep.subr.mxu0 0.0
  %828 = vmatpush1.msra.mxu0 0.0
  %829 = vmatprep.subr.mxu0 0.0
  %830 = vmatpush1.msra.mxu0 0.0
  %831 = vmatprep.subr.mxu0 0.0
  %832 = vmatpush1.msra.mxu0 0.0
  %833 = vmatprep.subr.mxu0 0.0
  %834 = vmatpush1.msra.mxu0 0.0
  %835 = vmatprep.subr.mxu0 0.0
  %836 = vmatpush1.msra.mxu0 0.0
  %837 = vmatprep.subr.mxu0 0.0
  %838 = vmatpush1.msra.mxu0 0.0
  %839 = vmatprep.subr.mxu0 0.0
  %840 = vmatpush1.msra.mxu0 0.0
  %841 = vmatprep.subr.mxu0 0.0
  %842 = vmatpush1.msra.mxu0 0.0
  %843 = vmatprep.subr.mxu0 0.0
  %844 = vmatpush1.msra.mxu0 0.0
  %845 = vmatprep.subr.mxu0 0.0
  %846 = vmatpush1.msra.mxu0 0.0
  %847 = vmatprep.subr.mxu0 0.0
  %848 = vmatpush1.msra.mxu0 0.0
  %849 = vmatprep.subr.mxu0 0.0
  %850 = vmatpush1.msra.mxu0 0.0
  %851 = vmatprep.subr.mxu0 0.0
  %852 = vmatpush1.msra.mxu0 0.0
  %853 = vmatprep.subr.mxu0 0.0
  %854 = vmatpush1.msra.mxu0 0.0
  %855 = vmatprep.subr.mxu0 0.0
  %856 = vmatpush1.msra.mxu0 0.0
  %857 = vmatprep.subr.mxu0 0.0
  %858 = vmatpush1.msra.mxu0 0.0
  %859 = vmatprep.subr.mxu0 0.0
  %860 = vmatpush1.msra.mxu0 0.0
  %861 = vmatprep.subr.mxu0 0.0
  %862 = vmatpush1.msra.mxu0 0.0
  %863 = vmatprep.subr.mxu0 0.0
  %864 = vmatpush1.msra.mxu0 0.0
  %865 = vmatprep.subr.mxu0 0.0
  %866 = vmatpush1.msra.mxu0 0.0
  %867 = vmatprep.subr.mxu0 0.0
  %868 = vmatpush1.msra.mxu0 0.0
  %869 = vmatprep.subr.mxu0 0.0
  %870 = vmatpush1.msra.mxu0 0.0
  %871 = vmatprep.mubr.f32.mxu0 0.0
  %872 = vmatmul.mubr.f32.gmra.mrb[0].mxu0 %v805
  %v873 = vpop.f32.mrb[0].mxu0
  %v874 = vadd.f32 0.0, %v873
  %v875 = vpop.f32.mrb[0].mxu0
  %876 = vdwg.mxu0
  %v878 = vrot.slane %v874, 6
  %v879 = vrot.slane %v874, 7
  %v882 = vadd.f32 %v128, %v878
  %v883 = vadd.f32 %v133, %v879
  %v884 = vxor.u32 %v882, 2147483648
  %v885 = vxor.u32 %v883, 2147483648
  %v886 = vmul.f32 %v884, 1.442695
  %v887 = vpow.pop %v886
  %v888 = vmul.f32 %v885, 1.442695
  %v889 = vpow.pop %v888
  %v890 = vadd.f32 %v887, 1.0
  %v891 = vadd.f32 %v889, 1.0
  %v892 = vrcp.pop %v890
  %v893 = vmul.f32 1.0, %v892
  %v894 = vrcp.pop %v891
  %v895 = vmul.f32 1.0, %v894
  %v896 = vtanh.pop %v882
  %v897 = vtanh.pop %v883
  %v900 = vrot.slane %v627, 7
  %v901 = vrot.slane %v628, 7
  %v904 = vmul.f32 %v893, %v900
  %v905 = vmul.f32 %v895, %v901
  %908 = vrot.lane.b32.xlu0 %v896, 64
  %v909 = vpop.permute.xlu0 %908
  %910 = vrot.lane.b32.xlu0 %v897, 64
  %v911 = vpop.permute.xlu0 %910
  %v914 = vmul.f32 %v893, %v909
  %v915 = vmul.f32 %v895, %v911
  %918 = vrot.lane.b32.xlu0 %v914, 32
  %v919 = vpop.permute.xlu0 %918
  %920 = vrot.lane.b32.xlu0 %v915, 32
  %v921 = vpop.permute.xlu0 %920
  %v924 = vadd.f32 %v904, %v919
  %v925 = vadd.f32 %v905, %v921
  %v926 = vtanh.pop %v924
  %v927 = vtanh.pop %v925
  %930 = vrot.lane.b32.xlu0 %v926, 64
  %v931 = vpop.permute.xlu0 %930
  %932 = vrot.lane.b32.xlu0 %v927, 64
  %v933 = vpop.permute.xlu0 %932
  %v936 = vmul.f32 %v893, %v931
  %v937 = vmul.f32 %v895, %v933
  %v938 = vrot.slane %v777, 6
  %v939 = vrot.slane %v778, 5
  %v940 = vsel %vm505, %v939, %v938
  %941 = vrot.lane.b32.xlu0 %v940, 32
  %v942 = vpop.permute.xlu0 %941
  %v943 = vsel %vm54, %v942, 0
  %945 = vmatprep.subr.mxu0 0.0
  %946 = vmatpush1.msra.mxu0 %v226
  %947 = vmatprep.subr.mxu0 0.0
  %948 = vmatpush1.msra.mxu0 %v227
  %949 = vmatprep.subr.mxu0 0.0
  %950 = vmatpush1.msra.mxu0 %v228
  %951 = vmatprep.subr.mxu0 0.0
  %952 = vmatpush1.msra.mxu0 %v229
  %953 = vmatprep.subr.mxu0 0.0
  %954 = vmatpush1.msra.mxu0 0.0
  %955 = vmatprep.subr.mxu0 0.0
  %956 = vmatpush1.msra.mxu0 0.0
  %957 = vmatprep.subr.mxu0 0.0
  %958 = vmatpush1.msra.mxu0 0.0
  %959 = vmatprep.subr.mxu0 0.0
  %960 = vmatpush1.msra.mxu0 0.0
  %961 = vmatprep.subr.mxu0 0.0
  %962 = vmatpush1.msra.mxu0 0.0
  %963 = vmatprep.subr.mxu0 0.0
  %964 = vmatpush1.msra.mxu0 0.0
  %965 = vmatprep.subr.mxu0 0.0
  %966 = vmatpush1.msra.mxu0 0.0
  %967 = vmatprep.subr.mxu0 0.0
  %968 = vmatpush1.msra.mxu0 0.0
  %969 = vmatprep.subr.mxu0 0.0
  %970 = vmatpush1.msra.mxu0 0.0
  %971 = vmatprep.subr.mxu0 0.0
  %972 = vmatpush1.msra.mxu0 0.0
  %973 = vmatprep.subr.mxu0 0.0
  %974 = vmatpush1.msra.mxu0 0.0
  %975 = vmatprep.subr.mxu0 0.0
  %976 = vmatpush1.msra.mxu0 0.0
  %977 = vmatprep.subr.mxu0 0.0
  %978 = vmatpush1.msra.mxu0 0.0
  %979 = vmatprep.subr.mxu0 0.0
  %980 = vmatpush1.msra.mxu0 0.0
  %981 = vmatprep.subr.mxu0 0.0
  %982 = vmatpush1.msra.mxu0 0.0
  %983 = vmatprep.subr.mxu0 0.0
  %984 = vmatpush1.msra.mxu0 0.0
  %985 = vmatprep.subr.mxu0 0.0
  %986 = vmatpush1.msra.mxu0 0.0
  %987 = vmatprep.subr.mxu0 0.0
  %988 = vmatpush1.msra.mxu0 0.0
  %989 = vmatprep.subr.mxu0 0.0
  %990 = vmatpush1.msra.mxu0 0.0
  %991 = vmatprep.subr.mxu0 0.0
  %992 = vmatpush1.msra.mxu0 0.0
  %993 = vmatprep.subr.mxu0 0.0
  %994 = vmatpush1.msra.mxu0 0.0
  %995 = vmatprep.subr.mxu0 0.0
  %996 = vmatpush1.msra.mxu0 0.0
  %997 = vmatprep.subr.mxu0 0.0
  %998 = vmatpush1.msra.mxu0 0.0
  %999 = vmatprep.subr.mxu0 0.0
  %1000 = vmatpush1.msra.mxu0 0.0
  %1001 = vmatprep.subr.mxu0 0.0
  %1002 = vmatpush1.msra.mxu0 0.0
  %1003 = vmatprep.subr.mxu0 0.0
  %1004 = vmatpush1.msra.mxu0 0.0
  %1005 = vmatprep.subr.mxu0 0.0
  %1006 = vmatpush1.msra.mxu0 0.0
  %1007 = vmatprep.subr.mxu0 0.0
  %1008 = vmatpush1.msra.mxu0 0.0
  %1009 = vmatprep.mubr.f32.mxu0 0.0
  %1010 = vmatmul.mubr.f32.gmra.mrb[0].mxu0 %v943
  %v1011 = vpop.f32.mrb[0].mxu0
  %v1012 = vadd.f32 0.0, %v1011
  %v1013 = vpop.f32.mrb[0].mxu0
  %1014 = vdwg.mxu0
  %v1016 = vrot.slane %v1012, 3
  %v1017 = vrot.slane %v1012, 4
  %v1020 = vadd.f32 %v214, %v1016
  %v1021 = vadd.f32 %v219, %v1017
  %v1022 = vxor.u32 %v1020, 2147483648
  %v1023 = vxor.u32 %v1021, 2147483648
  %v1024 = vmul.f32 %v1022, 1.442695
  %v1025 = vpow.pop %v1024
  %v1026 = vmul.f32 %v1023, 1.442695
  %v1027 = vpow.pop %v1026
  %v1028 = vadd.f32 %v1025, 1.0
  %v1029 = vadd.f32 %v1027, 1.0
  %v1030 = vrcp.pop %v1028
  %v1031 = vmul.f32 1.0, %v1030
  %v1032 = vrcp.pop %v1029
  %v1033 = vmul.f32 1.0, %v1032
  %v1034 = vtanh.pop %v1020
  %v1035 = vtanh.pop %v1021
  %v1038 = vrot.slane %v765, 1
  %v1039 = vrot.slane %v766, 1
  %v1042 = vmul.f32 %v1031, %v1038
  %v1043 = vmul.f32 %v1033, %v1039
  %1046 = vrot.lane.b32.xlu0 %v1034, 64
  %v1047 = vpop.permute.xlu0 %1046
  %1048 = vrot.lane.b32.xlu0 %v1035, 64
  %v1049 = vpop.permute.xlu0 %1048
  %v1052 = vmul.f32 %v1031, %v1047
  %v1053 = vmul.f32 %v1033, %v1049
  %1056 = vrot.lane.b32.xlu0 %v1052, 32
  %v1057 = vpop.permute.xlu0 %1056
  %1058 = vrot.lane.b32.xlu0 %v1053, 32
  %v1059 = vpop.permute.xlu0 %1058
  %v1062 = vadd.f32 %v1042, %v1057
  %v1063 = vadd.f32 %v1043, %v1059
  %v1064 = vtanh.pop %v1062
  %v1065 = vtanh.pop %v1063
  %1068 = vrot.lane.b32.xlu0 %v1064, 64
  %v1069 = vpop.permute.xlu0 %1068
  %1070 = vrot.lane.b32.xlu0 %v1065, 64
  %v1071 = vpop.permute.xlu0 %1070
  %v1074 = vmul.f32 %v1031, %v1069
  %v1075 = vmul.f32 %v1033, %v1071
  %1078 = vrot.lane.b32.xlu0 %v936, 32
  %v1079 = vpop.permute.xlu0 %1078
  %1080 = vrot.lane.b32.xlu0 %v937, 32
  %v1081 = vpop.permute.xlu0 %1080
  %vm1084 = vcmask 256002
  %1085 = vst.msk [vmem:[%s11] sm:$0x4] %vm1084, %v1079
  %1086 = vst.msk [vmem:[%s11 + $0x8] sm:$0x4] %vm1084, %v1081
  %1089 = vrot.lane.b32.xlu0 %v1074, 64
  %v1090 = vpop.permute.xlu0 %1089
  %1091 = vrot.lane.b32.xlu0 %v1075, 64
  %v1092 = vpop.permute.xlu0 %1091
  %vm1095 = vcmask 521477
  %1096 = vst.msk [vmem:[%s11] sm:$0x20] %vm1095, %v1090
  %1097 = vst.msk [vmem:[%s11 + $0x8] sm:$0x20] %vm1095, %v1092
  %v1098 = vrot.slane %v936, 2
  %v1099 = vrot.slane %v937, 1
  %v1100 = vsel %vm505, %v1099, %v1098
  %1101 = vrot.lane.b32.xlu0 %v1100, 32
  %v1102 = vpop.permute.xlu0 %1101
  %v1103 = vsel %vm54, %v1102, 0
  %1105 = vmatprep.subr.mxu0 0.0
  %1106 = vmatpush1.msra.mxu0 %v222
  %1107 = vmatprep.subr.mxu0 0.0
  %1108 = vmatpush1.msra.mxu0 %v223
  %1109 = vmatprep.subr.mxu0 0.0
  %1110 = vmatpush1.msra.mxu0 %v224
  %1111 = vmatprep.subr.mxu0 0.0
  %1112 = vmatpush1.msra.mxu0 %v225
  %1113 = vmatprep.subr.mxu0 0.0
  %1114 = vmatpush1.msra.mxu0 0.0
  %1115 = vmatprep.subr.mxu0 0.0
  %1116 = vmatpush1.msra.mxu0 0.0
  %1117 = vmatprep.subr.mxu0 0.0
  %1118 = vmatpush1.msra.mxu0 0.0
  %1119 = vmatprep.subr.mxu0 0.0
  %1120 = vmatpush1.msra.mxu0 0.0
  %1121 = vmatprep.subr.mxu0 0.0
  %1122 = vmatpush1.msra.mxu0 0.0
  %1123 = vmatprep.subr.mxu0 0.0
  %1124 = vmatpush1.msra.mxu0 0.0
  %1125 = vmatprep.subr.mxu0 0.0
  %1126 = vmatpush1.msra.mxu0 0.0
  %1127 = vmatprep.subr.mxu0 0.0
  %1128 = vmatpush1.msra.mxu0 0.0
  %1129 = vmatprep.subr.mxu0 0.0
  %1130 = vmatpush1.msra.mxu0 0.0
  %1131 = vmatprep.subr.mxu0 0.0
  %1132 = vmatpush1.msra.mxu0 0.0
  %1133 = vmatprep.subr.mxu0 0.0
  %1134 = vmatpush1.msra.mxu0 0.0
  %1135 = vmatprep.subr.mxu0 0.0
  %1136 = vmatpush1.msra.mxu0 0.0
  %1137 = vmatprep.subr.mxu0 0.0
  %1138 = vmatpush1.msra.mxu0 0.0
  %1139 = vmatprep.subr.mxu0 0.0
  %1140 = vmatpush1.msra.mxu0 0.0
  %1141 = vmatprep.subr.mxu0 0.0
  %1142 = vmatpush1.msra.mxu0 0.0
  %1143 = vmatprep.subr.mxu0 0.0
  %1144 = vmatpush1.msra.mxu0 0.0
  %1145 = vmatprep.subr.mxu0 0.0
  %1146 = vmatpush1.msra.mxu0 0.0
  %1147 = vmatprep.subr.mxu0 0.0
  %1148 = vmatpush1.msra.mxu0 0.0
  %1149 = vmatprep.subr.mxu0 0.0
  %1150 = vmatpush1.msra.mxu0 0.0
  %1151 = vmatprep.subr.mxu0 0.0
  %1152 = vmatpush1.msra.mxu0 0.0
  %1153 = vmatprep.subr.mxu0 0.0
  %1154 = vmatpush1.msra.mxu0 0.0
  %1155 = vmatprep.subr.mxu0 0.0
  %1156 = vmatpush1.msra.mxu0 0.0
  %1157 = vmatprep.subr.mxu0 0.0
  %1158 = vmatpush1.msra.mxu0 0.0
  %1159 = vmatprep.subr.mxu0 0.0
  %1160 = vmatpush1.msra.mxu0 0.0
  %1161 = vmatprep.subr.mxu0 0.0
  %1162 = vmatpush1.msra.mxu0 0.0
  %1163 = vmatprep.subr.mxu0 0.0
  %1164 = vmatpush1.msra.mxu0 0.0
  %1165 = vmatprep.subr.mxu0 0.0
  %1166 = vmatpush1.msra.mxu0 0.0
  %1167 = vmatprep.subr.mxu0 0.0
  %1168 = vmatpush1.msra.mxu0 0.0
  %1169 = vmatprep.mubr.f32.mxu0 0.0
  %1170 = vmatmul.mubr.f32.gmra.mrb[0].mxu0 %v1103
  %v1171 = vpop.f32.mrb[0].mxu0
  %v1172 = vadd.f32 0.0, %v1171
  %v1173 = vpop.f32.mrb[0].mxu0
  %1174 = vdwg.mxu0
  %v1176 = vrot.slane %v1172, 5
  %v1177 = vrot.slane %v1172, 6
  %v1180 = vadd.f32 %v128, %v1176
  %v1181 = vadd.f32 %v133, %v1177
  %v1182 = vxor.u32 %v1180, 2147483648
  %v1183 = vxor.u32 %v1181, 2147483648
  %v1184 = vmul.f32 %v1182, 1.442695
  %v1185 = vpow.pop %v1184
  %v1186 = vmul.f32 %v1183, 1.442695
  %v1187 = vpow.pop %v1186
  %v1188 = vadd.f32 %v1185, 1.0
  %v1189 = vadd.f32 %v1187, 1.0
  %v1190 = vrcp.pop %v1188
  %v1191 = vmul.f32 1.0, %v1190
  %v1192 = vrcp.pop %v1189
  %v1193 = vmul.f32 1.0, %v1192
  %v1194 = vtanh.pop %v1180
  %v1195 = vtanh.pop %v1181
  %v1198 = vrot.slane %v924, 7
  %v1199 = vrot.slane %v925, 7
  %v1202 = vmul.f32 %v1191, %v1198
  %v1203 = vmul.f32 %v1193, %v1199
  %1206 = vrot.lane.b32.xlu0 %v1194, 64
  %v1207 = vpop.permute.xlu0 %1206
  %1208 = vrot.lane.b32.xlu0 %v1195, 64
  %v1209 = vpop.permute.xlu0 %1208
  %v1212 = vmul.f32 %v1191, %v1207
  %v1213 = vmul.f32 %v1193, %v1209
  %1216 = vrot.lane.b32.xlu0 %v1212, 32
  %v1217 = vpop.permute.xlu0 %1216
  %1218 = vrot.lane.b32.xlu0 %v1213, 32
  %v1219 = vpop.permute.xlu0 %1218
  %v1222 = vadd.f32 %v1202, %v1217
  %v1223 = vadd.f32 %v1203, %v1219
  %v1224 = vtanh.pop %v1222
  %v1225 = vtanh.pop %v1223
  %1228 = vrot.lane.b32.xlu0 %v1224, 64
  %v1229 = vpop.permute.xlu0 %1228
  %1230 = vrot.lane.b32.xlu0 %v1225, 64
  %v1231 = vpop.permute.xlu0 %1230
  %v1234 = vmul.f32 %v1191, %v1229
  %v1235 = vmul.f32 %v1193, %v1231
  %v1236 = vrot.slane %v1074, 5
  %v1237 = vrot.slane %v1075, 4
  %v1238 = vsel %vm505, %v1237, %v1236
  %1239 = vrot.lane.b32.xlu0 %v1238, 32
  %v1240 = vpop.permute.xlu0 %1239
  %v1241 = vsel %vm54, %v1240, 0
  %1243 = vmatprep.subr.mxu0 0.0
  %1244 = vmatpush1.msra.mxu0 %v226
  %1245 = vmatprep.subr.mxu0 0.0
  %1246 = vmatpush1.msra.mxu0 %v227
  %1247 = vmatprep.subr.mxu0 0.0
  %1248 = vmatpush1.msra.mxu0 %v228
  %1249 = vmatprep.subr.mxu0 0.0
  %1250 = vmatpush1.msra.mxu0 %v229
  %1251 = vmatprep.subr.mxu0 0.0
  %1252 = vmatpush1.msra.mxu0 0.0
  %1253 = vmatprep.subr.mxu0 0.0
  %1254 = vmatpush1.msra.mxu0 0.0
  %1255 = vmatprep.subr.mxu0 0.0
  %1256 = vmatpush1.msra.mxu0 0.0
  %1257 = vmatprep.subr.mxu0 0.0
  %1258 = vmatpush1.msra.mxu0 0.0
  %1259 = vmatprep.subr.mxu0 0.0
  %1260 = vmatpush1.msra.mxu0 0.0
  %1261 = vmatprep.subr.mxu0 0.0
  %1262 = vmatpush1.msra.mxu0 0.0
  %1263 = vmatprep.subr.mxu0 0.0
  %1264 = vmatpush1.msra.mxu0 0.0
  %1265 = vmatprep.subr.mxu0 0.0
  %1266 = vmatpush1.msra.mxu0 0.0
  %1267 = vmatprep.subr.mxu0 0.0
  %1268 = vmatpush1.msra.mxu0 0.0
  %1269 = vmatprep.subr.mxu0 0.0
  %1270 = vmatpush1.msra.mxu0 0.0
  %1271 = vmatprep.subr.mxu0 0.0
  %1272 = vmatpush1.msra.mxu0 0.0
  %1273 = vmatprep.subr.mxu0 0.0
  %1274 = vmatpush1.msra.mxu0 0.0
  %1275 = vmatprep.subr.mxu0 0.0
  %1276 = vmatpush1.msra.mxu0 0.0
  %1277 = vmatprep.subr.mxu0 0.0
  %1278 = vmatpush1.msra.mxu0 0.0
  %1279 = vmatprep.subr.mxu0 0.0
  %1280 = vmatpush1.msra.mxu0 0.0
  %1281 = vmatprep.subr.mxu0 0.0
  %1282 = vmatpush1.msra.mxu0 0.0
  %1283 = vmatprep.subr.mxu0 0.0
  %1284 = vmatpush1.msra.mxu0 0.0
  %1285 = vmatprep.subr.mxu0 0.0
  %1286 = vmatpush1.msra.mxu0 0.0
  %1287 = vmatprep.subr.mxu0 0.0
  %1288 = vmatpush1.msra.mxu0 0.0
  %1289 = vmatprep.subr.mxu0 0.0
  %1290 = vmatpush1.msra.mxu0 0.0
  %1291 = vmatprep.subr.mxu0 0.0
  %1292 = vmatpush1.msra.mxu0 0.0
  %1293 = vmatprep.subr.mxu0 0.0
  %1294 = vmatpush1.msra.mxu0 0.0
  %1295 = vmatprep.subr.mxu0 0.0
  %1296 = vmatpush1.msra.mxu0 0.0
  %1297 = vmatprep.subr.mxu0 0.0
  %1298 = vmatpush1.msra.mxu0 0.0
  %1299 = vmatprep.subr.mxu0 0.0
  %1300 = vmatpush1.msra.mxu0 0.0
  %1301 = vmatprep.subr.mxu0 0.0
  %1302 = vmatpush1.msra.mxu0 0.0
  %1303 = vmatprep.subr.mxu0 0.0
  %1304 = vmatpush1.msra.mxu0 0.0
  %1305 = vmatprep.subr.mxu0 0.0
  %1306 = vmatpush1.msra.mxu0 0.0
  %1307 = vmatprep.mubr.f32.mxu0 0.0
  %1308 = vmatmul.mubr.f32.gmra.mrb[0].mxu0 %v1241
  %v1309 = vpop.f32.mrb[0].mxu0
  %v1310 = vadd.f32 0.0, %v1309
  %v1311 = vpop.f32.mrb[0].mxu0
  %1312 = vdwg.mxu0
  %v1314 = vrot.slane %v1310, 4
  %v1315 = vrot.slane %v1310, 5
  %v1318 = vadd.f32 %v214, %v1314
  %v1319 = vadd.f32 %v219, %v1315
  %v1320 = vxor.u32 %v1318, 2147483648
  %v1321 = vxor.u32 %v1319, 2147483648
  %v1322 = vmul.f32 %v1320, 1.442695
  %v1323 = vpow.pop %v1322
  %v1324 = vmul.f32 %v1321, 1.442695
  %v1325 = vpow.pop %v1324
  %v1326 = vadd.f32 %v1323, 1.0
  %v1327 = vadd.f32 %v1325, 1.0
  %v1328 = vrcp.pop %v1326
  %v1329 = vmul.f32 1.0, %v1328
  %v1330 = vrcp.pop %v1327
  %v1331 = vmul.f32 1.0, %v1330
  %v1332 = vtanh.pop %v1318
  %v1333 = vtanh.pop %v1319
  %v1336 = vrot.slane %v1062, 1
  %v1337 = vrot.slane %v1063, 1
  %v1340 = vmul.f32 %v1329, %v1336
  %v1341 = vmul.f32 %v1331, %v1337
  %1344 = vrot.lane.b32.xlu0 %v1332, 64
  %v1345 = vpop.permute.xlu0 %1344
  %1346 = vrot.lane.b32.xlu0 %v1333, 64
  %v1347 = vpop.permute.xlu0 %1346
  %v1350 = vmul.f32 %v1329, %v1345
  %v1351 = vmul.f32 %v1331, %v1347
  %1354 = vrot.lane.b32.xlu0 %v1350, 32
  %v1355 = vpop.permute.xlu0 %1354
  %1356 = vrot.lane.b32.xlu0 %v1351, 32
  %v1357 = vpop.permute.xlu0 %1356
  %v1360 = vadd.f32 %v1340, %v1355
  %v1361 = vadd.f32 %v1341, %v1357
  %v1362 = vtanh.pop %v1360
  %v1363 = vtanh.pop %v1361
  %1366 = vrot.lane.b32.xlu0 %v1362, 64
  %v1367 = vpop.permute.xlu0 %1366
  %1368 = vrot.lane.b32.xlu0 %v1363, 64
  %v1369 = vpop.permute.xlu0 %1368
  %v1372 = vmul.f32 %v1329, %v1367
  %v1373 = vmul.f32 %v1331, %v1369
  %1376 = vrot.lane.b32.xlu0 %v1234, 32
  %v1377 = vpop.permute.xlu0 %1376
  %1378 = vrot.lane.b32.xlu0 %v1235, 32
  %v1379 = vpop.permute.xlu0 %1378
  %vm1382 = vcmask 257027
  %1383 = vst.msk [vmem:[%s11] sm:$0x8] %vm1382, %v1377
  %1384 = vst.msk [vmem:[%s11 + $0x8] sm:$0x8] %vm1382, %v1379
  %1387 = vrot.lane.b32.xlu0 %v1372, 64
  %v1388 = vpop.permute.xlu0 %1387
  %1389 = vrot.lane.b32.xlu0 %v1373, 64
  %v1390 = vpop.permute.xlu0 %1389
  %vm1393 = vcmask 520452
  %1394 = vst.msk [vmem:[%s11] sm:$0x10] %vm1393, %v1388
  %1395 = vst.msk [vmem:[%s11 + $0x8] sm:$0x10] %vm1393, %v1390
  %v1396 = vrot.slane %v1234, 3
  %v1397 = vrot.slane %v1235, 2
  %v1398 = vsel %vm505, %v1397, %v1396
  %1399 = vrot.lane.b32.xlu0 %v1398, 32
  %v1400 = vpop.permute.xlu0 %1399
  %v1401 = vsel %vm54, %v1400, 0
  %1403 = vmatprep.subr.mxu0 0.0
  %1404 = vmatpush1.msra.mxu0 %v222
  %1405 = vmatprep.subr.mxu0 0.0
  %1406 = vmatpush1.msra.mxu0 %v223
  %1407 = vmatprep.subr.mxu0 0.0
  %1408 = vmatpush1.msra.mxu0 %v224
  %1409 = vmatprep.subr.mxu0 0.0
  %1410 = vmatpush1.msra.mxu0 %v225
  %1411 = vmatprep.subr.mxu0 0.0
  %1412 = vmatpush1.msra.mxu0 0.0
  %1413 = vmatprep.subr.mxu0 0.0
  %1414 = vmatpush1.msra.mxu0 0.0
  %1415 = vmatprep.subr.mxu0 0.0
  %1416 = vmatpush1.msra.mxu0 0.0
  %1417 = vmatprep.subr.mxu0 0.0
  %1418 = vmatpush1.msra.mxu0 0.0
  %1419 = vmatprep.subr.mxu0 0.0
  %1420 = vmatpush1.msra.mxu0 0.0
  %1421 = vmatprep.subr.mxu0 0.0
  %1422 = vmatpush1.msra.mxu0 0.0
  %1423 = vmatprep.subr.mxu0 0.0
  %1424 = vmatpush1.msra.mxu0 0.0
  %1425 = vmatprep.subr.mxu0 0.0
  %1426 = vmatpush1.msra.mxu0 0.0
  %1427 = vmatprep.subr.mxu0 0.0
  %1428 = vmatpush1.msra.mxu0 0.0
  %1429 = vmatprep.subr.mxu0 0.0
  %1430 = vmatpush1.msra.mxu0 0.0
  %1431 = vmatprep.subr.mxu0 0.0
  %1432 = vmatpush1.msra.mxu0 0.0
  %1433 = vmatprep.subr.mxu0 0.0
  %1434 = vmatpush1.msra.mxu0 0.0
  %1435 = vmatprep.subr.mxu0 0.0
  %1436 = vmatpush1.msra.mxu0 0.0
  %1437 = vmatprep.subr.mxu0 0.0
  %1438 = vmatpush1.msra.mxu0 0.0
  %1439 = vmatprep.subr.mxu0 0.0
  %1440 = vmatpush1.msra.mxu0 0.0
  %1441 = vmatprep.subr.mxu0 0.0
  %1442 = vmatpush1.msra.mxu0 0.0
  %1443 = vmatprep.subr.mxu0 0.0
  %1444 = vmatpush1.msra.mxu0 0.0
  %1445 = vmatprep.subr.mxu0 0.0
  %1446 = vmatpush1.msra.mxu0 0.0
  %1447 = vmatprep.subr.mxu0 0.0
  %1448 = vmatpush1.msra.mxu0 0.0
  %1449 = vmatprep.subr.mxu0 0.0
  %1450 = vmatpush1.msra.mxu0 0.0
  %1451 = vmatprep.subr.mxu0 0.0
  %1452 = vmatpush1.msra.mxu0 0.0
  %1453 = vmatprep.subr.mxu0 0.0
  %1454 = vmatpush1.msra.mxu0 0.0
  %1455 = vmatprep.subr.mxu0 0.0
  %1456 = vmatpush1.msra.mxu0 0.0
  %1457 = vmatprep.subr.mxu0 0.0
  %1458 = vmatpush1.msra.mxu0 0.0
  %1459 = vmatprep.subr.mxu0 0.0
  %1460 = vmatpush1.msra.mxu0 0.0
  %1461 = vmatprep.subr.mxu0 0.0
  %1462 = vmatpush1.msra.mxu0 0.0
  %1463 = vmatprep.subr.mxu0 0.0
  %1464 = vmatpush1.msra.mxu0 0.0
  %1465 = vmatprep.subr.mxu0 0.0
  %1466 = vmatpush1.msra.mxu0 0.0
  %1467 = vmatprep.mubr.f32.mxu0 0.0
  %1468 = vmatmul.mubr.f32.gmra.mrb[0].mxu0 %v1401
  %v1469 = vpop.f32.mrb[0].mxu0
  %v1470 = vadd.f32 0.0, %v1469
  %v1471 = vpop.f32.mrb[0].mxu0
  %1472 = vdwg.mxu0
  %v1474 = vrot.slane %v1470, 4
  %v1475 = vrot.slane %v1470, 5
  %v1478 = vadd.f32 %v128, %v1474
  %v1479 = vadd.f32 %v133, %v1475
  %v1480 = vxor.u32 %v1478, 2147483648
  %v1481 = vxor.u32 %v1479, 2147483648
  %v1482 = vmul.f32 %v1480, 1.442695
  %v1483 = vpow.pop %v1482
  %v1484 = vmul.f32 %v1481, 1.442695
  %v1485 = vpow.pop %v1484
  %v1486 = vadd.f32 %v1483, 1.0
  %v1487 = vadd.f32 %v1485, 1.0
  %v1488 = vrcp.pop %v1486
  %v1489 = vmul.f32 1.0, %v1488
  %v1490 = vrcp.pop %v1487
  %v1491 = vmul.f32 1.0, %v1490
  %v1492 = vtanh.pop %v1478
  %v1493 = vtanh.pop %v1479
  %v1496 = vrot.slane %v1222, 7
  %v1497 = vrot.slane %v1223, 7
  %v1500 = vmul.f32 %v1489, %v1496
  %v1501 = vmul.f32 %v1491, %v1497
  %1504 = vrot.lane.b32.xlu0 %v1492, 64
  %v1505 = vpop.permute.xlu0 %1504
  %1506 = vrot.lane.b32.xlu0 %v1493, 64
  %v1507 = vpop.permute.xlu0 %1506
  %v1510 = vmul.f32 %v1489, %v1505
  %v1511 = vmul.f32 %v1491, %v1507
  %1514 = vrot.lane.b32.xlu0 %v1510, 32
  %v1515 = vpop.permute.xlu0 %1514
  %1516 = vrot.lane.b32.xlu0 %v1511, 32
  %v1517 = vpop.permute.xlu0 %1516
  %v1520 = vadd.f32 %v1500, %v1515
  %v1521 = vadd.f32 %v1501, %v1517
  %v1522 = vtanh.pop %v1520
  %v1523 = vtanh.pop %v1521
  %1526 = vrot.lane.b32.xlu0 %v1522, 64
  %v1527 = vpop.permute.xlu0 %1526
  %1528 = vrot.lane.b32.xlu0 %v1523, 64
  %v1529 = vpop.permute.xlu0 %1528
  %v1532 = vmul.f32 %v1489, %v1527
  %v1533 = vmul.f32 %v1491, %v1529
  %v1534 = vrot.slane %v1372, 4
  %v1535 = vrot.slane %v1373, 3
  %v1536 = vsel %vm505, %v1535, %v1534
  %1537 = vrot.lane.b32.xlu0 %v1536, 32
  %v1538 = vpop.permute.xlu0 %1537
  %v1539 = vsel %vm54, %v1538, 0
  %1541 = vmatprep.subr.mxu0 0.0
  %1542 = vmatpush1.msra.mxu0 %v226
  %1543 = vmatprep.subr.mxu0 0.0
  %1544 = vmatpush1.msra.mxu0 %v227
  %1545 = vmatprep.subr.mxu0 0.0
  %1546 = vmatpush1.msra.mxu0 %v228
  %1547 = vmatprep.subr.mxu0 0.0
  %1548 = vmatpush1.msra.mxu0 %v229
  %1549 = vmatprep.subr.mxu0 0.0
  %1550 = vmatpush1.msra.mxu0 0.0
  %1551 = vmatprep.subr.mxu0 0.0
  %1552 = vmatpush1.msra.mxu0 0.0
  %1553 = vmatprep.subr.mxu0 0.0
  %1554 = vmatpush1.msra.mxu0 0.0
  %1555 = vmatprep.subr.mxu0 0.0
  %1556 = vmatpush1.msra.mxu0 0.0
  %1557 = vmatprep.subr.mxu0 0.0
  %1558 = vmatpush1.msra.mxu0 0.0
  %1559 = vmatprep.subr.mxu0 0.0
  %1560 = vmatpush1.msra.mxu0 0.0
  %1561 = vmatprep.subr.mxu0 0.0
  %1562 = vmatpush1.msra.mxu0 0.0
  %1563 = vmatprep.subr.mxu0 0.0
  %1564 = vmatpush1.msra.mxu0 0.0
  %1565 = vmatprep.subr.mxu0 0.0
  %1566 = vmatpush1.msra.mxu0 0.0
  %1567 = vmatprep.subr.mxu0 0.0
  %1568 = vmatpush1.msra.mxu0 0.0
  %1569 = vmatprep.subr.mxu0 0.0
  %1570 = vmatpush1.msra.mxu0 0.0
  %1571 = vmatprep.subr.mxu0 0.0
  %1572 = vmatpush1.msra.mxu0 0.0
  %1573 = vmatprep.subr.mxu0 0.0
  %1574 = vmatpush1.msra.mxu0 0.0
  %1575 = vmatprep.subr.mxu0 0.0
  %1576 = vmatpush1.msra.mxu0 0.0
  %1577 = vmatprep.subr.mxu0 0.0
  %1578 = vmatpush1.msra.mxu0 0.0
  %1579 = vmatprep.subr.mxu0 0.0
  %1580 = vmatpush1.msra.mxu0 0.0
  %1581 = vmatprep.subr.mxu0 0.0
  %1582 = vmatpush1.msra.mxu0 0.0
  %1583 = vmatprep.subr.mxu0 0.0
  %1584 = vmatpush1.msra.mxu0 0.0
  %1585 = vmatprep.subr.mxu0 0.0
  %1586 = vmatpush1.msra.mxu0 0.0
  %1587 = vmatprep.subr.mxu0 0.0
  %1588 = vmatpush1.msra.mxu0 0.0
  %1589 = vmatprep.subr.mxu0 0.0
  %1590 = vmatpush1.msra.mxu0 0.0
  %1591 = vmatprep.subr.mxu0 0.0
  %1592 = vmatpush1.msra.mxu0 0.0
  %1593 = vmatprep.subr.mxu0 0.0
  %1594 = vmatpush1.msra.mxu0 0.0
  %1595 = vmatprep.subr.mxu0 0.0
  %1596 = vmatpush1.msra.mxu0 0.0
  %1597 = vmatprep.subr.mxu0 0.0
  %1598 = vmatpush1.msra.mxu0 0.0
  %1599 = vmatprep.subr.mxu0 0.0
  %1600 = vmatpush1.msra.mxu0 0.0
  %1601 = vmatprep.subr.mxu0 0.0
  %1602 = vmatpush1.msra.mxu0 0.0
  %1603 = vmatprep.subr.mxu0 0.0
  %1604 = vmatpush1.msra.mxu0 0.0
  %1605 = vmatprep.mubr.f32.mxu0 0.0
  %1606 = vmatmul.mubr.f32.gmra.mrb[0].mxu0 %v1539
  %v1607 = vpop.f32.mrb[0].mxu0
  %v1608 = vadd.f32 0.0, %v1607
  %v1609 = vpop.f32.mrb[0].mxu0
  %1610 = vdwg.mxu0
  %v1612 = vrot.slane %v1608, 5
  %v1613 = vrot.slane %v1608, 6
  %v1616 = vadd.f32 %v214, %v1612
  %v1617 = vadd.f32 %v219, %v1613
  %v1618 = vxor.u32 %v1616, 2147483648
  %v1619 = vxor.u32 %v1617, 2147483648
  %v1620 = vmul.f32 %v1618, 1.442695
  %v1621 = vpow.pop %v1620
  %v1622 = vmul.f32 %v1619, 1.442695
  %v1623 = vpow.pop %v1622
  %v1624 = vadd.f32 %v1621, 1.0
  %v1625 = vadd.f32 %v1623, 1.0
  %v1626 = vrcp.pop %v1624
  %v1627 = vmul.f32 1.0, %v1626
  %v1628 = vrcp.pop %v1625
  %v1629 = vmul.f32 1.0, %v1628
  %v1630 = vtanh.pop %v1616
  %v1631 = vtanh.pop %v1617
  %v1634 = vrot.slane %v1360, 1
  %v1635 = vrot.slane %v1361, 1
  %v1638 = vmul.f32 %v1627, %v1634
  %v1639 = vmul.f32 %v1629, %v1635
  %1642 = vrot.lane.b32.xlu0 %v1630, 64
  %v1643 = vpop.permute.xlu0 %1642
  %1644 = vrot.lane.b32.xlu0 %v1631, 64
  %v1645 = vpop.permute.xlu0 %1644
  %v1648 = vmul.f32 %v1627, %v1643
  %v1649 = vmul.f32 %v1629, %v1645
  %1652 = vrot.lane.b32.xlu0 %v1648, 32
  %v1653 = vpop.permute.xlu0 %1652
  %1654 = vrot.lane.b32.xlu0 %v1649, 32
  %v1655 = vpop.permute.xlu0 %1654
  %v1658 = vadd.f32 %v1638, %v1653
  %v1659 = vadd.f32 %v1639, %v1655
  %v1660 = vtanh.pop %v1658
  %v1661 = vtanh.pop %v1659
  %1664 = vrot.lane.b32.xlu0 %v1660, 64
  %v1665 = vpop.permute.xlu0 %1664
  %1666 = vrot.lane.b32.xlu0 %v1661, 64
  %v1667 = vpop.permute.xlu0 %1666
  %v1670 = vmul.f32 %v1627, %v1665
  %v1671 = vmul.f32 %v1629, %v1667
  %1674 = vrot.lane.b32.xlu0 %v1532, 32
  %v1675 = vpop.permute.xlu0 %1674
  %1676 = vrot.lane.b32.xlu0 %v1533, 32
  %v1677 = vpop.permute.xlu0 %1676
  %vm1680 = vcmask 258052
  %1681 = vst.msk [vmem:[%s11] sm:$0x10] %vm1680, %v1675
  %1682 = vst.msk [vmem:[%s11 + $0x8] sm:$0x10] %vm1680, %v1677
  %1685 = vrot.lane.b32.xlu0 %v1670, 64
  %v1686 = vpop.permute.xlu0 %1685
  %1687 = vrot.lane.b32.xlu0 %v1671, 64
  %v1688 = vpop.permute.xlu0 %1687
  %vm1691 = vcmask 519427
  %1692 = vst.msk [vmem:[%s11] sm:$0x8] %vm1691, %v1686
  %1693 = vst.msk [vmem:[%s11 + $0x8] sm:$0x8] %vm1691, %v1688
  %v1694 = vrot.slane %v1532, 4
  %v1695 = vrot.slane %v1533, 3
  %v1696 = vsel %vm505, %v1695, %v1694
  %1697 = vrot.lane.b32.xlu0 %v1696, 32
  %v1698 = vpop.permute.xlu0 %1697
  %v1699 = vsel %vm54, %v1698, 0
  %1701 = vmatprep.subr.mxu0 0.0
  %1702 = vmatpush1.msra.mxu0 %v222
  %1703 = vmatprep.subr.mxu0 0.0
  %1704 = vmatpush1.msra.mxu0 %v223
  %1705 = vmatprep.subr.mxu0 0.0
  %1706 = vmatpush1.msra.mxu0 %v224
  %1707 = vmatprep.subr.mxu0 0.0
  %1708 = vmatpush1.msra.mxu0 %v225
  %1709 = vmatprep.subr.mxu0 0.0
  %1710 = vmatpush1.msra.mxu0 0.0
  %1711 = vmatprep.subr.mxu0 0.0
  %1712 = vmatpush1.msra.mxu0 0.0
  %1713 = vmatprep.subr.mxu0 0.0
  %1714 = vmatpush1.msra.mxu0 0.0
  %1715 = vmatprep.subr.mxu0 0.0
  %1716 = vmatpush1.msra.mxu0 0.0
  %1717 = vmatprep.subr.mxu0 0.0
  %1718 = vmatpush1.msra.mxu0 0.0
  %1719 = vmatprep.subr.mxu0 0.0
  %1720 = vmatpush1.msra.mxu0 0.0
  %1721 = vmatprep.subr.mxu0 0.0
  %1722 = vmatpush1.msra.mxu0 0.0
  %1723 = vmatprep.subr.mxu0 0.0
  %1724 = vmatpush1.msra.mxu0 0.0
  %1725 = vmatprep.subr.mxu0 0.0
  %1726 = vmatpush1.msra.mxu0 0.0
  %1727 = vmatprep.subr.mxu0 0.0
  %1728 = vmatpush1.msra.mxu0 0.0
  %1729 = vmatprep.subr.mxu0 0.0
  %1730 = vmatpush1.msra.mxu0 0.0
  %1731 = vmatprep.subr.mxu0 0.0
  %1732 = vmatpush1.msra.mxu0 0.0
  %1733 = vmatprep.subr.mxu0 0.0
  %1734 = vmatpush1.msra.mxu0 0.0
  %1735 = vmatprep.subr.mxu0 0.0
  %1736 = vmatpush1.msra.mxu0 0.0
  %1737 = vmatprep.subr.mxu0 0.0
  %1738 = vmatpush1.msra.mxu0 0.0
  %1739 = vmatprep.subr.mxu0 0.0
  %1740 = vmatpush1.msra.mxu0 0.0
  %1741 = vmatprep.subr.mxu0 0.0
  %1742 = vmatpush1.msra.mxu0 0.0
  %1743 = vmatprep.subr.mxu0 0.0
  %1744 = vmatpush1.msra.mxu0 0.0
  %1745 = vmatprep.subr.mxu0 0.0
  %1746 = vmatpush1.msra.mxu0 0.0
  %1747 = vmatprep.subr.mxu0 0.0
  %1748 = vmatpush1.msra.mxu0 0.0
  %1749 = vmatprep.subr.mxu0 0.0
  %1750 = vmatpush1.msra.mxu0 0.0
  %1751 = vmatprep.subr.mxu0 0.0
  %1752 = vmatpush1.msra.mxu0 0.0
  %1753 = vmatprep.subr.mxu0 0.0
  %1754 = vmatpush1.msra.mxu0 0.0
  %1755 = vmatprep.subr.mxu0 0.0
  %1756 = vmatpush1.msra.mxu0 0.0
  %1757 = vmatprep.subr.mxu0 0.0
  %1758 = vmatpush1.msra.mxu0 0.0
  %1759 = vmatprep.subr.mxu0 0.0
  %1760 = vmatpush1.msra.mxu0 0.0
  %1761 = vmatprep.subr.mxu0 0.0
  %1762 = vmatpush1.msra.mxu0 0.0
  %1763 = vmatprep.subr.mxu0 0.0
  %1764 = vmatpush1.msra.mxu0 0.0
  %1765 = vmatprep.mubr.f32.mxu0 0.0
  %1766 = vmatmul.mubr.f32.gmra.mrb[0].mxu0 %v1699
  %v1767 = vpop.f32.mrb[0].mxu0
  %v1768 = vadd.f32 0.0, %v1767
  %v1769 = vpop.f32.mrb[0].mxu0
  %1770 = vdwg.mxu0
  %v1772 = vrot.slane %v1768, 3
  %v1773 = vrot.slane %v1768, 4
  %v1776 = vadd.f32 %v128, %v1772
  %v1777 = vadd.f32 %v133, %v1773
  %v1778 = vxor.u32 %v1776, 2147483648
  %v1779 = vxor.u32 %v1777, 2147483648
  %v1780 = vmul.f32 %v1778, 1.442695
  %v1781 = vpow.pop %v1780
  %v1782 = vmul.f32 %v1779, 1.442695
  %v1783 = vpow.pop %v1782
  %v1784 = vadd.f32 %v1781, 1.0
  %v1785 = vadd.f32 %v1783, 1.0
  %v1786 = vrcp.pop %v1784
  %v1787 = vmul.f32 1.0, %v1786
  %v1788 = vrcp.pop %v1785
  %v1789 = vmul.f32 1.0, %v1788
  %v1790 = vtanh.pop %v1776
  %v1791 = vtanh.pop %v1777
  %v1794 = vrot.slane %v1520, 7
  %v1795 = vrot.slane %v1521, 7
  %v1798 = vmul.f32 %v1787, %v1794
  %v1799 = vmul.f32 %v1789, %v1795
  %1802 = vrot.lane.b32.xlu0 %v1790, 64
  %v1803 = vpop.permute.xlu0 %1802
  %1804 = vrot.lane.b32.xlu0 %v1791, 64
  %v1805 = vpop.permute.xlu0 %1804
  %v1808 = vmul.f32 %v1787, %v1803
  %v1809 = vmul.f32 %v1789, %v1805
  %1812 = vrot.lane.b32.xlu0 %v1808, 32
  %v1813 = vpop.permute.xlu0 %1812
  %1814 = vrot.lane.b32.xlu0 %v1809, 32
  %v1815 = vpop.permute.xlu0 %1814
  %v1818 = vadd.f32 %v1798, %v1813
  %v1819 = vadd.f32 %v1799, %v1815
  %v1820 = vtanh.pop %v1818
  %v1821 = vtanh.pop %v1819
  %1824 = vrot.lane.b32.xlu0 %v1820, 64
  %v1825 = vpop.permute.xlu0 %1824
  %1826 = vrot.lane.b32.xlu0 %v1821, 64
  %v1827 = vpop.permute.xlu0 %1826
  %v1830 = vmul.f32 %v1787, %v1825
  %v1831 = vmul.f32 %v1789, %v1827
  %v1832 = vrot.slane %v1670, 3
  %v1833 = vrot.slane %v1671, 2
  %v1834 = vsel %vm505, %v1833, %v1832
  %1835 = vrot.lane.b32.xlu0 %v1834, 32
  %v1836 = vpop.permute.xlu0 %1835
  %v1837 = vsel %vm54, %v1836, 0
  %1839 = vmatprep.subr.mxu0 0.0
  %1840 = vmatpush1.msra.mxu0 %v226
  %1841 = vmatprep.subr.mxu0 0.0
  %1842 = vmatpush1.msra.mxu0 %v227
  %1843 = vmatprep.subr.mxu0 0.0
  %1844 = vmatpush1.msra.mxu0 %v228
  %1845 = vmatprep.subr.mxu0 0.0
  %1846 = vmatpush1.msra.mxu0 %v229
  %1847 = vmatprep.subr.mxu0 0.0
  %1848 = vmatpush1.msra.mxu0 0.0
  %1849 = vmatprep.subr.mxu0 0.0
  %1850 = vmatpush1.msra.mxu0 0.0
  %1851 = vmatprep.subr.mxu0 0.0
  %1852 = vmatpush1.msra.mxu0 0.0
  %1853 = vmatprep.subr.mxu0 0.0
  %1854 = vmatpush1.msra.mxu0 0.0
  %1855 = vmatprep.subr.mxu0 0.0
  %1856 = vmatpush1.msra.mxu0 0.0
  %1857 = vmatprep.subr.mxu0 0.0
  %1858 = vmatpush1.msra.mxu0 0.0
  %1859 = vmatprep.subr.mxu0 0.0
  %1860 = vmatpush1.msra.mxu0 0.0
  %1861 = vmatprep.subr.mxu0 0.0
  %1862 = vmatpush1.msra.mxu0 0.0
  %1863 = vmatprep.subr.mxu0 0.0
  %1864 = vmatpush1.msra.mxu0 0.0
  %1865 = vmatprep.subr.mxu0 0.0
  %1866 = vmatpush1.msra.mxu0 0.0
  %1867 = vmatprep.subr.mxu0 0.0
  %1868 = vmatpush1.msra.mxu0 0.0
  %1869 = vmatprep.subr.mxu0 0.0
  %1870 = vmatpush1.msra.mxu0 0.0
  %1871 = vmatprep.subr.mxu0 0.0
  %1872 = vmatpush1.msra.mxu0 0.0
  %1873 = vmatprep.subr.mxu0 0.0
  %1874 = vmatpush1.msra.mxu0 0.0
  %1875 = vmatprep.subr.mxu0 0.0
  %1876 = vmatpush1.msra.mxu0 0.0
  %1877 = vmatprep.subr.mxu0 0.0
  %1878 = vmatpush1.msra.mxu0 0.0
  %1879 = vmatprep.subr.mxu0 0.0
  %1880 = vmatpush1.msra.mxu0 0.0
  %1881 = vmatprep.subr.mxu0 0.0
  %1882 = vmatpush1.msra.mxu0 0.0
  %1883 = vmatprep.subr.mxu0 0.0
  %1884 = vmatpush1.msra.mxu0 0.0
  %1885 = vmatprep.subr.mxu0 0.0
  %1886 = vmatpush1.msra.mxu0 0.0
  %1887 = vmatprep.subr.mxu0 0.0
  %1888 = vmatpush1.msra.mxu0 0.0
  %1889 = vmatprep.subr.mxu0 0.0
  %1890 = vmatpush1.msra.mxu0 0.0
  %1891 = vmatprep.subr.mxu0 0.0
  %1892 = vmatpush1.msra.mxu0 0.0
  %1893 = vmatprep.subr.mxu0 0.0
  %1894 = vmatpush1.msra.mxu0 0.0
  %1895 = vmatprep.subr.mxu0 0.0
  %1896 = vmatpush1.msra.mxu0 0.0
  %1897 = vmatprep.subr.mxu0 0.0
  %1898 = vmatpush1.msra.mxu0 0.0
  %1899 = vmatprep.subr.mxu0 0.0
  %1900 = vmatpush1.msra.mxu0 0.0
  %1901 = vmatprep.subr.mxu0 0.0
  %1902 = vmatpush1.msra.mxu0 0.0
  %1903 = vmatprep.mubr.f32.mxu0 0.0
  %1904 = vmatmul.mubr.f32.gmra.mrb[0].mxu0 %v1837
  %v1905 = vpop.f32.mrb[0].mxu0
  %v1906 = vadd.f32 0.0, %v1905
  %v1907 = vpop.f32.mrb[0].mxu0
  %1908 = vdwg.mxu0
  %v1910 = vrot.slane %v1906, 6
  %v1911 = vrot.slane %v1906, 7
  %v1914 = vadd.f32 %v214, %v1910
  %v1915 = vadd.f32 %v219, %v1911
  %v1916 = vxor.u32 %v1914, 2147483648
  %v1917 = vxor.u32 %v1915, 2147483648
  %v1918 = vmul.f32 %v1916, 1.442695
  %v1919 = vpow.pop %v1918
  %v1920 = vmul.f32 %v1917, 1.442695
  %v1921 = vpow.pop %v1920
  %v1922 = vadd.f32 %v1919, 1.0
  %v1923 = vadd.f32 %v1921, 1.0
  %v1924 = vrcp.pop %v1922
  %v1925 = vmul.f32 1.0, %v1924
  %v1926 = vrcp.pop %v1923
  %v1927 = vmul.f32 1.0, %v1926
  %v1928 = vtanh.pop %v1914
  %v1929 = vtanh.pop %v1915
  %v1932 = vrot.slane %v1658, 1
  %v1933 = vrot.slane %v1659, 1
  %v1936 = vmul.f32 %v1925, %v1932
  %v1937 = vmul.f32 %v1927, %v1933
  %1940 = vrot.lane.b32.xlu0 %v1928, 64
  %v1941 = vpop.permute.xlu0 %1940
  %1942 = vrot.lane.b32.xlu0 %v1929, 64
  %v1943 = vpop.permute.xlu0 %1942
  %v1946 = vmul.f32 %v1925, %v1941
  %v1947 = vmul.f32 %v1927, %v1943
  %1950 = vrot.lane.b32.xlu0 %v1946, 32
  %v1951 = vpop.permute.xlu0 %1950
  %1952 = vrot.lane.b32.xlu0 %v1947, 32
  %v1953 = vpop.permute.xlu0 %1952
  %v1956 = vadd.f32 %v1936, %v1951
  %v1957 = vadd.f32 %v1937, %v1953
  %v1958 = vtanh.pop %v1956
  %v1959 = vtanh.pop %v1957
  %1962 = vrot.lane.b32.xlu0 %v1958, 64
  %v1963 = vpop.permute.xlu0 %1962
  %1964 = vrot.lane.b32.xlu0 %v1959, 64
  %v1965 = vpop.permute.xlu0 %1964
  %v1968 = vmul.f32 %v1925, %v1963
  %v1969 = vmul.f32 %v1927, %v1965
  %1972 = vrot.lane.b32.xlu0 %v1830, 32
  %v1973 = vpop.permute.xlu0 %1972
  %1974 = vrot.lane.b32.xlu0 %v1831, 32
  %v1975 = vpop.permute.xlu0 %1974
  %vm1978 = vcmask 259077
  %1979 = vst.msk [vmem:[%s11] sm:$0x20] %vm1978, %v1973
  %1980 = vst.msk [vmem:[%s11 + $0x8] sm:$0x20] %vm1978, %v1975
  %1983 = vrot.lane.b32.xlu0 %v1968, 64
  %v1984 = vpop.permute.xlu0 %1983
  %1985 = vrot.lane.b32.xlu0 %v1969, 64
  %v1986 = vpop.permute.xlu0 %1985
  %vm1989 = vcmask 518402
  %1990 = vst.msk [vmem:[%s11] sm:$0x4] %vm1989, %v1984
  %1991 = vst.msk [vmem:[%s11 + $0x8] sm:$0x4] %vm1989, %v1986
  %v1992 = vrot.slane %v1830, 5
  %v1993 = vrot.slane %v1831, 4
  %v1994 = vsel %vm505, %v1993, %v1992
  %1995 = vrot.lane.b32.xlu0 %v1994, 32
  %v1996 = vpop.permute.xlu0 %1995
  %v1997 = vsel %vm54, %v1996, 0
  %1999 = vmatprep.subr.mxu0 0.0
  %2000 = vmatpush1.msra.mxu0 %v222
  %2001 = vmatprep.subr.mxu0 0.0
  %2002 = vmatpush1.msra.mxu0 %v223
  %2003 = vmatprep.subr.mxu0 0.0
  %2004 = vmatpush1.msra.mxu0 %v224
  %2005 = vmatprep.subr.mxu0 0.0
  %2006 = vmatpush1.msra.mxu0 %v225
  %2007 = vmatprep.subr.mxu0 0.0
  %2008 = vmatpush1.msra.mxu0 0.0
  %2009 = vmatprep.subr.mxu0 0.0
  %2010 = vmatpush1.msra.mxu0 0.0
  %2011 = vmatprep.subr.mxu0 0.0
  %2012 = vmatpush1.msra.mxu0 0.0
  %2013 = vmatprep.subr.mxu0 0.0
  %2014 = vmatpush1.msra.mxu0 0.0
  %2015 = vmatprep.subr.mxu0 0.0
  %2016 = vmatpush1.msra.mxu0 0.0
  %2017 = vmatprep.subr.mxu0 0.0
  %2018 = vmatpush1.msra.mxu0 0.0
  %2019 = vmatprep.subr.mxu0 0.0
  %2020 = vmatpush1.msra.mxu0 0.0
  %2021 = vmatprep.subr.mxu0 0.0
  %2022 = vmatpush1.msra.mxu0 0.0
  %2023 = vmatprep.subr.mxu0 0.0
  %2024 = vmatpush1.msra.mxu0 0.0
  %2025 = vmatprep.subr.mxu0 0.0
  %2026 = vmatpush1.msra.mxu0 0.0
  %2027 = vmatprep.subr.mxu0 0.0
  %2028 = vmatpush1.msra.mxu0 0.0
  %2029 = vmatprep.subr.mxu0 0.0
  %2030 = vmatpush1.msra.mxu0 0.0
  %2031 = vmatprep.subr.mxu0 0.0
  %2032 = vmatpush1.msra.mxu0 0.0
  %2033 = vmatprep.subr.mxu0 0.0
  %2034 = vmatpush1.msra.mxu0 0.0
  %2035 = vmatprep.subr.mxu0 0.0
  %2036 = vmatpush1.msra.mxu0 0.0
  %2037 = vmatprep.subr.mxu0 0.0
  %2038 = vmatpush1.msra.mxu0 0.0
  %2039 = vmatprep.subr.mxu0 0.0
  %2040 = vmatpush1.msra.mxu0 0.0
  %2041 = vmatprep.subr.mxu0 0.0
  %2042 = vmatpush1.msra.mxu0 0.0
  %2043 = vmatprep.subr.mxu0 0.0
  %2044 = vmatpush1.msra.mxu0 0.0
  %2045 = vmatprep.subr.mxu0 0.0
  %2046 = vmatpush1.msra.mxu0 0.0
  %2047 = vmatprep.subr.mxu0 0.0
  %2048 = vmatpush1.msra.mxu0 0.0
  %2049 = vmatprep.subr.mxu0 0.0
  %2050 = vmatpush1.msra.mxu0 0.0
  %2051 = vmatprep.subr.mxu0 0.0
  %2052 = vmatpush1.msra.mxu0 0.0
  %2053 = vmatprep.subr.mxu0 0.0
  %2054 = vmatpush1.msra.mxu0 0.0
  %2055 = vmatprep.subr.mxu0 0.0
  %2056 = vmatpush1.msra.mxu0 0.0
  %2057 = vmatprep.subr.mxu0 0.0
  %2058 = vmatpush1.msra.mxu0 0.0
  %2059 = vmatprep.subr.mxu0 0.0
  %2060 = vmatpush1.msra.mxu0 0.0
  %2061 = vmatprep.subr.mxu0 0.0
  %2062 = vmatpush1.msra.mxu0 0.0
  %2063 = vmatprep.mubr.f32.mxu0 0.0
  %2064 = vmatmul.mubr.f32.gmra.mrb[0].mxu0 %v1997
  %v2065 = vpop.f32.mrb[0].mxu0
  %v2066 = vadd.f32 0.0, %v2065
  %v2067 = vpop.f32.mrb[0].mxu0
  %2068 = vdwg.mxu0
  %v2070 = vrot.slane %v2066, 2
  %v2071 = vrot.slane %v2066, 3
  %v2074 = vadd.f32 %v128, %v2070
  %v2075 = vadd.f32 %v133, %v2071
  %v2076 = vxor.u32 %v2074, 2147483648
  %v2077 = vxor.u32 %v2075, 2147483648
  %v2078 = vmul.f32 %v2076, 1.442695
  %v2079 = vpow.pop %v2078
  %v2080 = vmul.f32 %v2077, 1.442695
  %v2081 = vpow.pop %v2080
  %v2082 = vadd.f32 %v2079, 1.0
  %v2083 = vadd.f32 %v2081, 1.0
  %v2084 = vrcp.pop %v2082
  %v2085 = vmul.f32 1.0, %v2084
  %v2086 = vrcp.pop %v2083
  %v2087 = vmul.f32 1.0, %v2086
  %v2088 = vtanh.pop %v2074
  %v2089 = vtanh.pop %v2075
  %v2092 = vrot.slane %v1818, 7
  %v2093 = vrot.slane %v1819, 7
  %v2096 = vmul.f32 %v2085, %v2092
  %v2097 = vmul.f32 %v2087, %v2093
  %2100 = vrot.lane.b32.xlu0 %v2088, 64
  %v2101 = vpop.permute.xlu0 %2100
  %2102 = vrot.lane.b32.xlu0 %v2089, 64
  %v2103 = vpop.permute.xlu0 %2102
  %v2106 = vmul.f32 %v2085, %v2101
  %v2107 = vmul.f32 %v2087, %v2103
  %2110 = vrot.lane.b32.xlu0 %v2106, 32
  %v2111 = vpop.permute.xlu0 %2110
  %2112 = vrot.lane.b32.xlu0 %v2107, 32
  %v2113 = vpop.permute.xlu0 %2112
  %v2116 = vadd.f32 %v2096, %v2111
  %v2117 = vadd.f32 %v2097, %v2113
  %v2118 = vtanh.pop %v2116
  %v2119 = vtanh.pop %v2117
  %2122 = vrot.lane.b32.xlu0 %v2118, 64
  %v2123 = vpop.permute.xlu0 %2122
  %2124 = vrot.lane.b32.xlu0 %v2119, 64
  %v2125 = vpop.permute.xlu0 %2124
  %v2128 = vmul.f32 %v2085, %v2123
  %v2129 = vmul.f32 %v2087, %v2125
  %v2130 = vrot.slane %v1968, 2
  %v2131 = vrot.slane %v1969, 1
  %v2132 = vsel %vm505, %v2131, %v2130
  %2133 = vrot.lane.b32.xlu0 %v2132, 32
  %v2134 = vpop.permute.xlu0 %2133
  %v2135 = vsel %vm54, %v2134, 0
  %2137 = vmatprep.subr.mxu0 0.0
  %2138 = vmatpush1.msra.mxu0 %v226
  %2139 = vmatprep.subr.mxu0 0.0
  %2140 = vmatpush1.msra.mxu0 %v227
  %2141 = vmatprep.subr.mxu0 0.0
  %2142 = vmatpush1.msra.mxu0 %v228
  %2143 = vmatprep.subr.mxu0 0.0
  %2144 = vmatpush1.msra.mxu0 %v229
  %2145 = vmatprep.subr.mxu0 0.0
  %2146 = vmatpush1.msra.mxu0 0.0
  %2147 = vmatprep.subr.mxu0 0.0
  %2148 = vmatpush1.msra.mxu0 0.0
  %2149 = vmatprep.subr.mxu0 0.0
  %2150 = vmatpush1.msra.mxu0 0.0
  %2151 = vmatprep.subr.mxu0 0.0
  %2152 = vmatpush1.msra.mxu0 0.0
  %2153 = vmatprep.subr.mxu0 0.0
  %2154 = vmatpush1.msra.mxu0 0.0
  %2155 = vmatprep.subr.mxu0 0.0
  %2156 = vmatpush1.msra.mxu0 0.0
  %2157 = vmatprep.subr.mxu0 0.0
  %2158 = vmatpush1.msra.mxu0 0.0
  %2159 = vmatprep.subr.mxu0 0.0
  %2160 = vmatpush1.msra.mxu0 0.0
  %2161 = vmatprep.subr.mxu0 0.0
  %2162 = vmatpush1.msra.mxu0 0.0
  %2163 = vmatprep.subr.mxu0 0.0
  %2164 = vmatpush1.msra.mxu0 0.0
  %2165 = vmatprep.subr.mxu0 0.0
  %2166 = vmatpush1.msra.mxu0 0.0
  %2167 = vmatprep.subr.mxu0 0.0
  %2168 = vmatpush1.msra.mxu0 0.0
  %2169 = vmatprep.subr.mxu0 0.0
  %2170 = vmatpush1.msra.mxu0 0.0
  %2171 = vmatprep.subr.mxu0 0.0
  %2172 = vmatpush1.msra.mxu0 0.0
  %2173 = vmatprep.subr.mxu0 0.0
  %2174 = vmatpush1.msra.mxu0 0.0
  %2175 = vmatprep.subr.mxu0 0.0
  %2176 = vmatpush1.msra.mxu0 0.0
  %2177 = vmatprep.subr.mxu0 0.0
  %2178 = vmatpush1.msra.mxu0 0.0
  %2179 = vmatprep.subr.mxu0 0.0
  %2180 = vmatpush1.msra.mxu0 0.0
  %2181 = vmatprep.subr.mxu0 0.0
  %2182 = vmatpush1.msra.mxu0 0.0
  %2183 = vmatprep.subr.mxu0 0.0
  %2184 = vmatpush1.msra.mxu0 0.0
  %2185 = vmatprep.subr.mxu0 0.0
  %2186 = vmatpush1.msra.mxu0 0.0
  %2187 = vmatprep.subr.mxu0 0.0
  %2188 = vmatpush1.msra.mxu0 0.0
  %2189 = vmatprep.subr.mxu0 0.0
  %2190 = vmatpush1.msra.mxu0 0.0
  %2191 = vmatprep.subr.mxu0 0.0
  %2192 = vmatpush1.msra.mxu0 0.0
  %2193 = vmatprep.subr.mxu0 0.0
  %2194 = vmatpush1.msra.mxu0 0.0
  %2195 = vmatprep.subr.mxu0 0.0
  %2196 = vmatpush1.msra.mxu0 0.0
  %2197 = vmatprep.subr.mxu0 0.0
  %2198 = vmatpush1.msra.mxu0 0.0
  %2199 = vmatprep.subr.mxu0 0.0
  %2200 = vmatpush1.msra.mxu0 0.0
  %2201 = vmatprep.mubr.f32.mxu0 0.0
  %2202 = vmatmul.mubr.f32.gmra.mrb[0].mxu0 %v2135
  %v2203 = vpop.f32.mrb[0].mxu0
  %v2204 = vadd.f32 0.0, %v2203
  %v2205 = vpop.f32.mrb[0].mxu0
  %2206 = vdwg.mxu0
  %v2208 = vrot.slane %v2204, 7
  %v2211 = vadd.f32 %v214, %v2208
  %v2212 = vadd.f32 %v219, %v2204
  %v2213 = vxor.u32 %v2211, 2147483648
  %v2214 = vxor.u32 %v2212, 2147483648
  %v2215 = vmul.f32 %v2213, 1.442695
  %v2216 = vpow.pop %v2215
  %v2217 = vmul.f32 %v2214, 1.442695
  %v2218 = vpow.pop %v2217
  %v2219 = vadd.f32 %v2216, 1.0
  %v2220 = vadd.f32 %v2218, 1.0
  %v2221 = vrcp.pop %v2219
  %v2222 = vmul.f32 1.0, %v2221
  %v2223 = vrcp.pop %v2220
  %v2224 = vmul.f32 1.0, %v2223
  %v2225 = vtanh.pop %v2211
  %v2226 = vtanh.pop %v2212
  %v2229 = vrot.slane %v1956, 1
  %v2230 = vrot.slane %v1957, 1
  %v2233 = vmul.f32 %v2222, %v2229
  %v2234 = vmul.f32 %v2224, %v2230
  %2237 = vrot.lane.b32.xlu0 %v2225, 64
  %v2238 = vpop.permute.xlu0 %2237
  %2239 = vrot.lane.b32.xlu0 %v2226, 64
  %v2240 = vpop.permute.xlu0 %2239
  %v2243 = vmul.f32 %v2222, %v2238
  %v2244 = vmul.f32 %v2224, %v2240
  %2247 = vrot.lane.b32.xlu0 %v2243, 32
  %v2248 = vpop.permute.xlu0 %2247
  %2249 = vrot.lane.b32.xlu0 %v2244, 32
  %v2250 = vpop.permute.xlu0 %2249
  %v2253 = vadd.f32 %v2233, %v2248
  %v2254 = vadd.f32 %v2234, %v2250
  %v2255 = vtanh.pop %v2253
  %v2256 = vtanh.pop %v2254
  %2259 = vrot.lane.b32.xlu0 %v2255, 64
  %v2260 = vpop.permute.xlu0 %2259
  %2261 = vrot.lane.b32.xlu0 %v2256, 64
  %v2262 = vpop.permute.xlu0 %2261
  %v2265 = vmul.f32 %v2222, %v2260
  %v2266 = vmul.f32 %v2224, %v2262
  %2269 = vrot.lane.b32.xlu0 %v2128, 32
  %v2270 = vpop.permute.xlu0 %2269
  %2271 = vrot.lane.b32.xlu0 %v2129, 32
  %v2272 = vpop.permute.xlu0 %2271
  %vm2275 = vcmask 260102
  %2276 = vst.msk [vmem:[%s11] sm:$0x40] %vm2275, %v2270
  %2277 = vst.msk [vmem:[%s11 + $0x8] sm:$0x40] %vm2275, %v2272
  %2280 = vrot.lane.b32.xlu0 %v2265, 64
  %v2281 = vpop.permute.xlu0 %2280
  %2282 = vrot.lane.b32.xlu0 %v2266, 64
  %v2283 = vpop.permute.xlu0 %2282
  %vm2286 = vcmask 517377
  %2287 = vst.msk [vmem:[%s11] sm:$0x2] %vm2286, %v2281
  %2288 = vst.msk [vmem:[%s11 + $0x8] sm:$0x2] %vm2286, %v2283
  %v2289 = vrot.slane %v2128, 6
  %v2290 = vrot.slane %v2129, 5
  %v2291 = vsel %vm505, %v2290, %v2289
  %2292 = vrot.lane.b32.xlu0 %v2291, 32
  %v2293 = vpop.permute.xlu0 %2292
  %v2294 = vsel %vm54, %v2293, 0
  %2296 = vmatprep.subr.mxu0 0.0
  %2297 = vmatpush1.msra.mxu0 %v222
  %2298 = vmatprep.subr.mxu0 0.0
  %2299 = vmatpush1.msra.mxu0 %v223
  %2300 = vmatprep.subr.mxu0 0.0
  %2301 = vmatpush1.msra.mxu0 %v224
  %2302 = vmatprep.subr.mxu0 0.0
  %2303 = vmatpush1.msra.mxu0 %v225
  %2304 = vmatprep.subr.mxu0 0.0
  %2305 = vmatpush1.msra.mxu0 0.0
  %2306 = vmatprep.subr.mxu0 0.0
  %2307 = vmatpush1.msra.mxu0 0.0
  %2308 = vmatprep.subr.mxu0 0.0
  %2309 = vmatpush1.msra.mxu0 0.0
  %2310 = vmatprep.subr.mxu0 0.0
  %2311 = vmatpush1.msra.mxu0 0.0
  %2312 = vmatprep.subr.mxu0 0.0
  %2313 = vmatpush1.msra.mxu0 0.0
  %2314 = vmatprep.subr.mxu0 0.0
  %2315 = vmatpush1.msra.mxu0 0.0
  %2316 = vmatprep.subr.mxu0 0.0
  %2317 = vmatpush1.msra.mxu0 0.0
  %2318 = vmatprep.subr.mxu0 0.0
  %2319 = vmatpush1.msra.mxu0 0.0
  %2320 = vmatprep.subr.mxu0 0.0
  %2321 = vmatpush1.msra.mxu0 0.0
  %2322 = vmatprep.subr.mxu0 0.0
  %2323 = vmatpush1.msra.mxu0 0.0
  %2324 = vmatprep.subr.mxu0 0.0
  %2325 = vmatpush1.msra.mxu0 0.0
  %2326 = vmatprep.subr.mxu0 0.0
  %2327 = vmatpush1.msra.mxu0 0.0
  %2328 = vmatprep.subr.mxu0 0.0
  %2329 = vmatpush1.msra.mxu0 0.0
  %2330 = vmatprep.subr.mxu0 0.0
  %2331 = vmatpush1.msra.mxu0 0.0
  %2332 = vmatprep.subr.mxu0 0.0
  %2333 = vmatpush1.msra.mxu0 0.0
  %2334 = vmatprep.subr.mxu0 0.0
  %2335 = vmatpush1.msra.mxu0 0.0
  %2336 = vmatprep.subr.mxu0 0.0
  %2337 = vmatpush1.msra.mxu0 0.0
  %2338 = vmatprep.subr.mxu0 0.0
  %2339 = vmatpush1.msra.mxu0 0.0
  %2340 = vmatprep.subr.mxu0 0.0
  %2341 = vmatpush1.msra.mxu0 0.0
  %2342 = vmatprep.subr.mxu0 0.0
  %2343 = vmatpush1.msra.mxu0 0.0
  %2344 = vmatprep.subr.mxu0 0.0
  %2345 = vmatpush1.msra.mxu0 0.0
  %2346 = vmatprep.subr.mxu0 0.0
  %2347 = vmatpush1.msra.mxu0 0.0
  %2348 = vmatprep.subr.mxu0 0.0
  %2349 = vmatpush1.msra.mxu0 0.0
  %2350 = vmatprep.subr.mxu0 0.0
  %2351 = vmatpush1.msra.mxu0 0.0
  %2352 = vmatprep.subr.mxu0 0.0
  %2353 = vmatpush1.msra.mxu0 0.0
  %2354 = vmatprep.subr.mxu0 0.0
  %2355 = vmatpush1.msra.mxu0 0.0
  %2356 = vmatprep.subr.mxu0 0.0
  %2357 = vmatpush1.msra.mxu0 0.0
  %2358 = vmatprep.subr.mxu0 0.0
  %2359 = vmatpush1.msra.mxu0 0.0
  %2360 = vmatprep.mubr.f32.mxu0 0.0
  %2361 = vmatmul.mubr.f32.gmra.mrb[0].mxu0 %v2294
  %v2362 = vpop.f32.mrb[0].mxu0
  %v2363 = vadd.f32 0.0, %v2362
  %v2364 = vpop.f32.mrb[0].mxu0
  %2365 = vdwg.mxu0
  %v2367 = vrot.slane %v2363, 1
  %v2368 = vrot.slane %v2363, 2
  %v2371 = vadd.f32 %v128, %v2367
  %v2372 = vadd.f32 %v133, %v2368
  %v2373 = vxor.u32 %v2371, 2147483648
  %v2374 = vxor.u32 %v2372, 2147483648
  %v2375 = vmul.f32 %v2373, 1.442695
  %v2376 = vpow.pop %v2375
  %v2377 = vmul.f32 %v2374, 1.442695
  %v2378 = vpow.pop %v2377
  %v2379 = vadd.f32 %v2376, 1.0
  %v2380 = vadd.f32 %v2378, 1.0
  %v2381 = vrcp.pop %v2379
  %v2382 = vmul.f32 1.0, %v2381
  %v2383 = vrcp.pop %v2380
  %v2384 = vmul.f32 1.0, %v2383
  %v2385 = vtanh.pop %v2371
  %v2386 = vtanh.pop %v2372
  %v2389 = vrot.slane %v2116, 7
  %v2390 = vrot.slane %v2117, 7
  %v2393 = vmul.f32 %v2382, %v2389
  %v2394 = vmul.f32 %v2384, %v2390
  %2397 = vrot.lane.b32.xlu0 %v2385, 64
  %v2398 = vpop.permute.xlu0 %2397
  %2399 = vrot.lane.b32.xlu0 %v2386, 64
  %v2400 = vpop.permute.xlu0 %2399
  %v2403 = vmul.f32 %v2382, %v2398
  %v2404 = vmul.f32 %v2384, %v2400
  %2407 = vrot.lane.b32.xlu0 %v2403, 32
  %v2408 = vpop.permute.xlu0 %2407
  %2409 = vrot.lane.b32.xlu0 %v2404, 32
  %v2410 = vpop.permute.xlu0 %2409
  %v2413 = vadd.f32 %v2393, %v2408
  %v2414 = vadd.f32 %v2394, %v2410
  %v2415 = vtanh.pop %v2413
  %v2416 = vtanh.pop %v2414
  %2419 = vrot.lane.b32.xlu0 %v2415, 64
  %v2420 = vpop.permute.xlu0 %2419
  %2421 = vrot.lane.b32.xlu0 %v2416, 64
  %v2422 = vpop.permute.xlu0 %2421
  %v2425 = vmul.f32 %v2382, %v2420
  %v2426 = vmul.f32 %v2384, %v2422
  %v2427 = vrot.slane %v2265, 1
  %v2428 = vsel %vm505, %v2266, %v2427
  %2429 = vrot.lane.b32.xlu0 %v2428, 32
  %v2430 = vpop.permute.xlu0 %2429
  %v2431 = vsel %vm54, %v2430, 0
  %2433 = vmatprep.subr.mxu0 0.0
  %2434 = vmatpush1.msra.mxu0 %v226
  %2435 = vmatprep.subr.mxu0 0.0
  %2436 = vmatpush1.msra.mxu0 %v227
  %2437 = vmatprep.subr.mxu0 0.0
  %2438 = vmatpush1.msra.mxu0 %v228
  %2439 = vmatprep.subr.mxu0 0.0
  %2440 = vmatpush1.msra.mxu0 %v229
  %2441 = vmatprep.subr.mxu0 0.0
  %2442 = vmatpush1.msra.mxu0 0.0
  %2443 = vmatprep.subr.mxu0 0.0
  %2444 = vmatpush1.msra.mxu0 0.0
  %2445 = vmatprep.subr.mxu0 0.0
  %2446 = vmatpush1.msra.mxu0 0.0
  %2447 = vmatprep.subr.mxu0 0.0
  %2448 = vmatpush1.msra.mxu0 0.0
  %2449 = vmatprep.subr.mxu0 0.0
  %2450 = vmatpush1.msra.mxu0 0.0
  %2451 = vmatprep.subr.mxu0 0.0
  %2452 = vmatpush1.msra.mxu0 0.0
  %2453 = vmatprep.subr.mxu0 0.0
  %2454 = vmatpush1.msra.mxu0 0.0
  %2455 = vmatprep.subr.mxu0 0.0
  %2456 = vmatpush1.msra.mxu0 0.0
  %2457 = vmatprep.subr.mxu0 0.0
  %2458 = vmatpush1.msra.mxu0 0.0
  %2459 = vmatprep.subr.mxu0 0.0
  %2460 = vmatpush1.msra.mxu0 0.0
  %2461 = vmatprep.subr.mxu0 0.0
  %2462 = vmatpush1.msra.mxu0 0.0
  %2463 = vmatprep.subr.mxu0 0.0
  %2464 = vmatpush1.msra.mxu0 0.0
  %2465 = vmatprep.subr.mxu0 0.0
  %2466 = vmatpush1.msra.mxu0 0.0
  %2467 = vmatprep.subr.mxu0 0.0
  %2468 = vmatpush1.msra.mxu0 0.0
  %2469 = vmatprep.subr.mxu0 0.0
  %2470 = vmatpush1.msra.mxu0 0.0
  %2471 = vmatprep.subr.mxu0 0.0
  %2472 = vmatpush1.msra.mxu0 0.0
  %2473 = vmatprep.subr.mxu0 0.0
  %2474 = vmatpush1.msra.mxu0 0.0
  %2475 = vmatprep.subr.mxu0 0.0
  %2476 = vmatpush1.msra.mxu0 0.0
  %2477 = vmatprep.subr.mxu0 0.0
  %2478 = vmatpush1.msra.mxu0 0.0
  %2479 = vmatprep.subr.mxu0 0.0
  %2480 = vmatpush1.msra.mxu0 0.0
  %2481 = vmatprep.subr.mxu0 0.0
  %2482 = vmatpush1.msra.mxu0 0.0
  %2483 = vmatprep.subr.mxu0 0.0
  %2484 = vmatpush1.msra.mxu0 0.0
  %2485 = vmatprep.subr.mxu0 0.0
  %2486 = vmatpush1.msra.mxu0 0.0
  %2487 = vmatprep.subr.mxu0 0.0
  %2488 = vmatpush1.msra.mxu0 0.0
  %2489 = vmatprep.subr.mxu0 0.0
  %2490 = vmatpush1.msra.mxu0 0.0
  %2491 = vmatprep.subr.mxu0 0.0
  %2492 = vmatpush1.msra.mxu0 0.0
  %2493 = vmatprep.subr.mxu0 0.0
  %2494 = vmatpush1.msra.mxu0 0.0
  %2495 = vmatprep.subr.mxu0 0.0
  %2496 = vmatpush1.msra.mxu0 0.0
  %2497 = vmatprep.mubr.f32.mxu0 0.0
  %2498 = vmatmul.mubr.f32.gmra.mrb[0].mxu0 %v2431
  %v2499 = vpop.f32.mrb[0].mxu0
  %v2500 = vadd.f32 0.0, %v2499
  %v2501 = vpop.f32.mrb[0].mxu0
  %2502 = vdwg.mxu0
  %v2504 = vrot.slane %v2500, 1
  %v2507 = vadd.f32 %v214, %v2500
  %v2508 = vadd.f32 %v219, %v2504
  %v2509 = vxor.u32 %v2507, 2147483648
  %v2510 = vxor.u32 %v2508, 2147483648
  %v2511 = vmul.f32 %v2509, 1.442695
  %v2512 = vpow.pop %v2511
  %v2513 = vmul.f32 %v2510, 1.442695
  %v2514 = vpow.pop %v2513
  %v2515 = vadd.f32 %v2512, 1.0
  %v2516 = vadd.f32 %v2514, 1.0
  %v2517 = vrcp.pop %v2515
  %v2518 = vmul.f32 1.0, %v2517
  %v2519 = vrcp.pop %v2516
  %v2520 = vmul.f32 1.0, %v2519
  %v2521 = vtanh.pop %v2507
  %v2522 = vtanh.pop %v2508
  %v2525 = vrot.slane %v2253, 1
  %v2526 = vrot.slane %v2254, 1
  %v2529 = vmul.f32 %v2518, %v2525
  %v2530 = vmul.f32 %v2520, %v2526
  %2533 = vrot.lane.b32.xlu0 %v2521, 64
  %v2534 = vpop.permute.xlu0 %2533
  %2535 = vrot.lane.b32.xlu0 %v2522, 64
  %v2536 = vpop.permute.xlu0 %2535
  %v2539 = vmul.f32 %v2518, %v2534
  %v2540 = vmul.f32 %v2520, %v2536
  %2543 = vrot.lane.b32.xlu0 %v2539, 32
  %v2544 = vpop.permute.xlu0 %2543
  %2545 = vrot.lane.b32.xlu0 %v2540, 32
  %v2546 = vpop.permute.xlu0 %2545
  %v2549 = vadd.f32 %v2529, %v2544
  %v2550 = vadd.f32 %v2530, %v2546
  %v2551 = vtanh.pop %v2549
  %v2552 = vtanh.pop %v2550
  %2555 = vrot.lane.b32.xlu0 %v2551, 64
  %v2556 = vpop.permute.xlu0 %2555
  %2557 = vrot.lane.b32.xlu0 %v2552, 64
  %v2558 = vpop.permute.xlu0 %2557
  %v2561 = vmul.f32 %v2518, %v2556
  %v2562 = vmul.f32 %v2520, %v2558
  %2565 = vrot.lane.b32.xlu0 %v2425, 32
  %v2566 = vpop.permute.xlu0 %2565
  %2567 = vrot.lane.b32.xlu0 %v2426, 32
  %v2568 = vpop.permute.xlu0 %2567
  %vm2571 = vcmask 261127
  %2572 = vst.msk [vmem:[%s11] sm:$0x80] %vm2571, %v2566
  %2573 = vst.msk [vmem:[%s11 + $0x8] sm:$0x80] %vm2571, %v2568
  %2576 = vrot.lane.b32.xlu0 %v2561, 64
  %v2577 = vpop.permute.xlu0 %2576
  %2578 = vrot.lane.b32.xlu0 %v2562, 64
  %v2579 = vpop.permute.xlu0 %2578
  %vm2582 = vcmask 516352
  %2583 = vst.msk [vmem:[%s11] sm:$0x1] %vm2582, %v2577
  %2584 = vst.msk [vmem:[%s11 + $0x8] sm:$0x1] %vm2582, %v2579
  %v2585 = vld [vmem:[%s7] sm:$0xff]
  %v2586 = vld [vmem:[%s7 + $0x8] sm:$0xff]
  %v2587 = vld [vmem:[%s7 + $0x10] sm:$0xff]
  %v2588 = vld [vmem:[%s7 + $0x18] sm:$0xff]
  %v2589 = vld [vmem:[%s7 + $0x20] sm:$0xff]
  %v2590 = vld [vmem:[%s7 + $0x28] sm:$0xff]
  %v2591 = vld [vmem:[%s7 + $0x30] sm:$0xff]
  %v2592 = vld [vmem:[%s7 + $0x38] sm:$0xff]
  %v2593 = vld [vmem:[%s9] sm:$0xff]
  %v2594 = vld [vmem:[%s9 + $0x8] sm:$0xff]
  %v2595 = vld [vmem:[%s9 + $0x10] sm:$0xff]
  %v2596 = vld [vmem:[%s9 + $0x18] sm:$0xff]
  %v2597 = vld [vmem:[%s9 + $0x20] sm:$0xff]
  %v2598 = vld [vmem:[%s9 + $0x28] sm:$0xff]
  %v2599 = vld [vmem:[%s9 + $0x30] sm:$0xff]
  %v2600 = vld [vmem:[%s9 + $0x38] sm:$0xff]
  %v2601 = vrot.slane %v2562, 7
  %v2602 = vsel %vm505, %v2601, %v2561
  %2603 = vrot.lane.b32.xlu0 %v2602, 32
  %v2604 = vpop.permute.xlu0 %2603
  %v2605 = vsel %vm54, %v2604, 0
  %2607 = vmatprep.subr.mxu0 0.0
  %2608 = vmatpush1.msra.mxu0 %v2589
  %2609 = vmatprep.subr.mxu0 0.0
  %2610 = vmatpush1.msra.mxu0 %v2590
  %2611 = vmatprep.subr.mxu0 0.0
  %2612 = vmatpush1.msra.mxu0 %v2591
  %2613 = vmatprep.subr.mxu0 0.0
  %2614 = vmatpush1.msra.mxu0 %v2592
  %2615 = vmatprep.subr.mxu0 0.0
  %2616 = vmatpush1.msra.mxu0 0.0
  %2617 = vmatprep.subr.mxu0 0.0
  %2618 = vmatpush1.msra.mxu0 0.0
  %2619 = vmatprep.subr.mxu0 0.0
  %2620 = vmatpush1.msra.mxu0 0.0
  %2621 = vmatprep.subr.mxu0 0.0
  %2622 = vmatpush1.msra.mxu0 0.0
  %2623 = vmatprep.subr.mxu0 0.0
  %2624 = vmatpush1.msra.mxu0 0.0
  %2625 = vmatprep.subr.mxu0 0.0
  %2626 = vmatpush1.msra.mxu0 0.0
  %2627 = vmatprep.subr.mxu0 0.0
  %2628 = vmatpush1.msra.mxu0 0.0
  %2629 = vmatprep.subr.mxu0 0.0
  %2630 = vmatpush1.msra.mxu0 0.0
  %2631 = vmatprep.subr.mxu0 0.0
  %2632 = vmatpush1.msra.mxu0 0.0
  %2633 = vmatprep.subr.mxu0 0.0
  %2634 = vmatpush1.msra.mxu0 0.0
  %2635 = vmatprep.subr.mxu0 0.0
  %2636 = vmatpush1.msra.mxu0 0.0
  %2637 = vmatprep.subr.mxu0 0.0
  %2638 = vmatpush1.msra.mxu0 0.0
  %2639 = vmatprep.subr.mxu0 0.0
  %2640 = vmatpush1.msra.mxu0 0.0
  %2641 = vmatprep.subr.mxu0 0.0
  %2642 = vmatpush1.msra.mxu0 0.0
  %2643 = vmatprep.subr.mxu0 0.0
  %2644 = vmatpush1.msra.mxu0 0.0
  %2645 = vmatprep.subr.mxu0 0.0
  %2646 = vmatpush1.msra.mxu0 0.0
  %2647 = vmatprep.subr.mxu0 0.0
  %2648 = vmatpush1.msra.mxu0 0.0
  %2649 = vmatprep.subr.mxu0 0.0
  %2650 = vmatpush1.msra.mxu0 0.0
  %2651 = vmatprep.subr.mxu0 0.0
  %2652 = vmatpush1.msra.mxu0 0.0
  %2653 = vmatprep.subr.mxu0 0.0
  %2654 = vmatpush1.msra.mxu0 0.0
  %2655 = vmatprep.subr.mxu0 0.0
  %2656 = vmatpush1.msra.mxu0 0.0
  %2657 = vmatprep.subr.mxu0 0.0
  %2658 = vmatpush1.msra.mxu0 0.0
  %2659 = vmatprep.subr.mxu0 0.0
  %2660 = vmatpush1.msra.mxu0 0.0
  %2661 = vmatprep.subr.mxu0 0.0
  %2662 = vmatpush1.msra.mxu0 0.0
  %2663 = vmatprep.subr.mxu0 0.0
  %2664 = vmatpush1.msra.mxu0 0.0
  %2665 = vmatprep.subr.mxu0 0.0
  %2666 = vmatpush1.msra.mxu0 0.0
  %2667 = vmatprep.subr.mxu0 0.0
  %2668 = vmatpush1.msra.mxu0 0.0
  %2669 = vmatprep.subr.mxu0 0.0
  %2670 = vmatpush1.msra.mxu0 0.0
  %2671 = vmatprep.mubr.f32.mxu0 0.0
  %2672 = vmatmul.mubr.f32.gmra.mrb[0].mxu0 %v2605
  %v2673 = vpop.f32.mrb[0].mxu0
  %v2674 = vadd.f32 0.0, %v2673
  %v2675 = vpop.f32.mrb[0].mxu0
  %2676 = vdwg.mxu0
  %v2677 = vrot.slane %v2425, 7
  %v2678 = vrot.slane %v2426, 6
  %v2679 = vsel %vm505, %v2678, %v2677
  %2680 = vrot.lane.b32.xlu0 %v2679, 32
  %v2681 = vpop.permute.xlu0 %2680
  %v2682 = vsel %vm54, %v2681, 0
  %2684 = vmatprep.subr.mxu0 0.0
  %2685 = vmatpush1.msra.mxu0 %v2585
  %2686 = vmatprep.subr.mxu0 0.0
  %2687 = vmatpush1.msra.mxu0 %v2586
  %2688 = vmatprep.subr.mxu0 0.0
  %2689 = vmatpush1.msra.mxu0 %v2587
  %2690 = vmatprep.subr.mxu0 0.0
  %2691 = vmatpush1.msra.mxu0 %v2588
  %2692 = vmatprep.subr.mxu0 0.0
  %2693 = vmatpush1.msra.mxu0 0.0
  %2694 = vmatprep.subr.mxu0 0.0
  %2695 = vmatpush1.msra.mxu0 0.0
  %2696 = vmatprep.subr.mxu0 0.0
  %2697 = vmatpush1.msra.mxu0 0.0
  %2698 = vmatprep.subr.mxu0 0.0
  %2699 = vmatpush1.msra.mxu0 0.0
  %2700 = vmatprep.subr.mxu0 0.0
  %2701 = vmatpush1.msra.mxu0 0.0
  %2702 = vmatprep.subr.mxu0 0.0
  %2703 = vmatpush1.msra.mxu0 0.0
  %2704 = vmatprep.subr.mxu0 0.0
  %2705 = vmatpush1.msra.mxu0 0.0
  %2706 = vmatprep.subr.mxu0 0.0
  %2707 = vmatpush1.msra.mxu0 0.0
  %2708 = vmatprep.subr.mxu0 0.0
  %2709 = vmatpush1.msra.mxu0 0.0
  %2710 = vmatprep.subr.mxu0 0.0
  %2711 = vmatpush1.msra.mxu0 0.0
  %2712 = vmatprep.subr.mxu0 0.0
  %2713 = vmatpush1.msra.mxu0 0.0
  %2714 = vmatprep.subr.mxu0 0.0
  %2715 = vmatpush1.msra.mxu0 0.0
  %2716 = vmatprep.subr.mxu0 0.0
  %2717 = vmatpush1.msra.mxu0 0.0
  %2718 = vmatprep.subr.mxu0 0.0
  %2719 = vmatpush1.msra.mxu0 0.0
  %2720 = vmatprep.subr.mxu0 0.0
  %2721 = vmatpush1.msra.mxu0 0.0
  %2722 = vmatprep.subr.mxu0 0.0
  %2723 = vmatpush1.msra.mxu0 0.0
  %2724 = vmatprep.subr.mxu0 0.0
  %2725 = vmatpush1.msra.mxu0 0.0
  %2726 = vmatprep.subr.mxu0 0.0
  %2727 = vmatpush1.msra.mxu0 0.0
  %2728 = vmatprep.subr.mxu0 0.0
  %2729 = vmatpush1.msra.mxu0 0.0
  %2730 = vmatprep.subr.mxu0 0.0
  %2731 = vmatpush1.msra.mxu0 0.0
  %2732 = vmatprep.subr.mxu0 0.0
  %2733 = vmatpush1.msra.mxu0 0.0
  %2734 = vmatprep.subr.mxu0 0.0
  %2735 = vmatpush1.msra.mxu0 0.0
  %2736 = vmatprep.subr.mxu0 0.0
  %2737 = vmatpush1.msra.mxu0 0.0
  %2738 = vmatprep.subr.mxu0 0.0
  %2739 = vmatpush1.msra.mxu0 0.0
  %2740 = vmatprep.subr.mxu0 0.0
  %2741 = vmatpush1.msra.mxu0 0.0
  %2742 = vmatprep.subr.mxu0 0.0
  %2743 = vmatpush1.msra.mxu0 0.0
  %2744 = vmatprep.subr.mxu0 0.0
  %2745 = vmatpush1.msra.mxu0 0.0
  %2746 = vmatprep.subr.mxu0 0.0
  %2747 = vmatpush1.msra.mxu0 0.0
  %2748 = vmatprep.mubr.f32.mxu0 0.0
  %2749 = vmatmul.mubr.f32.gmra.mrb[0].mxu0 %v2682
  %v2750 = vpop.f32.mrb[0].mxu0
  %v2751 = vadd.f32 %v2674, %v2750
  %v2752 = vpop.f32.mrb[0].mxu0
  %2753 = vdwg.mxu0
  %v2754 = vld [vmem:[%s8] sm:$0x1]
  %v2756 = vlaneseq
  %v2757 = vshrl.u32 %v2756, 7
  %v2758 = vsub.s32 0, %v2757
  %v2759 = vrot.slane %v2754, %v2758
  %v2761 = vadd.f32 %v2751, %v2759
  %v2764 = vrot.slane %v2550, 7
  %v2765 = vsel %vm505, %v2764, %v2549
  %2766 = vrot.lane.b32.xlu0 %v2765, 96
  %v2767 = vpop.permute.xlu0 %2766
  %v2768 = vsel %vm54, %v2767, 0
  %2770 = vmatprep.subr.mxu0 0.0
  %2771 = vmatpush1.msra.mxu0 %v2597
  %2772 = vmatprep.subr.mxu0 0.0
  %2773 = vmatpush1.msra.mxu0 %v2598
  %2774 = vmatprep.subr.mxu0 0.0
  %2775 = vmatpush1.msra.mxu0 %v2599
  %2776 = vmatprep.subr.mxu0 0.0
  %2777 = vmatpush1.msra.mxu0 %v2600
  %2778 = vmatprep.subr.mxu0 0.0
  %2779 = vmatpush1.msra.mxu0 0.0
  %2780 = vmatprep.subr.mxu0 0.0
  %2781 = vmatpush1.msra.mxu0 0.0
  %2782 = vmatprep.subr.mxu0 0.0
  %2783 = vmatpush1.msra.mxu0 0.0
  %2784 = vmatprep.subr.mxu0 0.0
  %2785 = vmatpush1.msra.mxu0 0.0
  %2786 = vmatprep.subr.mxu0 0.0
  %2787 = vmatpush1.msra.mxu0 0.0
  %2788 = vmatprep.subr.mxu0 0.0
  %2789 = vmatpush1.msra.mxu0 0.0
  %2790 = vmatprep.subr.mxu0 0.0
  %2791 = vmatpush1.msra.mxu0 0.0
  %2792 = vmatprep.subr.mxu0 0.0
  %2793 = vmatpush1.msra.mxu0 0.0
  %2794 = vmatprep.subr.mxu0 0.0
  %2795 = vmatpush1.msra.mxu0 0.0
  %2796 = vmatprep.subr.mxu0 0.0
  %2797 = vmatpush1.msra.mxu0 0.0
  %2798 = vmatprep.subr.mxu0 0.0
  %2799 = vmatpush1.msra.mxu0 0.0
  %2800 = vmatprep.subr.mxu0 0.0
  %2801 = vmatpush1.msra.mxu0 0.0
  %2802 = vmatprep.subr.mxu0 0.0
  %2803 = vmatpush1.msra.mxu0 0.0
  %2804 = vmatprep.subr.mxu0 0.0
  %2805 = vmatpush1.msra.mxu0 0.0
  %2806 = vmatprep.subr.mxu0 0.0
  %2807 = vmatpush1.msra.mxu0 0.0
  %2808 = vmatprep.subr.mxu0 0.0
  %2809 = vmatpush1.msra.mxu0 0.0
  %2810 = vmatprep.subr.mxu0 0.0
  %2811 = vmatpush1.msra.mxu0 0.0
  %2812 = vmatprep.subr.mxu0 0.0
  %2813 = vmatpush1.msra.mxu0 0.0
  %2814 = vmatprep.subr.mxu0 0.0
  %2815 = vmatpush1.msra.mxu0 0.0
  %2816 = vmatprep.subr.mxu0 0.0
  %2817 = vmatpush1.msra.mxu0 0.0
  %2818 = vmatprep.subr.mxu0 0.0
  %2819 = vmatpush1.msra.mxu0 0.0
  %2820 = vmatprep.subr.mxu0 0.0
  %2821 = vmatpush1.msra.mxu0 0.0
  %2822 = vmatprep.subr.mxu0 0.0
  %2823 = vmatpush1.msra.mxu0 0.0
  %2824 = vmatprep.subr.mxu0 0.0
  %2825 = vmatpush1.msra.mxu0 0.0
  %2826 = vmatprep.subr.mxu0 0.0
  %2827 = vmatpush1.msra.mxu0 0.0
  %2828 = vmatprep.subr.mxu0 0.0
  %2829 = vmatpush1.msra.mxu0 0.0
  %2830 = vmatprep.subr.mxu0 0.0
  %2831 = vmatpush1.msra.mxu0 0.0
  %2832 = vmatprep.subr.mxu0 0.0
  %2833 = vmatpush1.msra.mxu0 0.0
  %2834 = vmatprep.mubr.f32.mxu0 0.0
  %2835 = vmatmul.mubr.f32.gmra.mrb[0].mxu0 %v2768
  %v2836 = vpop.f32.mrb[0].mxu0
  %v2837 = vadd.f32 0.0, %v2836
  %v2838 = vpop.f32.mrb[0].mxu0
  %2839 = vdwg.mxu0
  %v2842 = vrot.slane %v2413, 7
  %v2843 = vrot.slane %v2414, 6
  %v2844 = vsel %vm505, %v2843, %v2842
  %2845 = vrot.lane.b32.xlu0 %v2844, 96
  %v2846 = vpop.permute.xlu0 %2845
  %v2847 = vsel %vm54, %v2846, 0
  %2849 = vmatprep.subr.mxu0 0.0
  %2850 = vmatpush1.msra.mxu0 %v2593
  %2851 = vmatprep.subr.mxu0 0.0
  %2852 = vmatpush1.msra.mxu0 %v2594
  %2853 = vmatprep.subr.mxu0 0.0
  %2854 = vmatpush1.msra.mxu0 %v2595
  %2855 = vmatprep.subr.mxu0 0.0
  %2856 = vmatpush1.msra.mxu0 %v2596
  %2857 = vmatprep.subr.mxu0 0.0
  %2858 = vmatpush1.msra.mxu0 0.0
  %2859 = vmatprep.subr.mxu0 0.0
  %2860 = vmatpush1.msra.mxu0 0.0
  %2861 = vmatprep.subr.mxu0 0.0
  %2862 = vmatpush1.msra.mxu0 0.0
  %2863 = vmatprep.subr.mxu0 0.0
  %2864 = vmatpush1.msra.mxu0 0.0
  %2865 = vmatprep.subr.mxu0 0.0
  %2866 = vmatpush1.msra.mxu0 0.0
  %2867 = vmatprep.subr.mxu0 0.0
  %2868 = vmatpush1.msra.mxu0 0.0
  %2869 = vmatprep.subr.mxu0 0.0
  %2870 = vmatpush1.msra.mxu0 0.0
  %2871 = vmatprep.subr.mxu0 0.0
  %2872 = vmatpush1.msra.mxu0 0.0
  %2873 = vmatprep.subr.mxu0 0.0
  %2874 = vmatpush1.msra.mxu0 0.0
  %2875 = vmatprep.subr.mxu0 0.0
  %2876 = vmatpush1.msra.mxu0 0.0
  %2877 = vmatprep.subr.mxu0 0.0
  %2878 = vmatpush1.msra.mxu0 0.0
  %2879 = vmatprep.subr.mxu0 0.0
  %2880 = vmatpush1.msra.mxu0 0.0
  %2881 = vmatprep.subr.mxu0 0.0
  %2882 = vmatpush1.msra.mxu0 0.0
  %2883 = vmatprep.subr.mxu0 0.0
  %2884 = vmatpush1.msra.mxu0 0.0
  %2885 = vmatprep.subr.mxu0 0.0
  %2886 = vmatpush1.msra.mxu0 0.0
  %2887 = vmatprep.subr.mxu0 0.0
  %2888 = vmatpush1.msra.mxu0 0.0
  %2889 = vmatprep.subr.mxu0 0.0
  %2890 = vmatpush1.msra.mxu0 0.0
  %2891 = vmatprep.subr.mxu0 0.0
  %2892 = vmatpush1.msra.mxu0 0.0
  %2893 = vmatprep.subr.mxu0 0.0
  %2894 = vmatpush1.msra.mxu0 0.0
  %2895 = vmatprep.subr.mxu0 0.0
  %2896 = vmatpush1.msra.mxu0 0.0
  %2897 = vmatprep.subr.mxu0 0.0
  %2898 = vmatpush1.msra.mxu0 0.0
  %2899 = vmatprep.subr.mxu0 0.0
  %2900 = vmatpush1.msra.mxu0 0.0
  %2901 = vmatprep.subr.mxu0 0.0
  %2902 = vmatpush1.msra.mxu0 0.0
  %2903 = vmatprep.subr.mxu0 0.0
  %2904 = vmatpush1.msra.mxu0 0.0
  %2905 = vmatprep.subr.mxu0 0.0
  %2906 = vmatpush1.msra.mxu0 0.0
  %2907 = vmatprep.subr.mxu0 0.0
  %2908 = vmatpush1.msra.mxu0 0.0
  %2909 = vmatprep.subr.mxu0 0.0
  %2910 = vmatpush1.msra.mxu0 0.0
  %2911 = vmatprep.subr.mxu0 0.0
  %2912 = vmatpush1.msra.mxu0 0.0
  %2913 = vmatprep.mubr.f32.mxu0 0.0
  %2914 = vmatmul.mubr.f32.gmra.mrb[0].mxu0 %v2847
  %v2915 = vpop.f32.mrb[0].mxu0
  %v2916 = vadd.f32 %v2837, %v2915
  %v2917 = vpop.f32.mrb[0].mxu0
  %2918 = vdwg.mxu0
  %v2919 = vld [vmem:[%s10] sm:$0x1]
  %v2921 = vlaneseq
  %v2922 = vshrl.u32 %v2921, 7
  %v2923 = vsub.s32 0, %v2922
  %v2924 = vrot.slane %v2919, %v2923
  %v2926 = vadd.f32 %v2916, %v2924
  %vm2927 = vcmask 517120
  %2928 = vst.msk [vmem:[%s12] sm:$0x3] %vm2927, %v2761
  %2929 = vst.msk [vmem:[%s13] sm:$0x3] %vm2927, %v2926
  // Predicated region
  $region46: #{rnn_autoencoder_forward.2} parent=0 // pred_check
    _
  $region47: #{rnn_autoencoder_forward.2} parent=0 // pred_check_branch
    %2931 = sbr.rel (0) target = $region49
  $region48: #{rnn_autoencoder_forward.2} parent=0 // pred_region
    _
  $region49: #{rnn_autoencoder_forward.2} parent=0 // pred_fallthru
    _
  // Predicated region
  $region50: #{rnn_autoencoder_forward.2} parent=0 // pred_check
    _
  $region51: #{rnn_autoencoder_forward.2} parent=0 // pred_check_branch
    %2933 = sbr.rel (0) target = $region53
  $region52: #{rnn_autoencoder_forward.2} parent=0 // pred_region
    _
  $region53: #{rnn_autoencoder_forward.2} parent=0 // pred_fallthru
    _
  // Predicated region
  $region54: #{rnn_autoencoder_forward.2} parent=0 // pred_check
    _
  $region55: #{rnn_autoencoder_forward.2} parent=0 // pred_check_branch
    %2935 = sbr.rel (0) target = $region57
  $region56: #{rnn_autoencoder_forward.2} parent=0 // pred_region
    _
  $region57: #{rnn_autoencoder_forward.2} parent=0 // pred_fallthru
    _
  // Predicated region
  $region58: #{rnn_autoencoder_forward.2} parent=0 // pred_check
    _
  $region59: #{rnn_autoencoder_forward.2} parent=0 // pred_check_branch
    %2937 = sbr.rel (0) target = $region61
  $region60: #{rnn_autoencoder_forward.2} parent=0 // pred_region
    _
  $region61: #{rnn_autoencoder_forward.2} parent=0 // pred_fallthru
    _
  // Predicated region
  $region62: #{rnn_autoencoder_forward.2} parent=0 // pred_check
    _
  $region63: #{rnn_autoencoder_forward.2} parent=0 // pred_check_branch
    %2939 = sbr.rel (0) target = $region65
  $region64: #{rnn_autoencoder_forward.2} parent=0 // pred_region
    _
  $region65: #{rnn_autoencoder_forward.2} parent=0 // pred_fallthru
    _
  // Predicated region
  $region66: #{rnn_autoencoder_forward.2} parent=0 // pred_check
    _
  $region67: #{rnn_autoencoder_forward.2} parent=0 // pred_check_branch
    %2941 = sbr.rel (0) target = $region69
  $region68: #{rnn_autoencoder_forward.2} parent=0 // pred_region
    _
  $region69: #{rnn_autoencoder_forward.2} parent=0 // pred_fallthru
    _

</llo_original>
